<compile_context>
chip_gen: v5e
topology: v5e:2x2
jax: 0.10.0
libtpu: 0.0.40
codegen_flags: <defaults>
</compile_context>

<pallas_src>
import functools
import math

import jax
import jax.numpy as jnp
from jax import lax
from jax.experimental import pallas as pl
from jax.experimental.pallas import tpu as pltpu


def _pick_tile(m, cap):
    """Largest tile <= cap that evenly divides m (multiple of 32 when tiled).

    Falls back to the full extent (single tile) if no clean divisor exists so
    the (8,128)/(16,128) block-shape constraints are always satisfied.
    """
    if m <= cap:
        return m
    for t in range(cap - cap % 32, 31, -32):
        if m % t == 0:
            return t
    return m


# -----------------------------------------------------------------------------
# kNN negative pairwise squared distances (row-tiled)
# -----------------------------------------------------------------------------
def _knn_dist_kernel(q_ref, x_ref, xx_ref, o_ref):
    # q_ref: (1, TQ, C), x_ref: (1, N, C), xx_ref: (1, 1, N) -> o_ref: (1, TQ, N)
    q = q_ref[0]
    xa = x_ref[0]
    # Contract last axes directly; no explicit transpose before the MXU.
    inner = lax.dot_general(q, xa, (((1,), (1,)), ((), ())),
                            preferred_element_type=jnp.float32)        # (TQ, N)
    qq = jnp.sum(q * q, axis=1, keepdims=True)                         # (TQ, 1)
    o_ref[0] = 2.0 * inner - qq - xx_ref[0]


def knn_neg_dist(x):
    """x: (B, N, C) -> (B, N, N) negative pairwise squared distances."""
    B, N, C = x.shape
    xx = jnp.sum(x * x, axis=-1)[:, None, :]          # (B, 1, N)  tiny, in JAX
    tq = _pick_tile(N, 128)
    return pl.pallas_call(
        _knn_dist_kernel,
        out_shape=jax.ShapeDtypeStruct((B, N, N), jnp.float32),
        grid=(B, N // tq),
        in_specs=[
            pl.BlockSpec((1, tq, C), lambda b, q: (b, q, 0)),
            pl.BlockSpec((1, N, C), lambda b, q: (b, 0, 0)),   # resident over q-tiles
            pl.BlockSpec((1, 1, N), lambda b, q: (b, 0, 0)),
        ],
        out_specs=pl.BlockSpec((1, tq, N), lambda b, q: (b, q, 0)),
        compiler_params=pltpu.CompilerParams(
            dimension_semantics=("parallel", "parallel")),
    )(x, x, xx)


# -----------------------------------------------------------------------------
# Fused EdgeConv block: (conv [-> conv]) -> max over k neighbors
# -----------------------------------------------------------------------------
def _edgeconv_kernel(e_ref, *refs, k):
    # e_ref: (1, k, TN, Cin)  bf16/f32
    # refs : (w, scale, shift) per conv, then the output ref (1, TN, Cout)
    o_ref = refs[-1]
    wsb = refs[:-1]
    n_conv = len(wsb) // 3
    acc = None
    for j in range(k):                                   # static unrolled loop
        h = e_ref[0, j].astype(jnp.float32)              # (TN, Cin)
        for c in range(n_conv):
            w_ref, s_ref, b_ref = wsb[3 * c], wsb[3 * c + 1], wsb[3 * c + 2]
            h = jnp.dot(h, w_ref[...], preferred_element_type=jnp.float32)
            h = h * s_ref[...] + b_ref[...]              # fused BN affine
            h = jnp.where(h > 0, h, 0.2 * h)             # LeakyReLU(0.2)
        acc = h if acc is None else jnp.maximum(acc, h)  # max over neighbors
    o_ref[0] = acc


def edgeconv_block(edge, convs, *, tile_cap=256):
    """edge: (B, k, N, Cin) -> (B, N, Cout).  Fused convs + max-over-k."""
    B, K, N, Cin = edge.shape
    Cout = convs[-1][0].shape[1]
    tn = _pick_tile(N, tile_cap)
    in_specs = [pl.BlockSpec((1, K, tn, Cin), lambda b, n: (b, 0, n, 0))]
    args = [edge]
    for w, s, sh in convs:
        ci, co = w.shape
        in_specs.append(pl.BlockSpec((ci, co), lambda b, n: (0, 0)))
        in_specs.append(pl.BlockSpec((1, co), lambda b, n: (0, 0)))
        in_specs.append(pl.BlockSpec((1, co), lambda b, n: (0, 0)))
        args.extend([w, s, sh])
    return pl.pallas_call(
        functools.partial(_edgeconv_kernel, k=K),
        out_shape=jax.ShapeDtypeStruct((B, N, Cout), jnp.float32),
        grid=(B, N // tn),
        in_specs=in_specs,
        out_specs=pl.BlockSpec((1, tn, Cout), lambda b, n: (b, n, 0)),
        compiler_params=pltpu.CompilerParams(
            dimension_semantics=("parallel", "parallel")),
    )(*args)


# -----------------------------------------------------------------------------
# conv6 + global max pool, split-K over (x1, x2, x3) -- no concat, no (B,N,1024)
# -----------------------------------------------------------------------------
def _conv6_pool_kernel(x1_ref, x2_ref, x3_ref, w1_ref, w2_ref, w3_ref,
                       s_ref, sh_ref, o_ref):
    y = jnp.dot(x1_ref[0], w1_ref[...], preferred_element_type=jnp.float32)
    y = y + jnp.dot(x2_ref[0], w2_ref[...], preferred_element_type=jnp.float32)
    y = y + jnp.dot(x3_ref[0], w3_ref[...], preferred_element_type=jnp.float32)
    y = y * s_ref[...] + sh_ref[...]
    y = jnp.where(y > 0, y, 0.2 * y)                     # (TN, 1024)

    @pl.when(pl.program_id(1) == 0)
    def _():
        o_ref[...] = jnp.full(o_ref.shape, -jnp.inf, jnp.float32)

    o_ref[0] = jnp.maximum(o_ref[0], jnp.max(y, axis=0, keepdims=True))


def conv6_global_max(x1, x2, x3, w, scale, shift, *, tile_cap=512):
    B, N, C = x1.shape
    Cout = w.shape[1]
    tn = _pick_tile(N, tile_cap)
    return pl.pallas_call(
        _conv6_pool_kernel,
        out_shape=jax.ShapeDtypeStruct((B, 1, Cout), jnp.float32),
        grid=(B, N // tn),
        in_specs=[
            pl.BlockSpec((1, tn, C), lambda b, n: (b, n, 0)),
            pl.BlockSpec((1, tn, C), lambda b, n: (b, n, 0)),
            pl.BlockSpec((1, tn, C), lambda b, n: (b, n, 0)),
            pl.BlockSpec((C, Cout), lambda b, n: (0, 0)),
            pl.BlockSpec((C, Cout), lambda b, n: (0, 0)),
            pl.BlockSpec((C, Cout), lambda b, n: (0, 0)),
            pl.BlockSpec((1, Cout), lambda b, n: (0, 0)),
            pl.BlockSpec((1, Cout), lambda b, n: (0, 0)),
        ],
        out_specs=pl.BlockSpec((1, 1, Cout), lambda b, n: (b, 0, 0)),
        compiler_params=pltpu.CompilerParams(
            dimension_semantics=("parallel", "arbitrary")),
    )(x1, x2, x3, w[:C], w[C:2 * C], w[2 * C:], scale, shift)


# -----------------------------------------------------------------------------
# Fused head: conv7 (split-K + per-batch global bias) -> conv8 -> conv9
#             + global max / sum pools carried across N tiles
# -----------------------------------------------------------------------------
def _head_kernel(x1_ref, x2_ref, x3_ref, gb_ref,
                 w7a_ref, w7b_ref, w7c_ref, s7_ref,
                 w8_ref, s8_ref, b8_ref, w9_ref,
                 pf_ref, pfmax_ref, pfsum_ref, lmax_ref, lsum_ref):
    # conv7: split-K over (x1, x2, x3); the global-feature term and BN shift are
    # pre-folded into gb_ref (per batch).
    h = jnp.dot(x1_ref[0], w7a_ref[...], preferred_element_type=jnp.float32)
    h = h + jnp.dot(x2_ref[0], w7b_ref[...], preferred_element_type=jnp.float32)
    h = h + jnp.dot(x3_ref[0], w7c_ref[...], preferred_element_type=jnp.float32)
    h = h * s7_ref[...] + gb_ref[0]
    h = jnp.where(h > 0, h, 0.2 * h)                           # (TN, 512)

    # conv8 + BN + LeakyReLU -> point features
    pf = jnp.dot(h, w8_ref[...], preferred_element_type=jnp.float32)
    pf = pf * s8_ref[...] + b8_ref[...]
    pf = jnp.where(pf > 0, pf, 0.2 * pf)                       # (TN, 256)
    # TODO(synk): Dropout(p=0.5) is eval-mode identity; training RNG mask not replicated.
    pf_ref[0] = pf

    # conv9 (no BN / activation); only its pooled stats are ever needed.
    lg = jnp.dot(pf, w9_ref[...], preferred_element_type=jnp.float32)   # (TN, 40)

    @pl.when(pl.program_id(1) == 0)
    def _():
        pfmax_ref[...] = jnp.full(pfmax_ref.shape, -jnp.inf, jnp.float32)
        pfsum_ref[...] = jnp.zeros(pfsum_ref.shape, jnp.float32)
        lmax_ref[...] = jnp.full(lmax_ref.shape, -jnp.inf, jnp.float32)
        lsum_ref[...] = jnp.zeros(lsum_ref.shape, jnp.float32)

    pfmax_ref[0] = jnp.maximum(pfmax_ref[0], jnp.max(pf, axis=0, keepdims=True))
    pfsum_ref[0] = pfsum_ref[0] + jnp.sum(pf, axis=0, keepdims=True)
    lmax_ref[0] = jnp.maximum(lmax_ref[0], jnp.max(lg, axis=0, keepdims=True))
    lsum_ref[0] = lsum_ref[0] + jnp.sum(lg, axis=0, keepdims=True)


def head_block(x1, x2, x3, gbias, w7_123, s7, w8, s8, b8, w9, *, tile_cap=512):
    B, N, C = x1.shape                  # C = 64
    C7 = w8.shape[0]                    # 512
    C8 = w8.shape[1]                    # 256
    C9 = w9.shape[1]                    # 40
    tn = _pick_tile(N, tile_cap)
    w7a, w7b, w7c = w7_123[:C], w7_123[C:2 * C], w7_123[2 * C:]
    out_shape = (
        jax.ShapeDtypeStruct((B, N, C8), jnp.float32),   # point features
        jax.ShapeDtypeStruct((B, 1, C8), jnp.float32),   # max  pool (pf)
        jax.ShapeDtypeStruct((B, 1, C8), jnp.float32),   # sum  pool (pf)
        jax.ShapeDtypeStruct((B, 1, C9), jnp.float32),   # max  pool (logits)
        jax.ShapeDtypeStruct((B, 1, C9), jnp.float32),   # sum  pool (logits)
    )
    out_specs = (
        pl.BlockSpec((1, tn, C8), lambda b, n: (b, n, 0)),
        pl.BlockSpec((1, 1, C8), lambda b, n: (b, 0, 0)),
        pl.BlockSpec((1, 1, C8), lambda b, n: (b, 0, 0)),
        pl.BlockSpec((1, 1, C9), lambda b, n: (b, 0, 0)),
        pl.BlockSpec((1, 1, C9), lambda b, n: (b, 0, 0)),
    )
    return pl.pallas_call(
        _head_kernel,
        out_shape=out_shape,
        grid=(B, N // tn),
        in_specs=[
            pl.BlockSpec((1, tn, C), lambda b, n: (b, n, 0)),
            pl.BlockSpec((1, tn, C), lambda b, n: (b, n, 0)),
            pl.BlockSpec((1, tn, C), lambda b, n: (b, n, 0)),
            pl.BlockSpec((1, 1, C7), lambda b, n: (b, 0, 0)),
            pl.BlockSpec((C, C7), lambda b, n: (0, 0)),
            pl.BlockSpec((C, C7), lambda b, n: (0, 0)),
            pl.BlockSpec((C, C7), lambda b, n: (0, 0)),
            pl.BlockSpec((1, C7), lambda b, n: (0, 0)),
            pl.BlockSpec((C7, C8), lambda b, n: (0, 0)),
            pl.BlockSpec((1, C8), lambda b, n: (0, 0)),
            pl.BlockSpec((1, C8), lambda b, n: (0, 0)),
            pl.BlockSpec((C8, C9), lambda b, n: (0, 0)),
        ],
        out_specs=out_specs,
        compiler_params=pltpu.CompilerParams(
            dimension_semantics=("parallel", "arbitrary")),
    )(x1, x2, x3, gbias, w7a, w7b, w7c, s7, w8, s8, b8, w9)


# -----------------------------------------------------------------------------
# Tiny final linear (bias=False)
# -----------------------------------------------------------------------------
def _linear_kernel(x_ref, w_ref, o_ref):
    o_ref[...] = jnp.dot(x_ref[...], w_ref[...], preferred_element_type=jnp.float32)


def linear_pallas(x, w):
    B, Cin = x.shape
    Cout = w.shape[1]
    return pl.pallas_call(
        _linear_kernel,
        out_shape=jax.ShapeDtypeStruct((B, Cout), jnp.float32),
        grid=(1,),
        in_specs=[pl.BlockSpec((B, Cin), lambda i: (0, 0)),
                  pl.BlockSpec((Cin, Cout), lambda i: (0, 0))],
        out_specs=pl.BlockSpec((B, Cout), lambda i: (0, 0)),
    )(x, w)


# -----------------------------------------------------------------------------
# Graph feature construction (top-k + gather kept in JAX glue)
# -----------------------------------------------------------------------------
def get_graph_feature(x_bnc, k, store_dtype=jnp.bfloat16):
    """x_bnc: (B, N, C) -> edge features (B, k, N, 2C) = cat(nbr - center, center)."""
    # TODO(synk): fuse the top-k index selection + neighbor gather into the
    # EdgeConv kernel (scalar-prefetched idx / in-kernel gather) so this tensor
    # never touches HBM; no clean Pallas TPU top-k today.
    B, N, C = x_bnc.shape
    neg_dist = knn_neg_dist(x_bnc)                          # (B, N, N)   Pallas
    idx = jax.lax.top_k(neg_dist, k)[1]                     # (B, N, k)
    idx = jnp.transpose(idx, (0, 2, 1))                     # (B, k, N)   tiny
    nbrs = jax.vmap(lambda xb, ib: xb[ib])(x_bnc, idx)      # (B, k, N, C)
    center = jnp.broadcast_to(x_bnc[:, None], (B, k, N, C))
    feat = jnp.concatenate([nbrs - center, center], axis=-1)   # (B, k, N, 2C)
    return feat.astype(store_dtype)


# -----------------------------------------------------------------------------
# Deterministic parameter initialization (mirrors module shapes)
# -----------------------------------------------------------------------------
def init_params(key):
    conv_dims = [
        ("conv1", 6, 64), ("conv2", 64, 64), ("conv3", 128, 64),
        ("conv4", 64, 64), ("conv5", 128, 64), ("conv6", 192, 1024),
        ("conv7", 1216, 512), ("conv8", 512, 256), ("conv9", 256, 40),
    ]
    params = {}
    keys = jax.random.split(key, 3 * len(conv_dims) + 1)
    eps = 1e-5
    ki = 0
    for name, cin, cout in conv_dims:
        params[name + "_w"] = (
            jax.random.normal(keys[ki], (cin, cout), jnp.float32) / math.sqrt(cin))
        ki += 1
        if name != "conv9":                       # conv9 has no BN
            gamma = 1.0 + 0.1 * jax.random.normal(keys[ki], (1, cout), jnp.float32)
            ki += 1
            beta = 0.1 * jax.random.normal(keys[ki], (1, cout), jnp.float32)
            ki += 1
            # eval-mode BN with running_mean=0, running_var=1
            # TODO(synk): training-mode BatchNorm (batch statistics) not replicated.
            params[name + "_scale"] = gamma / jnp.sqrt(1.0 + eps)
            params[name + "_shift"] = beta
    params["linear1_w"] = (
        jax.random.normal(keys[-1], (80, 40), jnp.float32) / math.sqrt(80.0))
    return params


# -----------------------------------------------------------------------------
# Full forward pass
# -----------------------------------------------------------------------------
def dgcnn_seg_forward(x_ncw, params, k=20):
    """x_ncw: (B, 3, N) like the PyTorch module.  Returns (logits, obj_emb, point_features)."""
    B, _, N = x_ncw.shape
    k = min(k, N)                                             # clamp (module default k=20)
    x = jnp.transpose(x_ncw, (0, 2, 1)).astype(jnp.float32)   # (B, N, 3)

    def cp(name):
        return (params[name + "_w"], params[name + "_scale"], params[name + "_shift"])

    # EdgeConv block 1: graph feature -> conv1 -> conv2 -> max over k (fused)
    e = get_graph_feature(x, k)                                # (B, k, N, 6) bf16
    x1 = edgeconv_block(e, [cp("conv1"), cp("conv2")])         # (B, N, 64)

    # EdgeConv block 2
    e = get_graph_feature(x1, k)                               # (B, k, N, 128) bf16
    x2 = edgeconv_block(e, [cp("conv3"), cp("conv4")])         # (B, N, 64)

    # EdgeConv block 3
    e = get_graph_feature(x2, k)                               # (B, k, N, 128) bf16
    x3 = edgeconv_block(e, [cp("conv5")])                      # (B, N, 64)

    # conv6 + global max pool, split-K over (x1, x2, x3)
    g = conv6_global_max(x1, x2, x3, params["conv6_w"],
                         params["conv6_scale"], params["conv6_shift"])  # (B, 1, 1024)

    # Fold the global-feature contribution of conv7 into a per-batch bias:
    #   bias_b = scale7 * (g_b @ W7[:1024]) + shift7          (tiny, done in JAX)
    w7 = params["conv7_w"]
    gbias = (params["conv7_scale"] * jnp.matmul(g[:, 0, :], w7[:1024])
             + params["conv7_shift"])[:, None, :]              # (B, 1, 512)

    # Fused head: conv7 (split-K) -> conv8 -> conv9 + global max/sum pools
    pf, pf_max, pf_sum, l_max, l_sum = head_block(
        x1, x2, x3, gbias, w7[1024:], params["conv7_scale"],
        params["conv8_w"], params["conv8_scale"], params["conv8_shift"],
        params["conv9_w"])

    inv_n = 1.0 / N
    obj_emb = jnp.concatenate([pf_max[:, 0], pf_sum[:, 0] * inv_n], axis=-1)   # (B, 512)
    xcat = jnp.concatenate([l_max[:, 0], l_sum[:, 0] * inv_n], axis=-1)        # (B, 80)
    logits = linear_pallas(xcat, params["linear1_w"])                          # (B, 40)
    return logits, obj_emb, pf


# -----------------------------------------------------------------------------
if __name__ == "__main__":
    key = jax.random.PRNGKey(0)
    pkey, xkey = jax.random.split(key)

    B, C, N = 2, 3, 16   # small point cloud: 2 clouds, 3 coords, 16 points
    K = 4                # module default k=20 > N here, so use k=4 for the test
    x = jax.random.normal(xkey, (B, C, N), jnp.float32)

    params = init_params(pkey)

    fwd = jax.jit(functools.partial(dgcnn_seg_forward, k=K))
    logits, obj_emb, point_features = fwd(x, params)
    jax.block_until_ready((logits, obj_emb, point_features))

    assert logits.shape == (B, 40)
    assert obj_emb.shape == (B, 512)
    assert point_features.shape == (B, N, 256)
    print("KERNEL_OK")
</pallas_src>

<mosaic_0001>
module attributes {stable_mosaic.version = 11 : i64} {
  func.func @_knn_dist_kernel(%arg0: i32, %arg1: i32, %arg2: memref<1x16x3xf32, #tpu.memory_space<vmem>>, %arg3: memref<1x16x3xf32, #tpu.memory_space<vmem>>, %arg4: memref<1x1x16xf32, #tpu.memory_space<vmem>>, %arg5: memref<1x16x16xf32, #tpu.memory_space<vmem>>) attributes {dimension_semantics = [#tpu.dimension_semantics<parallel>, #tpu.dimension_semantics<parallel>], iteration_bounds = array<i64: 2, 1>, scalar_prefetch = 0 : i64, scratch_operands = 0 : i64, tpu.core_type = #tpu.core_type<tc>, window_params = [{transform_indices = @transform_0, window_bounds = array<i64: 1, 16, 3>}, {transform_indices = @transform_1, window_bounds = array<i64: 1, 16, 3>}, {transform_indices = @transform_2, window_bounds = array<i64: 1, 1, 16>}, {transform_indices = @transform_3, window_bounds = array<i64: 1, 16, 16>}]} {
    %c0 = arith.constant 0 : index
    %c0_0 = arith.constant 0 : index
    %c0_1 = arith.constant 0 : index
    %0 = vector.load %arg2[%c0, %c0_0, %c0_1] : memref<1x16x3xf32, #tpu.memory_space<vmem>>, vector<1x16x3xf32>
    %1 = vector.shape_cast %0 : vector<1x16x3xf32> to vector<16x3xf32>
    %c0_2 = arith.constant 0 : index
    %c0_3 = arith.constant 0 : index
    %c0_4 = arith.constant 0 : index
    %2 = vector.load %arg3[%c0_2, %c0_3, %c0_4] : memref<1x16x3xf32, #tpu.memory_space<vmem>>, vector<1x16x3xf32>
    %3 = vector.shape_cast %2 : vector<1x16x3xf32> to vector<16x3xf32>
    %cst = arith.constant dense<0.000000e+00> : vector<16x16xf32>
    %4 = tpu.matmul %1, %3, %cst {dimension_numbers = #tpu.dot_dimension_numbers<[1], [1], [0], [0], [0, 0, 1, 0], [], []>} : vector<16x3xf32>, vector<16x3xf32>, vector<16x16xf32> -> vector<16x16xf32>
    %5 = arith.mulf %1, %1 : vector<16x3xf32>
    %cst_5 = arith.constant dense<0.000000e+00> : vector<16xf32>
    %6 = vector.multi_reduction <add>, %5, %cst_5 [1] : vector<16x3xf32> to vector<16xf32>
    %7 = vector.shape_cast %6 : vector<16xf32> to vector<16x1xf32>
    %cst_6 = arith.constant 2.000000e+00 : f32
    %8 = vector.broadcast %cst_6 : f32 to vector<16x16xf32>
    %9 = arith.mulf %8, %4 : vector<16x16xf32>
    %10 = vector.broadcast %7 : vector<16x1xf32> to vector<16x16xf32>
    %11 = arith.subf %9, %10 : vector<16x16xf32>
    %c0_7 = arith.constant 0 : index
    %c0_8 = arith.constant 0 : index
    %c0_9 = arith.constant 0 : index
    %12 = vector.load %arg4[%c0_7, %c0_8, %c0_9] : memref<1x1x16xf32, #tpu.memory_space<vmem>>, vector<1x1x16xf32>
    %13 = vector.shape_cast %12 : vector<1x1x16xf32> to vector<1x16xf32>
    %14 = vector.broadcast %13 : vector<1x16xf32> to vector<16x16xf32>
    %15 = arith.subf %11, %14 : vector<16x16xf32>
    %c0_10 = arith.constant 0 : index
    %c0_11 = arith.constant 0 : index
    %c0_12 = arith.constant 0 : index
    %16 = vector.load %arg5[%c0_10, %c0_11, %c0_12] : memref<1x16x16xf32, #tpu.memory_space<vmem>>, vector<1x16x16xf32>
    %17 = vector.shape_cast %16 : vector<1x16x16xf32> to vector<16x16xf32>
    %18 = vector.shape_cast %15 : vector<16x16xf32> to vector<1x16x16xf32>
    tpu.vector_store %arg5[%c0_10, %c0_11, %c0_12], %18 {strides = array<i32>} : memref<1x16x16xf32, #tpu.memory_space<vmem>>, vector<1x16x16xf32>,
    return
  }
  func.func @transform_0(%arg0: i32, %arg1: i32) -> (i32, i32, i32) {
    %c0_i32 = arith.constant 0 : i32
    %c0_i32_0 = arith.constant 0 : i32
    return %arg0, %arg1, %c0_i32 : i32, i32, i32
  }
  func.func @transform_1(%arg0: i32, %arg1: i32) -> (i32, i32, i32) {
    %c0_i32 = arith.constant 0 : i32
    %c0_i32_0 = arith.constant 0 : i32
    %c0_i32_1 = arith.constant 0 : i32
    return %arg0, %c0_i32, %c0_i32_0 : i32, i32, i32
  }
  func.func @transform_2(%arg0: i32, %arg1: i32) -> (i32, i32, i32) {
    %c0_i32 = arith.constant 0 : i32
    %c0_i32_0 = arith.constant 0 : i32
    %c0_i32_1 = arith.constant 0 : i32
    return %arg0, %c0_i32, %c0_i32_0 : i32, i32, i32
  }
  func.func @transform_3(%arg0: i32, %arg1: i32) -> (i32, i32, i32) {
    %c0_i32 = arith.constant 0 : i32
    %c0_i32_0 = arith.constant 0 : i32
    return %arg0, %arg1, %c0_i32 : i32, i32, i32
  }
}

module attributes {stable_mosaic.version = 11 : i64} {
  func.func @_knn_dist_kernel(%arg0: i32, %arg1: i32, %arg2: memref<1x16x64xf32, #tpu.memory_space<vmem>>, %arg3: memref<1x16x64xf32, #tpu.memory_space<vmem>>, %arg4: memref<1x1x16xf32, #tpu.memory_space<vmem>>, %arg5: memref<1x16x16xf32, #tpu.memory_space<vmem>>) attributes {dimension_semantics = [#tpu.dimension_semantics<parallel>, #tpu.dimension_semantics<parallel>], iteration_bounds = array<i64: 2, 1>, scalar_prefetch = 0 : i64, scratch_operands = 0 : i64, tpu.core_type = #tpu.core_type<tc>, window_params = [{transform_indices = @transform_0, window_bounds = array<i64: 1, 16, 64>}, {transform_indices = @transform_1, window_bounds = array<i64: 1, 16, 64>}, {transform_indices = @transform_2, window_bounds = array<i64: 1, 1, 16>}, {transform_indices = @transform_3, window_bounds = array<i64: 1, 16, 16>}]} {
    %c0 = arith.constant 0 : index
    %c0_0 = arith.constant 0 : index
    %c0_1 = arith.constant 0 : index
    %0 = vector.load %arg2[%c0, %c0_0, %c0_1] : memref<1x16x64xf32, #tpu.memory_space<vmem>>, vector<1x16x64xf32>
    %1 = vector.shape_cast %0 : vector<1x16x64xf32> to vector<16x64xf32>
    %c0_2 = arith.constant 0 : index
    %c0_3 = arith.constant 0 : index
    %c0_4 = arith.constant 0 : index
    %2 = vector.load %arg3[%c0_2, %c0_3, %c0_4] : memref<1x16x64xf32, #tpu.memory_space<vmem>>, vector<1x16x64xf32>
    %3 = vector.shape_cast %2 : vector<1x16x64xf32> to vector<16x64xf32>
    %cst = arith.constant dense<0.000000e+00> : vector<16x16xf32>
    %4 = tpu.matmul %1, %3, %cst {dimension_numbers = #tpu.dot_dimension_numbers<[1], [1], [0], [0], [0, 0, 1, 0], [], []>} : vector<16x64xf32>, vector<16x64xf32>, vector<16x16xf32> -> vector<16x16xf32>
    %5 = arith.mulf %1, %1 : vector<16x64xf32>
    %cst_5 = arith.constant dense<0.000000e+00> : vector<16xf32>
    %6 = vector.multi_reduction <add>, %5, %cst_5 [1] : vector<16x64xf32> to vector<16xf32>
    %7 = vector.shape_cast %6 : vector<16xf32> to vector<16x1xf32>
    %cst_6 = arith.constant 2.000000e+00 : f32
    %8 = vector.broadcast %cst_6 : f32 to vector<16x16xf32>
    %9 = arith.mulf %8, %4 : vector<16x16xf32>
    %10 = vector.broadcast %7 : vector<16x1xf32> to vector<16x16xf32>
    %11 = arith.subf %9, %10 : vector<16x16xf32>
    %c0_7 = arith.constant 0 : index
    %c0_8 = arith.constant 0 : index
    %c0_9 = arith.constant 0 : index
    %12 = vector.load %arg4[%c0_7, %c0_8, %c0_9] : memref<1x1x16xf32, #tpu.memory_space<vmem>>, vector<1x1x16xf32>
    %13 = vector.shape_cast %12 : vector<1x1x16xf32> to vector<1x16xf32>
    %14 = vector.broadcast %13 : vector<1x16xf32> to vector<16x16xf32>
    %15 = arith.subf %11, %14 : vector<16x16xf32>
    %c0_10 = arith.constant 0 : index
    %c0_11 = arith.constant 0 : index
    %c0_12 = arith.constant 0 : index
    %16 = vector.load %arg5[%c0_10, %c0_11, %c0_12] : memref<1x16x16xf32, #tpu.memory_space<vmem>>, vector<1x16x16xf32>
    %17 = vector.shape_cast %16 : vector<1x16x16xf32> to vector<16x16xf32>
    %18 = vector.shape_cast %15 : vector<16x16xf32> to vector<1x16x16xf32>
    tpu.vector_store %arg5[%c0_10, %c0_11, %c0_12], %18 {strides = array<i32>} : memref<1x16x16xf32, #tpu.memory_space<vmem>>, vector<1x16x16xf32>,
    return
  }
  func.func @transform_0(%arg0: i32, %arg1: i32) -> (i32, i32, i32) {
    %c0_i32 = arith.constant 0 : i32
    %c0_i32_0 = arith.constant 0 : i32
    return %arg0, %arg1, %c0_i32 : i32, i32, i32
  }
  func.func @transform_1(%arg0: i32, %arg1: i32) -> (i32, i32, i32) {
    %c0_i32 = arith.constant 0 : i32
    %c0_i32_0 = arith.constant 0 : i32
    %c0_i32_1 = arith.constant 0 : i32
    return %arg0, %c0_i32, %c0_i32_0 : i32, i32, i32
  }
  func.func @transform_2(%arg0: i32, %arg1: i32) -> (i32, i32, i32) {
    %c0_i32 = arith.constant 0 : i32
    %c0_i32_0 = arith.constant 0 : i32
    %c0_i32_1 = arith.constant 0 : i32
    return %arg0, %c0_i32, %c0_i32_0 : i32, i32, i32
  }
  func.func @transform_3(%arg0: i32, %arg1: i32) -> (i32, i32, i32) {
    %c0_i32 = arith.constant 0 : i32
    %c0_i32_0 = arith.constant 0 : i32
    return %arg0, %arg1, %c0_i32 : i32, i32, i32
  }
}

module attributes {stable_mosaic.version = 11 : i64} {
  func.func @_edgeconv_kernel(%arg0: i32, %arg1: i32, %arg2: memref<1x4x16x6xbf16, #tpu.memory_space<vmem>>, %arg3: memref<6x64xf32, #tpu.memory_space<vmem>>, %arg4: memref<1x64xf32, #tpu.memory_space<vmem>>, %arg5: memref<1x64xf32, #tpu.memory_space<vmem>>, %arg6: memref<64x64xf32, #tpu.memory_space<vmem>>, %arg7: memref<1x64xf32, #tpu.memory_space<vmem>>, %arg8: memref<1x64xf32, #tpu.memory_space<vmem>>, %arg9: memref<1x16x64xf32, #tpu.memory_space<vmem>>) attributes {dimension_semantics = [#tpu.dimension_semantics<parallel>, #tpu.dimension_semantics<parallel>], iteration_bounds = array<i64: 2, 1>, scalar_prefetch = 0 : i64, scratch_operands = 0 : i64, tpu.core_type = #tpu.core_type<tc>, window_params = [{transform_indices = @transform_0, window_bounds = array<i64: 1, 4, 16, 6>}, {pipeline_mode = #tpu.pipeline_mode<synchronous>, transform_indices = @transform_1, window_bounds = array<i64: 6, 64>}, {pipeline_mode = #tpu.pipeline_mode<synchronous>, transform_indices = @transform_2, window_bounds = array<i64: 1, 64>}, {pipeline_mode = #tpu.pipeline_mode<synchronous>, transform_indices = @transform_3, window_bounds = array<i64: 1, 64>}, {pipeline_mode = #tpu.pipeline_mode<synchronous>, transform_indices = @transform_4, window_bounds = array<i64: 64, 64>}, {pipeline_mode = #tpu.pipeline_mode<synchronous>, transform_indices = @transform_5, window_bounds = array<i64: 1, 64>}, {pipeline_mode = #tpu.pipeline_mode<synchronous>, transform_indices = @transform_6, window_bounds = array<i64: 1, 64>}, {transform_indices = @transform_7, window_bounds = array<i64: 1, 16, 64>}]} {
    %c0 = arith.constant 0 : index
    %c0_0 = arith.constant 0 : index
    %c0_1 = arith.constant 0 : index
    %c0_2 = arith.constant 0 : index
    %0 = vector.load %arg2[%c0, %c0_0, %c0_1, %c0_2] : memref<1x4x16x6xbf16, #tpu.memory_space<vmem>>, vector<1x1x16x6xbf16>
    %1 = vector.shape_cast %0 : vector<1x1x16x6xbf16> to vector<16x6xbf16>
    %2 = arith.extf %1 : vector<16x6xbf16> to vector<16x6xf32>
    %c0_3 = arith.constant 0 : index
    %c0_4 = arith.constant 0 : index
    %3 = vector.load %arg3[%c0_3, %c0_4] : memref<6x64xf32, #tpu.memory_space<vmem>>, vector<6x64xf32>
    %cst = arith.constant dense<0.000000e+00> : vector<16x64xf32>
    %4 = tpu.matmul %2, %3, %cst {dimension_numbers = #tpu.dot_dimension_numbers<[1], [0], [0], [1], [0, 0, 1, 1], [], []>} : vector<16x6xf32>, vector<6x64xf32>, vector<16x64xf32> -> vector<16x64xf32>
    %c0_5 = arith.constant 0 : index
    %c0_6 = arith.constant 0 : index
    %5 = vector.load %arg4[%c0_5, %c0_6] : memref<1x64xf32, #tpu.memory_space<vmem>>, vector<1x64xf32>
    %6 = vector.broadcast %5 : vector<1x64xf32> to vector<16x64xf32>
    %7 = arith.mulf %4, %6 : vector<16x64xf32>
    %c0_7 = arith.constant 0 : index
    %c0_8 = arith.constant 0 : index
    %8 = vector.load %arg5[%c0_7, %c0_8] : memref<1x64xf32, #tpu.memory_space<vmem>>, vector<1x64xf32>
    %9 = vector.broadcast %8 : vector<1x64xf32> to vector<16x64xf32>
    %10 = arith.addf %7, %9 : vector<16x64xf32>
    %cst_9 = arith.constant 0.000000e+00 : f32
    %11 = vector.broadcast %cst_9 : f32 to vector<16x64xf32>
    %12 = arith.cmpf ogt, %10, %11 : vector<16x64xf32>
    %cst_10 = arith.constant 2.000000e-01 : f32
    %13 = vector.broadcast %cst_10 : f32 to vector<16x64xf32>
    %14 = arith.mulf %13, %10 : vector<16x64xf32>
    %15 = arith.select %12, %10, %14 : vector<16x64xi1>, vector<16x64xf32>
    %c0_11 = arith.constant 0 : index
    %c0_12 = arith.constant 0 : index
    %16 = vector.load %arg6[%c0_11, %c0_12] : memref<64x64xf32, #tpu.memory_space<vmem>>, vector<64x64xf32>
    %cst_13 = arith.constant dense<0.000000e+00> : vector<16x64xf32>
    %17 = tpu.matmul %15, %16, %cst_13 {dimension_numbers = #tpu.dot_dimension_numbers<[1], [0], [0], [1], [0, 0, 1, 1], [], []>} : vector<16x64xf32>, vector<64x64xf32>, vector<16x64xf32> -> vector<16x64xf32>
    %c0_14 = arith.constant 0 : index
    %c0_15 = arith.constant 0 : index
    %18 = vector.load %arg7[%c0_14, %c0_15] : memref<1x64xf32, #tpu.memory_space<vmem>>, vector<1x64xf32>
    %19 = vector.broadcast %18 : vector<1x64xf32> to vector<16x64xf32>
    %20 = arith.mulf %17, %19 : vector<16x64xf32>
    %c0_16 = arith.constant 0 : index
    %c0_17 = arith.constant 0 : index
    %21 = vector.load %arg8[%c0_16, %c0_17] : memref<1x64xf32, #tpu.memory_space<vmem>>, vector<1x64xf32>
    %22 = vector.broadcast %21 : vector<1x64xf32> to vector<16x64xf32>
    %23 = arith.addf %20, %22 : vector<16x64xf32>
    %cst_18 = arith.constant 0.000000e+00 : f32
    %24 = vector.broadcast %cst_18 : f32 to vector<16x64xf32>
    %25 = arith.cmpf ogt, %23, %24 : vector<16x64xf32>
    %cst_19 = arith.constant 2.000000e-01 : f32
    %26 = vector.broadcast %cst_19 : f32 to vector<16x64xf32>
    %27 = arith.mulf %26, %23 : vector<16x64xf32>
    %28 = arith.select %25, %23, %27 : vector<16x64xi1>, vector<16x64xf32>
    %c0_20 = arith.constant 0 : index
    %c1 = arith.constant 1 : index
    %c0_21 = arith.constant 0 : index
    %c0_22 = arith.constant 0 : index
    %29 = vector.load %arg2[%c0_20, %c1, %c0_21, %c0_22] : memref<1x4x16x6xbf16, #tpu.memory_space<vmem>>, vector<1x1x16x6xbf16>
    %30 = vector.shape_cast %29 : vector<1x1x16x6xbf16> to vector<16x6xbf16>
    %31 = arith.extf %30 : vector<16x6xbf16> to vector<16x6xf32>
    %c0_23 = arith.constant 0 : index
    %c0_24 = arith.constant 0 : index
    %32 = vector.load %arg3[%c0_23, %c0_24] : memref<6x64xf32, #tpu.memory_space<vmem>>, vector<6x64xf32>
    %cst_25 = arith.constant dense<0.000000e+00> : vector<16x64xf32>
    %33 = tpu.matmul %31, %32, %cst_25 {dimension_numbers = #tpu.dot_dimension_numbers<[1], [0], [0], [1], [0, 0, 1, 1], [], []>} : vector<16x6xf32>, vector<6x64xf32>, vector<16x64xf32> -> vector<16x64xf32>
    %c0_26 = arith.constant 0 : index
    %c0_27 = arith.constant 0 : index
    %34 = vector.load %arg4[%c0_26, %c0_27] : memref<1x64xf32, #tpu.memory_space<vmem>>, vector<1x64xf32>
    %35 = vector.broadcast %34 : vector<1x64xf32> to vector<16x64xf32>
    %36 = arith.mulf %33, %35 : vector<16x64xf32>
    %c0_28 = arith.constant 0 : index
    %c0_29 = arith.constant 0 : index
    %37 = vector.load %arg5[%c0_28, %c0_29] : memref<1x64xf32, #tpu.memory_space<vmem>>, vector<1x64xf32>
    %38 = vector.broadcast %37 : vector<1x64xf32> to vector<16x64xf32>
    %39 = arith.addf %36, %38 : vector<16x64xf32>
    %cst_30 = arith.constant 0.000000e+00 : f32
    %40 = vector.broadcast %cst_30 : f32 to vector<16x64xf32>
    %41 = arith.cmpf ogt, %39, %40 : vector<16x64xf32>
    %cst_31 = arith.constant 2.000000e-01 : f32
    %42 = vector.broadcast %cst_31 : f32 to vector<16x64xf32>
    %43 = arith.mulf %42, %39 : vector<16x64xf32>
    %44 = arith.select %41, %39, %43 : vector<16x64xi1>, vector<16x64xf32>
    %c0_32 = arith.constant 0 : index
    %c0_33 = arith.constant 0 : index
    %45 = vector.load %arg6[%c0_32, %c0_33] : memref<64x64xf32, #tpu.memory_space<vmem>>, vector<64x64xf32>
    %cst_34 = arith.constant dense<0.000000e+00> : vector<16x64xf32>
    %46 = tpu.matmul %44, %45, %cst_34 {dimension_numbers = #tpu.dot_dimension_numbers<[1], [0], [0], [1], [0, 0, 1, 1], [], []>} : vector<16x64xf32>, vector<64x64xf32>, vector<16x64xf32> -> vector<16x64xf32>
    %c0_35 = arith.constant 0 : index
    %c0_36 = arith.constant 0 : index
    %47 = vector.load %arg7[%c0_35, %c0_36] : memref<1x64xf32, #tpu.memory_space<vmem>>, vector<1x64xf32>
    %48 = vector.broadcast %47 : vector<1x64xf32> to vector<16x64xf32>
    %49 = arith.mulf %46, %48 : vector<16x64xf32>
    %c0_37 = arith.constant 0 : index
    %c0_38 = arith.constant 0 : index
    %50 = vector.load %arg8[%c0_37, %c0_38] : memref<1x64xf32, #tpu.memory_space<vmem>>, vector<1x64xf32>
    %51 = vector.broadcast %50 : vector<1x64xf32> to vector<16x64xf32>
    %52 = arith.addf %49, %51 : vector<16x64xf32>
    %cst_39 = arith.constant 0.000000e+00 : f32
    %53 = vector.broadcast %cst_39 : f32 to vector<16x64xf32>
    %54 = arith.cmpf ogt, %52, %53 : vector<16x64xf32>
    %cst_40 = arith.constant 2.000000e-01 : f32
    %55 = vector.broadcast %cst_40 : f32 to vector<16x64xf32>
    %56 = arith.mulf %55, %52 : vector<16x64xf32>
    %57 = arith.select %54, %52, %56 : vector<16x64xi1>, vector<16x64xf32>
    %58 = arith.maximumf %28, %57 : vector<16x64xf32>
    %c0_41 = arith.constant 0 : index
    %c2 = arith.constant 2 : index
    %c0_42 = arith.constant 0 : index
    %c0_43 = arith.constant 0 : index
    %59 = vector.load %arg2[%c0_41, %c2, %c0_42, %c0_43] : memref<1x4x16x6xbf16, #tpu.memory_space<vmem>>, vector<1x1x16x6xbf16>
    %60 = vector.shape_cast %59 : vector<1x1x16x6xbf16> to vector<16x6xbf16>
    %61 = arith.extf %60 : vector<16x6xbf16> to vector<16x6xf32>
    %c0_44 = arith.constant 0 : index
    %c0_45 = arith.constant 0 : index
    %62 = vector.load %arg3[%c0_44, %c0_45] : memref<6x64xf32, #tpu.memory_space<vmem>>, vector<6x64xf32>
    %cst_46 = arith.constant dense<0.000000e+00> : vector<16x64xf32>
    %63 = tpu.matmul %61, %62, %cst_46 {dimension_numbers = #tpu.dot_dimension_numbers<[1], [0], [0], [1], [0, 0, 1, 1], [], []>} : vector<16x6xf32>, vector<6x64xf32>, vector<16x64xf32> -> vector<16x64xf32>
    %c0_47 = arith.constant 0 : index
    %c0_48 = arith.constant 0 : index
    %64 = vector.load %arg4[%c0_47, %c0_48] : memref<1x64xf32, #tpu.memory_space<vmem>>, vector<1x64xf32>
    %65 = vector.broadcast %64 : vector<1x64xf32> to vector<16x64xf32>
    %66 = arith.mulf %63, %65 : vector<16x64xf32>
    %c0_49 = arith.constant 0 : index
    %c0_50 = arith.constant 0 : index
    %67 = vector.load %arg5[%c0_49, %c0_50] : memref<1x64xf32, #tpu.memory_space<vmem>>, vector<1x64xf32>
    %68 = vector.broadcast %67 : vector<1x64xf32> to vector<16x64xf32>
    %69 = arith.addf %66, %68 : vector<16x64xf32>
    %cst_51 = arith.constant 0.000000e+00 : f32
    %70 = vector.broadcast %cst_51 : f32 to vector<16x64xf32>
    %71 = arith.cmpf ogt, %69, %70 : vector<16x64xf32>
    %cst_52 = arith.constant 2.000000e-01 : f32
    %72 = vector.broadcast %cst_52 : f32 to vector<16x64xf32>
    %73 = arith.mulf %72, %69 : vector<16x64xf32>
    %74 = arith.select %71, %69, %73 : vector<16x64xi1>, vector<16x64xf32>
    %c0_53 = arith.constant 0 : index
    %c0_54 = arith.constant 0 : index
    %75 = vector.load %arg6[%c0_53, %c0_54] : memref<64x64xf32, #tpu.memory_space<vmem>>, vector<64x64xf32>
    %cst_55 = arith.constant dense<0.000000e+00> : vector<16x64xf32>
    %76 = tpu.matmul %74, %75, %cst_55 {dimension_numbers = #tpu.dot_dimension_numbers<[1], [0], [0], [1], [0, 0, 1, 1], [], []>} : vector<16x64xf32>, vector<64x64xf32>, vector<16x64xf32> -> vector<16x64xf32>
    %c0_56 = arith.constant 0 : index
    %c0_57 = arith.constant 0 : index
    %77 = vector.load %arg7[%c0_56, %c0_57] : memref<1x64xf32, #tpu.memory_space<vmem>>, vector<1x64xf32>
    %78 = vector.broadcast %77 : vector<1x64xf32> to vector<16x64xf32>
    %79 = arith.mulf %76, %78 : vector<16x64xf32>
    %c0_58 = arith.constant 0 : index
    %c0_59 = arith.constant 0 : index
    %80 = vector.load %arg8[%c0_58, %c0_59] : memref<1x64xf32, #tpu.memory_space<vmem>>, vector<1x64xf32>
    %81 = vector.broadcast %80 : vector<1x64xf32> to vector<16x64xf32>
    %82 = arith.addf %79, %81 : vector<16x64xf32>
    %cst_60 = arith.constant 0.000000e+00 : f32
    %83 = vector.broadcast %cst_60 : f32 to vector<16x64xf32>
    %84 = arith.cmpf ogt, %82, %83 : vector<16x64xf32>
    %cst_61 = arith.constant 2.000000e-01 : f32
    %85 = vector.broadcast %cst_61 : f32 to vector<16x64xf32>
    %86 = arith.mulf %85, %82 : vector<16x64xf32>
    %87 = arith.select %84, %82, %86 : vector<16x64xi1>, vector<16x64xf32>
    %88 = arith.maximumf %58, %87 : vector<16x64xf32>
    %c0_62 = arith.constant 0 : index
    %c3 = arith.constant 3 : index
    %c0_63 = arith.constant 0 : index
    %c0_64 = arith.constant 0 : index
    %89 = vector.load %arg2[%c0_62, %c3, %c0_63, %c0_64] : memref<1x4x16x6xbf16, #tpu.memory_space<vmem>>, vector<1x1x16x6xbf16>
    %90 = vector.shape_cast %89 : vector<1x1x16x6xbf16> to vector<16x6xbf16>
    %91 = arith.extf %90 : vector<16x6xbf16> to vector<16x6xf32>
    %c0_65 = arith.constant 0 : index
    %c0_66 = arith.constant 0 : index
    %92 = vector.load %arg3[%c0_65, %c0_66] : memref<6x64xf32, #tpu.memory_space<vmem>>, vector<6x64xf32>
    %cst_67 = arith.constant dense<0.000000e+00> : vector<16x64xf32>
    %93 = tpu.matmul %91, %92, %cst_67 {dimension_numbers = #tpu.dot_dimension_numbers<[1], [0], [0], [1], [0, 0, 1, 1], [], []>} : vector<16x6xf32>, vector<6x64xf32>, vector<16x64xf32> -> vector<16x64xf32>
    %c0_68 = arith.constant 0 : index
    %c0_69 = arith.constant 0 : index
    %94 = vector.load %arg4[%c0_68, %c0_69] : memref<1x64xf32, #tpu.memory_space<vmem>>, vector<1x64xf32>
    %95 = vector.broadcast %94 : vector<1x64xf32> to vector<16x64xf32>
    %96 = arith.mulf %93, %95 : vector<16x64xf32>
    %c0_70 = arith.constant 0 : index
    %c0_71 = arith.constant 0 : index
    %97 = vector.load %arg5[%c0_70, %c0_71] : memref<1x64xf32, #tpu.memory_space<vmem>>, vector<1x64xf32>
    %98 = vector.broadcast %97 : vector<1x64xf32> to vector<16x64xf32>
    %99 = arith.addf %96, %98 : vector<16x64xf32>
    %cst_72 = arith.constant 0.000000e+00 : f32
    %100 = vector.broadcast %cst_72 : f32 to vector<16x64xf32>
    %101 = arith.cmpf ogt, %99, %100 : vector<16x64xf32>
    %cst_73 = arith.constant 2.000000e-01 : f32
    %102 = vector.broadcast %cst_73 : f32 to vector<16x64xf32>
    %103 = arith.mulf %102, %99 : vector<16x64xf32>
    %104 = arith.select %101, %99, %103 : vector<16x64xi1>, vector<16x64xf32>
    %c0_74 = arith.constant 0 : index
    %c0_75 = arith.constant 0 : index
    %105 = vector.load %arg6[%c0_74, %c0_75] : memref<64x64xf32, #tpu.memory_space<vmem>>, vector<64x64xf32>
    %cst_76 = arith.constant dense<0.000000e+00> : vector<16x64xf32>
    %106 = tpu.matmul %104, %105, %cst_76 {dimension_numbers = #tpu.dot_dimension_numbers<[1], [0], [0], [1], [0, 0, 1, 1], [], []>} : vector<16x64xf32>, vector<64x64xf32>, vector<16x64xf32> -> vector<16x64xf32>
    %c0_77 = arith.constant 0 : index
    %c0_78 = arith.constant 0 : index
    %107 = vector.load %arg7[%c0_77, %c0_78] : memref<1x64xf32, #tpu.memory_space<vmem>>, vector<1x64xf32>
    %108 = vector.broadcast %107 : vector<1x64xf32> to vector<16x64xf32>
    %109 = arith.mulf %106, %108 : vector<16x64xf32>
    %c0_79 = arith.constant 0 : index
    %c0_80 = arith.constant 0 : index
    %110 = vector.load %arg8[%c0_79, %c0_80] : memref<1x64xf32, #tpu.memory_space<vmem>>, vector<1x64xf32>
    %111 = vector.broadcast %110 : vector<1x64xf32> to vector<16x64xf32>
    %112 = arith.addf %109, %111 : vector<16x64xf32>
    %cst_81 = arith.constant 0.000000e+00 : f32
    %113 = vector.broadcast %cst_81 : f32 to vector<16x64xf32>
    %114 = arith.cmpf ogt, %112, %113 : vector<16x64xf32>
    %cst_82 = arith.constant 2.000000e-01 : f32
    %115 = vector.broadcast %cst_82 : f32 to vector<16x64xf32>
    %116 = arith.mulf %115, %112 : vector<16x64xf32>
    %117 = arith.select %114, %112, %116 : vector<16x64xi1>, vector<16x64xf32>
    %118 = arith.maximumf %88, %117 : vector<16x64xf32>
    %c0_83 = arith.constant 0 : index
    %c0_84 = arith.constant 0 : index
    %c0_85 = arith.constant 0 : index
    %119 = vector.load %arg9[%c0_83, %c0_84, %c0_85] : memref<1x16x64xf32, #tpu.memory_space<vmem>>, vector<1x16x64xf32>
    %120 = vector.shape_cast %119 : vector<1x16x64xf32> to vector<16x64xf32>
    %121 = vector.shape_cast %118 : vector<16x64xf32> to vector<1x16x64xf32>
    tpu.vector_store %arg9[%c0_83, %c0_84, %c0_85], %121 {strides = array<i32>} : memref<1x16x64xf32, #tpu.memory_space<vmem>>, vector<1x16x64xf32>,
    return
  }
  func.func @transform_0(%arg0: i32, %arg1: i32) -> (i32, i32, i32, i32) {
    %c0_i32 = arith.constant 0 : i32
    %c0_i32_0 = arith.constant 0 : i32
    %c0_i32_1 = arith.constant 0 : i32
    return %arg0, %c0_i32, %arg1, %c0_i32_0 : i32, i32, i32, i32
  }
  func.func @transform_1(%arg0: i32, %arg1: i32) -> (i32, i32) {
    %c0_i32 = arith.constant 0 : i32
    %c0_i32_0 = arith.constant 0 : i32
    %c0_i32_1 = arith.constant 0 : i32
    return %c0_i32, %c0_i32_0 : i32, i32
  }
  func.func @transform_2(%arg0: i32, %arg1: i32) -> (i32, i32) {
    %c0_i32 = arith.constant 0 : i32
    %c0_i32_0 = arith.constant 0 : i32
    %c0_i32_1 = arith.constant 0 : i32
    return %c0_i32, %c0_i32_0 : i32, i32
  }
  func.func @transform_3(%arg0: i32, %arg1: i32) -> (i32, i32) {
    %c0_i32 = arith.constant 0 : i32
    %c0_i32_0 = arith.constant 0 : i32
    %c0_i32_1 = arith.constant 0 : i32
    return %c0_i32, %c0_i32_0 : i32, i32
  }
  func.func @transform_4(%arg0: i32, %arg1: i32) -> (i32, i32) {
    %c0_i32 = arith.constant 0 : i32
    %c0_i32_0 = arith.constant 0 : i32
    %c0_i32_1 = arith.constant 0 : i32
    return %c0_i32, %c0_i32_0 : i32, i32
  }
  func.func @transform_5(%arg0: i32, %arg1: i32) -> (i32, i32) {
    %c0_i32 = arith.constant 0 : i32
    %c0_i32_0 = arith.constant 0 : i32
    %c0_i32_1 = arith.constant 0 : i32
    return %c0_i32, %c0_i32_0 : i32, i32
  }
  func.func @transform_6(%arg0: i32, %arg1: i32) -> (i32, i32) {
    %c0_i32 = arith.constant 0 : i32
    %c0_i32_0 = arith.constant 0 : i32
    %c0_i32_1 = arith.constant 0 : i32
    return %c0_i32, %c0_i32_0 : i32, i32
  }
  func.func @transform_7(%arg0: i32, %arg1: i32) -> (i32, i32, i32) {
    %c0_i32 = arith.constant 0 : i32
    %c0_i32_0 = arith.constant 0 : i32
    return %arg0, %arg1, %c0_i32 : i32, i32, i32
  }
}

module attributes {stable_mosaic.version = 11 : i64} {
  func.func @_edgeconv_kernel(%arg0: i32, %arg1: i32, %arg2: memref<1x4x16x128xbf16, #tpu.memory_space<vmem>>, %arg3: memref<128x64xf32, #tpu.memory_space<vmem>>, %arg4: memref<1x64xf32, #tpu.memory_space<vmem>>, %arg5: memref<1x64xf32, #tpu.memory_space<vmem>>, %arg6: memref<64x64xf32, #tpu.memory_space<vmem>>, %arg7: memref<1x64xf32, #tpu.memory_space<vmem>>, %arg8: memref<1x64xf32, #tpu.memory_space<vmem>>, %arg9: memref<1x16x64xf32, #tpu.memory_space<vmem>>) attributes {dimension_semantics = [#tpu.dimension_semantics<parallel>, #tpu.dimension_semantics<parallel>], iteration_bounds = array<i64: 2, 1>, scalar_prefetch = 0 : i64, scratch_operands = 0 : i64, tpu.core_type = #tpu.core_type<tc>, window_params = [{transform_indices = @transform_0, window_bounds = array<i64: 1, 4, 16, 128>}, {pipeline_mode = #tpu.pipeline_mode<synchronous>, transform_indices = @transform_1, window_bounds = array<i64: 128, 64>}, {pipeline_mode = #tpu.pipeline_mode<synchronous>, transform_indices = @transform_2, window_bounds = array<i64: 1, 64>}, {pipeline_mode = #tpu.pipeline_mode<synchronous>, transform_indices = @transform_3, window_bounds = array<i64: 1, 64>}, {pipeline_mode = #tpu.pipeline_mode<synchronous>, transform_indices = @transform_4, window_bounds = array<i64: 64, 64>}, {pipeline_mode = #tpu.pipeline_mode<synchronous>, transform_indices = @transform_5, window_bounds = array<i64: 1, 64>}, {pipeline_mode = #tpu.pipeline_mode<synchronous>, transform_indices = @transform_6, window_bounds = array<i64: 1, 64>}, {transform_indices = @transform_7, window_bounds = array<i64: 1, 16, 64>}]} {
    %c0 = arith.constant 0 : index
    %c0_0 = arith.constant 0 : index
    %c0_1 = arith.constant 0 : index
    %c0_2 = arith.constant 0 : index
    %0 = vector.load %arg2[%c0, %c0_0, %c0_1, %c0_2] : memref<1x4x16x128xbf16, #tpu.memory_space<vmem>>, vector<1x1x16x128xbf16>
    %1 = vector.shape_cast %0 : vector<1x1x16x128xbf16> to vector<16x128xbf16>
    %2 = arith.extf %1 : vector<16x128xbf16> to vector<16x128xf32>
    %c0_3 = arith.constant 0 : index
    %c0_4 = arith.constant 0 : index
    %3 = vector.load %arg3[%c0_3, %c0_4] : memref<128x64xf32, #tpu.memory_space<vmem>>, vector<128x64xf32>
    %cst = arith.constant dense<0.000000e+00> : vector<16x64xf32>
    %4 = tpu.matmul %2, %3, %cst {dimension_numbers = #tpu.dot_dimension_numbers<[1], [0], [0], [1], [0, 0, 1, 1], [], []>} : vector<16x128xf32>, vector<128x64xf32>, vector<16x64xf32> -> vector<16x64xf32>
    %c0_5 = arith.constant 0 : index
    %c0_6 = arith.constant 0 : index
    %5 = vector.load %arg4[%c0_5, %c0_6] : memref<1x64xf32, #tpu.memory_space<vmem>>, vector<1x64xf32>
    %6 = vector.broadcast %5 : vector<1x64xf32> to vector<16x64xf32>
    %7 = arith.mulf %4, %6 : vector<16x64xf32>
    %c0_7 = arith.constant 0 : index
    %c0_8 = arith.constant 0 : index
    %8 = vector.load %arg5[%c0_7, %c0_8] : memref<1x64xf32, #tpu.memory_space<vmem>>, vector<1x64xf32>
    %9 = vector.broadcast %8 : vector<1x64xf32> to vector<16x64xf32>
    %10 = arith.addf %7, %9 : vector<16x64xf32>
    %cst_9 = arith.constant 0.000000e+00 : f32
    %11 = vector.broadcast %cst_9 : f32 to vector<16x64xf32>
    %12 = arith.cmpf ogt, %10, %11 : vector<16x64xf32>
    %cst_10 = arith.constant 2.000000e-01 : f32
    %13 = vector.broadcast %cst_10 : f32 to vector<16x64xf32>
    %14 = arith.mulf %13, %10 : vector<16x64xf32>
    %15 = arith.select %12, %10, %14 : vector<16x64xi1>, vector<16x64xf32>
    %c0_11 = arith.constant 0 : index
    %c0_12 = arith.constant 0 : index
    %16 = vector.load %arg6[%c0_11, %c0_12] : memref<64x64xf32, #tpu.memory_space<vmem>>, vector<64x64xf32>
    %cst_13 = arith.constant dense<0.000000e+00> : vector<16x64xf32>
    %17 = tpu.matmul %15, %16, %cst_13 {dimension_numbers = #tpu.dot_dimension_numbers<[1], [0], [0], [1], [0, 0, 1, 1], [], []>} : vector<16x64xf32>, vector<64x64xf32>, vector<16x64xf32> -> vector<16x64xf32>
    %c0_14 = arith.constant 0 : index
    %c0_15 = arith.constant 0 : index
    %18 = vector.load %arg7[%c0_14, %c0_15] : memref<1x64xf32, #tpu.memory_space<vmem>>, vector<1x64xf32>
    %19 = vector.broadcast %18 : vector<1x64xf32> to vector<16x64xf32>
    %20 = arith.mulf %17, %19 : vector<16x64xf32>
    %c0_16 = arith.constant 0 : index
    %c0_17 = arith.constant 0 : index
    %21 = vector.load %arg8[%c0_16, %c0_17] : memref<1x64xf32, #tpu.memory_space<vmem>>, vector<1x64xf32>
    %22 = vector.broadcast %21 : vector<1x64xf32> to vector<16x64xf32>
    %23 = arith.addf %20, %22 : vector<16x64xf32>
    %cst_18 = arith.constant 0.000000e+00 : f32
    %24 = vector.broadcast %cst_18 : f32 to vector<16x64xf32>
    %25 = arith.cmpf ogt, %23, %24 : vector<16x64xf32>
    %cst_19 = arith.constant 2.000000e-01 : f32
    %26 = vector.broadcast %cst_19 : f32 to vector<16x64xf32>
    %27 = arith.mulf %26, %23 : vector<16x64xf32>
    %28 = arith.select %25, %23, %27 : vector<16x64xi1>, vector<16x64xf32>
    %c0_20 = arith.constant 0 : index
    %c1 = arith.constant 1 : index
    %c0_21 = arith.constant 0 : index
    %c0_22 = arith.constant 0 : index
    %29 = vector.load %arg2[%c0_20, %c1, %c0_21, %c0_22] : memref<1x4x16x128xbf16, #tpu.memory_space<vmem>>, vector<1x1x16x128xbf16>
    %30 = vector.shape_cast %29 : vector<1x1x16x128xbf16> to vector<16x128xbf16>
    %31 = arith.extf %30 : vector<16x128xbf16> to vector<16x128xf32>
    %c0_23 = arith.constant 0 : index
    %c0_24 = arith.constant 0 : index
    %32 = vector.load %arg3[%c0_23, %c0_24] : memref<128x64xf32, #tpu.memory_space<vmem>>, vector<128x64xf32>
    %cst_25 = arith.constant dense<0.000000e+00> : vector<16x64xf32>
    %33 = tpu.matmul %31, %32, %cst_25 {dimension_numbers = #tpu.dot_dimension_numbers<[1], [0], [0], [1], [0, 0, 1, 1], [], []>} : vector<16x128xf32>, vector<128x64xf32>, vector<16x64xf32> -> vector<16x64xf32>
    %c0_26 = arith.constant 0 : index
    %c0_27 = arith.constant 0 : index
    %34 = vector.load %arg4[%c0_26, %c0_27] : memref<1x64xf32, #tpu.memory_space<vmem>>, vector<1x64xf32>
    %35 = vector.broadcast %34 : vector<1x64xf32> to vector<16x64xf32>
    %36 = arith.mulf %33, %35 : vector<16x64xf32>
    %c0_28 = arith.constant 0 : index
    %c0_29 = arith.constant 0 : index
    %37 = vector.load %arg5[%c0_28, %c0_29] : memref<1x64xf32, #tpu.memory_space<vmem>>, vector<1x64xf32>
    %38 = vector.broadcast %37 : vector<1x64xf32> to vector<16x64xf32>
    %39 = arith.addf %36, %38 : vector<16x64xf32>
    %cst_30 = arith.constant 0.000000e+00 : f32
    %40 = vector.broadcast %cst_30 : f32 to vector<16x64xf32>
    %41 = arith.cmpf ogt, %39, %40 : vector<16x64xf32>
    %cst_31 = arith.constant 2.000000e-01 : f32
    %42 = vector.broadcast %cst_31 : f32 to vector<16x64xf32>
    %43 = arith.mulf %42, %39 : vector<16x64xf32>
    %44 = arith.select %41, %39, %43 : vector<16x64xi1>, vector<16x64xf32>
    %c0_32 = arith.constant 0 : index
    %c0_33 = arith.constant 0 : index
    %45 = vector.load %arg6[%c0_32, %c0_33] : memref<64x64xf32, #tpu.memory_space<vmem>>, vector<64x64xf32>
    %cst_34 = arith.constant dense<0.000000e+00> : vector<16x64xf32>
    %46 = tpu.matmul %44, %45, %cst_34 {dimension_numbers = #tpu.dot_dimension_numbers<[1], [0], [0], [1], [0, 0, 1, 1], [], []>} : vector<16x64xf32>, vector<64x64xf32>, vector<16x64xf32> -> vector<16x64xf32>
    %c0_35 = arith.constant 0 : index
    %c0_36 = arith.constant 0 : index
    %47 = vector.load %arg7[%c0_35, %c0_36] : memref<1x64xf32, #tpu.memory_space<vmem>>, vector<1x64xf32>
    %48 = vector.broadcast %47 : vector<1x64xf32> to vector<16x64xf32>
    %49 = arith.mulf %46, %48 : vector<16x64xf32>
    %c0_37 = arith.constant 0 : index
    %c0_38 = arith.constant 0 : index
    %50 = vector.load %arg8[%c0_37, %c0_38] : memref<1x64xf32, #tpu.memory_space<vmem>>, vector<1x64xf32>
    %51 = vector.broadcast %50 : vector<1x64xf32> to vector<16x64xf32>
    %52 = arith.addf %49, %51 : vector<16x64xf32>
    %cst_39 = arith.constant 0.000000e+00 : f32
    %53 = vector.broadcast %cst_39 : f32 to vector<16x64xf32>
    %54 = arith.cmpf ogt, %52, %53 : vector<16x64xf32>
    %cst_40 = arith.constant 2.000000e-01 : f32
    %55 = vector.broadcast %cst_40 : f32 to vector<16x64xf32>
    %56 = arith.mulf %55, %52 : vector<16x64xf32>
    %57 = arith.select %54, %52, %56 : vector<16x64xi1>, vector<16x64xf32>
    %58 = arith.maximumf %28, %57 : vector<16x64xf32>
    %c0_41 = arith.constant 0 : index
    %c2 = arith.constant 2 : index
    %c0_42 = arith.constant 0 : index
    %c0_43 = arith.constant 0 : index
    %59 = vector.load %arg2[%c0_41, %c2, %c0_42, %c0_43] : memref<1x4x16x128xbf16, #tpu.memory_space<vmem>>, vector<1x1x16x128xbf16>
    %60 = vector.shape_cast %59 : vector<1x1x16x128xbf16> to vector<16x128xbf16>
    %61 = arith.extf %60 : vector<16x128xbf16> to vector<16x128xf32>
    %c0_44 = arith.constant 0 : index
    %c0_45 = arith.constant 0 : index
    %62 = vector.load %arg3[%c0_44, %c0_45] : memref<128x64xf32, #tpu.memory_space<vmem>>, vector<128x64xf32>
    %cst_46 = arith.constant dense<0.000000e+00> : vector<16x64xf32>
    %63 = tpu.matmul %61, %62, %cst_46 {dimension_numbers = #tpu.dot_dimension_numbers<[1], [0], [0], [1], [0, 0, 1, 1], [], []>} : vector<16x128xf32>, vector<128x64xf32>, vector<16x64xf32> -> vector<16x64xf32>
    %c0_47 = arith.constant 0 : index
    %c0_48 = arith.constant 0 : index
    %64 = vector.load %arg4[%c0_47, %c0_48] : memref<1x64xf32, #tpu.memory_space<vmem>>, vector<1x64xf32>
    %65 = vector.broadcast %64 : vector<1x64xf32> to vector<16x64xf32>
    %66 = arith.mulf %63, %65 : vector<16x64xf32>
    %c0_49 = arith.constant 0 : index
    %c0_50 = arith.constant 0 : index
    %67 = vector.load %arg5[%c0_49, %c0_50] : memref<1x64xf32, #tpu.memory_space<vmem>>, vector<1x64xf32>
    %68 = vector.broadcast %67 : vector<1x64xf32> to vector<16x64xf32>
    %69 = arith.addf %66, %68 : vector<16x64xf32>
    %cst_51 = arith.constant 0.000000e+00 : f32
    %70 = vector.broadcast %cst_51 : f32 to vector<16x64xf32>
    %71 = arith.cmpf ogt, %69, %70 : vector<16x64xf32>
    %cst_52 = arith.constant 2.000000e-01 : f32
    %72 = vector.broadcast %cst_52 : f32 to vector<16x64xf32>
    %73 = arith.mulf %72, %69 : vector<16x64xf32>
    %74 = arith.select %71, %69, %73 : vector<16x64xi1>, vector<16x64xf32>
    %c0_53 = arith.constant 0 : index
    %c0_54 = arith.constant 0 : index
    %75 = vector.load %arg6[%c0_53, %c0_54] : memref<64x64xf32, #tpu.memory_space<vmem>>, vector<64x64xf32>
    %cst_55 = arith.constant dense<0.000000e+00> : vector<16x64xf32>
    %76 = tpu.matmul %74, %75, %cst_55 {dimension_numbers = #tpu.dot_dimension_numbers<[1], [0], [0], [1], [0, 0, 1, 1], [], []>} : vector<16x64xf32>, vector<64x64xf32>, vector<16x64xf32> -> vector<16x64xf32>
    %c0_56 = arith.constant 0 : index
    %c0_57 = arith.constant 0 : index
    %77 = vector.load %arg7[%c0_56, %c0_57] : memref<1x64xf32, #tpu.memory_space<vmem>>, vector<1x64xf32>
    %78 = vector.broadcast %77 : vector<1x64xf32> to vector<16x64xf32>
    %79 = arith.mulf %76, %78 : vector<16x64xf32>
    %c0_58 = arith.constant 0 : index
    %c0_59 = arith.constant 0 : index
    %80 = vector.load %arg8[%c0_58, %c0_59] : memref<1x64xf32, #tpu.memory_space<vmem>>, vector<1x64xf32>
    %81 = vector.broadcast %80 : vector<1x64xf32> to vector<16x64xf32>
    %82 = arith.addf %79, %81 : vector<16x64xf32>
    %cst_60 = arith.constant 0.000000e+00 : f32
    %83 = vector.broadcast %cst_60 : f32 to vector<16x64xf32>
    %84 = arith.cmpf ogt, %82, %83 : vector<16x64xf32>
    %cst_61 = arith.constant 2.000000e-01 : f32
    %85 = vector.broadcast %cst_61 : f32 to vector<16x64xf32>
    %86 = arith.mulf %85, %82 : vector<16x64xf32>
    %87 = arith.select %84, %82, %86 : vector<16x64xi1>, vector<16x64xf32>
    %88 = arith.maximumf %58, %87 : vector<16x64xf32>
    %c0_62 = arith.constant 0 : index
    %c3 = arith.constant 3 : index
    %c0_63 = arith.constant 0 : index
    %c0_64 = arith.constant 0 : index
    %89 = vector.load %arg2[%c0_62, %c3, %c0_63, %c0_64] : memref<1x4x16x128xbf16, #tpu.memory_space<vmem>>, vector<1x1x16x128xbf16>
    %90 = vector.shape_cast %89 : vector<1x1x16x128xbf16> to vector<16x128xbf16>
    %91 = arith.extf %90 : vector<16x128xbf16> to vector<16x128xf32>
    %c0_65 = arith.constant 0 : index
    %c0_66 = arith.constant 0 : index
    %92 = vector.load %arg3[%c0_65, %c0_66] : memref<128x64xf32, #tpu.memory_space<vmem>>, vector<128x64xf32>
    %cst_67 = arith.constant dense<0.000000e+00> : vector<16x64xf32>
    %93 = tpu.matmul %91, %92, %cst_67 {dimension_numbers = #tpu.dot_dimension_numbers<[1], [0], [0], [1], [0, 0, 1, 1], [], []>} : vector<16x128xf32>, vector<128x64xf32>, vector<16x64xf32> -> vector<16x64xf32>
    %c0_68 = arith.constant 0 : index
    %c0_69 = arith.constant 0 : index
    %94 = vector.load %arg4[%c0_68, %c0_69] : memref<1x64xf32, #tpu.memory_space<vmem>>, vector<1x64xf32>
    %95 = vector.broadcast %94 : vector<1x64xf32> to vector<16x64xf32>
    %96 = arith.mulf %93, %95 : vector<16x64xf32>
    %c0_70 = arith.constant 0 : index
    %c0_71 = arith.constant 0 : index
    %97 = vector.load %arg5[%c0_70, %c0_71] : memref<1x64xf32, #tpu.memory_space<vmem>>, vector<1x64xf32>
    %98 = vector.broadcast %97 : vector<1x64xf32> to vector<16x64xf32>
    %99 = arith.addf %96, %98 : vector<16x64xf32>
    %cst_72 = arith.constant 0.000000e+00 : f32
    %100 = vector.broadcast %cst_72 : f32 to vector<16x64xf32>
    %101 = arith.cmpf ogt, %99, %100 : vector<16x64xf32>
    %cst_73 = arith.constant 2.000000e-01 : f32
    %102 = vector.broadcast %cst_73 : f32 to vector<16x64xf32>
    %103 = arith.mulf %102, %99 : vector<16x64xf32>
    %104 = arith.select %101, %99, %103 : vector<16x64xi1>, vector<16x64xf32>
    %c0_74 = arith.constant 0 : index
    %c0_75 = arith.constant 0 : index
    %105 = vector.load %arg6[%c0_74, %c0_75] : memref<64x64xf32, #tpu.memory_space<vmem>>, vector<64x64xf32>
    %cst_76 = arith.constant dense<0.000000e+00> : vector<16x64xf32>
    %106 = tpu.matmul %104, %105, %cst_76 {dimension_numbers = #tpu.dot_dimension_numbers<[1], [0], [0], [1], [0, 0, 1, 1], [], []>} : vector<16x64xf32>, vector<64x64xf32>, vector<16x64xf32> -> vector<16x64xf32>
    %c0_77 = arith.constant 0 : index
    %c0_78 = arith.constant 0 : index
    %107 = vector.load %arg7[%c0_77, %c0_78] : memref<1x64xf32, #tpu.memory_space<vmem>>, vector<1x64xf32>
    %108 = vector.broadcast %107 : vector<1x64xf32> to vector<16x64xf32>
    %109 = arith.mulf %106, %108 : vector<16x64xf32>
    %c0_79 = arith.constant 0 : index
    %c0_80 = arith.constant 0 : index
    %110 = vector.load %arg8[%c0_79, %c0_80] : memref<1x64xf32, #tpu.memory_space<vmem>>, vector<1x64xf32>
    %111 = vector.broadcast %110 : vector<1x64xf32> to vector<16x64xf32>
    %112 = arith.addf %109, %111 : vector<16x64xf32>
    %cst_81 = arith.constant 0.000000e+00 : f32
    %113 = vector.broadcast %cst_81 : f32 to vector<16x64xf32>
    %114 = arith.cmpf ogt, %112, %113 : vector<16x64xf32>
    %cst_82 = arith.constant 2.000000e-01 : f32
    %115 = vector.broadcast %cst_82 : f32 to vector<16x64xf32>
    %116 = arith.mulf %115, %112 : vector<16x64xf32>
    %117 = arith.select %114, %112, %116 : vector<16x64xi1>, vector<16x64xf32>
    %118 = arith.maximumf %88, %117 : vector<16x64xf32>
    %c0_83 = arith.constant 0 : index
    %c0_84 = arith.constant 0 : index
    %c0_85 = arith.constant 0 : index
    %119 = vector.load %arg9[%c0_83, %c0_84, %c0_85] : memref<1x16x64xf32, #tpu.memory_space<vmem>>, vector<1x16x64xf32>
    %120 = vector.shape_cast %119 : vector<1x16x64xf32> to vector<16x64xf32>
    %121 = vector.shape_cast %118 : vector<16x64xf32> to vector<1x16x64xf32>
    tpu.vector_store %arg9[%c0_83, %c0_84, %c0_85], %121 {strides = array<i32>} : memref<1x16x64xf32, #tpu.memory_space<vmem>>, vector<1x16x64xf32>,
    return
  }
  func.func @transform_0(%arg0: i32, %arg1: i32) -> (i32, i32, i32, i32) {
    %c0_i32 = arith.constant 0 : i32
    %c0_i32_0 = arith.constant 0 : i32
    %c0_i32_1 = arith.constant 0 : i32
    return %arg0, %c0_i32, %arg1, %c0_i32_0 : i32, i32, i32, i32
  }
  func.func @transform_1(%arg0: i32, %arg1: i32) -> (i32, i32) {
    %c0_i32 = arith.constant 0 : i32
    %c0_i32_0 = arith.constant 0 : i32
    %c0_i32_1 = arith.constant 0 : i32
    return %c0_i32, %c0_i32_0 : i32, i32
  }
  func.func @transform_2(%arg0: i32, %arg1: i32) -> (i32, i32) {
    %c0_i32 = arith.constant 0 : i32
    %c0_i32_0 = arith.constant 0 : i32
    %c0_i32_1 = arith.constant 0 : i32
    return %c0_i32, %c0_i32_0 : i32, i32
  }
  func.func @transform_3(%arg0: i32, %arg1: i32) -> (i32, i32) {
    %c0_i32 = arith.constant 0 : i32
    %c0_i32_0 = arith.constant 0 : i32
    %c0_i32_1 = arith.constant 0 : i32
    return %c0_i32, %c0_i32_0 : i32, i32
  }
  func.func @transform_4(%arg0: i32, %arg1: i32) -> (i32, i32) {
    %c0_i32 = arith.constant 0 : i32
    %c0_i32_0 = arith.constant 0 : i32
    %c0_i32_1 = arith.constant 0 : i32
    return %c0_i32, %c0_i32_0 : i32, i32
  }
  func.func @transform_5(%arg0: i32, %arg1: i32) -> (i32, i32) {
    %c0_i32 = arith.constant 0 : i32
    %c0_i32_0 = arith.constant 0 : i32
    %c0_i32_1 = arith.constant 0 : i32
    return %c0_i32, %c0_i32_0 : i32, i32
  }
  func.func @transform_6(%arg0: i32, %arg1: i32) -> (i32, i32) {
    %c0_i32 = arith.constant 0 : i32
    %c0_i32_0 = arith.constant 0 : i32
    %c0_i32_1 = arith.constant 0 : i32
    return %c0_i32, %c0_i32_0 : i32, i32
  }
  func.func @transform_7(%arg0: i32, %arg1: i32) -> (i32, i32, i32) {
    %c0_i32 = arith.constant 0 : i32
    %c0_i32_0 = arith.constant 0 : i32
    return %arg0, %arg1, %c0_i32 : i32, i32, i32
  }
}

module attributes {stable_mosaic.version = 11 : i64} {
  func.func @_edgeconv_kernel(%arg0: i32, %arg1: i32, %arg2: memref<1x4x16x128xbf16, #tpu.memory_space<vmem>>, %arg3: memref<128x64xf32, #tpu.memory_space<vmem>>, %arg4: memref<1x64xf32, #tpu.memory_space<vmem>>, %arg5: memref<1x64xf32, #tpu.memory_space<vmem>>, %arg6: memref<1x16x64xf32, #tpu.memory_space<vmem>>) attributes {dimension_semantics = [#tpu.dimension_semantics<parallel>, #tpu.dimension_semantics<parallel>], iteration_bounds = array<i64: 2, 1>, scalar_prefetch = 0 : i64, scratch_operands = 0 : i64, tpu.core_type = #tpu.core_type<tc>, window_params = [{transform_indices = @transform_0, window_bounds = array<i64: 1, 4, 16, 128>}, {pipeline_mode = #tpu.pipeline_mode<synchronous>, transform_indices = @transform_1, window_bounds = array<i64: 128, 64>}, {pipeline_mode = #tpu.pipeline_mode<synchronous>, transform_indices = @transform_2, window_bounds = array<i64: 1, 64>}, {pipeline_mode = #tpu.pipeline_mode<synchronous>, transform_indices = @transform_3, window_bounds = array<i64: 1, 64>}, {transform_indices = @transform_4, window_bounds = array<i64: 1, 16, 64>}]} {
    %c0 = arith.constant 0 : index
    %c0_0 = arith.constant 0 : index
    %c0_1 = arith.constant 0 : index
    %c0_2 = arith.constant 0 : index
    %0 = vector.load %arg2[%c0, %c0_0, %c0_1, %c0_2] : memref<1x4x16x128xbf16, #tpu.memory_space<vmem>>, vector<1x1x16x128xbf16>
    %1 = vector.shape_cast %0 : vector<1x1x16x128xbf16> to vector<16x128xbf16>
    %2 = arith.extf %1 : vector<16x128xbf16> to vector<16x128xf32>
    %c0_3 = arith.constant 0 : index
    %c0_4 = arith.constant 0 : index
    %3 = vector.load %arg3[%c0_3, %c0_4] : memref<128x64xf32, #tpu.memory_space<vmem>>, vector<128x64xf32>
    %cst = arith.constant dense<0.000000e+00> : vector<16x64xf32>
    %4 = tpu.matmul %2, %3, %cst {dimension_numbers = #tpu.dot_dimension_numbers<[1], [0], [0], [1], [0, 0, 1, 1], [], []>} : vector<16x128xf32>, vector<128x64xf32>, vector<16x64xf32> -> vector<16x64xf32>
    %c0_5 = arith.constant 0 : index
    %c0_6 = arith.constant 0 : index
    %5 = vector.load %arg4[%c0_5, %c0_6] : memref<1x64xf32, #tpu.memory_space<vmem>>, vector<1x64xf32>
    %6 = vector.broadcast %5 : vector<1x64xf32> to vector<16x64xf32>
    %7 = arith.mulf %4, %6 : vector<16x64xf32>
    %c0_7 = arith.constant 0 : index
    %c0_8 = arith.constant 0 : index
    %8 = vector.load %arg5[%c0_7, %c0_8] : memref<1x64xf32, #tpu.memory_space<vmem>>, vector<1x64xf32>
    %9 = vector.broadcast %8 : vector<1x64xf32> to vector<16x64xf32>
    %10 = arith.addf %7, %9 : vector<16x64xf32>
    %cst_9 = arith.constant 0.000000e+00 : f32
    %11 = vector.broadcast %cst_9 : f32 to vector<16x64xf32>
    %12 = arith.cmpf ogt, %10, %11 : vector<16x64xf32>
    %cst_10 = arith.constant 2.000000e-01 : f32
    %13 = vector.broadcast %cst_10 : f32 to vector<16x64xf32>
    %14 = arith.mulf %13, %10 : vector<16x64xf32>
    %15 = arith.select %12, %10, %14 : vector<16x64xi1>, vector<16x64xf32>
    %c0_11 = arith.constant 0 : index
    %c1 = arith.constant 1 : index
    %c0_12 = arith.constant 0 : index
    %c0_13 = arith.constant 0 : index
    %16 = vector.load %arg2[%c0_11, %c1, %c0_12, %c0_13] : memref<1x4x16x128xbf16, #tpu.memory_space<vmem>>, vector<1x1x16x128xbf16>
    %17 = vector.shape_cast %16 : vector<1x1x16x128xbf16> to vector<16x128xbf16>
    %18 = arith.extf %17 : vector<16x128xbf16> to vector<16x128xf32>
    %c0_14 = arith.constant 0 : index
    %c0_15 = arith.constant 0 : index
    %19 = vector.load %arg3[%c0_14, %c0_15] : memref<128x64xf32, #tpu.memory_space<vmem>>, vector<128x64xf32>
    %cst_16 = arith.constant dense<0.000000e+00> : vector<16x64xf32>
    %20 = tpu.matmul %18, %19, %cst_16 {dimension_numbers = #tpu.dot_dimension_numbers<[1], [0], [0], [1], [0, 0, 1, 1], [], []>} : vector<16x128xf32>, vector<128x64xf32>, vector<16x64xf32> -> vector<16x64xf32>
    %c0_17 = arith.constant 0 : index
    %c0_18 = arith.constant 0 : index
    %21 = vector.load %arg4[%c0_17, %c0_18] : memref<1x64xf32, #tpu.memory_space<vmem>>, vector<1x64xf32>
    %22 = vector.broadcast %21 : vector<1x64xf32> to vector<16x64xf32>
    %23 = arith.mulf %20, %22 : vector<16x64xf32>
    %c0_19 = arith.constant 0 : index
    %c0_20 = arith.constant 0 : index
    %24 = vector.load %arg5[%c0_19, %c0_20] : memref<1x64xf32, #tpu.memory_space<vmem>>, vector<1x64xf32>
    %25 = vector.broadcast %24 : vector<1x64xf32> to vector<16x64xf32>
    %26 = arith.addf %23, %25 : vector<16x64xf32>
    %cst_21 = arith.constant 0.000000e+00 : f32
    %27 = vector.broadcast %cst_21 : f32 to vector<16x64xf32>
    %28 = arith.cmpf ogt, %26, %27 : vector<16x64xf32>
    %cst_22 = arith.constant 2.000000e-01 : f32
    %29 = vector.broadcast %cst_22 : f32 to vector<16x64xf32>
    %30 = arith.mulf %29, %26 : vector<16x64xf32>
    %31 = arith.select %28, %26, %30 : vector<16x64xi1>, vector<16x64xf32>
    %32 = arith.maximumf %15, %31 : vector<16x64xf32>
    %c0_23 = arith.constant 0 : index
    %c2 = arith.constant 2 : index
    %c0_24 = arith.constant 0 : index
    %c0_25 = arith.constant 0 : index
    %33 = vector.load %arg2[%c0_23, %c2, %c0_24, %c0_25] : memref<1x4x16x128xbf16, #tpu.memory_space<vmem>>, vector<1x1x16x128xbf16>
    %34 = vector.shape_cast %33 : vector<1x1x16x128xbf16> to vector<16x128xbf16>
    %35 = arith.extf %34 : vector<16x128xbf16> to vector<16x128xf32>
    %c0_26 = arith.constant 0 : index
    %c0_27 = arith.constant 0 : index
    %36 = vector.load %arg3[%c0_26, %c0_27] : memref<128x64xf32, #tpu.memory_space<vmem>>, vector<128x64xf32>
    %cst_28 = arith.constant dense<0.000000e+00> : vector<16x64xf32>
    %37 = tpu.matmul %35, %36, %cst_28 {dimension_numbers = #tpu.dot_dimension_numbers<[1], [0], [0], [1], [0, 0, 1, 1], [], []>} : vector<16x128xf32>, vector<128x64xf32>, vector<16x64xf32> -> vector<16x64xf32>
    %c0_29 = arith.constant 0 : index
    %c0_30 = arith.constant 0 : index
    %38 = vector.load %arg4[%c0_29, %c0_30] : memref<1x64xf32, #tpu.memory_space<vmem>>, vector<1x64xf32>
    %39 = vector.broadcast %38 : vector<1x64xf32> to vector<16x64xf32>
    %40 = arith.mulf %37, %39 : vector<16x64xf32>
    %c0_31 = arith.constant 0 : index
    %c0_32 = arith.constant 0 : index
    %41 = vector.load %arg5[%c0_31, %c0_32] : memref<1x64xf32, #tpu.memory_space<vmem>>, vector<1x64xf32>
    %42 = vector.broadcast %41 : vector<1x64xf32> to vector<16x64xf32>
    %43 = arith.addf %40, %42 : vector<16x64xf32>
    %cst_33 = arith.constant 0.000000e+00 : f32
    %44 = vector.broadcast %cst_33 : f32 to vector<16x64xf32>
    %45 = arith.cmpf ogt, %43, %44 : vector<16x64xf32>
    %cst_34 = arith.constant 2.000000e-01 : f32
    %46 = vector.broadcast %cst_34 : f32 to vector<16x64xf32>
    %47 = arith.mulf %46, %43 : vector<16x64xf32>
    %48 = arith.select %45, %43, %47 : vector<16x64xi1>, vector<16x64xf32>
    %49 = arith.maximumf %32, %48 : vector<16x64xf32>
    %c0_35 = arith.constant 0 : index
    %c3 = arith.constant 3 : index
    %c0_36 = arith.constant 0 : index
    %c0_37 = arith.constant 0 : index
    %50 = vector.load %arg2[%c0_35, %c3, %c0_36, %c0_37] : memref<1x4x16x128xbf16, #tpu.memory_space<vmem>>, vector<1x1x16x128xbf16>
    %51 = vector.shape_cast %50 : vector<1x1x16x128xbf16> to vector<16x128xbf16>
    %52 = arith.extf %51 : vector<16x128xbf16> to vector<16x128xf32>
    %c0_38 = arith.constant 0 : index
    %c0_39 = arith.constant 0 : index
    %53 = vector.load %arg3[%c0_38, %c0_39] : memref<128x64xf32, #tpu.memory_space<vmem>>, vector<128x64xf32>
    %cst_40 = arith.constant dense<0.000000e+00> : vector<16x64xf32>
    %54 = tpu.matmul %52, %53, %cst_40 {dimension_numbers = #tpu.dot_dimension_numbers<[1], [0], [0], [1], [0, 0, 1, 1], [], []>} : vector<16x128xf32>, vector<128x64xf32>, vector<16x64xf32> -> vector<16x64xf32>
    %c0_41 = arith.constant 0 : index
    %c0_42 = arith.constant 0 : index
    %55 = vector.load %arg4[%c0_41, %c0_42] : memref<1x64xf32, #tpu.memory_space<vmem>>, vector<1x64xf32>
    %56 = vector.broadcast %55 : vector<1x64xf32> to vector<16x64xf32>
    %57 = arith.mulf %54, %56 : vector<16x64xf32>
    %c0_43 = arith.constant 0 : index
    %c0_44 = arith.constant 0 : index
    %58 = vector.load %arg5[%c0_43, %c0_44] : memref<1x64xf32, #tpu.memory_space<vmem>>, vector<1x64xf32>
    %59 = vector.broadcast %58 : vector<1x64xf32> to vector<16x64xf32>
    %60 = arith.addf %57, %59 : vector<16x64xf32>
    %cst_45 = arith.constant 0.000000e+00 : f32
    %61 = vector.broadcast %cst_45 : f32 to vector<16x64xf32>
    %62 = arith.cmpf ogt, %60, %61 : vector<16x64xf32>
    %cst_46 = arith.constant 2.000000e-01 : f32
    %63 = vector.broadcast %cst_46 : f32 to vector<16x64xf32>
    %64 = arith.mulf %63, %60 : vector<16x64xf32>
    %65 = arith.select %62, %60, %64 : vector<16x64xi1>, vector<16x64xf32>
    %66 = arith.maximumf %49, %65 : vector<16x64xf32>
    %c0_47 = arith.constant 0 : index
    %c0_48 = arith.constant 0 : index
    %c0_49 = arith.constant 0 : index
    %67 = vector.load %arg6[%c0_47, %c0_48, %c0_49] : memref<1x16x64xf32, #tpu.memory_space<vmem>>, vector<1x16x64xf32>
    %68 = vector.shape_cast %67 : vector<1x16x64xf32> to vector<16x64xf32>
    %69 = vector.shape_cast %66 : vector<16x64xf32> to vector<1x16x64xf32>
    tpu.vector_store %arg6[%c0_47, %c0_48, %c0_49], %69 {strides = array<i32>} : memref<1x16x64xf32, #tpu.memory_space<vmem>>, vector<1x16x64xf32>,
    return
  }
  func.func @transform_0(%arg0: i32, %arg1: i32) -> (i32, i32, i32, i32) {
    %c0_i32 = arith.constant 0 : i32
    %c0_i32_0 = arith.constant 0 : i32
    %c0_i32_1 = arith.constant 0 : i32
    return %arg0, %c0_i32, %arg1, %c0_i32_0 : i32, i32, i32, i32
  }
  func.func @transform_1(%arg0: i32, %arg1: i32) -> (i32, i32) {
    %c0_i32 = arith.constant 0 : i32
    %c0_i32_0 = arith.constant 0 : i32
    %c0_i32_1 = arith.constant 0 : i32
    return %c0_i32, %c0_i32_0 : i32, i32
  }
  func.func @transform_2(%arg0: i32, %arg1: i32) -> (i32, i32) {
    %c0_i32 = arith.constant 0 : i32
    %c0_i32_0 = arith.constant 0 : i32
    %c0_i32_1 = arith.constant 0 : i32
    return %c0_i32, %c0_i32_0 : i32, i32
  }
  func.func @transform_3(%arg0: i32, %arg1: i32) -> (i32, i32) {
    %c0_i32 = arith.constant 0 : i32
    %c0_i32_0 = arith.constant 0 : i32
    %c0_i32_1 = arith.constant 0 : i32
    return %c0_i32, %c0_i32_0 : i32, i32
  }
  func.func @transform_4(%arg0: i32, %arg1: i32) -> (i32, i32, i32) {
    %c0_i32 = arith.constant 0 : i32
    %c0_i32_0 = arith.constant 0 : i32
    return %arg0, %arg1, %c0_i32 : i32, i32, i32
  }
}

module attributes {stable_mosaic.version = 11 : i64} {
  func.func @_conv6_pool_kernel(%arg0: i32, %arg1: i32, %arg2: memref<1x16x64xf32, #tpu.memory_space<vmem>>, %arg3: memref<1x16x64xf32, #tpu.memory_space<vmem>>, %arg4: memref<1x16x64xf32, #tpu.memory_space<vmem>>, %arg5: memref<64x1024xf32, #tpu.memory_space<vmem>>, %arg6: memref<64x1024xf32, #tpu.memory_space<vmem>>, %arg7: memref<64x1024xf32, #tpu.memory_space<vmem>>, %arg8: memref<1x1024xf32, #tpu.memory_space<vmem>>, %arg9: memref<1x1024xf32, #tpu.memory_space<vmem>>, %arg10: memref<1x1x1024xf32, #tpu.memory_space<vmem>>) attributes {dimension_semantics = [#tpu.dimension_semantics<parallel>, #tpu.dimension_semantics<arbitrary>], iteration_bounds = array<i64: 2, 1>, scalar_prefetch = 0 : i64, scratch_operands = 0 : i64, tpu.core_type = #tpu.core_type<tc>, window_params = [{transform_indices = @transform_0, window_bounds = array<i64: 1, 16, 64>}, {transform_indices = @transform_1, window_bounds = array<i64: 1, 16, 64>}, {transform_indices = @transform_2, window_bounds = array<i64: 1, 16, 64>}, {pipeline_mode = #tpu.pipeline_mode<synchronous>, transform_indices = @transform_3, window_bounds = array<i64: 64, 1024>}, {pipeline_mode = #tpu.pipeline_mode<synchronous>, transform_indices = @transform_4, window_bounds = array<i64: 64, 1024>}, {pipeline_mode = #tpu.pipeline_mode<synchronous>, transform_indices = @transform_5, window_bounds = array<i64: 64, 1024>}, {pipeline_mode = #tpu.pipeline_mode<synchronous>, transform_indices = @transform_6, window_bounds = array<i64: 1, 1024>}, {pipeline_mode = #tpu.pipeline_mode<synchronous>, transform_indices = @transform_7, window_bounds = array<i64: 1, 1024>}, {transform_indices = @transform_8, window_bounds = array<i64: 1, 1, 1024>}]} {
    %c0 = arith.constant 0 : index
    %c0_0 = arith.constant 0 : index
    %c0_1 = arith.constant 0 : index
    %0 = vector.load %arg2[%c0, %c0_0, %c0_1] : memref<1x16x64xf32, #tpu.memory_space<vmem>>, vector<1x16x64xf32>
    %1 = vector.shape_cast %0 : vector<1x16x64xf32> to vector<16x64xf32>
    %c0_2 = arith.constant 0 : index
    %c0_3 = arith.constant 0 : index
    %2 = vector.load %arg5[%c0_2, %c0_3] : memref<64x1024xf32, #tpu.memory_space<vmem>>, vector<64x1024xf32>
    %cst = arith.constant dense<0.000000e+00> : vector<16x1024xf32>
    %3 = tpu.matmul %1, %2, %cst {dimension_numbers = #tpu.dot_dimension_numbers<[1], [0], [0], [1], [0, 0, 1, 1], [], []>} : vector<16x64xf32>, vector<64x1024xf32>, vector<16x1024xf32> -> vector<16x1024xf32>
    %c0_4 = arith.constant 0 : index
    %c0_5 = arith.constant 0 : index
    %c0_6 = arith.constant 0 : index
    %4 = vector.load %arg3[%c0_4, %c0_5, %c0_6] : memref<1x16x64xf32, #tpu.memory_space<vmem>>, vector<1x16x64xf32>
    %5 = vector.shape_cast %4 : vector<1x16x64xf32> to vector<16x64xf32>
    %c0_7 = arith.constant 0 : index
    %c0_8 = arith.constant 0 : index
    %6 = vector.load %arg6[%c0_7, %c0_8] : memref<64x1024xf32, #tpu.memory_space<vmem>>, vector<64x1024xf32>
    %cst_9 = arith.constant dense<0.000000e+00> : vector<16x1024xf32>
    %7 = tpu.matmul %5, %6, %cst_9 {dimension_numbers = #tpu.dot_dimension_numbers<[1], [0], [0], [1], [0, 0, 1, 1], [], []>} : vector<16x64xf32>, vector<64x1024xf32>, vector<16x1024xf32> -> vector<16x1024xf32>
    %8 = arith.addf %3, %7 : vector<16x1024xf32>
    %c0_10 = arith.constant 0 : index
    %c0_11 = arith.constant 0 : index
    %c0_12 = arith.constant 0 : index
    %9 = vector.load %arg4[%c0_10, %c0_11, %c0_12] : memref<1x16x64xf32, #tpu.memory_space<vmem>>, vector<1x16x64xf32>
    %10 = vector.shape_cast %9 : vector<1x16x64xf32> to vector<16x64xf32>
    %c0_13 = arith.constant 0 : index
    %c0_14 = arith.constant 0 : index
    %11 = vector.load %arg7[%c0_13, %c0_14] : memref<64x1024xf32, #tpu.memory_space<vmem>>, vector<64x1024xf32>
    %cst_15 = arith.constant dense<0.000000e+00> : vector<16x1024xf32>
    %12 = tpu.matmul %10, %11, %cst_15 {dimension_numbers = #tpu.dot_dimension_numbers<[1], [0], [0], [1], [0, 0, 1, 1], [], []>} : vector<16x64xf32>, vector<64x1024xf32>, vector<16x1024xf32> -> vector<16x1024xf32>
    %13 = arith.addf %8, %12 : vector<16x1024xf32>
    %c0_16 = arith.constant 0 : index
    %c0_17 = arith.constant 0 : index
    %14 = vector.load %arg8[%c0_16, %c0_17] : memref<1x1024xf32, #tpu.memory_space<vmem>>, vector<1x1024xf32>
    %15 = vector.broadcast %14 : vector<1x1024xf32> to vector<16x1024xf32>
    %16 = arith.mulf %13, %15 : vector<16x1024xf32>
    %c0_18 = arith.constant 0 : index
    %c0_19 = arith.constant 0 : index
    %17 = vector.load %arg9[%c0_18, %c0_19] : memref<1x1024xf32, #tpu.memory_space<vmem>>, vector<1x1024xf32>
    %18 = vector.broadcast %17 : vector<1x1024xf32> to vector<16x1024xf32>
    %19 = arith.addf %16, %18 : vector<16x1024xf32>
    %cst_20 = arith.constant 0.000000e+00 : f32
    %20 = vector.broadcast %cst_20 : f32 to vector<16x1024xf32>
    %21 = arith.cmpf ogt, %19, %20 : vector<16x1024xf32>
    %cst_21 = arith.constant 2.000000e-01 : f32
    %22 = vector.broadcast %cst_21 : f32 to vector<16x1024xf32>
    %23 = arith.mulf %22, %19 : vector<16x1024xf32>
    %24 = arith.select %21, %19, %23 : vector<16x1024xi1>, vector<16x1024xf32>
    %c0_i32 = arith.constant 0 : i32
    %25 = arith.cmpi eq, %arg1, %c0_i32 : i32
    %26 = arith.extui %25 : i1 to i32
    %c0_i32_22 = arith.constant 0 : i32
    %27 = arith.cmpi ne, %26, %c0_i32_22 : i32
    scf.if %27 {
      %cst_30 = arith.constant 0xFF800000 : f32
      %36 = vector.broadcast %cst_30 : f32 to vector<1x1x1024xf32>
      %c0_31 = arith.constant 0 : index
      %c0_32 = arith.constant 0 : index
      %c0_33 = arith.constant 0 : index
      %37 = vector.load %arg10[%c0_31, %c0_32, %c0_33] : memref<1x1x1024xf32, #tpu.memory_space<vmem>>, vector<1x1x1024xf32>
      tpu.vector_store %arg10[%c0_31, %c0_32, %c0_33], %36 {strides = array<i32>} : memref<1x1x1024xf32, #tpu.memory_space<vmem>>, vector<1x1x1024xf32>,
    } else {
    }
    %c0_23 = arith.constant 0 : index
    %c0_24 = arith.constant 0 : index
    %c0_25 = arith.constant 0 : index
    %28 = vector.load %arg10[%c0_23, %c0_24, %c0_25] : memref<1x1x1024xf32, #tpu.memory_space<vmem>>, vector<1x1x1024xf32>
    %29 = vector.shape_cast %28 : vector<1x1x1024xf32> to vector<1x1024xf32>
    %cst_26 = arith.constant dense<0xFF800000> : vector<1024xf32>
    %30 = vector.multi_reduction <maximumf>, %24, %cst_26 [0] : vector<16x1024xf32> to vector<1024xf32>
    %31 = vector.shape_cast %30 : vector<1024xf32> to vector<1x1024xf32>
    %32 = arith.maximumf %29, %31 : vector<1x1024xf32>
    %c0_27 = arith.constant 0 : index
    %c0_28 = arith.constant 0 : index
    %c0_29 = arith.constant 0 : index
    %33 = vector.load %arg10[%c0_27, %c0_28, %c0_29] : memref<1x1x1024xf32, #tpu.memory_space<vmem>>, vector<1x1x1024xf32>
    %34 = vector.shape_cast %33 : vector<1x1x1024xf32> to vector<1x1024xf32>
    %35 = vector.shape_cast %32 : vector<1x1024xf32> to vector<1x1x1024xf32>
    tpu.vector_store %arg10[%c0_27, %c0_28, %c0_29], %35 {strides = array<i32>} : memref<1x1x1024xf32, #tpu.memory_space<vmem>>, vector<1x1x1024xf32>,
    return
  }
  func.func @transform_0(%arg0: i32, %arg1: i32) -> (i32, i32, i32) {
    %c0_i32 = arith.constant 0 : i32
    %c0_i32_0 = arith.constant 0 : i32
    return %arg0, %arg1, %c0_i32 : i32, i32, i32
  }
  func.func @transform_1(%arg0: i32, %arg1: i32) -> (i32, i32, i32) {
    %c0_i32 = arith.constant 0 : i32
    %c0_i32_0 = arith.constant 0 : i32
    return %arg0, %arg1, %c0_i32 : i32, i32, i32
  }
  func.func @transform_2(%arg0: i32, %arg1: i32) -> (i32, i32, i32) {
    %c0_i32 = arith.constant 0 : i32
    %c0_i32_0 = arith.constant 0 : i32
    return %arg0, %arg1, %c0_i32 : i32, i32, i32
  }
  func.func @transform_3(%arg0: i32, %arg1: i32) -> (i32, i32) {
    %c0_i32 = arith.constant 0 : i32
    %c0_i32_0 = arith.constant 0 : i32
    %c0_i32_1 = arith.constant 0 : i32
    return %c0_i32, %c0_i32_0 : i32, i32
  }
  func.func @transform_4(%arg0: i32, %arg1: i32) -> (i32, i32) {
    %c0_i32 = arith.constant 0 : i32
    %c0_i32_0 = arith.constant 0 : i32
    %c0_i32_1 = arith.constant 0 : i32
    return %c0_i32, %c0_i32_0 : i32, i32
  }
  func.func @transform_5(%arg0: i32, %arg1: i32) -> (i32, i32) {
    %c0_i32 = arith.constant 0 : i32
    %c0_i32_0 = arith.constant 0 : i32
    %c0_i32_1 = arith.constant 0 : i32
    return %c0_i32, %c0_i32_0 : i32, i32
  }
  func.func @transform_6(%arg0: i32, %arg1: i32) -> (i32, i32) {
    %c0_i32 = arith.constant 0 : i32
    %c0_i32_0 = arith.constant 0 : i32
    %c0_i32_1 = arith.constant 0 : i32
    return %c0_i32, %c0_i32_0 : i32, i32
  }
  func.func @transform_7(%arg0: i32, %arg1: i32) -> (i32, i32) {
    %c0_i32 = arith.constant 0 : i32
    %c0_i32_0 = arith.constant 0 : i32
    %c0_i32_1 = arith.constant 0 : i32
    return %c0_i32, %c0_i32_0 : i32, i32
  }
  func.func @transform_8(%arg0: i32, %arg1: i32) -> (i32, i32, i32) {
    %c0_i32 = arith.constant 0 : i32
    %c0_i32_0 = arith.constant 0 : i32
    %c0_i32_1 = arith.constant 0 : i32
    return %arg0, %c0_i32, %c0_i32_0 : i32, i32, i32
  }
}

module attributes {stable_mosaic.version = 11 : i64} {
  func.func @_head_kernel(%arg0: i32, %arg1: i32, %arg2: memref<1x16x64xf32, #tpu.memory_space<vmem>>, %arg3: memref<1x16x64xf32, #tpu.memory_space<vmem>>, %arg4: memref<1x16x64xf32, #tpu.memory_space<vmem>>, %arg5: memref<1x1x512xf32, #tpu.memory_space<vmem>>, %arg6: memref<64x512xf32, #tpu.memory_space<vmem>>, %arg7: memref<64x512xf32, #tpu.memory_space<vmem>>, %arg8: memref<64x512xf32, #tpu.memory_space<vmem>>, %arg9: memref<1x512xf32, #tpu.memory_space<vmem>>, %arg10: memref<512x256xf32, #tpu.memory_space<vmem>>, %arg11: memref<1x256xf32, #tpu.memory_space<vmem>>, %arg12: memref<1x256xf32, #tpu.memory_space<vmem>>, %arg13: memref<256x40xf32, #tpu.memory_space<vmem>>, %arg14: memref<1x16x256xf32, #tpu.memory_space<vmem>>, %arg15: memref<1x1x256xf32, #tpu.memory_space<vmem>>, %arg16: memref<1x1x256xf32, #tpu.memory_space<vmem>>, %arg17: memref<1x1x40xf32, #tpu.memory_space<vmem>>, %arg18: memref<1x1x40xf32, #tpu.memory_space<vmem>>) attributes {dimension_semantics = [#tpu.dimension_semantics<parallel>, #tpu.dimension_semantics<arbitrary>], iteration_bounds = array<i64: 2, 1>, scalar_prefetch = 0 : i64, scratch_operands = 0 : i64, tpu.core_type = #tpu.core_type<tc>, window_params = [{transform_indices = @transform_0, window_bounds = array<i64: 1, 16, 64>}, {transform_indices = @transform_1, window_bounds = array<i64: 1, 16, 64>}, {transform_indices = @transform_2, window_bounds = array<i64: 1, 16, 64>}, {transform_indices = @transform_3, window_bounds = array<i64: 1, 1, 512>}, {pipeline_mode = #tpu.pipeline_mode<synchronous>, transform_indices = @transform_4, window_bounds = array<i64: 64, 512>}, {pipeline_mode = #tpu.pipeline_mode<synchronous>, transform_indices = @transform_5, window_bounds = array<i64: 64, 512>}, {pipeline_mode = #tpu.pipeline_mode<synchronous>, transform_indices = @transform_6, window_bounds = array<i64: 64, 512>}, {pipeline_mode = #tpu.pipeline_mode<synchronous>, transform_indices = @transform_7, window_bounds = array<i64: 1, 512>}, {pipeline_mode = #tpu.pipeline_mode<synchronous>, transform_indices = @transform_8, window_bounds = array<i64: 512, 256>}, {pipeline_mode = #tpu.pipeline_mode<synchronous>, transform_indices = @transform_9, window_bounds = array<i64: 1, 256>}, {pipeline_mode = #tpu.pipeline_mode<synchronous>, transform_indices = @transform_10, window_bounds = array<i64: 1, 256>}, {pipeline_mode = #tpu.pipeline_mode<synchronous>, transform_indices = @transform_11, window_bounds = array<i64: 256, 40>}, {transform_indices = @transform_12, window_bounds = array<i64: 1, 16, 256>}, {transform_indices = @transform_13, window_bounds = array<i64: 1, 1, 256>}, {transform_indices = @transform_14, window_bounds = array<i64: 1, 1, 256>}, {transform_indices = @transform_15, window_bounds = array<i64: 1, 1, 40>}, {transform_indices = @transform_16, window_bounds = array<i64: 1, 1, 40>}]} {
    %c0 = arith.constant 0 : index
    %c0_0 = arith.constant 0 : index
    %c0_1 = arith.constant 0 : index
    %0 = vector.load %arg2[%c0, %c0_0, %c0_1] : memref<1x16x64xf32, #tpu.memory_space<vmem>>, vector<1x16x64xf32>
    %1 = vector.shape_cast %0 : vector<1x16x64xf32> to vector<16x64xf32>
    %c0_2 = arith.constant 0 : index
    %c0_3 = arith.constant 0 : index
    %2 = vector.load %arg6[%c0_2, %c0_3] : memref<64x512xf32, #tpu.memory_space<vmem>>, vector<64x512xf32>
    %cst = arith.constant dense<0.000000e+00> : vector<16x512xf32>
    %3 = tpu.matmul %1, %2, %cst {dimension_numbers = #tpu.dot_dimension_numbers<[1], [0], [0], [1], [0, 0, 1, 1], [], []>} : vector<16x64xf32>, vector<64x512xf32>, vector<16x512xf32> -> vector<16x512xf32>
    %c0_4 = arith.constant 0 : index
    %c0_5 = arith.constant 0 : index
    %c0_6 = arith.constant 0 : index
    %4 = vector.load %arg3[%c0_4, %c0_5, %c0_6] : memref<1x16x64xf32, #tpu.memory_space<vmem>>, vector<1x16x64xf32>
    %5 = vector.shape_cast %4 : vector<1x16x64xf32> to vector<16x64xf32>
    %c0_7 = arith.constant 0 : index
    %c0_8 = arith.constant 0 : index
    %6 = vector.load %arg7[%c0_7, %c0_8] : memref<64x512xf32, #tpu.memory_space<vmem>>, vector<64x512xf32>
    %cst_9 = arith.constant dense<0.000000e+00> : vector<16x512xf32>
    %7 = tpu.matmul %5, %6, %cst_9 {dimension_numbers = #tpu.dot_dimension_numbers<[1], [0], [0], [1], [0, 0, 1, 1], [], []>} : vector<16x64xf32>, vector<64x512xf32>, vector<16x512xf32> -> vector<16x512xf32>
    %8 = arith.addf %3, %7 : vector<16x512xf32>
    %c0_10 = arith.constant 0 : index
    %c0_11 = arith.constant 0 : index
    %c0_12 = arith.constant 0 : index
    %9 = vector.load %arg4[%c0_10, %c0_11, %c0_12] : memref<1x16x64xf32, #tpu.memory_space<vmem>>, vector<1x16x64xf32>
    %10 = vector.shape_cast %9 : vector<1x16x64xf32> to vector<16x64xf32>
    %c0_13 = arith.constant 0 : index
    %c0_14 = arith.constant 0 : index
    %11 = vector.load %arg8[%c0_13, %c0_14] : memref<64x512xf32, #tpu.memory_space<vmem>>, vector<64x512xf32>
    %cst_15 = arith.constant dense<0.000000e+00> : vector<16x512xf32>
    %12 = tpu.matmul %10, %11, %cst_15 {dimension_numbers = #tpu.dot_dimension_numbers<[1], [0], [0], [1], [0, 0, 1, 1], [], []>} : vector<16x64xf32>, vector<64x512xf32>, vector<16x512xf32> -> vector<16x512xf32>
    %13 = arith.addf %8, %12 : vector<16x512xf32>
    %c0_16 = arith.constant 0 : index
    %c0_17 = arith.constant 0 : index
    %14 = vector.load %arg9[%c0_16, %c0_17] : memref<1x512xf32, #tpu.memory_space<vmem>>, vector<1x512xf32>
    %15 = vector.broadcast %14 : vector<1x512xf32> to vector<16x512xf32>
    %16 = arith.mulf %13, %15 : vector<16x512xf32>
    %c0_18 = arith.constant 0 : index
    %c0_19 = arith.constant 0 : index
    %c0_20 = arith.constant 0 : index
    %17 = vector.load %arg5[%c0_18, %c0_19, %c0_20] : memref<1x1x512xf32, #tpu.memory_space<vmem>>, vector<1x1x512xf32>
    %18 = vector.shape_cast %17 : vector<1x1x512xf32> to vector<1x512xf32>
    %19 = vector.broadcast %18 : vector<1x512xf32> to vector<16x512xf32>
    %20 = arith.addf %16, %19 : vector<16x512xf32>
    %cst_21 = arith.constant 0.000000e+00 : f32
    %21 = vector.broadcast %cst_21 : f32 to vector<16x512xf32>
    %22 = arith.cmpf ogt, %20, %21 : vector<16x512xf32>
    %cst_22 = arith.constant 2.000000e-01 : f32
    %23 = vector.broadcast %cst_22 : f32 to vector<16x512xf32>
    %24 = arith.mulf %23, %20 : vector<16x512xf32>
    %25 = arith.select %22, %20, %24 : vector<16x512xi1>, vector<16x512xf32>
    %c0_23 = arith.constant 0 : index
    %c0_24 = arith.constant 0 : index
    %26 = vector.load %arg10[%c0_23, %c0_24] : memref<512x256xf32, #tpu.memory_space<vmem>>, vector<512x256xf32>
    %cst_25 = arith.constant dense<0.000000e+00> : vector<16x256xf32>
    %27 = tpu.matmul %25, %26, %cst_25 {dimension_numbers = #tpu.dot_dimension_numbers<[1], [0], [0], [1], [0, 0, 1, 1], [], []>} : vector<16x512xf32>, vector<512x256xf32>, vector<16x256xf32> -> vector<16x256xf32>
    %c0_26 = arith.constant 0 : index
    %c0_27 = arith.constant 0 : index
    %28 = vector.load %arg11[%c0_26, %c0_27] : memref<1x256xf32, #tpu.memory_space<vmem>>, vector<1x256xf32>
    %29 = vector.broadcast %28 : vector<1x256xf32> to vector<16x256xf32>
    %30 = arith.mulf %27, %29 : vector<16x256xf32>
    %c0_28 = arith.constant 0 : index
    %c0_29 = arith.constant 0 : index
    %31 = vector.load %arg12[%c0_28, %c0_29] : memref<1x256xf32, #tpu.memory_space<vmem>>, vector<1x256xf32>
    %32 = vector.broadcast %31 : vector<1x256xf32> to vector<16x256xf32>
    %33 = arith.addf %30, %32 : vector<16x256xf32>
    %cst_30 = arith.constant 0.000000e+00 : f32
    %34 = vector.broadcast %cst_30 : f32 to vector<16x256xf32>
    %35 = arith.cmpf ogt, %33, %34 : vector<16x256xf32>
    %cst_31 = arith.constant 2.000000e-01 : f32
    %36 = vector.broadcast %cst_31 : f32 to vector<16x256xf32>
    %37 = arith.mulf %36, %33 : vector<16x256xf32>
    %38 = arith.select %35, %33, %37 : vector<16x256xi1>, vector<16x256xf32>
    %c0_32 = arith.constant 0 : index
    %c0_33 = arith.constant 0 : index
    %c0_34 = arith.constant 0 : index
    %39 = vector.load %arg14[%c0_32, %c0_33, %c0_34] : memref<1x16x256xf32, #tpu.memory_space<vmem>>, vector<1x16x256xf32>
    %40 = vector.shape_cast %39 : vector<1x16x256xf32> to vector<16x256xf32>
    %41 = vector.shape_cast %38 : vector<16x256xf32> to vector<1x16x256xf32>
    tpu.vector_store %arg14[%c0_32, %c0_33, %c0_34], %41 {strides = array<i32>} : memref<1x16x256xf32, #tpu.memory_space<vmem>>, vector<1x16x256xf32>,
    %c0_35 = arith.constant 0 : index
    %c0_36 = arith.constant 0 : index
    %42 = vector.load %arg13[%c0_35, %c0_36] : memref<256x40xf32, #tpu.memory_space<vmem>>, vector<256x40xf32>
    %cst_37 = arith.constant dense<0.000000e+00> : vector<16x40xf32>
    %43 = tpu.matmul %38, %42, %cst_37 {dimension_numbers = #tpu.dot_dimension_numbers<[1], [0], [0], [1], [0, 0, 1, 1], [], []>} : vector<16x256xf32>, vector<256x40xf32>, vector<16x40xf32> -> vector<16x40xf32>
    %c0_i32 = arith.constant 0 : i32
    %44 = arith.cmpi eq, %arg1, %c0_i32 : i32
    %45 = arith.extui %44 : i1 to i32
    %c0_i32_38 = arith.constant 0 : i32
    %46 = arith.cmpi ne, %45, %c0_i32_38 : i32
    scf.if %46 {
      %cst_67 = arith.constant 0xFF800000 : f32
      %79 = vector.broadcast %cst_67 : f32 to vector<1x1x256xf32>
      %c0_68 = arith.constant 0 : index
      %c0_69 = arith.constant 0 : index
      %c0_70 = arith.constant 0 : index
      %80 = vector.load %arg15[%c0_68, %c0_69, %c0_70] : memref<1x1x256xf32, #tpu.memory_space<vmem>>, vector<1x1x256xf32>
      tpu.vector_store %arg15[%c0_68, %c0_69, %c0_70], %79 {strides = array<i32>} : memref<1x1x256xf32, #tpu.memory_space<vmem>>, vector<1x1x256xf32>,
      %cst_71 = arith.constant 0.000000e+00 : f32
      %81 = vector.broadcast %cst_71 : f32 to vector<1x1x256xf32>
      %c0_72 = arith.constant 0 : index
      %c0_73 = arith.constant 0 : index
      %c0_74 = arith.constant 0 : index
      %82 = vector.load %arg16[%c0_72, %c0_73, %c0_74] : memref<1x1x256xf32, #tpu.memory_space<vmem>>, vector<1x1x256xf32>
      tpu.vector_store %arg16[%c0_72, %c0_73, %c0_74], %81 {strides = array<i32>} : memref<1x1x256xf32, #tpu.memory_space<vmem>>, vector<1x1x256xf32>,
      %cst_75 = arith.constant 0xFF800000 : f32
      %83 = vector.broadcast %cst_75 : f32 to vector<1x1x40xf32>
      %c0_76 = arith.constant 0 : index
      %c0_77 = arith.constant 0 : index
      %c0_78 = arith.constant 0 : index
      %84 = vector.load %arg17[%c0_76, %c0_77, %c0_78] : memref<1x1x40xf32, #tpu.memory_space<vmem>>, vector<1x1x40xf32>
      tpu.vector_store %arg17[%c0_76, %c0_77, %c0_78], %83 {strides = array<i32>} : memref<1x1x40xf32, #tpu.memory_space<vmem>>, vector<1x1x40xf32>,
      %cst_79 = arith.constant 0.000000e+00 : f32
      %85 = vector.broadcast %cst_79 : f32 to vector<1x1x40xf32>
      %c0_80 = arith.constant 0 : index
      %c0_81 = arith.constant 0 : index
      %c0_82 = arith.constant 0 : index
      %86 = vector.load %arg18[%c0_80, %c0_81, %c0_82] : memref<1x1x40xf32, #tpu.memory_space<vmem>>, vector<1x1x40xf32>
      tpu.vector_store %arg18[%c0_80, %c0_81, %c0_82], %85 {strides = array<i32>} : memref<1x1x40xf32, #tpu.memory_space<vmem>>, vector<1x1x40xf32>,
    } else {
    }
    %c0_39 = arith.constant 0 : index
    %c0_40 = arith.constant 0 : index
    %c0_41 = arith.constant 0 : index
    %47 = vector.load %arg15[%c0_39, %c0_40, %c0_41] : memref<1x1x256xf32, #tpu.memory_space<vmem>>, vector<1x1x256xf32>
    %48 = vector.shape_cast %47 : vector<1x1x256xf32> to vector<1x256xf32>
    %cst_42 = arith.constant dense<0xFF800000> : vector<256xf32>
    %49 = vector.multi_reduction <maximumf>, %38, %cst_42 [0] : vector<16x256xf32> to vector<256xf32>
    %50 = vector.shape_cast %49 : vector<256xf32> to vector<1x256xf32>
    %51 = arith.maximumf %48, %50 : vector<1x256xf32>
    %c0_43 = arith.constant 0 : index
    %c0_44 = arith.constant 0 : index
    %c0_45 = arith.constant 0 : index
    %52 = vector.load %arg15[%c0_43, %c0_44, %c0_45] : memref<1x1x256xf32, #tpu.memory_space<vmem>>, vector<1x1x256xf32>
    %53 = vector.shape_cast %52 : vector<1x1x256xf32> to vector<1x256xf32>
    %54 = vector.shape_cast %51 : vector<1x256xf32> to vector<1x1x256xf32>
    tpu.vector_store %arg15[%c0_43, %c0_44, %c0_45], %54 {strides = array<i32>} : memref<1x1x256xf32, #tpu.memory_space<vmem>>, vector<1x1x256xf32>,
    %c0_46 = arith.constant 0 : index
    %c0_47 = arith.constant 0 : index
    %c0_48 = arith.constant 0 : index
    %55 = vector.load %arg16[%c0_46, %c0_47, %c0_48] : memref<1x1x256xf32, #tpu.memory_space<vmem>>, vector<1x1x256xf32>
    %56 = vector.shape_cast %55 : vector<1x1x256xf32> to vector<1x256xf32>
    %cst_49 = arith.constant dense<0.000000e+00> : vector<256xf32>
    %57 = vector.multi_reduction <add>, %38, %cst_49 [0] : vector<16x256xf32> to vector<256xf32>
    %58 = vector.shape_cast %57 : vector<256xf32> to vector<1x256xf32>
    %59 = arith.addf %56, %58 : vector<1x256xf32>
    %c0_50 = arith.constant 0 : index
    %c0_51 = arith.constant 0 : index
    %c0_52 = arith.constant 0 : index
    %60 = vector.load %arg16[%c0_50, %c0_51, %c0_52] : memref<1x1x256xf32, #tpu.memory_space<vmem>>, vector<1x1x256xf32>
    %61 = vector.shape_cast %60 : vector<1x1x256xf32> to vector<1x256xf32>
    %62 = vector.shape_cast %59 : vector<1x256xf32> to vector<1x1x256xf32>
    tpu.vector_store %arg16[%c0_50, %c0_51, %c0_52], %62 {strides = array<i32>} : memref<1x1x256xf32, #tpu.memory_space<vmem>>, vector<1x1x256xf32>,
    %c0_53 = arith.constant 0 : index
    %c0_54 = arith.constant 0 : index
    %c0_55 = arith.constant 0 : index
    %63 = vector.load %arg17[%c0_53, %c0_54, %c0_55] : memref<1x1x40xf32, #tpu.memory_space<vmem>>, vector<1x1x40xf32>
    %64 = vector.shape_cast %63 : vector<1x1x40xf32> to vector<1x40xf32>
    %cst_56 = arith.constant dense<0xFF800000> : vector<40xf32>
    %65 = vector.multi_reduction <maximumf>, %43, %cst_56 [0] : vector<16x40xf32> to vector<40xf32>
    %66 = vector.shape_cast %65 : vector<40xf32> to vector<1x40xf32>
    %67 = arith.maximumf %64, %66 : vector<1x40xf32>
    %c0_57 = arith.constant 0 : index
    %c0_58 = arith.constant 0 : index
    %c0_59 = arith.constant 0 : index
    %68 = vector.load %arg17[%c0_57, %c0_58, %c0_59] : memref<1x1x40xf32, #tpu.memory_space<vmem>>, vector<1x1x40xf32>
    %69 = vector.shape_cast %68 : vector<1x1x40xf32> to vector<1x40xf32>
    %70 = vector.shape_cast %67 : vector<1x40xf32> to vector<1x1x40xf32>
    tpu.vector_store %arg17[%c0_57, %c0_58, %c0_59], %70 {strides = array<i32>} : memref<1x1x40xf32, #tpu.memory_space<vmem>>, vector<1x1x40xf32>,
    %c0_60 = arith.constant 0 : index
    %c0_61 = arith.constant 0 : index
    %c0_62 = arith.constant 0 : index
    %71 = vector.load %arg18[%c0_60, %c0_61, %c0_62] : memref<1x1x40xf32, #tpu.memory_space<vmem>>, vector<1x1x40xf32>
    %72 = vector.shape_cast %71 : vector<1x1x40xf32> to vector<1x40xf32>
    %cst_63 = arith.constant dense<0.000000e+00> : vector<40xf32>
    %73 = vector.multi_reduction <add>, %43, %cst_63 [0] : vector<16x40xf32> to vector<40xf32>
    %74 = vector.shape_cast %73 : vector<40xf32> to vector<1x40xf32>
    %75 = arith.addf %72, %74 : vector<1x40xf32>
    %c0_64 = arith.constant 0 : index
    %c0_65 = arith.constant 0 : index
    %c0_66 = arith.constant 0 : index
    %76 = vector.load %arg18[%c0_64, %c0_65, %c0_66] : memref<1x1x40xf32, #tpu.memory_space<vmem>>, vector<1x1x40xf32>
    %77 = vector.shape_cast %76 : vector<1x1x40xf32> to vector<1x40xf32>
    %78 = vector.shape_cast %75 : vector<1x40xf32> to vector<1x1x40xf32>
    tpu.vector_store %arg18[%c0_64, %c0_65, %c0_66], %78 {strides = array<i32>} : memref<1x1x40xf32, #tpu.memory_space<vmem>>, vector<1x1x40xf32>,
    return
  }
  func.func @transform_0(%arg0: i32, %arg1: i32) -> (i32, i32, i32) {
    %c0_i32 = arith.constant 0 : i32
    %c0_i32_0 = arith.constant 0 : i32
    return %arg0, %arg1, %c0_i32 : i32, i32, i32
  }
  func.func @transform_1(%arg0: i32, %arg1: i32) -> (i32, i32, i32) {
    %c0_i32 = arith.constant 0 : i32
    %c0_i32_0 = arith.constant 0 : i32
    return %arg0, %arg1, %c0_i32 : i32, i32, i32
  }
  func.func @transform_2(%arg0: i32, %arg1: i32) -> (i32, i32, i32) {
    %c0_i32 = arith.constant 0 : i32
    %c0_i32_0 = arith.constant 0 : i32
    return %arg0, %arg1, %c0_i32 : i32, i32, i32
  }
  func.func @transform_3(%arg0: i32, %arg1: i32) -> (i32, i32, i32) {
    %c0_i32 = arith.constant 0 : i32
    %c0_i32_0 = arith.constant 0 : i32
    %c0_i32_1 = arith.constant 0 : i32
    return %arg0, %c0_i32, %c0_i32_0 : i32, i32, i32
  }
  func.func @transform_4(%arg0: i32, %arg1: i32) -> (i32, i32) {
    %c0_i32 = arith.constant 0 : i32
    %c0_i32_0 = arith.constant 0 : i32
    %c0_i32_1 = arith.constant 0 : i32
    return %c0_i32, %c0_i32_0 : i32, i32
  }
  func.func @transform_5(%arg0: i32, %arg1: i32) -> (i32, i32) {
    %c0_i32 = arith.constant 0 : i32
    %c0_i32_0 = arith.constant 0 : i32
    %c0_i32_1 = arith.constant 0 : i32
    return %c0_i32, %c0_i32_0 : i32, i32
  }
  func.func @transform_6(%arg0: i32, %arg1: i32) -> (i32, i32) {
    %c0_i32 = arith.constant 0 : i32
    %c0_i32_0 = arith.constant 0 : i32
    %c0_i32_1 = arith.constant 0 : i32
    return %c0_i32, %c0_i32_0 : i32, i32
  }
  func.func @transform_7(%arg0: i32, %arg1: i32) -> (i32, i32) {
    %c0_i32 = arith.constant 0 : i32
    %c0_i32_0 = arith.constant 0 : i32
    %c0_i32_1 = arith.constant 0 : i32
    return %c0_i32, %c0_i32_0 : i32, i32
  }
  func.func @transform_8(%arg0: i32, %arg1: i32) -> (i32, i32) {
    %c0_i32 = arith.constant 0 : i32
    %c0_i32_0 = arith.constant 0 : i32
    %c0_i32_1 = arith.constant 0 : i32
    return %c0_i32, %c0_i32_0 : i32, i32
  }
  func.func @transform_9(%arg0: i32, %arg1: i32) -> (i32, i32) {
    %c0_i32 = arith.constant 0 : i32
    %c0_i32_0 = arith.constant 0 : i32
    %c0_i32_1 = arith.constant 0 : i32
    return %c0_i32, %c0_i32_0 : i32, i32
  }
  func.func @transform_10(%arg0: i32, %arg1: i32) -> (i32, i32) {
    %c0_i32 = arith.constant 0 : i32
    %c0_i32_0 = arith.constant 0 : i32
    %c0_i32_1 = arith.constant 0 : i32
    return %c0_i32, %c0_i32_0 : i32, i32
  }
  func.func @transform_11(%arg0: i32, %arg1: i32) -> (i32, i32) {
    %c0_i32 = arith.constant 0 : i32
    %c0_i32_0 = arith.constant 0 : i32
    %c0_i32_1 = arith.constant 0 : i32
    return %c0_i32, %c0_i32_0 : i32, i32
  }
  func.func @transform_12(%arg0: i32, %arg1: i32) -> (i32, i32, i32) {
    %c0_i32 = arith.constant 0 : i32
    %c0_i32_0 = arith.constant 0 : i32
    return %arg0, %arg1, %c0_i32 : i32, i32, i32
  }
  func.func @transform_13(%arg0: i32, %arg1: i32) -> (i32, i32, i32) {
    %c0_i32 = arith.constant 0 : i32
    %c0_i32_0 = arith.constant 0 : i32
    %c0_i32_1 = arith.constant 0 : i32
    return %arg0, %c0_i32, %c0_i32_0 : i32, i32, i32
  }
  func.func @transform_14(%arg0: i32, %arg1: i32) -> (i32, i32, i32) {
    %c0_i32 = arith.constant 0 : i32
    %c0_i32_0 = arith.constant 0 : i32
    %c0_i32_1 = arith.constant 0 : i32
    return %arg0, %c0_i32, %c0_i32_0 : i32, i32, i32
  }
  func.func @transform_15(%arg0: i32, %arg1: i32) -> (i32, i32, i32) {
    %c0_i32 = arith.constant 0 : i32
    %c0_i32_0 = arith.constant 0 : i32
    %c0_i32_1 = arith.constant 0 : i32
    return %arg0, %c0_i32, %c0_i32_0 : i32, i32, i32
  }
  func.func @transform_16(%arg0: i32, %arg1: i32) -> (i32, i32, i32) {
    %c0_i32 = arith.constant 0 : i32
    %c0_i32_0 = arith.constant 0 : i32
    %c0_i32_1 = arith.constant 0 : i32
    return %arg0, %c0_i32, %c0_i32_0 : i32, i32, i32
  }
}

module attributes {stable_mosaic.version = 11 : i64} {
  func.func @_linear_kernel(%arg0: i32, %arg1: memref<2x80xf32, #tpu.memory_space<vmem>>, %arg2: memref<80x40xf32, #tpu.memory_space<vmem>>, %arg3: memref<2x40xf32, #tpu.memory_space<vmem>>) attributes {dimension_semantics = [#tpu.dimension_semantics<arbitrary>], iteration_bounds = array<i64: 1>, scalar_prefetch = 0 : i64, scratch_operands = 0 : i64, tpu.core_type = #tpu.core_type<tc>, window_params = [{pipeline_mode = #tpu.pipeline_mode<synchronous>, transform_indices = @transform_0, window_bounds = array<i64: 2, 80>}, {pipeline_mode = #tpu.pipeline_mode<synchronous>, transform_indices = @transform_1, window_bounds = array<i64: 80, 40>}, {pipeline_mode = #tpu.pipeline_mode<synchronous>, transform_indices = @transform_2, window_bounds = array<i64: 2, 40>}]} {
    %c0 = arith.constant 0 : index
    %c0_0 = arith.constant 0 : index
    %0 = vector.load %arg1[%c0, %c0_0] : memref<2x80xf32, #tpu.memory_space<vmem>>, vector<2x80xf32>
    %c0_1 = arith.constant 0 : index
    %c0_2 = arith.constant 0 : index
    %1 = vector.load %arg2[%c0_1, %c0_2] : memref<80x40xf32, #tpu.memory_space<vmem>>, vector<80x40xf32>
    %cst = arith.constant dense<0.000000e+00> : vector<2x40xf32>
    %2 = tpu.matmul %0, %1, %cst {dimension_numbers = #tpu.dot_dimension_numbers<[1], [0], [0], [1], [0, 0, 1, 1], [], []>} : vector<2x80xf32>, vector<80x40xf32>, vector<2x40xf32> -> vector<2x40xf32>
    %c0_3 = arith.constant 0 : index
    %c0_4 = arith.constant 0 : index
    %3 = vector.load %arg3[%c0_3, %c0_4] : memref<2x40xf32, #tpu.memory_space<vmem>>, vector<2x40xf32>
    tpu.vector_store %arg3[%c0_3, %c0_4], %2 {strides = array<i32>} : memref<2x40xf32, #tpu.memory_space<vmem>>, vector<2x40xf32>,
    return
  }
  func.func @transform_0(%arg0: i32) -> (i32, i32) {
    %c0_i32 = arith.constant 0 : i32
    %c0_i32_0 = arith.constant 0 : i32
    %c0_i32_1 = arith.constant 0 : i32
    return %c0_i32, %c0_i32_0 : i32, i32
  }
  func.func @transform_1(%arg0: i32) -> (i32, i32) {
    %c0_i32 = arith.constant 0 : i32
    %c0_i32_0 = arith.constant 0 : i32
    %c0_i32_1 = arith.constant 0 : i32
    return %c0_i32, %c0_i32_0 : i32, i32
  }
  func.func @transform_2(%arg0: i32) -> (i32, i32) {
    %c0_i32 = arith.constant 0 : i32
    %c0_i32_0 = arith.constant 0 : i32
    %c0_i32_1 = arith.constant 0 : i32
    return %c0_i32, %c0_i32_0 : i32, i32
  }
}

</mosaic_0001>

<llo_original>
// kernel: dgcnn_seg_forward.9
$region0: #{dgcnn_seg_forward.9}
  #allocation0 [shape = 'u32[]', space=smem, size = 0x4, offset = 0x4, fixed_abs, tag = 'smem constant byte address 0x4 - core index']
  #allocation1 [shape = 'u32[72,128]{1,0:T(1,128)}', space=vmem, size = 0x9000, scoped, tag = 'internal scratch']
  %s0 = inlined_call_operand.vmem [shape: f32[2,16,3], index: 0, kind: input, shape index: {}, may-alias: {0,1}]
  %s1 = inlined_call_operand.vmem [shape: f32[2,16,3], index: 1, kind: input, shape index: {}, may-alias: {0,1}]
  %s2 = inlined_call_operand.vmem [shape: f32[2,1,16], index: 2, kind: input, shape index: {}]
  %s3 = inlined_call_operand.vmem [shape: f32[2,16,16], index: 3, kind: output, shape index: {}]
  %s4 = sld [smem:[#allocation0]]
  $region45: #{dgcnn_seg_forward.9} parent=0
    _
  %s6 = ssub.s32 1, %s4
  %s7 = scalar_select 0, %s6, %s4
  loop: start=0, step=1, limit=4
  $region2: #{dgcnn_seg_forward.9} parent=0 // loop_pre_header
    _
  $region3: #{dgcnn_seg_forward.9} parent=0 // loop_header
    %s9 = sphi 0, %s13
    %p10 = scmp.ge.s32.totalorder %s9, 4
    %s16 = sphi 0, %s28
    %s17 = sphi 0, %s24
    %s18 = sphi 0, %s16
    %s19 = sphi 0, %s17
    %s20 = sphi 0, %s18
    %s21 = sphi 0, %s19
    %s33 = sphi 0, %s35
    %s36 = sphi 0, %s33
    %s37 = sphi 0, %s36
    %s53 = sphi 0, %s37
    %s59 = sphi 0, %s61
    %s62 = sphi 0, %s59
    %s63 = sphi 0, %s62
    %s79 = sphi 0, %s63
    %s85 = sphi 0, %s87
    %s88 = sphi 0, %s85
    %s89 = sphi 0, %s88
    %s105 = sphi 0, %s89
    %s113 = sphi 0, %s115
    %s116 = sphi 0, %s113
    %s117 = sphi 0, %s116
    %s133 = sphi 0, %s117
  $region4: #{dgcnn_seg_forward.9} parent=0 // loop_header_branch
    %12 = sbr.rel (%p10) target = $region8
  $region5: #{dgcnn_seg_forward.9} parent=0 // loop_body
    %s14 = ssub.s32 %s9, 1
    %s15 = ssub.s32 %s9, 2
    %s22 = sadd.s32 1, %s17
    %p23 = scmp.ge.s32.totalorder %s22, 1
    %s24 = scalar_select %p23, 0, %s22
    %s25 = sadd.s32 1, %s16
    %s26 = scalar_select %p23, %s25, %s16
    %p27 = scmp.ge.s32.totalorder %s26, 2
    %s28 = scalar_select %p27, 0, %s26
    %s29 = ssub.s32 %s16, %s28
    %s30 = ssub.s32 %s17, %s24
    %s31 = sor.u32 %s29, %s30
    %p32 = scmp.eq.s32.totalorder %s31, 0
    %s34 = sadd.s32 %s33, 1
    %s35 = scalar_select %p32, %s33, %s34
    %p38 = pneg %p32
    %p39 = scmp.eq.s32.totalorder %s9, 1
    %p40 = por %p38, %p39
    %p41 = scmp.ne.s32.totalorder %s33, %s36
    %p42 = scmp.eq.s32.totalorder %s9, 0
    %p43 = por %p41, %p42
    %p44 = scmp.ne.s32.totalorder %s33, %s36
    %p45 = scmp.eq.s32.totalorder %s14, 1
    %p46 = por %p44, %p45
    %p47 = scmp.ne.s32.totalorder %s36, %s37
    %p48 = scmp.eq.s32.totalorder %s14, 0
    %p49 = por %p47, %p48
    %p50 = scmp.ne.s32.totalorder %s36, %s37
    %p51 = scmp.eq.s32.totalorder %s15, 1
    %p52 = por %p50, %p51
    %p54 = scmp.ne.s32.totalorder %s37, %s53
    %p55 = scmp.eq.s32.totalorder %s15, 0
    %p56 = por %p54, %p55
    %s57 = ssub.s32 %s16, %s28
    %p58 = scmp.eq.s32.totalorder %s57, 0
    %s60 = sadd.s32 %s59, 1
    %s61 = scalar_select %p58, %s59, %s60
    %p64 = pneg %p58
    %p65 = scmp.eq.s32.totalorder %s9, 1
    %p66 = por %p64, %p65
    %p67 = scmp.ne.s32.totalorder %s59, %s62
    %p68 = scmp.eq.s32.totalorder %s9, 0
    %p69 = por %p67, %p68
    %p70 = scmp.ne.s32.totalorder %s59, %s62
    %p71 = scmp.eq.s32.totalorder %s14, 1
    %p72 = por %p70, %p71
    %p73 = scmp.ne.s32.totalorder %s62, %s63
    %p74 = scmp.eq.s32.totalorder %s14, 0
    %p75 = por %p73, %p74
    %p76 = scmp.ne.s32.totalorder %s62, %s63
    %p77 = scmp.eq.s32.totalorder %s15, 1
    %p78 = por %p76, %p77
    %p80 = scmp.ne.s32.totalorder %s63, %s79
    %p81 = scmp.eq.s32.totalorder %s15, 0
    %p82 = por %p80, %p81
    %s83 = ssub.s32 %s16, %s28
    %p84 = scmp.eq.s32.totalorder %s83, 0
    %s86 = sadd.s32 %s85, 1
    %s87 = scalar_select %p84, %s85, %s86
    %p90 = pneg %p84
    %p91 = scmp.eq.s32.totalorder %s9, 1
    %p92 = por %p90, %p91
    %p93 = scmp.ne.s32.totalorder %s85, %s88
    %p94 = scmp.eq.s32.totalorder %s9, 0
    %p95 = por %p93, %p94
    %p96 = scmp.ne.s32.totalorder %s85, %s88
    %p97 = scmp.eq.s32.totalorder %s14, 1
    %p98 = por %p96, %p97
    %p99 = scmp.ne.s32.totalorder %s88, %s89
    %p100 = scmp.eq.s32.totalorder %s14, 0
    %p101 = por %p99, %p100
    %p102 = scmp.ne.s32.totalorder %s88, %s89
    %p103 = scmp.eq.s32.totalorder %s15, 1
    %p104 = por %p102, %p103
    %p106 = scmp.ne.s32.totalorder %s89, %s105
    %p107 = scmp.eq.s32.totalorder %s15, 0
    %p108 = por %p106, %p107
    %s109 = ssub.s32 %s16, %s28
    %s110 = ssub.s32 %s17, %s24
    %s111 = sor.u32 %s109, %s110
    %p112 = scmp.eq.s32.totalorder %s111, 0
    %s114 = sadd.s32 %s113, 1
    %s115 = scalar_select %p112, %s113, %s114
    %p118 = pneg %p112
    %p119 = scmp.eq.s32.totalorder %s9, 1
    %p120 = por %p118, %p119
    %p121 = scmp.ne.s32.totalorder %s113, %s116
    %p122 = scmp.eq.s32.totalorder %s9, 0
    %p123 = por %p121, %p122
    %p124 = scmp.ne.s32.totalorder %s113, %s116
    %p125 = scmp.eq.s32.totalorder %s14, 1
    %p126 = por %p124, %p125
    %p127 = scmp.ne.s32.totalorder %s116, %s117
    %p128 = scmp.eq.s32.totalorder %s14, 0
    %p129 = por %p127, %p128
    %p130 = scmp.ne.s32.totalorder %s116, %s117
    %p131 = scmp.eq.s32.totalorder %s15, 1
    %p132 = por %p130, %p131
    %p134 = scmp.ne.s32.totalorder %s117, %s133
    %p135 = scmp.eq.s32.totalorder %s15, 0
    %p136 = por %p134, %p135
    %p137 = scmp.le.s32.totalorder 1, %s9
    %p138 = scmp.lt.s32.totalorder %s9, 3
    %p139 = pnand %p137, %p138
    %p140 = pneg %p139
    // Predicated region
    $region9: #{dgcnn_seg_forward.9} parent=5 // pred_check
      _
    $region10: #{dgcnn_seg_forward.9} parent=5 // pred_check_branch
      %142 = sbr.rel (%p139) target = $region12
    $region11: #{dgcnn_seg_forward.9} parent=5 // pred_region
      %s143 = ssub.s32 %s9, 1
    $region12: #{dgcnn_seg_forward.9} parent=5 // pred_fallthru
      _
    %p144 = scmp.lt.s32.totalorder %s9, 2
    // Predicated region
    $region13: #{dgcnn_seg_forward.9} parent=5 // pred_check
      %p145 = pneg %p144
    $region14: #{dgcnn_seg_forward.9} parent=5 // pred_check_branch
      %147 = sbr.rel (%p145) target = $region16
    $region15: #{dgcnn_seg_forward.9} parent=5 // pred_region
      // Predicated region
      $region17: #{dgcnn_seg_forward.9} parent=15 // pred_check
        %p148 = pneg %p43
      $region18: #{dgcnn_seg_forward.9} parent=15 // pred_check_branch
        %150 = sbr.rel (%p148) target = $region20
      $region19: #{dgcnn_seg_forward.9} parent=15 // pred_region
        %s151 = smul.u32 2, %s17
        %p152 = scmp.lt.s32.totalorder %s16, 1
        %s153 = scalar_select %p152, %s16, 1
        %p154 = scmp.lt.s32.totalorder %s151, 1
        %s155 = scalar_select %p154, %s151, 1
        %s156 = smul.addr %s153, 2
        %s157 = sadd.s32 %s155, %s156
        %s158 = smul.addr %s157, 8
        %s159 = scalar_lea.vmem %s0, %s158
        %s160 = smul.u32 2, %s17
      $region20: #{dgcnn_seg_forward.9} parent=15 // pred_fallthru
        _
      // Predicated region
      $region21: #{dgcnn_seg_forward.9} parent=15 // pred_check
        %p161 = pneg %p69
      $region22: #{dgcnn_seg_forward.9} parent=15 // pred_check_branch
        %163 = sbr.rel (%p161) target = $region24
      $region23: #{dgcnn_seg_forward.9} parent=15 // pred_region
        %p164 = scmp.lt.s32.totalorder %s16, 1
        %s165 = scalar_select %p164, %s16, 1
        %s166 = smul.addr %s165, 2
        %s167 = smul.addr %s166, 8
        %s168 = scalar_lea.vmem %s1, %s167
      $region24: #{dgcnn_seg_forward.9} parent=15 // pred_fallthru
        _
      // Predicated region
      $region25: #{dgcnn_seg_forward.9} parent=15 // pred_check
        %p169 = pneg %p95
      $region26: #{dgcnn_seg_forward.9} parent=15 // pred_check_branch
        %171 = sbr.rel (%p169) target = $region28
      $region27: #{dgcnn_seg_forward.9} parent=15 // pred_region
        %p172 = scmp.lt.s32.totalorder %s16, 1
        %s173 = scalar_select %p172, %s16, 1
        %s174 = scalar_lea.vmem %s2, %s173
      $region28: #{dgcnn_seg_forward.9} parent=15 // pred_fallthru
        _
    $region16: #{dgcnn_seg_forward.9} parent=5 // pred_fallthru
      _
    %p175 = scmp.le.s32.totalorder 1, %s9
    %p176 = scmp.lt.s32.totalorder %s9, 3
    %p177 = pnand %p175, %p176
    %p178 = pneg %p177
    // Predicated region
    $region29: #{dgcnn_seg_forward.9} parent=5 // pred_check
      _
    $region30: #{dgcnn_seg_forward.9} parent=5 // pred_check_branch
      %180 = sbr.rel (%p177) target = $region32
    $region31: #{dgcnn_seg_forward.9} parent=5 // pred_region
      %s181 = ssub.s32 %s9, 1
      %s182 = smul.u32 2, %s19
      %p183 = scmp.lt.s32.totalorder %s18, 1
      %s184 = scalar_select %p183, %s18, 1
      %p185 = scmp.lt.s32.totalorder %s182, 1
      %s186 = scalar_select %p185, %s182, 1
      %s187 = smul.addr %s184, 2
      %s188 = sadd.s32 %s186, %s187
      %s189 = smul.addr %s188, 8
      %s190 = scalar_lea.vmem %s0, %s189
      %p191 = pneg %p49
      %p192 = pneg %p46
      %p193 = scmp.lt.s32.totalorder %s18, 1
      %s194 = scalar_select %p193, %s18, 1
      %s195 = smul.addr %s194, 2
      %s196 = smul.addr %s195, 8
      %s197 = scalar_lea.vmem %s1, %s196
      %p198 = pneg %p75
      %p199 = pneg %p72
      %p200 = scmp.lt.s32.totalorder %s18, 1
      %s201 = scalar_select %p200, %s18, 1
      %s202 = scalar_lea.vmem %s2, %s201
      %p203 = pneg %p101
      %p204 = pneg %p98
      %p205 = pneg %p129
      %p206 = pneg %p126
      %s207 = smul.u32 2, %s19
      %p208 = scmp.lt.s32.totalorder %s18, 1
      %s209 = scalar_select %p208, %s18, 1
      %p210 = scmp.lt.s32.totalorder %s207, 1
      %s211 = scalar_select %p210, %s207, 1
      %s212 = smul.addr %s209, 2
      %s213 = sadd.s32 %s211, %s212
      %s214 = smul.addr %s213, 8
      %s215 = scalar_lea.vmem %s3, %s214
      %s216 = smul.u32 2, %s19
      %p217 = scmp.lt.s32.totalorder %s18, 1
      %s218 = scalar_select %p217, %s18, 1
      %p219 = scmp.lt.s32.totalorder %s216, 1
      %s220 = scalar_select %p219, %s216, 1
      %s221 = smul.addr %s218, 2
      %s222 = sadd.s32 %s220, %s221
      %s223 = smul.addr %s222, 8
      %s224 = scalar_lea.vmem %s0, %s223
      %s225 = smul.u32 2, %s19
      %p226 = scmp.lt.s32.totalorder %s18, 1
      %s227 = scalar_select %p226, %s18, 1
      %s228 = smul.addr %s227, 2
      %s229 = smul.addr %s228, 8
      %s230 = scalar_lea.vmem %s1, %s229
      %p231 = scmp.lt.s32.totalorder %s18, 1
      %s232 = scalar_select %p231, %s18, 1
      %s233 = scalar_lea.vmem %s2, %s232
      %s234 = smul.u32 2, %s19
      %p235 = scmp.lt.s32.totalorder %s18, 1
      %s236 = scalar_select %p235, %s18, 1
      %p237 = scmp.lt.s32.totalorder %s234, 1
      %s238 = scalar_select %p237, %s234, 1
      %s239 = smul.addr %s236, 2
      %s240 = sadd.s32 %s238, %s239
      %s241 = smul.addr %s240, 8
      %s242 = scalar_lea.vmem %s3, %s241
      %s243 = smul.u32 2, %s19
      %v244 = vld [vmem:[%s224] sm:$0xff]
      %v245 = vld [vmem:[%s224 + $0x8] sm:$0xff]
      %v246 = vld [vmem:[%s230] sm:$0xff]
      %v247 = vld [vmem:[%s230 + $0x8] sm:$0xff]
      %vm248 = vcmask 23552
      %v250 = vsel %vm248, %v244, 0
      %v253 = vsel %vm248, %v245, 0
      %v256 = vsel %vm248, %v246, 0
      %v259 = vsel %vm248, %v247, 0
      %261 = vmatpush.xpose.msra.mxu0 0.0
      %262 = vmatpush.xpose.msra.mxu0 0.0
      %263 = vmatpush.xpose.msra.mxu0 0.0
      %264 = vmatpush.xpose.msra.mxu0 0.0
      %265 = vmatpush.xpose.msra.mxu0 0.0
      %266 = vmatpush.xpose.msra.mxu0 0.0
      %267 = vmatpush.xpose.msra.mxu0 0.0
      %268 = vmatpush.xpose.msra.mxu0 0.0
      %269 = vmatpush.xpose.msra.mxu0 0.0
      %270 = vmatpush.xpose.msra.mxu0 0.0
      %271 = vmatpush.xpose.msra.mxu0 0.0
      %272 = vmatpush.xpose.msra.mxu0 0.0
      %273 = vmatpush.xpose.msra.mxu0 0.0
      %274 = vmatpush.xpose.msra.mxu0 0.0
      %275 = vmatpush.xpose.msra.mxu0 %v259
      %276 = vmatpush.xpose.msra.mxu0 %v256
      %277 = vmatmul.f32.gmra.mxu0 %v250
      %v278 = vpop.f32.mrf.mxu0
      %v279 = vadd.f32 0.0, %v278
      %280 = vmatmul.f32.gmra.mxu0 %v253
      %v281 = vpop.f32.mrf.mxu0
      %v282 = vadd.f32 0.0, %v281
      %283 = vdwg.mxu0
      %v284 = vmul.f32 %v244, %v244
      %v285 = vmul.f32 %v245, %v245
      %v286 = vsel %vm248, %v284, 0.0
      %287 = vadd.xlane.f32.xlu0 %v286
      %v288 = vpop.xlane.xlu0 %287
      %v289 = vsel %vm248, %v285, 0.0
      %290 = vadd.xlane.f32.xlu0 %v289
      %v291 = vpop.xlane.xlu0 %290
      %v292 = vmul.f32 %v279, 2.0
      %v293 = vmul.f32 %v282, 2.0
      %v294 = vsub.f32 %v292, %v288
      %v295 = vsub.f32 %v293, %v291
      %v296 = vld [vmem:[%s233] sm:$0x1]
      %v298 = vperm.slane %v296, 0
      %v300 = vsub.f32 %v294, %v298
      %v301 = vsub.f32 %v295, %v298
      %vm302 = vcmask 130048
      %303 = vst.msk [vmem:[%s242] sm:$0xff] %vm302, %v300
      %304 = vst.msk [vmem:[%s242 + $0x8] sm:$0xff] %vm302, %v301
      %s305 = smul.u32 2, %s19
      %p306 = scmp.lt.s32.totalorder %s18, 1
      %s307 = scalar_select %p306, %s18, 1
      %p308 = scmp.lt.s32.totalorder %s305, 1
      %s309 = scalar_select %p308, %s305, 1
      %s310 = smul.addr %s307, 2
      %s311 = sadd.s32 %s309, %s310
      %s312 = smul.addr %s311, 8
      %s313 = scalar_lea.vmem %s3, %s312
      // Predicated region
      $region33: #{dgcnn_seg_forward.9} parent=31 // pred_check
        %p314 = pneg %p126
      $region34: #{dgcnn_seg_forward.9} parent=31 // pred_check_branch
        %316 = sbr.rel (%p314) target = $region36
      $region35: #{dgcnn_seg_forward.9} parent=31 // pred_region
        %s317 = smul.u32 2, %s19
      $region36: #{dgcnn_seg_forward.9} parent=31 // pred_fallthru
        _
    $region32: #{dgcnn_seg_forward.9} parent=5 // pred_fallthru
      _
    %p318 = scmp.le.s32.totalorder 2, %s9
    // Predicated region
    $region37: #{dgcnn_seg_forward.9} parent=5 // pred_check
      %p319 = pneg %p318
    $region38: #{dgcnn_seg_forward.9} parent=5 // pred_check_branch
      %321 = sbr.rel (%p319) target = $region40
    $region39: #{dgcnn_seg_forward.9} parent=5 // pred_region
      %s322 = ssub.s32 %s9, 2
      // Predicated region
      $region41: #{dgcnn_seg_forward.9} parent=39 // pred_check
        %p323 = pneg %p132
      $region42: #{dgcnn_seg_forward.9} parent=39 // pred_check_branch
        %325 = sbr.rel (%p323) target = $region44
      $region43: #{dgcnn_seg_forward.9} parent=39 // pred_region
        %s326 = smul.u32 2, %s21
        %p327 = scmp.lt.s32.totalorder %s20, 1
        %s328 = scalar_select %p327, %s20, 1
        %p329 = scmp.lt.s32.totalorder %s326, 1
        %s330 = scalar_select %p329, %s326, 1
        %s331 = smul.addr %s328, 2
        %s332 = sadd.s32 %s330, %s331
        %s333 = smul.addr %s332, 8
        %s334 = scalar_lea.vmem %s3, %s333
      $region44: #{dgcnn_seg_forward.9} parent=39 // pred_fallthru
        _
    $region40: #{dgcnn_seg_forward.9} parent=5 // pred_fallthru
      _
  $region6: #{dgcnn_seg_forward.9} parent=0 // loop_footer
    %s13 = sadd.s32 1, %s9
  $region7: #{dgcnn_seg_forward.9} parent=0 // loop_footer_branch
    %8 = sbr.rel target = $region3
  $region8: #{dgcnn_seg_forward.9} parent=0 // loop_exit
    _

// kernel: dgcnn_seg_forward.11
$region0: #{dgcnn_seg_forward.11}
  #allocation0 [shape = 'u32[]', space=smem, size = 0x4, offset = 0x4, fixed_abs, tag = 'smem constant byte address 0x4 - core index']
  #allocation1 [shape = 'u32[72,128]{1,0:T(1,128)}', space=vmem, size = 0x9000, scoped, tag = 'internal scratch']
  %s0 = inlined_call_operand.vmem [shape: f32[2,16,64], index: 0, kind: input, shape index: {}, may-alias: {0,1}]
  %s1 = inlined_call_operand.vmem [shape: f32[2,16,64], index: 1, kind: input, shape index: {}, may-alias: {0,1}]
  %s2 = inlined_call_operand.vmem [shape: f32[2,1,16], index: 2, kind: input, shape index: {}]
  %s3 = inlined_call_operand.vmem [shape: f32[2,16,16], index: 3, kind: output, shape index: {}]
  %s4 = sld [smem:[#allocation0]]
  $region45: #{dgcnn_seg_forward.11} parent=0
    _
  %s6 = ssub.s32 1, %s4
  %s7 = scalar_select 0, %s6, %s4
  loop: start=0, step=1, limit=4
  $region2: #{dgcnn_seg_forward.11} parent=0 // loop_pre_header
    _
  $region3: #{dgcnn_seg_forward.11} parent=0 // loop_header
    %s9 = sphi 0, %s13
    %p10 = scmp.ge.s32.totalorder %s9, 4
    %s16 = sphi 0, %s28
    %s17 = sphi 0, %s24
    %s18 = sphi 0, %s16
    %s19 = sphi 0, %s17
    %s20 = sphi 0, %s18
    %s21 = sphi 0, %s19
    %s33 = sphi 0, %s35
    %s36 = sphi 0, %s33
    %s37 = sphi 0, %s36
    %s53 = sphi 0, %s37
    %s59 = sphi 0, %s61
    %s62 = sphi 0, %s59
    %s63 = sphi 0, %s62
    %s79 = sphi 0, %s63
    %s85 = sphi 0, %s87
    %s88 = sphi 0, %s85
    %s89 = sphi 0, %s88
    %s105 = sphi 0, %s89
    %s113 = sphi 0, %s115
    %s116 = sphi 0, %s113
    %s117 = sphi 0, %s116
    %s133 = sphi 0, %s117
  $region4: #{dgcnn_seg_forward.11} parent=0 // loop_header_branch
    %12 = sbr.rel (%p10) target = $region8
  $region5: #{dgcnn_seg_forward.11} parent=0 // loop_body
    %s14 = ssub.s32 %s9, 1
    %s15 = ssub.s32 %s9, 2
    %s22 = sadd.s32 1, %s17
    %p23 = scmp.ge.s32.totalorder %s22, 1
    %s24 = scalar_select %p23, 0, %s22
    %s25 = sadd.s32 1, %s16
    %s26 = scalar_select %p23, %s25, %s16
    %p27 = scmp.ge.s32.totalorder %s26, 2
    %s28 = scalar_select %p27, 0, %s26
    %s29 = ssub.s32 %s16, %s28
    %s30 = ssub.s32 %s17, %s24
    %s31 = sor.u32 %s29, %s30
    %p32 = scmp.eq.s32.totalorder %s31, 0
    %s34 = sadd.s32 %s33, 1
    %s35 = scalar_select %p32, %s33, %s34
    %p38 = pneg %p32
    %p39 = scmp.eq.s32.totalorder %s9, 1
    %p40 = por %p38, %p39
    %p41 = scmp.ne.s32.totalorder %s33, %s36
    %p42 = scmp.eq.s32.totalorder %s9, 0
    %p43 = por %p41, %p42
    %p44 = scmp.ne.s32.totalorder %s33, %s36
    %p45 = scmp.eq.s32.totalorder %s14, 1
    %p46 = por %p44, %p45
    %p47 = scmp.ne.s32.totalorder %s36, %s37
    %p48 = scmp.eq.s32.totalorder %s14, 0
    %p49 = por %p47, %p48
    %p50 = scmp.ne.s32.totalorder %s36, %s37
    %p51 = scmp.eq.s32.totalorder %s15, 1
    %p52 = por %p50, %p51
    %p54 = scmp.ne.s32.totalorder %s37, %s53
    %p55 = scmp.eq.s32.totalorder %s15, 0
    %p56 = por %p54, %p55
    %s57 = ssub.s32 %s16, %s28
    %p58 = scmp.eq.s32.totalorder %s57, 0
    %s60 = sadd.s32 %s59, 1
    %s61 = scalar_select %p58, %s59, %s60
    %p64 = pneg %p58
    %p65 = scmp.eq.s32.totalorder %s9, 1
    %p66 = por %p64, %p65
    %p67 = scmp.ne.s32.totalorder %s59, %s62
    %p68 = scmp.eq.s32.totalorder %s9, 0
    %p69 = por %p67, %p68
    %p70 = scmp.ne.s32.totalorder %s59, %s62
    %p71 = scmp.eq.s32.totalorder %s14, 1
    %p72 = por %p70, %p71
    %p73 = scmp.ne.s32.totalorder %s62, %s63
    %p74 = scmp.eq.s32.totalorder %s14, 0
    %p75 = por %p73, %p74
    %p76 = scmp.ne.s32.totalorder %s62, %s63
    %p77 = scmp.eq.s32.totalorder %s15, 1
    %p78 = por %p76, %p77
    %p80 = scmp.ne.s32.totalorder %s63, %s79
    %p81 = scmp.eq.s32.totalorder %s15, 0
    %p82 = por %p80, %p81
    %s83 = ssub.s32 %s16, %s28
    %p84 = scmp.eq.s32.totalorder %s83, 0
    %s86 = sadd.s32 %s85, 1
    %s87 = scalar_select %p84, %s85, %s86
    %p90 = pneg %p84
    %p91 = scmp.eq.s32.totalorder %s9, 1
    %p92 = por %p90, %p91
    %p93 = scmp.ne.s32.totalorder %s85, %s88
    %p94 = scmp.eq.s32.totalorder %s9, 0
    %p95 = por %p93, %p94
    %p96 = scmp.ne.s32.totalorder %s85, %s88
    %p97 = scmp.eq.s32.totalorder %s14, 1
    %p98 = por %p96, %p97
    %p99 = scmp.ne.s32.totalorder %s88, %s89
    %p100 = scmp.eq.s32.totalorder %s14, 0
    %p101 = por %p99, %p100
    %p102 = scmp.ne.s32.totalorder %s88, %s89
    %p103 = scmp.eq.s32.totalorder %s15, 1
    %p104 = por %p102, %p103
    %p106 = scmp.ne.s32.totalorder %s89, %s105
    %p107 = scmp.eq.s32.totalorder %s15, 0
    %p108 = por %p106, %p107
    %s109 = ssub.s32 %s16, %s28
    %s110 = ssub.s32 %s17, %s24
    %s111 = sor.u32 %s109, %s110
    %p112 = scmp.eq.s32.totalorder %s111, 0
    %s114 = sadd.s32 %s113, 1
    %s115 = scalar_select %p112, %s113, %s114
    %p118 = pneg %p112
    %p119 = scmp.eq.s32.totalorder %s9, 1
    %p120 = por %p118, %p119
    %p121 = scmp.ne.s32.totalorder %s113, %s116
    %p122 = scmp.eq.s32.totalorder %s9, 0
    %p123 = por %p121, %p122
    %p124 = scmp.ne.s32.totalorder %s113, %s116
    %p125 = scmp.eq.s32.totalorder %s14, 1
    %p126 = por %p124, %p125
    %p127 = scmp.ne.s32.totalorder %s116, %s117
    %p128 = scmp.eq.s32.totalorder %s14, 0
    %p129 = por %p127, %p128
    %p130 = scmp.ne.s32.totalorder %s116, %s117
    %p131 = scmp.eq.s32.totalorder %s15, 1
    %p132 = por %p130, %p131
    %p134 = scmp.ne.s32.totalorder %s117, %s133
    %p135 = scmp.eq.s32.totalorder %s15, 0
    %p136 = por %p134, %p135
    %p137 = scmp.le.s32.totalorder 1, %s9
    %p138 = scmp.lt.s32.totalorder %s9, 3
    %p139 = pnand %p137, %p138
    %p140 = pneg %p139
    // Predicated region
    $region9: #{dgcnn_seg_forward.11} parent=5 // pred_check
      _
    $region10: #{dgcnn_seg_forward.11} parent=5 // pred_check_branch
      %142 = sbr.rel (%p139) target = $region12
    $region11: #{dgcnn_seg_forward.11} parent=5 // pred_region
      %s143 = ssub.s32 %s9, 1
    $region12: #{dgcnn_seg_forward.11} parent=5 // pred_fallthru
      _
    %p144 = scmp.lt.s32.totalorder %s9, 2
    // Predicated region
    $region13: #{dgcnn_seg_forward.11} parent=5 // pred_check
      %p145 = pneg %p144
    $region14: #{dgcnn_seg_forward.11} parent=5 // pred_check_branch
      %147 = sbr.rel (%p145) target = $region16
    $region15: #{dgcnn_seg_forward.11} parent=5 // pred_region
      // Predicated region
      $region17: #{dgcnn_seg_forward.11} parent=15 // pred_check
        %p148 = pneg %p43
      $region18: #{dgcnn_seg_forward.11} parent=15 // pred_check_branch
        %150 = sbr.rel (%p148) target = $region20
      $region19: #{dgcnn_seg_forward.11} parent=15 // pred_region
        %s151 = smul.u32 2, %s17
        %p152 = scmp.lt.s32.totalorder %s16, 1
        %s153 = scalar_select %p152, %s16, 1
        %p154 = scmp.lt.s32.totalorder %s151, 1
        %s155 = scalar_select %p154, %s151, 1
        %s156 = smul.addr %s153, 2
        %s157 = sadd.s32 %s155, %s156
        %s158 = smul.addr %s157, 8
        %s159 = scalar_lea.vmem %s0, %s158
        %s160 = smul.u32 2, %s17
      $region20: #{dgcnn_seg_forward.11} parent=15 // pred_fallthru
        _
      // Predicated region
      $region21: #{dgcnn_seg_forward.11} parent=15 // pred_check
        %p161 = pneg %p69
      $region22: #{dgcnn_seg_forward.11} parent=15 // pred_check_branch
        %163 = sbr.rel (%p161) target = $region24
      $region23: #{dgcnn_seg_forward.11} parent=15 // pred_region
        %p164 = scmp.lt.s32.totalorder %s16, 1
        %s165 = scalar_select %p164, %s16, 1
        %s166 = smul.addr %s165, 2
        %s167 = smul.addr %s166, 8
        %s168 = scalar_lea.vmem %s1, %s167
      $region24: #{dgcnn_seg_forward.11} parent=15 // pred_fallthru
        _
      // Predicated region
      $region25: #{dgcnn_seg_forward.11} parent=15 // pred_check
        %p169 = pneg %p95
      $region26: #{dgcnn_seg_forward.11} parent=15 // pred_check_branch
        %171 = sbr.rel (%p169) target = $region28
      $region27: #{dgcnn_seg_forward.11} parent=15 // pred_region
        %p172 = scmp.lt.s32.totalorder %s16, 1
        %s173 = scalar_select %p172, %s16, 1
        %s174 = scalar_lea.vmem %s2, %s173
      $region28: #{dgcnn_seg_forward.11} parent=15 // pred_fallthru
        _
    $region16: #{dgcnn_seg_forward.11} parent=5 // pred_fallthru
      _
    %p175 = scmp.le.s32.totalorder 1, %s9
    %p176 = scmp.lt.s32.totalorder %s9, 3
    %p177 = pnand %p175, %p176
    %p178 = pneg %p177
    // Predicated region
    $region29: #{dgcnn_seg_forward.11} parent=5 // pred_check
      _
    $region30: #{dgcnn_seg_forward.11} parent=5 // pred_check_branch
      %180 = sbr.rel (%p177) target = $region32
    $region31: #{dgcnn_seg_forward.11} parent=5 // pred_region
      %s181 = ssub.s32 %s9, 1
      %s182 = smul.u32 2, %s19
      %p183 = scmp.lt.s32.totalorder %s18, 1
      %s184 = scalar_select %p183, %s18, 1
      %p185 = scmp.lt.s32.totalorder %s182, 1
      %s186 = scalar_select %p185, %s182, 1
      %s187 = smul.addr %s184, 2
      %s188 = sadd.s32 %s186, %s187
      %s189 = smul.addr %s188, 8
      %s190 = scalar_lea.vmem %s0, %s189
      %p191 = pneg %p49
      %p192 = pneg %p46
      %p193 = scmp.lt.s32.totalorder %s18, 1
      %s194 = scalar_select %p193, %s18, 1
      %s195 = smul.addr %s194, 2
      %s196 = smul.addr %s195, 8
      %s197 = scalar_lea.vmem %s1, %s196
      %p198 = pneg %p75
      %p199 = pneg %p72
      %p200 = scmp.lt.s32.totalorder %s18, 1
      %s201 = scalar_select %p200, %s18, 1
      %s202 = scalar_lea.vmem %s2, %s201
      %p203 = pneg %p101
      %p204 = pneg %p98
      %p205 = pneg %p129
      %p206 = pneg %p126
      %s207 = smul.u32 2, %s19
      %p208 = scmp.lt.s32.totalorder %s18, 1
      %s209 = scalar_select %p208, %s18, 1
      %p210 = scmp.lt.s32.totalorder %s207, 1
      %s211 = scalar_select %p210, %s207, 1
      %s212 = smul.addr %s209, 2
      %s213 = sadd.s32 %s211, %s212
      %s214 = smul.addr %s213, 8
      %s215 = scalar_lea.vmem %s3, %s214
      %s216 = smul.u32 2, %s19
      %p217 = scmp.lt.s32.totalorder %s18, 1
      %s218 = scalar_select %p217, %s18, 1
      %p219 = scmp.lt.s32.totalorder %s216, 1
      %s220 = scalar_select %p219, %s216, 1
      %s221 = smul.addr %s218, 2
      %s222 = sadd.s32 %s220, %s221
      %s223 = smul.addr %s222, 8
      %s224 = scalar_lea.vmem %s0, %s223
      %s225 = smul.u32 2, %s19
      %p226 = scmp.lt.s32.totalorder %s18, 1
      %s227 = scalar_select %p226, %s18, 1
      %s228 = smul.addr %s227, 2
      %s229 = smul.addr %s228, 8
      %s230 = scalar_lea.vmem %s1, %s229
      %p231 = scmp.lt.s32.totalorder %s18, 1
      %s232 = scalar_select %p231, %s18, 1
      %s233 = scalar_lea.vmem %s2, %s232
      %s234 = smul.u32 2, %s19
      %p235 = scmp.lt.s32.totalorder %s18, 1
      %s236 = scalar_select %p235, %s18, 1
      %p237 = scmp.lt.s32.totalorder %s234, 1
      %s238 = scalar_select %p237, %s234, 1
      %s239 = smul.addr %s236, 2
      %s240 = sadd.s32 %s238, %s239
      %s241 = smul.addr %s240, 8
      %s242 = scalar_lea.vmem %s3, %s241
      %s243 = smul.u32 2, %s19
      %v244 = vld [vmem:[%s224] sm:$0xff]
      %v245 = vld [vmem:[%s224 + $0x8] sm:$0xff]
      %v246 = vld [vmem:[%s230] sm:$0xff]
      %v247 = vld [vmem:[%s230 + $0x8] sm:$0xff]
      %vm248 = vcmask 523264
      %v250 = vsel %vm248, %v244, 0
      %v253 = vsel %vm248, %v245, 0
      %v256 = vsel %vm248, %v246, 0
      %v259 = vsel %vm248, %v247, 0
      %261 = vmatpush.xpose.msra.mxu0 0.0
      %262 = vmatpush.xpose.msra.mxu0 0.0
      %263 = vmatpush.xpose.msra.mxu0 0.0
      %264 = vmatpush.xpose.msra.mxu0 0.0
      %265 = vmatpush.xpose.msra.mxu0 0.0
      %266 = vmatpush.xpose.msra.mxu0 0.0
      %267 = vmatpush.xpose.msra.mxu0 0.0
      %268 = vmatpush.xpose.msra.mxu0 0.0
      %269 = vmatpush.xpose.msra.mxu0 0.0
      %270 = vmatpush.xpose.msra.mxu0 0.0
      %271 = vmatpush.xpose.msra.mxu0 0.0
      %272 = vmatpush.xpose.msra.mxu0 0.0
      %273 = vmatpush.xpose.msra.mxu0 0.0
      %274 = vmatpush.xpose.msra.mxu0 0.0
      %275 = vmatpush.xpose.msra.mxu0 %v259
      %276 = vmatpush.xpose.msra.mxu0 %v256
      %277 = vmatmul.f32.gmra.mxu0 %v250
      %v278 = vpop.f32.mrf.mxu0
      %v279 = vadd.f32 0.0, %v278
      %280 = vmatmul.f32.gmra.mxu0 %v253
      %v281 = vpop.f32.mrf.mxu0
      %v282 = vadd.f32 0.0, %v281
      %283 = vdwg.mxu0
      %v284 = vmul.f32 %v244, %v244
      %v285 = vmul.f32 %v245, %v245
      %v286 = vsel %vm248, %v284, 0.0
      %287 = vadd.xlane.f32.xlu0 %v286
      %v288 = vpop.xlane.xlu0 %287
      %v289 = vsel %vm248, %v285, 0.0
      %290 = vadd.xlane.f32.xlu0 %v289
      %v291 = vpop.xlane.xlu0 %290
      %v292 = vmul.f32 %v279, 2.0
      %v293 = vmul.f32 %v282, 2.0
      %v294 = vsub.f32 %v292, %v288
      %v295 = vsub.f32 %v293, %v291
      %v296 = vld [vmem:[%s233] sm:$0x1]
      %v298 = vperm.slane %v296, 0
      %v300 = vsub.f32 %v294, %v298
      %v301 = vsub.f32 %v295, %v298
      %vm302 = vcmask 130048
      %303 = vst.msk [vmem:[%s242] sm:$0xff] %vm302, %v300
      %304 = vst.msk [vmem:[%s242 + $0x8] sm:$0xff] %vm302, %v301
      %s305 = smul.u32 2, %s19
      %p306 = scmp.lt.s32.totalorder %s18, 1
      %s307 = scalar_select %p306, %s18, 1
      %p308 = scmp.lt.s32.totalorder %s305, 1
      %s309 = scalar_select %p308, %s305, 1
      %s310 = smul.addr %s307, 2
      %s311 = sadd.s32 %s309, %s310
      %s312 = smul.addr %s311, 8
      %s313 = scalar_lea.vmem %s3, %s312
      // Predicated region
      $region33: #{dgcnn_seg_forward.11} parent=31 // pred_check
        %p314 = pneg %p126
      $region34: #{dgcnn_seg_forward.11} parent=31 // pred_check_branch
        %316 = sbr.rel (%p314) target = $region36
      $region35: #{dgcnn_seg_forward.11} parent=31 // pred_region
        %s317 = smul.u32 2, %s19
      $region36: #{dgcnn_seg_forward.11} parent=31 // pred_fallthru
        _
    $region32: #{dgcnn_seg_forward.11} parent=5 // pred_fallthru
      _
    %p318 = scmp.le.s32.totalorder 2, %s9
    // Predicated region
    $region37: #{dgcnn_seg_forward.11} parent=5 // pred_check
      %p319 = pneg %p318
    $region38: #{dgcnn_seg_forward.11} parent=5 // pred_check_branch
      %321 = sbr.rel (%p319) target = $region40
    $region39: #{dgcnn_seg_forward.11} parent=5 // pred_region
      %s322 = ssub.s32 %s9, 2
      // Predicated region
      $region41: #{dgcnn_seg_forward.11} parent=39 // pred_check
        %p323 = pneg %p132
      $region42: #{dgcnn_seg_forward.11} parent=39 // pred_check_branch
        %325 = sbr.rel (%p323) target = $region44
      $region43: #{dgcnn_seg_forward.11} parent=39 // pred_region
        %s326 = smul.u32 2, %s21
        %p327 = scmp.lt.s32.totalorder %s20, 1
        %s328 = scalar_select %p327, %s20, 1
        %p329 = scmp.lt.s32.totalorder %s326, 1
        %s330 = scalar_select %p329, %s326, 1
        %s331 = smul.addr %s328, 2
        %s332 = sadd.s32 %s330, %s331
        %s333 = smul.addr %s332, 8
        %s334 = scalar_lea.vmem %s3, %s333
      $region44: #{dgcnn_seg_forward.11} parent=39 // pred_fallthru
        _
    $region40: #{dgcnn_seg_forward.11} parent=5 // pred_fallthru
      _
  $region6: #{dgcnn_seg_forward.11} parent=0 // loop_footer
    %s13 = sadd.s32 1, %s9
  $region7: #{dgcnn_seg_forward.11} parent=0 // loop_footer_branch
    %8 = sbr.rel target = $region3
  $region8: #{dgcnn_seg_forward.11} parent=0 // loop_exit
    _

// kernel: dgcnn_seg_forward.10
$region0: #{dgcnn_seg_forward.10}
  #allocation0 [shape = 'u32[]', space=smem, size = 0x4, offset = 0x4, fixed_abs, tag = 'smem constant byte address 0x4 - core index']
  #allocation1 [shape = 'u32[72,128]{1,0:T(1,128)}', space=vmem, size = 0x9000, scoped, tag = 'internal scratch']
  %s0 = inlined_call_operand.vmem [shape: bf16[2,4,16,6], index: 0, kind: input, shape index: {}]
  %s1 = inlined_call_operand.hbm [shape: f32[6,64], index: 1, kind: input, shape index: {}]
  %s2 = inlined_call_operand.hbm [shape: f32[1,64], index: 2, kind: input, shape index: {}]
  %s3 = inlined_call_operand.hbm [shape: f32[1,64], index: 3, kind: input, shape index: {}]
  %s4 = inlined_call_operand.hbm [shape: f32[64,64], index: 4, kind: input, shape index: {}]
  %s5 = inlined_call_operand.hbm [shape: f32[1,64], index: 5, kind: input, shape index: {}]
  %s6 = inlined_call_operand.hbm [shape: f32[1,64], index: 6, kind: input, shape index: {}]
  %s7 = inlined_call_operand.vmem [shape: f32[2,16,64], index: 7, kind: output, shape index: {}]
  %s8 = sld [smem:[#allocation0]]
  $region85: #{dgcnn_seg_forward.10} parent=0
    _
  %s10 = ssub.s32 1, %s8
  %s11 = scalar_select 0, %s10, %s8
  $region1: #{dgcnn_seg_forward.10} parent=0
    #allocation2 [shape = 'u8[4096]{0}', space=vmem, size = 0x1000, scoped, tag = 'input window, operand 1, single buffered']
    #allocation3 [shape = 's32[2]{0}', space=sflag, size = 0x8, scoped, tag = 'scoped memory for dgcnn_seg_forward.10']
    #allocation4 [shape = 'u8[512]{0}', space=vmem, size = 0x400, scoped, tag = 'input window, operand 2, single buffered']
    #allocation5 [shape = 's32[1]{0}', space=sflag, size = 0x4, scoped, tag = 'scoped memory for dgcnn_seg_forward.10']
    #allocation6 [shape = 'u8[512]{0}', space=vmem, size = 0x400, scoped, tag = 'input window, operand 3, single buffered']
    #allocation7 [shape = 'u8[32768]{0}', space=vmem, size = 0x8000, scoped, tag = 'input window, operand 4, single buffered']
    #allocation8 [shape = 's32[1]{0}', space=sflag, size = 0x4, scoped, tag = 'scoped memory for dgcnn_seg_forward.10']
    #allocation9 [shape = 'u8[512]{0}', space=vmem, size = 0x400, scoped, tag = 'input window, operand 5, single buffered']
    #allocation10 [shape = 'u8[512]{0}', space=vmem, size = 0x400, scoped, tag = 'input window, operand 6, single buffered']
    #allocation11 [shape = 's32[1]{0}', space=sflag, size = 0x4, scoped, tag = 'scoped memory for dgcnn_seg_forward.10']
    %12 = vsyncpa [#allocation3], 0
    %13 = vsyncpa [#allocation5], 0
    %14 = vsyncpa [#allocation8], 0
    %15 = vsyncpa [#allocation11], 0
    loop: start=0, step=1, limit=4
    $region2: #{dgcnn_seg_forward.10} parent=1 // loop_pre_header
      _
    $region3: #{dgcnn_seg_forward.10} parent=1 // loop_header
      %s17 = sphi 0, %s21
      %p18 = scmp.ge.s32.totalorder %s17, 4
      %s24 = sphi 0, %s36
      %s25 = sphi 0, %s32
      %s26 = sphi 0, %s24
      %s27 = sphi 0, %s25
      %s28 = sphi 0, %s26
      %s29 = sphi 0, %s27
      %s41 = sphi 0, %s43
      %s44 = sphi 0, %s41
      %s45 = sphi 0, %s44
      %s61 = sphi 0, %s45
      %s65 = sphi 0, %s65
      %s67 = sphi 0, %s65
      %s68 = sphi 0, %s67
      %s82 = sphi 0, %s68
      %s86 = sphi 0, %s86
      %s88 = sphi 0, %s86
      %s89 = sphi 0, %s88
      %s103 = sphi 0, %s89
      %s107 = sphi 0, %s107
      %s109 = sphi 0, %s107
      %s110 = sphi 0, %s109
      %s124 = sphi 0, %s110
      %s128 = sphi 0, %s128
      %s130 = sphi 0, %s128
      %s131 = sphi 0, %s130
      %s145 = sphi 0, %s131
      %s149 = sphi 0, %s149
      %s151 = sphi 0, %s149
      %s152 = sphi 0, %s151
      %s166 = sphi 0, %s152
      %s170 = sphi 0, %s170
      %s172 = sphi 0, %s170
      %s173 = sphi 0, %s172
      %s187 = sphi 0, %s173
      %s195 = sphi 0, %s197
      %s198 = sphi 0, %s195
      %s199 = sphi 0, %s198
      %s215 = sphi 0, %s199
    $region4: #{dgcnn_seg_forward.10} parent=1 // loop_header_branch
      %20 = sbr.rel (%p18) target = $region8
    $region5: #{dgcnn_seg_forward.10} parent=1 // loop_body
      %s22 = ssub.s32 %s17, 1
      %s23 = ssub.s32 %s17, 2
      %s30 = sadd.s32 1, %s25
      %p31 = scmp.ge.s32.totalorder %s30, 1
      %s32 = scalar_select %p31, 0, %s30
      %s33 = sadd.s32 1, %s24
      %s34 = scalar_select %p31, %s33, %s24
      %p35 = scmp.ge.s32.totalorder %s34, 2
      %s36 = scalar_select %p35, 0, %s34
      %s37 = ssub.s32 %s24, %s36
      %s38 = ssub.s32 %s25, %s32
      %s39 = sor.u32 %s37, %s38
      %p40 = scmp.eq.s32.totalorder %s39, 0
      %s42 = sadd.s32 %s41, 1
      %s43 = scalar_select %p40, %s41, %s42
      %p46 = pneg %p40
      %p47 = scmp.eq.s32.totalorder %s17, 1
      %p48 = por %p46, %p47
      %p49 = scmp.ne.s32.totalorder %s41, %s44
      %p50 = scmp.eq.s32.totalorder %s17, 0
      %p51 = por %p49, %p50
      %p52 = scmp.ne.s32.totalorder %s41, %s44
      %p53 = scmp.eq.s32.totalorder %s22, 1
      %p54 = por %p52, %p53
      %p55 = scmp.ne.s32.totalorder %s44, %s45
      %p56 = scmp.eq.s32.totalorder %s22, 0
      %p57 = por %p55, %p56
      %p58 = scmp.ne.s32.totalorder %s44, %s45
      %p59 = scmp.eq.s32.totalorder %s23, 1
      %p60 = por %p58, %p59
      %p62 = scmp.ne.s32.totalorder %s45, %s61
      %p63 = scmp.eq.s32.totalorder %s23, 0
      %p64 = por %p62, %p63
      %s66 = sadd.s32 %s65, 1
      %p69 = scmp.eq.s32.totalorder %s17, 1
      %p70 = scmp.ne.s32.totalorder %s65, %s67
      %p71 = scmp.eq.s32.totalorder %s17, 0
      %p72 = por %p70, %p71
      %p73 = scmp.ne.s32.totalorder %s65, %s67
      %p74 = scmp.eq.s32.totalorder %s22, 1
      %p75 = por %p73, %p74
      %p76 = scmp.ne.s32.totalorder %s67, %s68
      %p77 = scmp.eq.s32.totalorder %s22, 0
      %p78 = por %p76, %p77
      %p79 = scmp.ne.s32.totalorder %s67, %s68
      %p80 = scmp.eq.s32.totalorder %s23, 1
      %p81 = por %p79, %p80
      %p83 = scmp.ne.s32.totalorder %s68, %s82
      %p84 = scmp.eq.s32.totalorder %s23, 0
      %p85 = por %p83, %p84
      %s87 = sadd.s32 %s86, 1
      %p90 = scmp.eq.s32.totalorder %s17, 1
      %p91 = scmp.ne.s32.totalorder %s86, %s88
      %p92 = scmp.eq.s32.totalorder %s17, 0
      %p93 = por %p91, %p92
      %p94 = scmp.ne.s32.totalorder %s86, %s88
      %p95 = scmp.eq.s32.totalorder %s22, 1
      %p96 = por %p94, %p95
      %p97 = scmp.ne.s32.totalorder %s88, %s89
      %p98 = scmp.eq.s32.totalorder %s22, 0
      %p99 = por %p97, %p98
      %p100 = scmp.ne.s32.totalorder %s88, %s89
      %p101 = scmp.eq.s32.totalorder %s23, 1
      %p102 = por %p100, %p101
      %p104 = scmp.ne.s32.totalorder %s89, %s103
      %p105 = scmp.eq.s32.totalorder %s23, 0
      %p106 = por %p104, %p105
      %s108 = sadd.s32 %s107, 1
      %p111 = scmp.eq.s32.totalorder %s17, 1
      %p112 = scmp.ne.s32.totalorder %s107, %s109
      %p113 = scmp.eq.s32.totalorder %s17, 0
      %p114 = por %p112, %p113
      %p115 = scmp.ne.s32.totalorder %s107, %s109
      %p116 = scmp.eq.s32.totalorder %s22, 1
      %p117 = por %p115, %p116
      %p118 = scmp.ne.s32.totalorder %s109, %s110
      %p119 = scmp.eq.s32.totalorder %s22, 0
      %p120 = por %p118, %p119
      %p121 = scmp.ne.s32.totalorder %s109, %s110
      %p122 = scmp.eq.s32.totalorder %s23, 1
      %p123 = por %p121, %p122
      %p125 = scmp.ne.s32.totalorder %s110, %s124
      %p126 = scmp.eq.s32.totalorder %s23, 0
      %p127 = por %p125, %p126
      %s129 = sadd.s32 %s128, 1
      %p132 = scmp.eq.s32.totalorder %s17, 1
      %p133 = scmp.ne.s32.totalorder %s128, %s130
      %p134 = scmp.eq.s32.totalorder %s17, 0
      %p135 = por %p133, %p134
      %p136 = scmp.ne.s32.totalorder %s128, %s130
      %p137 = scmp.eq.s32.totalorder %s22, 1
      %p138 = por %p136, %p137
      %p139 = scmp.ne.s32.totalorder %s130, %s131
      %p140 = scmp.eq.s32.totalorder %s22, 0
      %p141 = por %p139, %p140
      %p142 = scmp.ne.s32.totalorder %s130, %s131
      %p143 = scmp.eq.s32.totalorder %s23, 1
      %p144 = por %p142, %p143
      %p146 = scmp.ne.s32.totalorder %s131, %s145
      %p147 = scmp.eq.s32.totalorder %s23, 0
      %p148 = por %p146, %p147
      %s150 = sadd.s32 %s149, 1
      %p153 = scmp.eq.s32.totalorder %s17, 1
      %p154 = scmp.ne.s32.totalorder %s149, %s151
      %p155 = scmp.eq.s32.totalorder %s17, 0
      %p156 = por %p154, %p155
      %p157 = scmp.ne.s32.totalorder %s149, %s151
      %p158 = scmp.eq.s32.totalorder %s22, 1
      %p159 = por %p157, %p158
      %p160 = scmp.ne.s32.totalorder %s151, %s152
      %p161 = scmp.eq.s32.totalorder %s22, 0
      %p162 = por %p160, %p161
      %p163 = scmp.ne.s32.totalorder %s151, %s152
      %p164 = scmp.eq.s32.totalorder %s23, 1
      %p165 = por %p163, %p164
      %p167 = scmp.ne.s32.totalorder %s152, %s166
      %p168 = scmp.eq.s32.totalorder %s23, 0
      %p169 = por %p167, %p168
      %s171 = sadd.s32 %s170, 1
      %p174 = scmp.eq.s32.totalorder %s17, 1
      %p175 = scmp.ne.s32.totalorder %s170, %s172
      %p176 = scmp.eq.s32.totalorder %s17, 0
      %p177 = por %p175, %p176
      %p178 = scmp.ne.s32.totalorder %s170, %s172
      %p179 = scmp.eq.s32.totalorder %s22, 1
      %p180 = por %p178, %p179
      %p181 = scmp.ne.s32.totalorder %s172, %s173
      %p182 = scmp.eq.s32.totalorder %s22, 0
      %p183 = por %p181, %p182
      %p184 = scmp.ne.s32.totalorder %s172, %s173
      %p185 = scmp.eq.s32.totalorder %s23, 1
      %p186 = por %p184, %p185
      %p188 = scmp.ne.s32.totalorder %s173, %s187
      %p189 = scmp.eq.s32.totalorder %s23, 0
      %p190 = por %p188, %p189
      %s191 = ssub.s32 %s24, %s36
      %s192 = ssub.s32 %s25, %s32
      %s193 = sor.u32 %s191, %s192
      %p194 = scmp.eq.s32.totalorder %s193, 0
      %s196 = sadd.s32 %s195, 1
      %s197 = scalar_select %p194, %s195, %s196
      %p200 = pneg %p194
      %p201 = scmp.eq.s32.totalorder %s17, 1
      %p202 = por %p200, %p201
      %p203 = scmp.ne.s32.totalorder %s195, %s198
      %p204 = scmp.eq.s32.totalorder %s17, 0
      %p205 = por %p203, %p204
      %p206 = scmp.ne.s32.totalorder %s195, %s198
      %p207 = scmp.eq.s32.totalorder %s22, 1
      %p208 = por %p206, %p207
      %p209 = scmp.ne.s32.totalorder %s198, %s199
      %p210 = scmp.eq.s32.totalorder %s22, 0
      %p211 = por %p209, %p210
      %p212 = scmp.ne.s32.totalorder %s198, %s199
      %p213 = scmp.eq.s32.totalorder %s23, 1
      %p214 = por %p212, %p213
      %p216 = scmp.ne.s32.totalorder %s199, %s215
      %p217 = scmp.eq.s32.totalorder %s23, 0
      %p218 = por %p216, %p217
      %p219 = scmp.le.s32.totalorder 1, %s17
      %p220 = scmp.lt.s32.totalorder %s17, 3
      %p221 = pnand %p219, %p220
      %p222 = pneg %p221
      // Predicated region
      $region9: #{dgcnn_seg_forward.10} parent=5 // pred_check
        _
      $region10: #{dgcnn_seg_forward.10} parent=5 // pred_check_branch
        %224 = sbr.rel (%p221) target = $region12
      $region11: #{dgcnn_seg_forward.10} parent=5 // pred_region
        %s225 = ssub.s32 %s17, 1
        // Predicated region
        $region13: #{dgcnn_seg_forward.10} parent=11 // pred_check
          %p226 = pneg %p78
        $region14: #{dgcnn_seg_forward.10} parent=11 // pred_check_branch
          %228 = sbr.rel (%p226) target = $region16
        $region15: #{dgcnn_seg_forward.10} parent=11 // pred_region
          %230 = vsyncadd [#allocation3], 0
          %s232 = sshll.u32 %s1, 4
          %s233 = int_to_ptr.hbm [resolvable:$true] %s232
          %s234 = sshll.u32 [#allocation2], 4
          %s235 = int_to_ptr.vmem [resolvable:$true] %s234
          %237 = dma.hbm_to_vmem [thread:$0]  %s233, 128, %s235, [#allocation3]
        $region16: #{dgcnn_seg_forward.10} parent=11 // pred_fallthru
          _
        // Predicated region
        $region17: #{dgcnn_seg_forward.10} parent=11 // pred_check
          %p238 = pneg %p99
        $region18: #{dgcnn_seg_forward.10} parent=11 // pred_check_branch
          %240 = sbr.rel (%p238) target = $region20
        $region19: #{dgcnn_seg_forward.10} parent=11 // pred_region
          %242 = vsyncadd [#allocation5], 0
          %s244 = sshll.u32 %s2, 4
          %s245 = int_to_ptr.hbm [resolvable:$true] %s244
          %s246 = sshll.u32 [#allocation4], 4
          %s247 = int_to_ptr.vmem [resolvable:$true] %s246
          %249 = dma.hbm_to_vmem [thread:$0]  %s245, 16, %s247, [#allocation5]
        $region20: #{dgcnn_seg_forward.10} parent=11 // pred_fallthru
          _
        // Predicated region
        $region21: #{dgcnn_seg_forward.10} parent=11 // pred_check
          %p250 = pneg %p120
        $region22: #{dgcnn_seg_forward.10} parent=11 // pred_check_branch
          %252 = sbr.rel (%p250) target = $region24
        $region23: #{dgcnn_seg_forward.10} parent=11 // pred_region
          %254 = vsyncadd [#allocation5], 0
          %s256 = sshll.u32 %s3, 4
          %s257 = int_to_ptr.hbm [resolvable:$true] %s256
          %s258 = sshll.u32 [#allocation6], 4
          %s259 = int_to_ptr.vmem [resolvable:$true] %s258
          %261 = dma.hbm_to_vmem [thread:$0]  %s257, 16, %s259, [#allocation5]
        $region24: #{dgcnn_seg_forward.10} parent=11 // pred_fallthru
          _
        // Predicated region
        $region25: #{dgcnn_seg_forward.10} parent=11 // pred_check
          %p262 = pneg %p141
        $region26: #{dgcnn_seg_forward.10} parent=11 // pred_check_branch
          %264 = sbr.rel (%p262) target = $region28
        $region27: #{dgcnn_seg_forward.10} parent=11 // pred_region
          %266 = vsyncadd [#allocation8], 0
          %s267 = sshll.u32 %s4, 4
          %s268 = int_to_ptr.hbm [resolvable:$true] %s267
          %s269 = sshll.u32 [#allocation7], 4
          %s270 = int_to_ptr.vmem [resolvable:$true] %s269
          %275 = dma.hbm_to_vmem [thread:$0]  %s268, 1024, %s270, [#allocation8], 128, 128, 8
        $region28: #{dgcnn_seg_forward.10} parent=11 // pred_fallthru
          _
        // Predicated region
        $region29: #{dgcnn_seg_forward.10} parent=11 // pred_check
          %p276 = pneg %p162
        $region30: #{dgcnn_seg_forward.10} parent=11 // pred_check_branch
          %278 = sbr.rel (%p276) target = $region32
        $region31: #{dgcnn_seg_forward.10} parent=11 // pred_region
          %280 = vsyncadd [#allocation8], 0
          %s282 = sshll.u32 %s5, 4
          %s283 = int_to_ptr.hbm [resolvable:$true] %s282
          %s284 = sshll.u32 [#allocation9], 4
          %s285 = int_to_ptr.vmem [resolvable:$true] %s284
          %287 = dma.hbm_to_vmem [thread:$0]  %s283, 16, %s285, [#allocation8]
        $region32: #{dgcnn_seg_forward.10} parent=11 // pred_fallthru
          _
        // Predicated region
        $region33: #{dgcnn_seg_forward.10} parent=11 // pred_check
          %p288 = pneg %p183
        $region34: #{dgcnn_seg_forward.10} parent=11 // pred_check_branch
          %290 = sbr.rel (%p288) target = $region36
        $region35: #{dgcnn_seg_forward.10} parent=11 // pred_region
          %292 = vsyncadd [#allocation11], 0
          %s294 = sshll.u32 %s6, 4
          %s295 = int_to_ptr.hbm [resolvable:$true] %s294
          %s296 = sshll.u32 [#allocation10], 4
          %s297 = int_to_ptr.vmem [resolvable:$true] %s296
          %299 = dma.hbm_to_vmem [thread:$0]  %s295, 16, %s297, [#allocation11]
        $region36: #{dgcnn_seg_forward.10} parent=11 // pred_fallthru
          _
      $region12: #{dgcnn_seg_forward.10} parent=5 // pred_fallthru
        _
      %p300 = scmp.lt.s32.totalorder %s17, 2
      // Predicated region
      $region37: #{dgcnn_seg_forward.10} parent=5 // pred_check
        %p301 = pneg %p300
      $region38: #{dgcnn_seg_forward.10} parent=5 // pred_check_branch
        %303 = sbr.rel (%p301) target = $region40
      $region39: #{dgcnn_seg_forward.10} parent=5 // pred_region
        // Predicated region
        $region41: #{dgcnn_seg_forward.10} parent=39 // pred_check
          %p304 = pneg %p51
        $region42: #{dgcnn_seg_forward.10} parent=39 // pred_check_branch
          %306 = sbr.rel (%p304) target = $region44
        $region43: #{dgcnn_seg_forward.10} parent=39 // pred_region
          %s307 = smul.u32 2, %s25
          %p308 = scmp.lt.s32.totalorder %s24, 1
          %s309 = scalar_select %p308, %s24, 1
          %p310 = scmp.lt.s32.totalorder %s307, 1
          %s311 = scalar_select %p310, %s307, 1
          %s312 = smul.addr %s309, 8
          %s313 = sadd.s32 %s311, %s312
          %s314 = smul.addr %s313, 4
          %s315 = scalar_lea.vmem %s0, %s314
          %s316 = smul.u32 2, %s25
        $region44: #{dgcnn_seg_forward.10} parent=39 // pred_fallthru
          _
      $region40: #{dgcnn_seg_forward.10} parent=5 // pred_fallthru
        _
      %p317 = scmp.le.s32.totalorder 1, %s17
      %p318 = scmp.lt.s32.totalorder %s17, 3
      %p319 = pnand %p317, %p318
      %p320 = pneg %p319
      // Predicated region
      $region45: #{dgcnn_seg_forward.10} parent=5 // pred_check
        _
      $region46: #{dgcnn_seg_forward.10} parent=5 // pred_check_branch
        %322 = sbr.rel (%p319) target = $region48
      $region47: #{dgcnn_seg_forward.10} parent=5 // pred_region
        %s323 = ssub.s32 %s17, 1
        // Predicated region
        $region49: #{dgcnn_seg_forward.10} parent=47 // pred_check
          %p324 = pneg %p78
        $region50: #{dgcnn_seg_forward.10} parent=47 // pred_check_branch
          %326 = sbr.rel (%p324) target = $region52
        $region51: #{dgcnn_seg_forward.10} parent=47 // pred_region
          %328 = dma.done [#allocation3], 128
        $region52: #{dgcnn_seg_forward.10} parent=47 // pred_fallthru
          _
        // Predicated region
        $region53: #{dgcnn_seg_forward.10} parent=47 // pred_check
          %p329 = pneg %p99
        $region54: #{dgcnn_seg_forward.10} parent=47 // pred_check_branch
          %331 = sbr.rel (%p329) target = $region56
        $region55: #{dgcnn_seg_forward.10} parent=47 // pred_region
          %333 = dma.done [#allocation5], 16
        $region56: #{dgcnn_seg_forward.10} parent=47 // pred_fallthru
          _
        // Predicated region
        $region57: #{dgcnn_seg_forward.10} parent=47 // pred_check
          %p334 = pneg %p120
        $region58: #{dgcnn_seg_forward.10} parent=47 // pred_check_branch
          %336 = sbr.rel (%p334) target = $region60
        $region59: #{dgcnn_seg_forward.10} parent=47 // pred_region
          %338 = dma.done [#allocation5], 16
        $region60: #{dgcnn_seg_forward.10} parent=47 // pred_fallthru
          _
        // Predicated region
        $region61: #{dgcnn_seg_forward.10} parent=47 // pred_check
          %p339 = pneg %p141
        $region62: #{dgcnn_seg_forward.10} parent=47 // pred_check_branch
          %341 = sbr.rel (%p339) target = $region64
        $region63: #{dgcnn_seg_forward.10} parent=47 // pred_region
          %343 = dma.done [#allocation8], 1024
        $region64: #{dgcnn_seg_forward.10} parent=47 // pred_fallthru
          _
        // Predicated region
        $region65: #{dgcnn_seg_forward.10} parent=47 // pred_check
          %p344 = pneg %p162
        $region66: #{dgcnn_seg_forward.10} parent=47 // pred_check_branch
          %346 = sbr.rel (%p344) target = $region68
        $region67: #{dgcnn_seg_forward.10} parent=47 // pred_region
          %348 = dma.done [#allocation8], 16
        $region68: #{dgcnn_seg_forward.10} parent=47 // pred_fallthru
          _
        // Predicated region
        $region69: #{dgcnn_seg_forward.10} parent=47 // pred_check
          %p349 = pneg %p183
        $region70: #{dgcnn_seg_forward.10} parent=47 // pred_check_branch
          %351 = sbr.rel (%p349) target = $region72
        $region71: #{dgcnn_seg_forward.10} parent=47 // pred_region
          %353 = dma.done [#allocation11], 16
        $region72: #{dgcnn_seg_forward.10} parent=47 // pred_fallthru
          _
        %s354 = smul.u32 2, %s27
        %p355 = scmp.lt.s32.totalorder %s26, 1
        %s356 = scalar_select %p355, %s26, 1
        %p357 = scmp.lt.s32.totalorder %s354, 1
        %s358 = scalar_select %p357, %s354, 1
        %s359 = smul.addr %s356, 8
        %s360 = sadd.s32 %s358, %s359
        %s361 = smul.addr %s360, 4
        %s362 = scalar_lea.vmem %s0, %s361
        %p363 = pneg %p57
        %p364 = pneg %p54
        %p365 = pneg %p78
        %p366 = pneg %p75
        %p367 = pneg %p99
        %p368 = pneg %p96
        %p369 = pneg %p120
        %p370 = pneg %p117
        %p371 = pneg %p141
        %p372 = pneg %p138
        %p373 = pneg %p162
        %p374 = pneg %p159
        %p375 = pneg %p183
        %p376 = pneg %p180
        %p377 = pneg %p211
        %p378 = pneg %p208
        %s379 = smul.u32 2, %s27
        %p380 = scmp.lt.s32.totalorder %s26, 1
        %s381 = scalar_select %p380, %s26, 1
        %p382 = scmp.lt.s32.totalorder %s379, 1
        %s383 = scalar_select %p382, %s379, 1
        %s384 = smul.addr %s381, 2
        %s385 = sadd.s32 %s383, %s384
        %s386 = smul.addr %s385, 8
        %s387 = scalar_lea.vmem %s7, %s386
        %s388 = smul.u32 2, %s27
        %p389 = scmp.lt.s32.totalorder %s26, 1
        %s390 = scalar_select %p389, %s26, 1
        %p391 = scmp.lt.s32.totalorder %s388, 1
        %s392 = scalar_select %p391, %s388, 1
        %s393 = smul.addr %s390, 8
        %s394 = sadd.s32 %s392, %s393
        %s395 = smul.addr %s394, 4
        %s396 = scalar_lea.vmem %s0, %s395
        %s397 = smul.u32 2, %s27
        %s398 = smul.u32 2, %s27
        %p399 = scmp.lt.s32.totalorder %s26, 1
        %s400 = scalar_select %p399, %s26, 1
        %p401 = scmp.lt.s32.totalorder %s398, 1
        %s402 = scalar_select %p401, %s398, 1
        %s403 = smul.addr %s400, 2
        %s404 = sadd.s32 %s402, %s403
        %s405 = smul.addr %s404, 8
        %s406 = scalar_lea.vmem %s7, %s405
        %s407 = smul.u32 2, %s27
        %v408 = vld [vmem:[%s396] sm:$0xf]
        %v409 = vld [vmem:[%s396 + $0x4] sm:$0xf]
        %v410 = vunpack.c.l.bf16 %v408
        %v411 = vunpack.c.l.bf16 %v409
        %v412 = vld [vmem:[#allocation2] sm:$0x3f]
        %vm413 = vcmask 48128
        %v415 = vsel %vm413, %v410, 0
        %v418 = vsel %vm413, %v411, 0
        %vm420 = vcmask 1045504
        %v422 = vsel %vm420, %v412, 0
        %424 = vmatpush.msra.mxu0 0.0
        %425 = vmatpush.msra.mxu0 0.0
        %426 = vmatpush.msra.mxu0 0.0
        %427 = vmatpush.msra.mxu0 0.0
        %428 = vmatpush.msra.mxu0 0.0
        %429 = vmatpush.msra.mxu0 0.0
        %430 = vmatpush.msra.mxu0 0.0
        %431 = vmatpush.msra.mxu0 0.0
        %432 = vmatpush.msra.mxu0 0.0
        %433 = vmatpush.msra.mxu0 0.0
        %434 = vmatpush.msra.mxu0 0.0
        %435 = vmatpush.msra.mxu0 0.0
        %436 = vmatpush.msra.mxu0 0.0
        %437 = vmatpush.msra.mxu0 0.0
        %438 = vmatpush.msra.mxu0 0.0
        %439 = vmatpush.msra.mxu0 %v422
        %440 = vmatmul.f32.gmra.mxu0 %v415
        %v441 = vpop.f32.mrf.mxu0
        %v442 = vadd.f32 0.0, %v441
        %443 = vmatmul.f32.gmra.mxu0 %v418
        %v444 = vpop.f32.mrf.mxu0
        %v445 = vadd.f32 0.0, %v444
        %446 = vdwg.mxu0
        %v447 = vld [vmem:[#allocation4] sm:$0x1]
        %v449 = vperm.slane %v447, 0
        %v451 = vmul.f32 %v442, %v449
        %v452 = vmul.f32 %v445, %v449
        %v453 = vld [vmem:[#allocation6] sm:$0x1]
        %v455 = vperm.slane %v453, 0
        %v457 = vadd.f32 %v451, %v455
        %v458 = vadd.f32 %v452, %v455
        %vm459 = vcmp.gt.f32.partialorder %v457, 0.0
        %vm460 = vcmp.gt.f32.partialorder %v458, 0.0
        %v461 = vmul.f32 %v457, 0.2
        %v462 = vmul.f32 %v458, 0.2
        %v463 = vsel %vm459, %v457, %v461
        %v464 = vsel %vm460, %v458, %v462
        %v465 = vld [vmem:[#allocation7] sm:$0xff]
        %v466 = vld [vmem:[#allocation7 + $0x8] sm:$0xff]
        %v467 = vld [vmem:[#allocation7 + $0x10] sm:$0xff]
        %v468 = vld [vmem:[#allocation7 + $0x18] sm:$0xff]
        %v469 = vld [vmem:[#allocation7 + $0x20] sm:$0xff]
        %v470 = vld [vmem:[#allocation7 + $0x28] sm:$0xff]
        %v471 = vld [vmem:[#allocation7 + $0x30] sm:$0xff]
        %v472 = vld [vmem:[#allocation7 + $0x38] sm:$0xff]
        %vm473 = vcmask 523264
        %v475 = vsel %vm473, %v463, 0
        %v478 = vsel %vm473, %v464, 0
        %480 = vmatpush.msra.mxu0 0.0
        %481 = vmatpush.msra.mxu0 0.0
        %482 = vmatpush.msra.mxu0 0.0
        %483 = vmatpush.msra.mxu0 0.0
        %484 = vmatpush.msra.mxu0 0.0
        %485 = vmatpush.msra.mxu0 0.0
        %486 = vmatpush.msra.mxu0 0.0
        %487 = vmatpush.msra.mxu0 0.0
        %488 = vmatpush.msra.mxu0 %v472
        %489 = vmatpush.msra.mxu0 %v471
        %490 = vmatpush.msra.mxu0 %v470
        %491 = vmatpush.msra.mxu0 %v469
        %492 = vmatpush.msra.mxu0 %v468
        %493 = vmatpush.msra.mxu0 %v467
        %494 = vmatpush.msra.mxu0 %v466
        %495 = vmatpush.msra.mxu0 %v465
        %496 = vmatmul.f32.gmra.mxu0 %v475
        %v497 = vpop.f32.mrf.mxu0
        %v498 = vadd.f32 0.0, %v497
        %499 = vmatmul.f32.gmra.mxu0 %v478
        %v500 = vpop.f32.mrf.mxu0
        %v501 = vadd.f32 0.0, %v500
        %502 = vdwg.mxu0
        %v503 = vld [vmem:[#allocation9] sm:$0x1]
        %v505 = vperm.slane %v503, 0
        %v507 = vmul.f32 %v498, %v505
        %v508 = vmul.f32 %v501, %v505
        %v509 = vld [vmem:[#allocation10] sm:$0x1]
        %v511 = vperm.slane %v509, 0
        %v513 = vadd.f32 %v507, %v511
        %v514 = vadd.f32 %v508, %v511
        %vm515 = vcmp.gt.f32.partialorder %v513, 0.0
        %vm516 = vcmp.gt.f32.partialorder %v514, 0.0
        %v517 = vmul.f32 %v513, 0.2
        %v518 = vmul.f32 %v514, 0.2
        %v519 = vsel %vm515, %v513, %v517
        %v520 = vsel %vm516, %v514, %v518
        %s521 = scalar_lea.vmem %s396, 8
        %v522 = vld [vmem:[%s521] sm:$0xf]
        %v523 = vld [vmem:[%s521 + $0x4] sm:$0xf]
        %v524 = vunpack.c.l.bf16 %v522
        %v525 = vunpack.c.l.bf16 %v523
        %v527 = vsel %vm413, %v524, 0
        %v530 = vsel %vm413, %v525, 0
        %532 = vmatpush.msra.mxu0 0.0
        %533 = vmatpush.msra.mxu0 0.0
        %534 = vmatpush.msra.mxu0 0.0
        %535 = vmatpush.msra.mxu0 0.0
        %536 = vmatpush.msra.mxu0 0.0
        %537 = vmatpush.msra.mxu0 0.0
        %538 = vmatpush.msra.mxu0 0.0
        %539 = vmatpush.msra.mxu0 0.0
        %540 = vmatpush.msra.mxu0 0.0
        %541 = vmatpush.msra.mxu0 0.0
        %542 = vmatpush.msra.mxu0 0.0
        %543 = vmatpush.msra.mxu0 0.0
        %544 = vmatpush.msra.mxu0 0.0
        %545 = vmatpush.msra.mxu0 0.0
        %546 = vmatpush.msra.mxu0 0.0
        %547 = vmatpush.msra.mxu0 %v422
        %548 = vmatmul.f32.gmra.mxu0 %v527
        %v549 = vpop.f32.mrf.mxu0
        %v550 = vadd.f32 0.0, %v549
        %551 = vmatmul.f32.gmra.mxu0 %v530
        %v552 = vpop.f32.mrf.mxu0
        %v553 = vadd.f32 0.0, %v552
        %554 = vdwg.mxu0
        %v555 = vmul.f32 %v550, %v449
        %v556 = vmul.f32 %v553, %v449
        %v557 = vadd.f32 %v555, %v455
        %v558 = vadd.f32 %v556, %v455
        %vm559 = vcmp.gt.f32.partialorder %v557, 0.0
        %vm560 = vcmp.gt.f32.partialorder %v558, 0.0
        %v561 = vmul.f32 %v557, 0.2
        %v562 = vmul.f32 %v558, 0.2
        %v563 = vsel %vm559, %v557, %v561
        %v564 = vsel %vm560, %v558, %v562
        %v566 = vsel %vm473, %v563, 0
        %v569 = vsel %vm473, %v564, 0
        %571 = vmatpush.msra.mxu0 0.0
        %572 = vmatpush.msra.mxu0 0.0
        %573 = vmatpush.msra.mxu0 0.0
        %574 = vmatpush.msra.mxu0 0.0
        %575 = vmatpush.msra.mxu0 0.0
        %576 = vmatpush.msra.mxu0 0.0
        %577 = vmatpush.msra.mxu0 0.0
        %578 = vmatpush.msra.mxu0 0.0
        %579 = vmatpush.msra.mxu0 %v472
        %580 = vmatpush.msra.mxu0 %v471
        %581 = vmatpush.msra.mxu0 %v470
        %582 = vmatpush.msra.mxu0 %v469
        %583 = vmatpush.msra.mxu0 %v468
        %584 = vmatpush.msra.mxu0 %v467
        %585 = vmatpush.msra.mxu0 %v466
        %586 = vmatpush.msra.mxu0 %v465
        %587 = vmatmul.f32.gmra.mxu0 %v566
        %v588 = vpop.f32.mrf.mxu0
        %v589 = vadd.f32 0.0, %v588
        %590 = vmatmul.f32.gmra.mxu0 %v569
        %v591 = vpop.f32.mrf.mxu0
        %v592 = vadd.f32 0.0, %v591
        %593 = vdwg.mxu0
        %v594 = vmul.f32 %v589, %v505
        %v595 = vmul.f32 %v592, %v505
        %v596 = vadd.f32 %v594, %v511
        %v597 = vadd.f32 %v595, %v511
        %vm598 = vcmp.gt.f32.partialorder %v596, 0.0
        %vm599 = vcmp.gt.f32.partialorder %v597, 0.0
        %v600 = vmul.f32 %v596, 0.2
        %v601 = vmul.f32 %v597, 0.2
        %v602 = vsel %vm598, %v596, %v600
        %v603 = vsel %vm599, %v597, %v601
        %v604 = vmax.f32 %v519, %v602
        %v605 = vmax.f32 %v520, %v603
        %s606 = scalar_lea.vmem %s396, 16
        %v607 = vld [vmem:[%s606] sm:$0xf]
        %v608 = vld [vmem:[%s606 + $0x4] sm:$0xf]
        %v609 = vunpack.c.l.bf16 %v607
        %v610 = vunpack.c.l.bf16 %v608
        %v612 = vsel %vm413, %v609, 0
        %v615 = vsel %vm413, %v610, 0
        %617 = vmatpush.msra.mxu0 0.0
        %618 = vmatpush.msra.mxu0 0.0
        %619 = vmatpush.msra.mxu0 0.0
        %620 = vmatpush.msra.mxu0 0.0
        %621 = vmatpush.msra.mxu0 0.0
        %622 = vmatpush.msra.mxu0 0.0
        %623 = vmatpush.msra.mxu0 0.0
        %624 = vmatpush.msra.mxu0 0.0
        %625 = vmatpush.msra.mxu0 0.0
        %626 = vmatpush.msra.mxu0 0.0
        %627 = vmatpush.msra.mxu0 0.0
        %628 = vmatpush.msra.mxu0 0.0
        %629 = vmatpush.msra.mxu0 0.0
        %630 = vmatpush.msra.mxu0 0.0
        %631 = vmatpush.msra.mxu0 0.0
        %632 = vmatpush.msra.mxu0 %v422
        %633 = vmatmul.f32.gmra.mxu0 %v612
        %v634 = vpop.f32.mrf.mxu0
        %v635 = vadd.f32 0.0, %v634
        %636 = vmatmul.f32.gmra.mxu0 %v615
        %v637 = vpop.f32.mrf.mxu0
        %v638 = vadd.f32 0.0, %v637
        %639 = vdwg.mxu0
        %v640 = vmul.f32 %v635, %v449
        %v641 = vmul.f32 %v638, %v449
        %v642 = vadd.f32 %v640, %v455
        %v643 = vadd.f32 %v641, %v455
        %vm644 = vcmp.gt.f32.partialorder %v642, 0.0
        %vm645 = vcmp.gt.f32.partialorder %v643, 0.0
        %v646 = vmul.f32 %v642, 0.2
        %v647 = vmul.f32 %v643, 0.2
        %v648 = vsel %vm644, %v642, %v646
        %v649 = vsel %vm645, %v643, %v647
        %v651 = vsel %vm473, %v648, 0
        %v654 = vsel %vm473, %v649, 0
        %656 = vmatpush.msra.mxu0 0.0
        %657 = vmatpush.msra.mxu0 0.0
        %658 = vmatpush.msra.mxu0 0.0
        %659 = vmatpush.msra.mxu0 0.0
        %660 = vmatpush.msra.mxu0 0.0
        %661 = vmatpush.msra.mxu0 0.0
        %662 = vmatpush.msra.mxu0 0.0
        %663 = vmatpush.msra.mxu0 0.0
        %664 = vmatpush.msra.mxu0 %v472
        %665 = vmatpush.msra.mxu0 %v471
        %666 = vmatpush.msra.mxu0 %v470
        %667 = vmatpush.msra.mxu0 %v469
        %668 = vmatpush.msra.mxu0 %v468
        %669 = vmatpush.msra.mxu0 %v467
        %670 = vmatpush.msra.mxu0 %v466
        %671 = vmatpush.msra.mxu0 %v465
        %672 = vmatmul.f32.gmra.mxu0 %v651
        %v673 = vpop.f32.mrf.mxu0
        %v674 = vadd.f32 0.0, %v673
        %675 = vmatmul.f32.gmra.mxu0 %v654
        %v676 = vpop.f32.mrf.mxu0
        %v677 = vadd.f32 0.0, %v676
        %678 = vdwg.mxu0
        %v679 = vmul.f32 %v674, %v505
        %v680 = vmul.f32 %v677, %v505
        %v681 = vadd.f32 %v679, %v511
        %v682 = vadd.f32 %v680, %v511
        %vm683 = vcmp.gt.f32.partialorder %v681, 0.0
        %vm684 = vcmp.gt.f32.partialorder %v682, 0.0
        %v685 = vmul.f32 %v681, 0.2
        %v686 = vmul.f32 %v682, 0.2
        %v687 = vsel %vm683, %v681, %v685
        %v688 = vsel %vm684, %v682, %v686
        %v689 = vmax.f32 %v604, %v687
        %v690 = vmax.f32 %v605, %v688
        %s691 = scalar_lea.vmem %s396, 24
        %v692 = vld [vmem:[%s691] sm:$0xf]
        %v693 = vld [vmem:[%s691 + $0x4] sm:$0xf]
        %v694 = vunpack.c.l.bf16 %v692
        %v695 = vunpack.c.l.bf16 %v693
        %v697 = vsel %vm413, %v694, 0
        %v700 = vsel %vm413, %v695, 0
        %702 = vmatpush.msra.mxu0 0.0
        %703 = vmatpush.msra.mxu0 0.0
        %704 = vmatpush.msra.mxu0 0.0
        %705 = vmatpush.msra.mxu0 0.0
        %706 = vmatpush.msra.mxu0 0.0
        %707 = vmatpush.msra.mxu0 0.0
        %708 = vmatpush.msra.mxu0 0.0
        %709 = vmatpush.msra.mxu0 0.0
        %710 = vmatpush.msra.mxu0 0.0
        %711 = vmatpush.msra.mxu0 0.0
        %712 = vmatpush.msra.mxu0 0.0
        %713 = vmatpush.msra.mxu0 0.0
        %714 = vmatpush.msra.mxu0 0.0
        %715 = vmatpush.msra.mxu0 0.0
        %716 = vmatpush.msra.mxu0 0.0
        %717 = vmatpush.msra.mxu0 %v422
        %718 = vmatmul.f32.gmra.mxu0 %v697
        %v719 = vpop.f32.mrf.mxu0
        %v720 = vadd.f32 0.0, %v719
        %721 = vmatmul.f32.gmra.mxu0 %v700
        %v722 = vpop.f32.mrf.mxu0
        %v723 = vadd.f32 0.0, %v722
        %724 = vdwg.mxu0
        %v725 = vmul.f32 %v720, %v449
        %v726 = vmul.f32 %v723, %v449
        %v727 = vadd.f32 %v725, %v455
        %v728 = vadd.f32 %v726, %v455
        %vm729 = vcmp.gt.f32.partialorder %v727, 0.0
        %vm730 = vcmp.gt.f32.partialorder %v728, 0.0
        %v731 = vmul.f32 %v727, 0.2
        %v732 = vmul.f32 %v728, 0.2
        %v733 = vsel %vm729, %v727, %v731
        %v734 = vsel %vm730, %v728, %v732
        %v736 = vsel %vm473, %v733, 0
        %v739 = vsel %vm473, %v734, 0
        %741 = vmatpush.msra.mxu0 0.0
        %742 = vmatpush.msra.mxu0 0.0
        %743 = vmatpush.msra.mxu0 0.0
        %744 = vmatpush.msra.mxu0 0.0
        %745 = vmatpush.msra.mxu0 0.0
        %746 = vmatpush.msra.mxu0 0.0
        %747 = vmatpush.msra.mxu0 0.0
        %748 = vmatpush.msra.mxu0 0.0
        %749 = vmatpush.msra.mxu0 %v472
        %750 = vmatpush.msra.mxu0 %v471
        %751 = vmatpush.msra.mxu0 %v470
        %752 = vmatpush.msra.mxu0 %v469
        %753 = vmatpush.msra.mxu0 %v468
        %754 = vmatpush.msra.mxu0 %v467
        %755 = vmatpush.msra.mxu0 %v466
        %756 = vmatpush.msra.mxu0 %v465
        %757 = vmatmul.f32.gmra.mxu0 %v736
        %v758 = vpop.f32.mrf.mxu0
        %v759 = vadd.f32 0.0, %v758
        %760 = vmatmul.f32.gmra.mxu0 %v739
        %v761 = vpop.f32.mrf.mxu0
        %v762 = vadd.f32 0.0, %v761
        %763 = vdwg.mxu0
        %v764 = vmul.f32 %v759, %v505
        %v765 = vmul.f32 %v762, %v505
        %v766 = vadd.f32 %v764, %v511
        %v767 = vadd.f32 %v765, %v511
        %vm768 = vcmp.gt.f32.partialorder %v766, 0.0
        %vm769 = vcmp.gt.f32.partialorder %v767, 0.0
        %v770 = vmul.f32 %v766, 0.2
        %v771 = vmul.f32 %v767, 0.2
        %v772 = vsel %vm768, %v766, %v770
        %v773 = vsel %vm769, %v767, %v771
        %v774 = vmax.f32 %v689, %v772
        %v775 = vmax.f32 %v690, %v773
        %776 = vst.msk [vmem:[%s406] sm:$0xff] %vm473, %v774
        %777 = vst.msk [vmem:[%s406 + $0x8] sm:$0xff] %vm473, %v775
        %s778 = smul.u32 2, %s27
        %p779 = scmp.lt.s32.totalorder %s26, 1
        %s780 = scalar_select %p779, %s26, 1
        %p781 = scmp.lt.s32.totalorder %s778, 1
        %s782 = scalar_select %p781, %s778, 1
        %s783 = smul.addr %s780, 2
        %s784 = sadd.s32 %s782, %s783
        %s785 = smul.addr %s784, 8
        %s786 = scalar_lea.vmem %s7, %s785
        // Predicated region
        $region73: #{dgcnn_seg_forward.10} parent=47 // pred_check
          %p787 = pneg %p208
        $region74: #{dgcnn_seg_forward.10} parent=47 // pred_check_branch
          %789 = sbr.rel (%p787) target = $region76
        $region75: #{dgcnn_seg_forward.10} parent=47 // pred_region
          %s790 = smul.u32 2, %s27
        $region76: #{dgcnn_seg_forward.10} parent=47 // pred_fallthru
          _
      $region48: #{dgcnn_seg_forward.10} parent=5 // pred_fallthru
        _
      %p791 = scmp.le.s32.totalorder 2, %s17
      // Predicated region
      $region77: #{dgcnn_seg_forward.10} parent=5 // pred_check
        %p792 = pneg %p791
      $region78: #{dgcnn_seg_forward.10} parent=5 // pred_check_branch
        %794 = sbr.rel (%p792) target = $region80
      $region79: #{dgcnn_seg_forward.10} parent=5 // pred_region
        %s795 = ssub.s32 %s17, 2
        // Predicated region
        $region81: #{dgcnn_seg_forward.10} parent=79 // pred_check
          %p796 = pneg %p214
        $region82: #{dgcnn_seg_forward.10} parent=79 // pred_check_branch
          %798 = sbr.rel (%p796) target = $region84
        $region83: #{dgcnn_seg_forward.10} parent=79 // pred_region
          %s799 = smul.u32 2, %s29
          %p800 = scmp.lt.s32.totalorder %s28, 1
          %s801 = scalar_select %p800, %s28, 1
          %p802 = scmp.lt.s32.totalorder %s799, 1
          %s803 = scalar_select %p802, %s799, 1
          %s804 = smul.addr %s801, 2
          %s805 = sadd.s32 %s803, %s804
          %s806 = smul.addr %s805, 8
          %s807 = scalar_lea.vmem %s7, %s806
        $region84: #{dgcnn_seg_forward.10} parent=79 // pred_fallthru
          _
      $region80: #{dgcnn_seg_forward.10} parent=5 // pred_fallthru
        _
    $region6: #{dgcnn_seg_forward.10} parent=1 // loop_footer
      %s21 = sadd.s32 1, %s17
    $region7: #{dgcnn_seg_forward.10} parent=1 // loop_footer_branch
      %16 = sbr.rel target = $region3
    $region8: #{dgcnn_seg_forward.10} parent=1 // loop_exit
      _
    %808 = vsyncpa [#allocation3], 1
    %s809 = scalar_lea.sflag [#allocation3], 1
    %810 = vsyncpa %s809, 1
    %811 = vsyncpa [#allocation5], 1
    %812 = vsyncpa [#allocation8], 1
    %813 = vsyncpa [#allocation11], 1

// kernel: dgcnn_seg_forward.14
$region0: #{dgcnn_seg_forward.14}
  #allocation0 [shape = 'u32[]', space=smem, size = 0x4, offset = 0x4, fixed_abs, tag = 'smem constant byte address 0x4 - core index']
  #allocation1 [shape = 'u32[72,128]{1,0:T(1,128)}', space=vmem, size = 0x9000, scoped, tag = 'internal scratch']
  %s0 = inlined_call_operand.vmem [shape: bf16[2,4,16,128], index: 0, kind: input, shape index: {}]
  %s1 = inlined_call_operand.vmem [shape: f32[128,64], index: 1, kind: input, shape index: {}]
  %s2 = inlined_call_operand.vmem [shape: f32[1,64], index: 2, kind: input, shape index: {}]
  %s3 = inlined_call_operand.vmem [shape: f32[1,64], index: 3, kind: input, shape index: {}]
  %s4 = inlined_call_operand.vmem [shape: f32[2,16,64], index: 4, kind: output, shape index: {}]
  %s5 = sld [smem:[#allocation0]]
  $region49: #{dgcnn_seg_forward.14} parent=0
    _
  %s7 = ssub.s32 1, %s5
  %s8 = scalar_select 0, %s7, %s5
  loop: start=0, step=1, limit=4
  $region2: #{dgcnn_seg_forward.14} parent=0 // loop_pre_header
    _
  $region3: #{dgcnn_seg_forward.14} parent=0 // loop_header
    %s10 = sphi 0, %s14
    %p11 = scmp.ge.s32.totalorder %s10, 4
    %s17 = sphi 0, %s29
    %s18 = sphi 0, %s25
    %s19 = sphi 0, %s17
    %s20 = sphi 0, %s18
    %s21 = sphi 0, %s19
    %s22 = sphi 0, %s20
    %s34 = sphi 0, %s36
    %s37 = sphi 0, %s34
    %s38 = sphi 0, %s37
    %s54 = sphi 0, %s38
    %s58 = sphi 0, %s58
    %s60 = sphi 0, %s58
    %s61 = sphi 0, %s60
    %s75 = sphi 0, %s61
    %s79 = sphi 0, %s79
    %s81 = sphi 0, %s79
    %s82 = sphi 0, %s81
    %s96 = sphi 0, %s82
    %s100 = sphi 0, %s100
    %s102 = sphi 0, %s100
    %s103 = sphi 0, %s102
    %s117 = sphi 0, %s103
    %s125 = sphi 0, %s127
    %s128 = sphi 0, %s125
    %s129 = sphi 0, %s128
    %s145 = sphi 0, %s129
  $region4: #{dgcnn_seg_forward.14} parent=0 // loop_header_branch
    %13 = sbr.rel (%p11) target = $region8
  $region5: #{dgcnn_seg_forward.14} parent=0 // loop_body
    %s15 = ssub.s32 %s10, 1
    %s16 = ssub.s32 %s10, 2
    %s23 = sadd.s32 1, %s18
    %p24 = scmp.ge.s32.totalorder %s23, 1
    %s25 = scalar_select %p24, 0, %s23
    %s26 = sadd.s32 1, %s17
    %s27 = scalar_select %p24, %s26, %s17
    %p28 = scmp.ge.s32.totalorder %s27, 2
    %s29 = scalar_select %p28, 0, %s27
    %s30 = ssub.s32 %s17, %s29
    %s31 = ssub.s32 %s18, %s25
    %s32 = sor.u32 %s30, %s31
    %p33 = scmp.eq.s32.totalorder %s32, 0
    %s35 = sadd.s32 %s34, 1
    %s36 = scalar_select %p33, %s34, %s35
    %p39 = pneg %p33
    %p40 = scmp.eq.s32.totalorder %s10, 1
    %p41 = por %p39, %p40
    %p42 = scmp.ne.s32.totalorder %s34, %s37
    %p43 = scmp.eq.s32.totalorder %s10, 0
    %p44 = por %p42, %p43
    %p45 = scmp.ne.s32.totalorder %s34, %s37
    %p46 = scmp.eq.s32.totalorder %s15, 1
    %p47 = por %p45, %p46
    %p48 = scmp.ne.s32.totalorder %s37, %s38
    %p49 = scmp.eq.s32.totalorder %s15, 0
    %p50 = por %p48, %p49
    %p51 = scmp.ne.s32.totalorder %s37, %s38
    %p52 = scmp.eq.s32.totalorder %s16, 1
    %p53 = por %p51, %p52
    %p55 = scmp.ne.s32.totalorder %s38, %s54
    %p56 = scmp.eq.s32.totalorder %s16, 0
    %p57 = por %p55, %p56
    %s59 = sadd.s32 %s58, 1
    %p62 = scmp.eq.s32.totalorder %s10, 1
    %p63 = scmp.ne.s32.totalorder %s58, %s60
    %p64 = scmp.eq.s32.totalorder %s10, 0
    %p65 = por %p63, %p64
    %p66 = scmp.ne.s32.totalorder %s58, %s60
    %p67 = scmp.eq.s32.totalorder %s15, 1
    %p68 = por %p66, %p67
    %p69 = scmp.ne.s32.totalorder %s60, %s61
    %p70 = scmp.eq.s32.totalorder %s15, 0
    %p71 = por %p69, %p70
    %p72 = scmp.ne.s32.totalorder %s60, %s61
    %p73 = scmp.eq.s32.totalorder %s16, 1
    %p74 = por %p72, %p73
    %p76 = scmp.ne.s32.totalorder %s61, %s75
    %p77 = scmp.eq.s32.totalorder %s16, 0
    %p78 = por %p76, %p77
    %s80 = sadd.s32 %s79, 1
    %p83 = scmp.eq.s32.totalorder %s10, 1
    %p84 = scmp.ne.s32.totalorder %s79, %s81
    %p85 = scmp.eq.s32.totalorder %s10, 0
    %p86 = por %p84, %p85
    %p87 = scmp.ne.s32.totalorder %s79, %s81
    %p88 = scmp.eq.s32.totalorder %s15, 1
    %p89 = por %p87, %p88
    %p90 = scmp.ne.s32.totalorder %s81, %s82
    %p91 = scmp.eq.s32.totalorder %s15, 0
    %p92 = por %p90, %p91
    %p93 = scmp.ne.s32.totalorder %s81, %s82
    %p94 = scmp.eq.s32.totalorder %s16, 1
    %p95 = por %p93, %p94
    %p97 = scmp.ne.s32.totalorder %s82, %s96
    %p98 = scmp.eq.s32.totalorder %s16, 0
    %p99 = por %p97, %p98
    %s101 = sadd.s32 %s100, 1
    %p104 = scmp.eq.s32.totalorder %s10, 1
    %p105 = scmp.ne.s32.totalorder %s100, %s102
    %p106 = scmp.eq.s32.totalorder %s10, 0
    %p107 = por %p105, %p106
    %p108 = scmp.ne.s32.totalorder %s100, %s102
    %p109 = scmp.eq.s32.totalorder %s15, 1
    %p110 = por %p108, %p109
    %p111 = scmp.ne.s32.totalorder %s102, %s103
    %p112 = scmp.eq.s32.totalorder %s15, 0
    %p113 = por %p111, %p112
    %p114 = scmp.ne.s32.totalorder %s102, %s103
    %p115 = scmp.eq.s32.totalorder %s16, 1
    %p116 = por %p114, %p115
    %p118 = scmp.ne.s32.totalorder %s103, %s117
    %p119 = scmp.eq.s32.totalorder %s16, 0
    %p120 = por %p118, %p119
    %s121 = ssub.s32 %s17, %s29
    %s122 = ssub.s32 %s18, %s25
    %s123 = sor.u32 %s121, %s122
    %p124 = scmp.eq.s32.totalorder %s123, 0
    %s126 = sadd.s32 %s125, 1
    %s127 = scalar_select %p124, %s125, %s126
    %p130 = pneg %p124
    %p131 = scmp.eq.s32.totalorder %s10, 1
    %p132 = por %p130, %p131
    %p133 = scmp.ne.s32.totalorder %s125, %s128
    %p134 = scmp.eq.s32.totalorder %s10, 0
    %p135 = por %p133, %p134
    %p136 = scmp.ne.s32.totalorder %s125, %s128
    %p137 = scmp.eq.s32.totalorder %s15, 1
    %p138 = por %p136, %p137
    %p139 = scmp.ne.s32.totalorder %s128, %s129
    %p140 = scmp.eq.s32.totalorder %s15, 0
    %p141 = por %p139, %p140
    %p142 = scmp.ne.s32.totalorder %s128, %s129
    %p143 = scmp.eq.s32.totalorder %s16, 1
    %p144 = por %p142, %p143
    %p146 = scmp.ne.s32.totalorder %s129, %s145
    %p147 = scmp.eq.s32.totalorder %s16, 0
    %p148 = por %p146, %p147
    %p149 = scmp.le.s32.totalorder 1, %s10
    %p150 = scmp.lt.s32.totalorder %s10, 3
    %p151 = pnand %p149, %p150
    %p152 = pneg %p151
    // Predicated region
    $region9: #{dgcnn_seg_forward.14} parent=5 // pred_check
      _
    $region10: #{dgcnn_seg_forward.14} parent=5 // pred_check_branch
      %154 = sbr.rel (%p151) target = $region12
    $region11: #{dgcnn_seg_forward.14} parent=5 // pred_region
      %s155 = ssub.s32 %s10, 1
      // Predicated region
      $region13: #{dgcnn_seg_forward.14} parent=11 // pred_check
        %p156 = pneg %p71
      $region14: #{dgcnn_seg_forward.14} parent=11 // pred_check_branch
        %158 = sbr.rel (%p156) target = $region16
      $region15: #{dgcnn_seg_forward.14} parent=11 // pred_region
        _
      $region16: #{dgcnn_seg_forward.14} parent=11 // pred_fallthru
        _
      // Predicated region
      $region17: #{dgcnn_seg_forward.14} parent=11 // pred_check
        %p159 = pneg %p92
      $region18: #{dgcnn_seg_forward.14} parent=11 // pred_check_branch
        %161 = sbr.rel (%p159) target = $region20
      $region19: #{dgcnn_seg_forward.14} parent=11 // pred_region
        _
      $region20: #{dgcnn_seg_forward.14} parent=11 // pred_fallthru
        _
      // Predicated region
      $region21: #{dgcnn_seg_forward.14} parent=11 // pred_check
        %p162 = pneg %p113
      $region22: #{dgcnn_seg_forward.14} parent=11 // pred_check_branch
        %164 = sbr.rel (%p162) target = $region24
      $region23: #{dgcnn_seg_forward.14} parent=11 // pred_region
        _
      $region24: #{dgcnn_seg_forward.14} parent=11 // pred_fallthru
        _
    $region12: #{dgcnn_seg_forward.14} parent=5 // pred_fallthru
      _
    %p165 = scmp.lt.s32.totalorder %s10, 2
    // Predicated region
    $region25: #{dgcnn_seg_forward.14} parent=5 // pred_check
      %p166 = pneg %p165
    $region26: #{dgcnn_seg_forward.14} parent=5 // pred_check_branch
      %168 = sbr.rel (%p166) target = $region28
    $region27: #{dgcnn_seg_forward.14} parent=5 // pred_region
      // Predicated region
      $region29: #{dgcnn_seg_forward.14} parent=27 // pred_check
        %p169 = pneg %p44
      $region30: #{dgcnn_seg_forward.14} parent=27 // pred_check_branch
        %171 = sbr.rel (%p169) target = $region32
      $region31: #{dgcnn_seg_forward.14} parent=27 // pred_region
        %s172 = smul.u32 2, %s18
        %p173 = scmp.lt.s32.totalorder %s17, 1
        %s174 = scalar_select %p173, %s17, 1
        %p175 = scmp.lt.s32.totalorder %s172, 1
        %s176 = scalar_select %p175, %s172, 1
        %s177 = smul.addr %s174, 8
        %s178 = sadd.s32 %s176, %s177
        %s179 = smul.addr %s178, 4
        %s180 = scalar_lea.vmem %s0, %s179
        %s181 = smul.u32 2, %s18
      $region32: #{dgcnn_seg_forward.14} parent=27 // pred_fallthru
        _
    $region28: #{dgcnn_seg_forward.14} parent=5 // pred_fallthru
      _
    %p182 = scmp.le.s32.totalorder 1, %s10
    %p183 = scmp.lt.s32.totalorder %s10, 3
    %p184 = pnand %p182, %p183
    %p185 = pneg %p184
    // Predicated region
    $region33: #{dgcnn_seg_forward.14} parent=5 // pred_check
      _
    $region34: #{dgcnn_seg_forward.14} parent=5 // pred_check_branch
      %187 = sbr.rel (%p184) target = $region36
    $region35: #{dgcnn_seg_forward.14} parent=5 // pred_region
      %s188 = ssub.s32 %s10, 1
      %s189 = smul.u32 2, %s20
      %p190 = scmp.lt.s32.totalorder %s19, 1
      %s191 = scalar_select %p190, %s19, 1
      %p192 = scmp.lt.s32.totalorder %s189, 1
      %s193 = scalar_select %p192, %s189, 1
      %s194 = smul.addr %s191, 8
      %s195 = sadd.s32 %s193, %s194
      %s196 = smul.addr %s195, 4
      %s197 = scalar_lea.vmem %s0, %s196
      %p198 = pneg %p50
      %p199 = pneg %p47
      %p200 = pneg %p71
      %p201 = pneg %p68
      %p202 = pneg %p92
      %p203 = pneg %p89
      %p204 = pneg %p113
      %p205 = pneg %p110
      %p206 = pneg %p141
      %p207 = pneg %p138
      %s208 = smul.u32 2, %s20
      %p209 = scmp.lt.s32.totalorder %s19, 1
      %s210 = scalar_select %p209, %s19, 1
      %p211 = scmp.lt.s32.totalorder %s208, 1
      %s212 = scalar_select %p211, %s208, 1
      %s213 = smul.addr %s210, 2
      %s214 = sadd.s32 %s212, %s213
      %s215 = smul.addr %s214, 8
      %s216 = scalar_lea.vmem %s4, %s215
      %s217 = smul.u32 2, %s20
      %p218 = scmp.lt.s32.totalorder %s19, 1
      %s219 = scalar_select %p218, %s19, 1
      %p220 = scmp.lt.s32.totalorder %s217, 1
      %s221 = scalar_select %p220, %s217, 1
      %s222 = smul.addr %s219, 8
      %s223 = sadd.s32 %s221, %s222
      %s224 = smul.addr %s223, 4
      %s225 = scalar_lea.vmem %s0, %s224
      %s226 = smul.u32 2, %s20
      %s227 = smul.u32 2, %s20
      %p228 = scmp.lt.s32.totalorder %s19, 1
      %s229 = scalar_select %p228, %s19, 1
      %p230 = scmp.lt.s32.totalorder %s227, 1
      %s231 = scalar_select %p230, %s227, 1
      %s232 = smul.addr %s229, 2
      %s233 = sadd.s32 %s231, %s232
      %s234 = smul.addr %s233, 8
      %s235 = scalar_lea.vmem %s4, %s234
      %s236 = smul.u32 2, %s20
      %v237 = vld [vmem:[%s225] sm:$0xf]
      %v238 = vld [vmem:[%s225 + $0x4] sm:$0xf]
      %v239 = vunpack.c.l.bf16 %v237
      %v240 = vunpack.c.l.bf16 %v238
      %v241 = vld [vmem:[%s1] sm:$0xff]
      %v242 = vld [vmem:[%s1 + $0x8] sm:$0xff]
      %v243 = vld [vmem:[%s1 + $0x10] sm:$0xff]
      %v244 = vld [vmem:[%s1 + $0x18] sm:$0xff]
      %v245 = vld [vmem:[%s1 + $0x20] sm:$0xff]
      %v246 = vld [vmem:[%s1 + $0x28] sm:$0xff]
      %v247 = vld [vmem:[%s1 + $0x30] sm:$0xff]
      %v248 = vld [vmem:[%s1 + $0x38] sm:$0xff]
      %v249 = vld [vmem:[%s1 + $0x40] sm:$0xff]
      %v250 = vld [vmem:[%s1 + $0x48] sm:$0xff]
      %v251 = vld [vmem:[%s1 + $0x50] sm:$0xff]
      %v252 = vld [vmem:[%s1 + $0x58] sm:$0xff]
      %v253 = vld [vmem:[%s1 + $0x60] sm:$0xff]
      %v254 = vld [vmem:[%s1 + $0x68] sm:$0xff]
      %v255 = vld [vmem:[%s1 + $0x70] sm:$0xff]
      %v256 = vld [vmem:[%s1 + $0x78] sm:$0xff]
      %257 = vmatpush.msra.mxu0 %v256
      %258 = vmatpush.msra.mxu0 %v255
      %259 = vmatpush.msra.mxu0 %v254
      %260 = vmatpush.msra.mxu0 %v253
      %261 = vmatpush.msra.mxu0 %v252
      %262 = vmatpush.msra.mxu0 %v251
      %263 = vmatpush.msra.mxu0 %v250
      %264 = vmatpush.msra.mxu0 %v249
      %265 = vmatpush.msra.mxu0 %v248
      %266 = vmatpush.msra.mxu0 %v247
      %267 = vmatpush.msra.mxu0 %v246
      %268 = vmatpush.msra.mxu0 %v245
      %269 = vmatpush.msra.mxu0 %v244
      %270 = vmatpush.msra.mxu0 %v243
      %271 = vmatpush.msra.mxu0 %v242
      %272 = vmatpush.msra.mxu0 %v241
      %273 = vmatmul.f32.gmra.mxu0 %v239
      %v274 = vpop.f32.mrf.mxu0
      %v275 = vadd.f32 0.0, %v274
      %276 = vmatmul.f32.gmra.mxu0 %v240
      %v277 = vpop.f32.mrf.mxu0
      %v278 = vadd.f32 0.0, %v277
      %279 = vdwg.mxu0
      %v280 = vld [vmem:[%s2] sm:$0x1]
      %v282 = vperm.slane %v280, 0
      %v284 = vmul.f32 %v275, %v282
      %v285 = vmul.f32 %v278, %v282
      %v286 = vld [vmem:[%s3] sm:$0x1]
      %v288 = vperm.slane %v286, 0
      %v290 = vadd.f32 %v284, %v288
      %v291 = vadd.f32 %v285, %v288
      %vm292 = vcmp.gt.f32.partialorder %v290, 0.0
      %vm293 = vcmp.gt.f32.partialorder %v291, 0.0
      %v294 = vmul.f32 %v290, 0.2
      %v295 = vmul.f32 %v291, 0.2
      %v296 = vsel %vm292, %v290, %v294
      %v297 = vsel %vm293, %v291, %v295
      %s298 = scalar_lea.vmem %s225, 8
      %v299 = vld [vmem:[%s298] sm:$0xf]
      %v300 = vld [vmem:[%s298 + $0x4] sm:$0xf]
      %v301 = vunpack.c.l.bf16 %v299
      %v302 = vunpack.c.l.bf16 %v300
      %303 = vmatpush.msra.mxu0 %v256
      %304 = vmatpush.msra.mxu0 %v255
      %305 = vmatpush.msra.mxu0 %v254
      %306 = vmatpush.msra.mxu0 %v253
      %307 = vmatpush.msra.mxu0 %v252
      %308 = vmatpush.msra.mxu0 %v251
      %309 = vmatpush.msra.mxu0 %v250
      %310 = vmatpush.msra.mxu0 %v249
      %311 = vmatpush.msra.mxu0 %v248
      %312 = vmatpush.msra.mxu0 %v247
      %313 = vmatpush.msra.mxu0 %v246
      %314 = vmatpush.msra.mxu0 %v245
      %315 = vmatpush.msra.mxu0 %v244
      %316 = vmatpush.msra.mxu0 %v243
      %317 = vmatpush.msra.mxu0 %v242
      %318 = vmatpush.msra.mxu0 %v241
      %319 = vmatmul.f32.gmra.mxu0 %v301
      %v320 = vpop.f32.mrf.mxu0
      %v321 = vadd.f32 0.0, %v320
      %322 = vmatmul.f32.gmra.mxu0 %v302
      %v323 = vpop.f32.mrf.mxu0
      %v324 = vadd.f32 0.0, %v323
      %325 = vdwg.mxu0
      %v326 = vmul.f32 %v321, %v282
      %v327 = vmul.f32 %v324, %v282
      %v328 = vadd.f32 %v326, %v288
      %v329 = vadd.f32 %v327, %v288
      %vm330 = vcmp.gt.f32.partialorder %v328, 0.0
      %vm331 = vcmp.gt.f32.partialorder %v329, 0.0
      %v332 = vmul.f32 %v328, 0.2
      %v333 = vmul.f32 %v329, 0.2
      %v334 = vsel %vm330, %v328, %v332
      %v335 = vsel %vm331, %v329, %v333
      %v336 = vmax.f32 %v296, %v334
      %v337 = vmax.f32 %v297, %v335
      %s338 = scalar_lea.vmem %s225, 16
      %v339 = vld [vmem:[%s338] sm:$0xf]
      %v340 = vld [vmem:[%s338 + $0x4] sm:$0xf]
      %v341 = vunpack.c.l.bf16 %v339
      %v342 = vunpack.c.l.bf16 %v340
      %343 = vmatpush.msra.mxu0 %v256
      %344 = vmatpush.msra.mxu0 %v255
      %345 = vmatpush.msra.mxu0 %v254
      %346 = vmatpush.msra.mxu0 %v253
      %347 = vmatpush.msra.mxu0 %v252
      %348 = vmatpush.msra.mxu0 %v251
      %349 = vmatpush.msra.mxu0 %v250
      %350 = vmatpush.msra.mxu0 %v249
      %351 = vmatpush.msra.mxu0 %v248
      %352 = vmatpush.msra.mxu0 %v247
      %353 = vmatpush.msra.mxu0 %v246
      %354 = vmatpush.msra.mxu0 %v245
      %355 = vmatpush.msra.mxu0 %v244
      %356 = vmatpush.msra.mxu0 %v243
      %357 = vmatpush.msra.mxu0 %v242
      %358 = vmatpush.msra.mxu0 %v241
      %359 = vmatmul.f32.gmra.mxu0 %v341
      %v360 = vpop.f32.mrf.mxu0
      %v361 = vadd.f32 0.0, %v360
      %362 = vmatmul.f32.gmra.mxu0 %v342
      %v363 = vpop.f32.mrf.mxu0
      %v364 = vadd.f32 0.0, %v363
      %365 = vdwg.mxu0
      %v366 = vmul.f32 %v361, %v282
      %v367 = vmul.f32 %v364, %v282
      %v368 = vadd.f32 %v366, %v288
      %v369 = vadd.f32 %v367, %v288
      %vm370 = vcmp.gt.f32.partialorder %v368, 0.0
      %vm371 = vcmp.gt.f32.partialorder %v369, 0.0
      %v372 = vmul.f32 %v368, 0.2
      %v373 = vmul.f32 %v369, 0.2
      %v374 = vsel %vm370, %v368, %v372
      %v375 = vsel %vm371, %v369, %v373
      %v376 = vmax.f32 %v336, %v374
      %v377 = vmax.f32 %v337, %v375
      %s378 = scalar_lea.vmem %s225, 24
      %v379 = vld [vmem:[%s378] sm:$0xf]
      %v380 = vld [vmem:[%s378 + $0x4] sm:$0xf]
      %v381 = vunpack.c.l.bf16 %v379
      %v382 = vunpack.c.l.bf16 %v380
      %383 = vmatpush.msra.mxu0 %v256
      %384 = vmatpush.msra.mxu0 %v255
      %385 = vmatpush.msra.mxu0 %v254
      %386 = vmatpush.msra.mxu0 %v253
      %387 = vmatpush.msra.mxu0 %v252
      %388 = vmatpush.msra.mxu0 %v251
      %389 = vmatpush.msra.mxu0 %v250
      %390 = vmatpush.msra.mxu0 %v249
      %391 = vmatpush.msra.mxu0 %v248
      %392 = vmatpush.msra.mxu0 %v247
      %393 = vmatpush.msra.mxu0 %v246
      %394 = vmatpush.msra.mxu0 %v245
      %395 = vmatpush.msra.mxu0 %v244
      %396 = vmatpush.msra.mxu0 %v243
      %397 = vmatpush.msra.mxu0 %v242
      %398 = vmatpush.msra.mxu0 %v241
      %399 = vmatmul.f32.gmra.mxu0 %v381
      %v400 = vpop.f32.mrf.mxu0
      %v401 = vadd.f32 0.0, %v400
      %402 = vmatmul.f32.gmra.mxu0 %v382
      %v403 = vpop.f32.mrf.mxu0
      %v404 = vadd.f32 0.0, %v403
      %405 = vdwg.mxu0
      %v406 = vmul.f32 %v401, %v282
      %v407 = vmul.f32 %v404, %v282
      %v408 = vadd.f32 %v406, %v288
      %v409 = vadd.f32 %v407, %v288
      %vm410 = vcmp.gt.f32.partialorder %v408, 0.0
      %vm411 = vcmp.gt.f32.partialorder %v409, 0.0
      %v412 = vmul.f32 %v408, 0.2
      %v413 = vmul.f32 %v409, 0.2
      %v414 = vsel %vm410, %v408, %v412
      %v415 = vsel %vm411, %v409, %v413
      %v416 = vmax.f32 %v376, %v414
      %v417 = vmax.f32 %v377, %v415
      %vm418 = vcmask 523264
      %419 = vst.msk [vmem:[%s235] sm:$0xff] %vm418, %v416
      %420 = vst.msk [vmem:[%s235 + $0x8] sm:$0xff] %vm418, %v417
      %s421 = smul.u32 2, %s20
      %p422 = scmp.lt.s32.totalorder %s19, 1
      %s423 = scalar_select %p422, %s19, 1
      %p424 = scmp.lt.s32.totalorder %s421, 1
      %s425 = scalar_select %p424, %s421, 1
      %s426 = smul.addr %s423, 2
      %s427 = sadd.s32 %s425, %s426
      %s428 = smul.addr %s427, 8
      %s429 = scalar_lea.vmem %s4, %s428
      // Predicated region
      $region37: #{dgcnn_seg_forward.14} parent=35 // pred_check
        %p430 = pneg %p138
      $region38: #{dgcnn_seg_forward.14} parent=35 // pred_check_branch
        %432 = sbr.rel (%p430) target = $region40
      $region39: #{dgcnn_seg_forward.14} parent=35 // pred_region
        %s433 = smul.u32 2, %s20
      $region40: #{dgcnn_seg_forward.14} parent=35 // pred_fallthru
        _
    $region36: #{dgcnn_seg_forward.14} parent=5 // pred_fallthru
      _
    %p434 = scmp.le.s32.totalorder 2, %s10
    // Predicated region
    $region41: #{dgcnn_seg_forward.14} parent=5 // pred_check
      %p435 = pneg %p434
    $region42: #{dgcnn_seg_forward.14} parent=5 // pred_check_branch
      %437 = sbr.rel (%p435) target = $region44
    $region43: #{dgcnn_seg_forward.14} parent=5 // pred_region
      %s438 = ssub.s32 %s10, 2
      // Predicated region
      $region45: #{dgcnn_seg_forward.14} parent=43 // pred_check
        %p439 = pneg %p144
      $region46: #{dgcnn_seg_forward.14} parent=43 // pred_check_branch
        %441 = sbr.rel (%p439) target = $region48
      $region47: #{dgcnn_seg_forward.14} parent=43 // pred_region
        %s442 = smul.u32 2, %s22
        %p443 = scmp.lt.s32.totalorder %s21, 1
        %s444 = scalar_select %p443, %s21, 1
        %p445 = scmp.lt.s32.totalorder %s442, 1
        %s446 = scalar_select %p445, %s442, 1
        %s447 = smul.addr %s444, 2
        %s448 = sadd.s32 %s446, %s447
        %s449 = smul.addr %s448, 8
        %s450 = scalar_lea.vmem %s4, %s449
      $region48: #{dgcnn_seg_forward.14} parent=43 // pred_fallthru
        _
    $region44: #{dgcnn_seg_forward.14} parent=5 // pred_fallthru
      _
  $region6: #{dgcnn_seg_forward.14} parent=0 // loop_footer
    %s14 = sadd.s32 1, %s10
  $region7: #{dgcnn_seg_forward.14} parent=0 // loop_footer_branch
    %9 = sbr.rel target = $region3
  $region8: #{dgcnn_seg_forward.14} parent=0 // loop_exit
    _

// kernel: dgcnn_seg_forward.12
$region0: #{dgcnn_seg_forward.12}
  #allocation0 [shape = 'u32[]', space=smem, size = 0x4, offset = 0x4, fixed_abs, tag = 'smem constant byte address 0x4 - core index']
  #allocation1 [shape = 'u32[72,128]{1,0:T(1,128)}', space=vmem, size = 0x9000, scoped, tag = 'internal scratch']
  %s0 = inlined_call_operand.vmem [shape: bf16[2,4,16,128], index: 0, kind: input, shape index: {}]
  %s1 = inlined_call_operand.vmem [shape: f32[128,64], index: 1, kind: input, shape index: {}]
  %s2 = inlined_call_operand.hbm [shape: f32[1,64], index: 2, kind: input, shape index: {}]
  %s3 = inlined_call_operand.hbm [shape: f32[1,64], index: 3, kind: input, shape index: {}]
  %s4 = inlined_call_operand.hbm [shape: f32[64,64], index: 4, kind: input, shape index: {}]
  %s5 = inlined_call_operand.hbm [shape: f32[1,64], index: 5, kind: input, shape index: {}]
  %s6 = inlined_call_operand.hbm [shape: f32[1,64], index: 6, kind: input, shape index: {}]
  %s7 = inlined_call_operand.vmem [shape: f32[2,16,64], index: 7, kind: output, shape index: {}]
  %s8 = sld [smem:[#allocation0]]
  $region81: #{dgcnn_seg_forward.12} parent=0
    _
  %s10 = ssub.s32 1, %s8
  %s11 = scalar_select 0, %s10, %s8
  $region1: #{dgcnn_seg_forward.12} parent=0
    #allocation2 [shape = 'u8[512]{0}', space=vmem, size = 0x400, scoped, tag = 'input window, operand 2, single buffered']
    #allocation3 [shape = 's32[2]{0}', space=sflag, size = 0x8, scoped, tag = 'scoped memory for dgcnn_seg_forward.12']
    #allocation4 [shape = 'u8[512]{0}', space=vmem, size = 0x400, scoped, tag = 'input window, operand 3, single buffered']
    #allocation5 [shape = 's32[1]{0}', space=sflag, size = 0x4, scoped, tag = 'scoped memory for dgcnn_seg_forward.12']
    #allocation6 [shape = 'u8[32768]{0}', space=vmem, size = 0x8000, scoped, tag = 'input window, operand 4, single buffered']
    #allocation7 [shape = 'u8[512]{0}', space=vmem, size = 0x400, scoped, tag = 'input window, operand 5, single buffered']
    #allocation8 [shape = 's32[1]{0}', space=sflag, size = 0x4, scoped, tag = 'scoped memory for dgcnn_seg_forward.12']
    #allocation9 [shape = 'u8[512]{0}', space=vmem, size = 0x400, scoped, tag = 'input window, operand 6, single buffered']
    %12 = vsyncpa [#allocation3], 0
    %13 = vsyncpa [#allocation5], 0
    %14 = vsyncpa [#allocation8], 0
    loop: start=0, step=1, limit=4
    $region2: #{dgcnn_seg_forward.12} parent=1 // loop_pre_header
      _
    $region3: #{dgcnn_seg_forward.12} parent=1 // loop_header
      %s16 = sphi 0, %s20
      %p17 = scmp.ge.s32.totalorder %s16, 4
      %s23 = sphi 0, %s35
      %s24 = sphi 0, %s31
      %s25 = sphi 0, %s23
      %s26 = sphi 0, %s24
      %s27 = sphi 0, %s25
      %s28 = sphi 0, %s26
      %s40 = sphi 0, %s42
      %s43 = sphi 0, %s40
      %s44 = sphi 0, %s43
      %s60 = sphi 0, %s44
      %s64 = sphi 0, %s64
      %s66 = sphi 0, %s64
      %s67 = sphi 0, %s66
      %s81 = sphi 0, %s67
      %s85 = sphi 0, %s85
      %s87 = sphi 0, %s85
      %s88 = sphi 0, %s87
      %s102 = sphi 0, %s88
      %s106 = sphi 0, %s106
      %s108 = sphi 0, %s106
      %s109 = sphi 0, %s108
      %s123 = sphi 0, %s109
      %s127 = sphi 0, %s127
      %s129 = sphi 0, %s127
      %s130 = sphi 0, %s129
      %s144 = sphi 0, %s130
      %s148 = sphi 0, %s148
      %s150 = sphi 0, %s148
      %s151 = sphi 0, %s150
      %s165 = sphi 0, %s151
      %s169 = sphi 0, %s169
      %s171 = sphi 0, %s169
      %s172 = sphi 0, %s171
      %s186 = sphi 0, %s172
      %s194 = sphi 0, %s196
      %s197 = sphi 0, %s194
      %s198 = sphi 0, %s197
      %s214 = sphi 0, %s198
    $region4: #{dgcnn_seg_forward.12} parent=1 // loop_header_branch
      %19 = sbr.rel (%p17) target = $region8
    $region5: #{dgcnn_seg_forward.12} parent=1 // loop_body
      %s21 = ssub.s32 %s16, 1
      %s22 = ssub.s32 %s16, 2
      %s29 = sadd.s32 1, %s24
      %p30 = scmp.ge.s32.totalorder %s29, 1
      %s31 = scalar_select %p30, 0, %s29
      %s32 = sadd.s32 1, %s23
      %s33 = scalar_select %p30, %s32, %s23
      %p34 = scmp.ge.s32.totalorder %s33, 2
      %s35 = scalar_select %p34, 0, %s33
      %s36 = ssub.s32 %s23, %s35
      %s37 = ssub.s32 %s24, %s31
      %s38 = sor.u32 %s36, %s37
      %p39 = scmp.eq.s32.totalorder %s38, 0
      %s41 = sadd.s32 %s40, 1
      %s42 = scalar_select %p39, %s40, %s41
      %p45 = pneg %p39
      %p46 = scmp.eq.s32.totalorder %s16, 1
      %p47 = por %p45, %p46
      %p48 = scmp.ne.s32.totalorder %s40, %s43
      %p49 = scmp.eq.s32.totalorder %s16, 0
      %p50 = por %p48, %p49
      %p51 = scmp.ne.s32.totalorder %s40, %s43
      %p52 = scmp.eq.s32.totalorder %s21, 1
      %p53 = por %p51, %p52
      %p54 = scmp.ne.s32.totalorder %s43, %s44
      %p55 = scmp.eq.s32.totalorder %s21, 0
      %p56 = por %p54, %p55
      %p57 = scmp.ne.s32.totalorder %s43, %s44
      %p58 = scmp.eq.s32.totalorder %s22, 1
      %p59 = por %p57, %p58
      %p61 = scmp.ne.s32.totalorder %s44, %s60
      %p62 = scmp.eq.s32.totalorder %s22, 0
      %p63 = por %p61, %p62
      %s65 = sadd.s32 %s64, 1
      %p68 = scmp.eq.s32.totalorder %s16, 1
      %p69 = scmp.ne.s32.totalorder %s64, %s66
      %p70 = scmp.eq.s32.totalorder %s16, 0
      %p71 = por %p69, %p70
      %p72 = scmp.ne.s32.totalorder %s64, %s66
      %p73 = scmp.eq.s32.totalorder %s21, 1
      %p74 = por %p72, %p73
      %p75 = scmp.ne.s32.totalorder %s66, %s67
      %p76 = scmp.eq.s32.totalorder %s21, 0
      %p77 = por %p75, %p76
      %p78 = scmp.ne.s32.totalorder %s66, %s67
      %p79 = scmp.eq.s32.totalorder %s22, 1
      %p80 = por %p78, %p79
      %p82 = scmp.ne.s32.totalorder %s67, %s81
      %p83 = scmp.eq.s32.totalorder %s22, 0
      %p84 = por %p82, %p83
      %s86 = sadd.s32 %s85, 1
      %p89 = scmp.eq.s32.totalorder %s16, 1
      %p90 = scmp.ne.s32.totalorder %s85, %s87
      %p91 = scmp.eq.s32.totalorder %s16, 0
      %p92 = por %p90, %p91
      %p93 = scmp.ne.s32.totalorder %s85, %s87
      %p94 = scmp.eq.s32.totalorder %s21, 1
      %p95 = por %p93, %p94
      %p96 = scmp.ne.s32.totalorder %s87, %s88
      %p97 = scmp.eq.s32.totalorder %s21, 0
      %p98 = por %p96, %p97
      %p99 = scmp.ne.s32.totalorder %s87, %s88
      %p100 = scmp.eq.s32.totalorder %s22, 1
      %p101 = por %p99, %p100
      %p103 = scmp.ne.s32.totalorder %s88, %s102
      %p104 = scmp.eq.s32.totalorder %s22, 0
      %p105 = por %p103, %p104
      %s107 = sadd.s32 %s106, 1
      %p110 = scmp.eq.s32.totalorder %s16, 1
      %p111 = scmp.ne.s32.totalorder %s106, %s108
      %p112 = scmp.eq.s32.totalorder %s16, 0
      %p113 = por %p111, %p112
      %p114 = scmp.ne.s32.totalorder %s106, %s108
      %p115 = scmp.eq.s32.totalorder %s21, 1
      %p116 = por %p114, %p115
      %p117 = scmp.ne.s32.totalorder %s108, %s109
      %p118 = scmp.eq.s32.totalorder %s21, 0
      %p119 = por %p117, %p118
      %p120 = scmp.ne.s32.totalorder %s108, %s109
      %p121 = scmp.eq.s32.totalorder %s22, 1
      %p122 = por %p120, %p121
      %p124 = scmp.ne.s32.totalorder %s109, %s123
      %p125 = scmp.eq.s32.totalorder %s22, 0
      %p126 = por %p124, %p125
      %s128 = sadd.s32 %s127, 1
      %p131 = scmp.eq.s32.totalorder %s16, 1
      %p132 = scmp.ne.s32.totalorder %s127, %s129
      %p133 = scmp.eq.s32.totalorder %s16, 0
      %p134 = por %p132, %p133
      %p135 = scmp.ne.s32.totalorder %s127, %s129
      %p136 = scmp.eq.s32.totalorder %s21, 1
      %p137 = por %p135, %p136
      %p138 = scmp.ne.s32.totalorder %s129, %s130
      %p139 = scmp.eq.s32.totalorder %s21, 0
      %p140 = por %p138, %p139
      %p141 = scmp.ne.s32.totalorder %s129, %s130
      %p142 = scmp.eq.s32.totalorder %s22, 1
      %p143 = por %p141, %p142
      %p145 = scmp.ne.s32.totalorder %s130, %s144
      %p146 = scmp.eq.s32.totalorder %s22, 0
      %p147 = por %p145, %p146
      %s149 = sadd.s32 %s148, 1
      %p152 = scmp.eq.s32.totalorder %s16, 1
      %p153 = scmp.ne.s32.totalorder %s148, %s150
      %p154 = scmp.eq.s32.totalorder %s16, 0
      %p155 = por %p153, %p154
      %p156 = scmp.ne.s32.totalorder %s148, %s150
      %p157 = scmp.eq.s32.totalorder %s21, 1
      %p158 = por %p156, %p157
      %p159 = scmp.ne.s32.totalorder %s150, %s151
      %p160 = scmp.eq.s32.totalorder %s21, 0
      %p161 = por %p159, %p160
      %p162 = scmp.ne.s32.totalorder %s150, %s151
      %p163 = scmp.eq.s32.totalorder %s22, 1
      %p164 = por %p162, %p163
      %p166 = scmp.ne.s32.totalorder %s151, %s165
      %p167 = scmp.eq.s32.totalorder %s22, 0
      %p168 = por %p166, %p167
      %s170 = sadd.s32 %s169, 1
      %p173 = scmp.eq.s32.totalorder %s16, 1
      %p174 = scmp.ne.s32.totalorder %s169, %s171
      %p175 = scmp.eq.s32.totalorder %s16, 0
      %p176 = por %p174, %p175
      %p177 = scmp.ne.s32.totalorder %s169, %s171
      %p178 = scmp.eq.s32.totalorder %s21, 1
      %p179 = por %p177, %p178
      %p180 = scmp.ne.s32.totalorder %s171, %s172
      %p181 = scmp.eq.s32.totalorder %s21, 0
      %p182 = por %p180, %p181
      %p183 = scmp.ne.s32.totalorder %s171, %s172
      %p184 = scmp.eq.s32.totalorder %s22, 1
      %p185 = por %p183, %p184
      %p187 = scmp.ne.s32.totalorder %s172, %s186
      %p188 = scmp.eq.s32.totalorder %s22, 0
      %p189 = por %p187, %p188
      %s190 = ssub.s32 %s23, %s35
      %s191 = ssub.s32 %s24, %s31
      %s192 = sor.u32 %s190, %s191
      %p193 = scmp.eq.s32.totalorder %s192, 0
      %s195 = sadd.s32 %s194, 1
      %s196 = scalar_select %p193, %s194, %s195
      %p199 = pneg %p193
      %p200 = scmp.eq.s32.totalorder %s16, 1
      %p201 = por %p199, %p200
      %p202 = scmp.ne.s32.totalorder %s194, %s197
      %p203 = scmp.eq.s32.totalorder %s16, 0
      %p204 = por %p202, %p203
      %p205 = scmp.ne.s32.totalorder %s194, %s197
      %p206 = scmp.eq.s32.totalorder %s21, 1
      %p207 = por %p205, %p206
      %p208 = scmp.ne.s32.totalorder %s197, %s198
      %p209 = scmp.eq.s32.totalorder %s21, 0
      %p210 = por %p208, %p209
      %p211 = scmp.ne.s32.totalorder %s197, %s198
      %p212 = scmp.eq.s32.totalorder %s22, 1
      %p213 = por %p211, %p212
      %p215 = scmp.ne.s32.totalorder %s198, %s214
      %p216 = scmp.eq.s32.totalorder %s22, 0
      %p217 = por %p215, %p216
      %p218 = scmp.le.s32.totalorder 1, %s16
      %p219 = scmp.lt.s32.totalorder %s16, 3
      %p220 = pnand %p218, %p219
      %p221 = pneg %p220
      // Predicated region
      $region9: #{dgcnn_seg_forward.12} parent=5 // pred_check
        _
      $region10: #{dgcnn_seg_forward.12} parent=5 // pred_check_branch
        %223 = sbr.rel (%p220) target = $region12
      $region11: #{dgcnn_seg_forward.12} parent=5 // pred_region
        %s224 = ssub.s32 %s16, 1
        // Predicated region
        $region13: #{dgcnn_seg_forward.12} parent=11 // pred_check
          %p225 = pneg %p77
        $region14: #{dgcnn_seg_forward.12} parent=11 // pred_check_branch
          %227 = sbr.rel (%p225) target = $region16
        $region15: #{dgcnn_seg_forward.12} parent=11 // pred_region
          _
        $region16: #{dgcnn_seg_forward.12} parent=11 // pred_fallthru
          _
        // Predicated region
        $region17: #{dgcnn_seg_forward.12} parent=11 // pred_check
          %p228 = pneg %p98
        $region18: #{dgcnn_seg_forward.12} parent=11 // pred_check_branch
          %230 = sbr.rel (%p228) target = $region20
        $region19: #{dgcnn_seg_forward.12} parent=11 // pred_region
          %232 = vsyncadd [#allocation3], 0
          %s234 = sshll.u32 %s2, 4
          %s235 = int_to_ptr.hbm [resolvable:$true] %s234
          %s236 = sshll.u32 [#allocation2], 4
          %s237 = int_to_ptr.vmem [resolvable:$true] %s236
          %239 = dma.hbm_to_vmem [thread:$0]  %s235, 16, %s237, [#allocation3]
        $region20: #{dgcnn_seg_forward.12} parent=11 // pred_fallthru
          _
        // Predicated region
        $region21: #{dgcnn_seg_forward.12} parent=11 // pred_check
          %p240 = pneg %p119
        $region22: #{dgcnn_seg_forward.12} parent=11 // pred_check_branch
          %242 = sbr.rel (%p240) target = $region24
        $region23: #{dgcnn_seg_forward.12} parent=11 // pred_region
          %244 = vsyncadd [#allocation5], 0
          %s246 = sshll.u32 %s3, 4
          %s247 = int_to_ptr.hbm [resolvable:$true] %s246
          %s248 = sshll.u32 [#allocation4], 4
          %s249 = int_to_ptr.vmem [resolvable:$true] %s248
          %251 = dma.hbm_to_vmem [thread:$0]  %s247, 16, %s249, [#allocation5]
        $region24: #{dgcnn_seg_forward.12} parent=11 // pred_fallthru
          _
        // Predicated region
        $region25: #{dgcnn_seg_forward.12} parent=11 // pred_check
          %p252 = pneg %p140
        $region26: #{dgcnn_seg_forward.12} parent=11 // pred_check_branch
          %254 = sbr.rel (%p252) target = $region28
        $region27: #{dgcnn_seg_forward.12} parent=11 // pred_region
          %256 = vsyncadd [#allocation5], 0
          %s257 = sshll.u32 %s4, 4
          %s258 = int_to_ptr.hbm [resolvable:$true] %s257
          %s259 = sshll.u32 [#allocation6], 4
          %s260 = int_to_ptr.vmem [resolvable:$true] %s259
          %265 = dma.hbm_to_vmem [thread:$0]  %s258, 1024, %s260, [#allocation5], 128, 128, 8
        $region28: #{dgcnn_seg_forward.12} parent=11 // pred_fallthru
          _
        // Predicated region
        $region29: #{dgcnn_seg_forward.12} parent=11 // pred_check
          %p266 = pneg %p161
        $region30: #{dgcnn_seg_forward.12} parent=11 // pred_check_branch
          %268 = sbr.rel (%p266) target = $region32
        $region31: #{dgcnn_seg_forward.12} parent=11 // pred_region
          %270 = vsyncadd [#allocation8], 0
          %s272 = sshll.u32 %s5, 4
          %s273 = int_to_ptr.hbm [resolvable:$true] %s272
          %s274 = sshll.u32 [#allocation7], 4
          %s275 = int_to_ptr.vmem [resolvable:$true] %s274
          %277 = dma.hbm_to_vmem [thread:$0]  %s273, 16, %s275, [#allocation8]
        $region32: #{dgcnn_seg_forward.12} parent=11 // pred_fallthru
          _
        // Predicated region
        $region33: #{dgcnn_seg_forward.12} parent=11 // pred_check
          %p278 = pneg %p182
        $region34: #{dgcnn_seg_forward.12} parent=11 // pred_check_branch
          %280 = sbr.rel (%p278) target = $region36
        $region35: #{dgcnn_seg_forward.12} parent=11 // pred_region
          %282 = vsyncadd [#allocation8], 0
          %s284 = sshll.u32 %s6, 4
          %s285 = int_to_ptr.hbm [resolvable:$true] %s284
          %s286 = sshll.u32 [#allocation9], 4
          %s287 = int_to_ptr.vmem [resolvable:$true] %s286
          %289 = dma.hbm_to_vmem [thread:$0]  %s285, 16, %s287, [#allocation8]
        $region36: #{dgcnn_seg_forward.12} parent=11 // pred_fallthru
          _
      $region12: #{dgcnn_seg_forward.12} parent=5 // pred_fallthru
        _
      %p290 = scmp.lt.s32.totalorder %s16, 2
      // Predicated region
      $region37: #{dgcnn_seg_forward.12} parent=5 // pred_check
        %p291 = pneg %p290
      $region38: #{dgcnn_seg_forward.12} parent=5 // pred_check_branch
        %293 = sbr.rel (%p291) target = $region40
      $region39: #{dgcnn_seg_forward.12} parent=5 // pred_region
        // Predicated region
        $region41: #{dgcnn_seg_forward.12} parent=39 // pred_check
          %p294 = pneg %p50
        $region42: #{dgcnn_seg_forward.12} parent=39 // pred_check_branch
          %296 = sbr.rel (%p294) target = $region44
        $region43: #{dgcnn_seg_forward.12} parent=39 // pred_region
          %s297 = smul.u32 2, %s24
          %p298 = scmp.lt.s32.totalorder %s23, 1
          %s299 = scalar_select %p298, %s23, 1
          %p300 = scmp.lt.s32.totalorder %s297, 1
          %s301 = scalar_select %p300, %s297, 1
          %s302 = smul.addr %s299, 8
          %s303 = sadd.s32 %s301, %s302
          %s304 = smul.addr %s303, 4
          %s305 = scalar_lea.vmem %s0, %s304
          %s306 = smul.u32 2, %s24
        $region44: #{dgcnn_seg_forward.12} parent=39 // pred_fallthru
          _
      $region40: #{dgcnn_seg_forward.12} parent=5 // pred_fallthru
        _
      %p307 = scmp.le.s32.totalorder 1, %s16
      %p308 = scmp.lt.s32.totalorder %s16, 3
      %p309 = pnand %p307, %p308
      %p310 = pneg %p309
      // Predicated region
      $region45: #{dgcnn_seg_forward.12} parent=5 // pred_check
        _
      $region46: #{dgcnn_seg_forward.12} parent=5 // pred_check_branch
        %312 = sbr.rel (%p309) target = $region48
      $region47: #{dgcnn_seg_forward.12} parent=5 // pred_region
        %s313 = ssub.s32 %s16, 1
        // Predicated region
        $region49: #{dgcnn_seg_forward.12} parent=47 // pred_check
          %p314 = pneg %p98
        $region50: #{dgcnn_seg_forward.12} parent=47 // pred_check_branch
          %316 = sbr.rel (%p314) target = $region52
        $region51: #{dgcnn_seg_forward.12} parent=47 // pred_region
          %318 = dma.done [#allocation3], 16
        $region52: #{dgcnn_seg_forward.12} parent=47 // pred_fallthru
          _
        // Predicated region
        $region53: #{dgcnn_seg_forward.12} parent=47 // pred_check
          %p319 = pneg %p119
        $region54: #{dgcnn_seg_forward.12} parent=47 // pred_check_branch
          %321 = sbr.rel (%p319) target = $region56
        $region55: #{dgcnn_seg_forward.12} parent=47 // pred_region
          %323 = dma.done [#allocation5], 16
        $region56: #{dgcnn_seg_forward.12} parent=47 // pred_fallthru
          _
        // Predicated region
        $region57: #{dgcnn_seg_forward.12} parent=47 // pred_check
          %p324 = pneg %p140
        $region58: #{dgcnn_seg_forward.12} parent=47 // pred_check_branch
          %326 = sbr.rel (%p324) target = $region60
        $region59: #{dgcnn_seg_forward.12} parent=47 // pred_region
          %328 = dma.done [#allocation5], 1024
        $region60: #{dgcnn_seg_forward.12} parent=47 // pred_fallthru
          _
        // Predicated region
        $region61: #{dgcnn_seg_forward.12} parent=47 // pred_check
          %p329 = pneg %p161
        $region62: #{dgcnn_seg_forward.12} parent=47 // pred_check_branch
          %331 = sbr.rel (%p329) target = $region64
        $region63: #{dgcnn_seg_forward.12} parent=47 // pred_region
          %333 = dma.done [#allocation8], 16
        $region64: #{dgcnn_seg_forward.12} parent=47 // pred_fallthru
          _
        // Predicated region
        $region65: #{dgcnn_seg_forward.12} parent=47 // pred_check
          %p334 = pneg %p182
        $region66: #{dgcnn_seg_forward.12} parent=47 // pred_check_branch
          %336 = sbr.rel (%p334) target = $region68
        $region67: #{dgcnn_seg_forward.12} parent=47 // pred_region
          %338 = dma.done [#allocation8], 16
        $region68: #{dgcnn_seg_forward.12} parent=47 // pred_fallthru
          _
        %s339 = smul.u32 2, %s26
        %p340 = scmp.lt.s32.totalorder %s25, 1
        %s341 = scalar_select %p340, %s25, 1
        %p342 = scmp.lt.s32.totalorder %s339, 1
        %s343 = scalar_select %p342, %s339, 1
        %s344 = smul.addr %s341, 8
        %s345 = sadd.s32 %s343, %s344
        %s346 = smul.addr %s345, 4
        %s347 = scalar_lea.vmem %s0, %s346
        %p348 = pneg %p56
        %p349 = pneg %p53
        %p350 = pneg %p77
        %p351 = pneg %p74
        %p352 = pneg %p98
        %p353 = pneg %p95
        %p354 = pneg %p119
        %p355 = pneg %p116
        %p356 = pneg %p140
        %p357 = pneg %p137
        %p358 = pneg %p161
        %p359 = pneg %p158
        %p360 = pneg %p182
        %p361 = pneg %p179
        %p362 = pneg %p210
        %p363 = pneg %p207
        %s364 = smul.u32 2, %s26
        %p365 = scmp.lt.s32.totalorder %s25, 1
        %s366 = scalar_select %p365, %s25, 1
        %p367 = scmp.lt.s32.totalorder %s364, 1
        %s368 = scalar_select %p367, %s364, 1
        %s369 = smul.addr %s366, 2
        %s370 = sadd.s32 %s368, %s369
        %s371 = smul.addr %s370, 8
        %s372 = scalar_lea.vmem %s7, %s371
        %s373 = smul.u32 2, %s26
        %p374 = scmp.lt.s32.totalorder %s25, 1
        %s375 = scalar_select %p374, %s25, 1
        %p376 = scmp.lt.s32.totalorder %s373, 1
        %s377 = scalar_select %p376, %s373, 1
        %s378 = smul.addr %s375, 8
        %s379 = sadd.s32 %s377, %s378
        %s380 = smul.addr %s379, 4
        %s381 = scalar_lea.vmem %s0, %s380
        %s382 = smul.u32 2, %s26
        %s383 = smul.u32 2, %s26
        %p384 = scmp.lt.s32.totalorder %s25, 1
        %s385 = scalar_select %p384, %s25, 1
        %p386 = scmp.lt.s32.totalorder %s383, 1
        %s387 = scalar_select %p386, %s383, 1
        %s388 = smul.addr %s385, 2
        %s389 = sadd.s32 %s387, %s388
        %s390 = smul.addr %s389, 8
        %s391 = scalar_lea.vmem %s7, %s390
        %s392 = smul.u32 2, %s26
        %v393 = vld [vmem:[%s381] sm:$0xf]
        %v394 = vld [vmem:[%s381 + $0x4] sm:$0xf]
        %v395 = vunpack.c.l.bf16 %v393
        %v396 = vunpack.c.l.bf16 %v394
        %v397 = vld [vmem:[%s1] sm:$0xff]
        %v398 = vld [vmem:[%s1 + $0x8] sm:$0xff]
        %v399 = vld [vmem:[%s1 + $0x10] sm:$0xff]
        %v400 = vld [vmem:[%s1 + $0x18] sm:$0xff]
        %v401 = vld [vmem:[%s1 + $0x20] sm:$0xff]
        %v402 = vld [vmem:[%s1 + $0x28] sm:$0xff]
        %v403 = vld [vmem:[%s1 + $0x30] sm:$0xff]
        %v404 = vld [vmem:[%s1 + $0x38] sm:$0xff]
        %v405 = vld [vmem:[%s1 + $0x40] sm:$0xff]
        %v406 = vld [vmem:[%s1 + $0x48] sm:$0xff]
        %v407 = vld [vmem:[%s1 + $0x50] sm:$0xff]
        %v408 = vld [vmem:[%s1 + $0x58] sm:$0xff]
        %v409 = vld [vmem:[%s1 + $0x60] sm:$0xff]
        %v410 = vld [vmem:[%s1 + $0x68] sm:$0xff]
        %v411 = vld [vmem:[%s1 + $0x70] sm:$0xff]
        %v412 = vld [vmem:[%s1 + $0x78] sm:$0xff]
        %413 = vmatpush.msra.mxu0 %v412
        %414 = vmatpush.msra.mxu0 %v411
        %415 = vmatpush.msra.mxu0 %v410
        %416 = vmatpush.msra.mxu0 %v409
        %417 = vmatpush.msra.mxu0 %v408
        %418 = vmatpush.msra.mxu0 %v407
        %419 = vmatpush.msra.mxu0 %v406
        %420 = vmatpush.msra.mxu0 %v405
        %421 = vmatpush.msra.mxu0 %v404
        %422 = vmatpush.msra.mxu0 %v403
        %423 = vmatpush.msra.mxu0 %v402
        %424 = vmatpush.msra.mxu0 %v401
        %425 = vmatpush.msra.mxu0 %v400
        %426 = vmatpush.msra.mxu0 %v399
        %427 = vmatpush.msra.mxu0 %v398
        %428 = vmatpush.msra.mxu0 %v397
        %429 = vmatmul.f32.gmra.mxu0 %v395
        %v430 = vpop.f32.mrf.mxu0
        %v431 = vadd.f32 0.0, %v430
        %432 = vmatmul.f32.gmra.mxu0 %v396
        %v433 = vpop.f32.mrf.mxu0
        %v434 = vadd.f32 0.0, %v433
        %435 = vdwg.mxu0
        %v436 = vld [vmem:[#allocation2] sm:$0x1]
        %v438 = vperm.slane %v436, 0
        %v440 = vmul.f32 %v431, %v438
        %v441 = vmul.f32 %v434, %v438
        %v442 = vld [vmem:[#allocation4] sm:$0x1]
        %v444 = vperm.slane %v442, 0
        %v446 = vadd.f32 %v440, %v444
        %v447 = vadd.f32 %v441, %v444
        %vm448 = vcmp.gt.f32.partialorder %v446, 0.0
        %vm449 = vcmp.gt.f32.partialorder %v447, 0.0
        %v450 = vmul.f32 %v446, 0.2
        %v451 = vmul.f32 %v447, 0.2
        %v452 = vsel %vm448, %v446, %v450
        %v453 = vsel %vm449, %v447, %v451
        %v454 = vld [vmem:[#allocation6] sm:$0xff]
        %v455 = vld [vmem:[#allocation6 + $0x8] sm:$0xff]
        %v456 = vld [vmem:[#allocation6 + $0x10] sm:$0xff]
        %v457 = vld [vmem:[#allocation6 + $0x18] sm:$0xff]
        %v458 = vld [vmem:[#allocation6 + $0x20] sm:$0xff]
        %v459 = vld [vmem:[#allocation6 + $0x28] sm:$0xff]
        %v460 = vld [vmem:[#allocation6 + $0x30] sm:$0xff]
        %v461 = vld [vmem:[#allocation6 + $0x38] sm:$0xff]
        %vm462 = vcmask 523264
        %v464 = vsel %vm462, %v452, 0
        %v467 = vsel %vm462, %v453, 0
        %469 = vmatpush.msra.mxu0 0.0
        %470 = vmatpush.msra.mxu0 0.0
        %471 = vmatpush.msra.mxu0 0.0
        %472 = vmatpush.msra.mxu0 0.0
        %473 = vmatpush.msra.mxu0 0.0
        %474 = vmatpush.msra.mxu0 0.0
        %475 = vmatpush.msra.mxu0 0.0
        %476 = vmatpush.msra.mxu0 0.0
        %477 = vmatpush.msra.mxu0 %v461
        %478 = vmatpush.msra.mxu0 %v460
        %479 = vmatpush.msra.mxu0 %v459
        %480 = vmatpush.msra.mxu0 %v458
        %481 = vmatpush.msra.mxu0 %v457
        %482 = vmatpush.msra.mxu0 %v456
        %483 = vmatpush.msra.mxu0 %v455
        %484 = vmatpush.msra.mxu0 %v454
        %485 = vmatmul.f32.gmra.mxu0 %v464
        %v486 = vpop.f32.mrf.mxu0
        %v487 = vadd.f32 0.0, %v486
        %488 = vmatmul.f32.gmra.mxu0 %v467
        %v489 = vpop.f32.mrf.mxu0
        %v490 = vadd.f32 0.0, %v489
        %491 = vdwg.mxu0
        %v492 = vld [vmem:[#allocation7] sm:$0x1]
        %v494 = vperm.slane %v492, 0
        %v496 = vmul.f32 %v487, %v494
        %v497 = vmul.f32 %v490, %v494
        %v498 = vld [vmem:[#allocation9] sm:$0x1]
        %v500 = vperm.slane %v498, 0
        %v502 = vadd.f32 %v496, %v500
        %v503 = vadd.f32 %v497, %v500
        %vm504 = vcmp.gt.f32.partialorder %v502, 0.0
        %vm505 = vcmp.gt.f32.partialorder %v503, 0.0
        %v506 = vmul.f32 %v502, 0.2
        %v507 = vmul.f32 %v503, 0.2
        %v508 = vsel %vm504, %v502, %v506
        %v509 = vsel %vm505, %v503, %v507
        %s510 = scalar_lea.vmem %s381, 8
        %v511 = vld [vmem:[%s510] sm:$0xf]
        %v512 = vld [vmem:[%s510 + $0x4] sm:$0xf]
        %v513 = vunpack.c.l.bf16 %v511
        %v514 = vunpack.c.l.bf16 %v512
        %515 = vmatpush.msra.mxu0 %v412
        %516 = vmatpush.msra.mxu0 %v411
        %517 = vmatpush.msra.mxu0 %v410
        %518 = vmatpush.msra.mxu0 %v409
        %519 = vmatpush.msra.mxu0 %v408
        %520 = vmatpush.msra.mxu0 %v407
        %521 = vmatpush.msra.mxu0 %v406
        %522 = vmatpush.msra.mxu0 %v405
        %523 = vmatpush.msra.mxu0 %v404
        %524 = vmatpush.msra.mxu0 %v403
        %525 = vmatpush.msra.mxu0 %v402
        %526 = vmatpush.msra.mxu0 %v401
        %527 = vmatpush.msra.mxu0 %v400
        %528 = vmatpush.msra.mxu0 %v399
        %529 = vmatpush.msra.mxu0 %v398
        %530 = vmatpush.msra.mxu0 %v397
        %531 = vmatmul.f32.gmra.mxu0 %v513
        %v532 = vpop.f32.mrf.mxu0
        %v533 = vadd.f32 0.0, %v532
        %534 = vmatmul.f32.gmra.mxu0 %v514
        %v535 = vpop.f32.mrf.mxu0
        %v536 = vadd.f32 0.0, %v535
        %537 = vdwg.mxu0
        %v538 = vmul.f32 %v533, %v438
        %v539 = vmul.f32 %v536, %v438
        %v540 = vadd.f32 %v538, %v444
        %v541 = vadd.f32 %v539, %v444
        %vm542 = vcmp.gt.f32.partialorder %v540, 0.0
        %vm543 = vcmp.gt.f32.partialorder %v541, 0.0
        %v544 = vmul.f32 %v540, 0.2
        %v545 = vmul.f32 %v541, 0.2
        %v546 = vsel %vm542, %v540, %v544
        %v547 = vsel %vm543, %v541, %v545
        %v549 = vsel %vm462, %v546, 0
        %v552 = vsel %vm462, %v547, 0
        %554 = vmatpush.msra.mxu0 0.0
        %555 = vmatpush.msra.mxu0 0.0
        %556 = vmatpush.msra.mxu0 0.0
        %557 = vmatpush.msra.mxu0 0.0
        %558 = vmatpush.msra.mxu0 0.0
        %559 = vmatpush.msra.mxu0 0.0
        %560 = vmatpush.msra.mxu0 0.0
        %561 = vmatpush.msra.mxu0 0.0
        %562 = vmatpush.msra.mxu0 %v461
        %563 = vmatpush.msra.mxu0 %v460
        %564 = vmatpush.msra.mxu0 %v459
        %565 = vmatpush.msra.mxu0 %v458
        %566 = vmatpush.msra.mxu0 %v457
        %567 = vmatpush.msra.mxu0 %v456
        %568 = vmatpush.msra.mxu0 %v455
        %569 = vmatpush.msra.mxu0 %v454
        %570 = vmatmul.f32.gmra.mxu0 %v549
        %v571 = vpop.f32.mrf.mxu0
        %v572 = vadd.f32 0.0, %v571
        %573 = vmatmul.f32.gmra.mxu0 %v552
        %v574 = vpop.f32.mrf.mxu0
        %v575 = vadd.f32 0.0, %v574
        %576 = vdwg.mxu0
        %v577 = vmul.f32 %v572, %v494
        %v578 = vmul.f32 %v575, %v494
        %v579 = vadd.f32 %v577, %v500
        %v580 = vadd.f32 %v578, %v500
        %vm581 = vcmp.gt.f32.partialorder %v579, 0.0
        %vm582 = vcmp.gt.f32.partialorder %v580, 0.0
        %v583 = vmul.f32 %v579, 0.2
        %v584 = vmul.f32 %v580, 0.2
        %v585 = vsel %vm581, %v579, %v583
        %v586 = vsel %vm582, %v580, %v584
        %v587 = vmax.f32 %v508, %v585
        %v588 = vmax.f32 %v509, %v586
        %s589 = scalar_lea.vmem %s381, 16
        %v590 = vld [vmem:[%s589] sm:$0xf]
        %v591 = vld [vmem:[%s589 + $0x4] sm:$0xf]
        %v592 = vunpack.c.l.bf16 %v590
        %v593 = vunpack.c.l.bf16 %v591
        %594 = vmatpush.msra.mxu0 %v412
        %595 = vmatpush.msra.mxu0 %v411
        %596 = vmatpush.msra.mxu0 %v410
        %597 = vmatpush.msra.mxu0 %v409
        %598 = vmatpush.msra.mxu0 %v408
        %599 = vmatpush.msra.mxu0 %v407
        %600 = vmatpush.msra.mxu0 %v406
        %601 = vmatpush.msra.mxu0 %v405
        %602 = vmatpush.msra.mxu0 %v404
        %603 = vmatpush.msra.mxu0 %v403
        %604 = vmatpush.msra.mxu0 %v402
        %605 = vmatpush.msra.mxu0 %v401
        %606 = vmatpush.msra.mxu0 %v400
        %607 = vmatpush.msra.mxu0 %v399
        %608 = vmatpush.msra.mxu0 %v398
        %609 = vmatpush.msra.mxu0 %v397
        %610 = vmatmul.f32.gmra.mxu0 %v592
        %v611 = vpop.f32.mrf.mxu0
        %v612 = vadd.f32 0.0, %v611
        %613 = vmatmul.f32.gmra.mxu0 %v593
        %v614 = vpop.f32.mrf.mxu0
        %v615 = vadd.f32 0.0, %v614
        %616 = vdwg.mxu0
        %v617 = vmul.f32 %v612, %v438
        %v618 = vmul.f32 %v615, %v438
        %v619 = vadd.f32 %v617, %v444
        %v620 = vadd.f32 %v618, %v444
        %vm621 = vcmp.gt.f32.partialorder %v619, 0.0
        %vm622 = vcmp.gt.f32.partialorder %v620, 0.0
        %v623 = vmul.f32 %v619, 0.2
        %v624 = vmul.f32 %v620, 0.2
        %v625 = vsel %vm621, %v619, %v623
        %v626 = vsel %vm622, %v620, %v624
        %v628 = vsel %vm462, %v625, 0
        %v631 = vsel %vm462, %v626, 0
        %633 = vmatpush.msra.mxu0 0.0
        %634 = vmatpush.msra.mxu0 0.0
        %635 = vmatpush.msra.mxu0 0.0
        %636 = vmatpush.msra.mxu0 0.0
        %637 = vmatpush.msra.mxu0 0.0
        %638 = vmatpush.msra.mxu0 0.0
        %639 = vmatpush.msra.mxu0 0.0
        %640 = vmatpush.msra.mxu0 0.0
        %641 = vmatpush.msra.mxu0 %v461
        %642 = vmatpush.msra.mxu0 %v460
        %643 = vmatpush.msra.mxu0 %v459
        %644 = vmatpush.msra.mxu0 %v458
        %645 = vmatpush.msra.mxu0 %v457
        %646 = vmatpush.msra.mxu0 %v456
        %647 = vmatpush.msra.mxu0 %v455
        %648 = vmatpush.msra.mxu0 %v454
        %649 = vmatmul.f32.gmra.mxu0 %v628
        %v650 = vpop.f32.mrf.mxu0
        %v651 = vadd.f32 0.0, %v650
        %652 = vmatmul.f32.gmra.mxu0 %v631
        %v653 = vpop.f32.mrf.mxu0
        %v654 = vadd.f32 0.0, %v653
        %655 = vdwg.mxu0
        %v656 = vmul.f32 %v651, %v494
        %v657 = vmul.f32 %v654, %v494
        %v658 = vadd.f32 %v656, %v500
        %v659 = vadd.f32 %v657, %v500
        %vm660 = vcmp.gt.f32.partialorder %v658, 0.0
        %vm661 = vcmp.gt.f32.partialorder %v659, 0.0
        %v662 = vmul.f32 %v658, 0.2
        %v663 = vmul.f32 %v659, 0.2
        %v664 = vsel %vm660, %v658, %v662
        %v665 = vsel %vm661, %v659, %v663
        %v666 = vmax.f32 %v587, %v664
        %v667 = vmax.f32 %v588, %v665
        %s668 = scalar_lea.vmem %s381, 24
        %v669 = vld [vmem:[%s668] sm:$0xf]
        %v670 = vld [vmem:[%s668 + $0x4] sm:$0xf]
        %v671 = vunpack.c.l.bf16 %v669
        %v672 = vunpack.c.l.bf16 %v670
        %673 = vmatpush.msra.mxu0 %v412
        %674 = vmatpush.msra.mxu0 %v411
        %675 = vmatpush.msra.mxu0 %v410
        %676 = vmatpush.msra.mxu0 %v409
        %677 = vmatpush.msra.mxu0 %v408
        %678 = vmatpush.msra.mxu0 %v407
        %679 = vmatpush.msra.mxu0 %v406
        %680 = vmatpush.msra.mxu0 %v405
        %681 = vmatpush.msra.mxu0 %v404
        %682 = vmatpush.msra.mxu0 %v403
        %683 = vmatpush.msra.mxu0 %v402
        %684 = vmatpush.msra.mxu0 %v401
        %685 = vmatpush.msra.mxu0 %v400
        %686 = vmatpush.msra.mxu0 %v399
        %687 = vmatpush.msra.mxu0 %v398
        %688 = vmatpush.msra.mxu0 %v397
        %689 = vmatmul.f32.gmra.mxu0 %v671
        %v690 = vpop.f32.mrf.mxu0
        %v691 = vadd.f32 0.0, %v690
        %692 = vmatmul.f32.gmra.mxu0 %v672
        %v693 = vpop.f32.mrf.mxu0
        %v694 = vadd.f32 0.0, %v693
        %695 = vdwg.mxu0
        %v696 = vmul.f32 %v691, %v438
        %v697 = vmul.f32 %v694, %v438
        %v698 = vadd.f32 %v696, %v444
        %v699 = vadd.f32 %v697, %v444
        %vm700 = vcmp.gt.f32.partialorder %v698, 0.0
        %vm701 = vcmp.gt.f32.partialorder %v699, 0.0
        %v702 = vmul.f32 %v698, 0.2
        %v703 = vmul.f32 %v699, 0.2
        %v704 = vsel %vm700, %v698, %v702
        %v705 = vsel %vm701, %v699, %v703
        %v707 = vsel %vm462, %v704, 0
        %v710 = vsel %vm462, %v705, 0
        %712 = vmatpush.msra.mxu0 0.0
        %713 = vmatpush.msra.mxu0 0.0
        %714 = vmatpush.msra.mxu0 0.0
        %715 = vmatpush.msra.mxu0 0.0
        %716 = vmatpush.msra.mxu0 0.0
        %717 = vmatpush.msra.mxu0 0.0
        %718 = vmatpush.msra.mxu0 0.0
        %719 = vmatpush.msra.mxu0 0.0
        %720 = vmatpush.msra.mxu0 %v461
        %721 = vmatpush.msra.mxu0 %v460
        %722 = vmatpush.msra.mxu0 %v459
        %723 = vmatpush.msra.mxu0 %v458
        %724 = vmatpush.msra.mxu0 %v457
        %725 = vmatpush.msra.mxu0 %v456
        %726 = vmatpush.msra.mxu0 %v455
        %727 = vmatpush.msra.mxu0 %v454
        %728 = vmatmul.f32.gmra.mxu0 %v707
        %v729 = vpop.f32.mrf.mxu0
        %v730 = vadd.f32 0.0, %v729
        %731 = vmatmul.f32.gmra.mxu0 %v710
        %v732 = vpop.f32.mrf.mxu0
        %v733 = vadd.f32 0.0, %v732
        %734 = vdwg.mxu0
        %v735 = vmul.f32 %v730, %v494
        %v736 = vmul.f32 %v733, %v494
        %v737 = vadd.f32 %v735, %v500
        %v738 = vadd.f32 %v736, %v500
        %vm739 = vcmp.gt.f32.partialorder %v737, 0.0
        %vm740 = vcmp.gt.f32.partialorder %v738, 0.0
        %v741 = vmul.f32 %v737, 0.2
        %v742 = vmul.f32 %v738, 0.2
        %v743 = vsel %vm739, %v737, %v741
        %v744 = vsel %vm740, %v738, %v742
        %v745 = vmax.f32 %v666, %v743
        %v746 = vmax.f32 %v667, %v744
        %747 = vst.msk [vmem:[%s391] sm:$0xff] %vm462, %v745
        %748 = vst.msk [vmem:[%s391 + $0x8] sm:$0xff] %vm462, %v746
        %s749 = smul.u32 2, %s26
        %p750 = scmp.lt.s32.totalorder %s25, 1
        %s751 = scalar_select %p750, %s25, 1
        %p752 = scmp.lt.s32.totalorder %s749, 1
        %s753 = scalar_select %p752, %s749, 1
        %s754 = smul.addr %s751, 2
        %s755 = sadd.s32 %s753, %s754
        %s756 = smul.addr %s755, 8
        %s757 = scalar_lea.vmem %s7, %s756
        // Predicated region
        $region69: #{dgcnn_seg_forward.12} parent=47 // pred_check
          %p758 = pneg %p207
        $region70: #{dgcnn_seg_forward.12} parent=47 // pred_check_branch
          %760 = sbr.rel (%p758) target = $region72
        $region71: #{dgcnn_seg_forward.12} parent=47 // pred_region
          %s761 = smul.u32 2, %s26
        $region72: #{dgcnn_seg_forward.12} parent=47 // pred_fallthru
          _
      $region48: #{dgcnn_seg_forward.12} parent=5 // pred_fallthru
        _
      %p762 = scmp.le.s32.totalorder 2, %s16
      // Predicated region
      $region73: #{dgcnn_seg_forward.12} parent=5 // pred_check
        %p763 = pneg %p762
      $region74: #{dgcnn_seg_forward.12} parent=5 // pred_check_branch
        %765 = sbr.rel (%p763) target = $region76
      $region75: #{dgcnn_seg_forward.12} parent=5 // pred_region
        %s766 = ssub.s32 %s16, 2
        // Predicated region
        $region77: #{dgcnn_seg_forward.12} parent=75 // pred_check
          %p767 = pneg %p213
        $region78: #{dgcnn_seg_forward.12} parent=75 // pred_check_branch
          %769 = sbr.rel (%p767) target = $region80
        $region79: #{dgcnn_seg_forward.12} parent=75 // pred_region
          %s770 = smul.u32 2, %s28
          %p771 = scmp.lt.s32.totalorder %s27, 1
          %s772 = scalar_select %p771, %s27, 1
          %p773 = scmp.lt.s32.totalorder %s770, 1
          %s774 = scalar_select %p773, %s770, 1
          %s775 = smul.addr %s772, 2
          %s776 = sadd.s32 %s774, %s775
          %s777 = smul.addr %s776, 8
          %s778 = scalar_lea.vmem %s7, %s777
        $region80: #{dgcnn_seg_forward.12} parent=75 // pred_fallthru
          _
      $region76: #{dgcnn_seg_forward.12} parent=5 // pred_fallthru
        _
    $region6: #{dgcnn_seg_forward.12} parent=1 // loop_footer
      %s20 = sadd.s32 1, %s16
    $region7: #{dgcnn_seg_forward.12} parent=1 // loop_footer_branch
      %15 = sbr.rel target = $region3
    $region8: #{dgcnn_seg_forward.12} parent=1 // loop_exit
      _
    %779 = vsyncpa [#allocation3], 1
    %s780 = scalar_lea.sflag [#allocation3], 1
    %781 = vsyncpa %s780, 1
    %782 = vsyncpa [#allocation5], 1
    %783 = vsyncpa [#allocation8], 1

// kernel: dgcnn_seg_forward.15
$region0: #{dgcnn_seg_forward.15}
  #allocation0 [shape = 'u32[]', space=smem, size = 0x4, offset = 0x4, fixed_abs, tag = 'smem constant byte address 0x4 - core index']
  #allocation1 [shape = 'u32[72,128]{1,0:T(1,128)}', space=vmem, size = 0x9000, scoped, tag = 'internal scratch']
  %s0 = inlined_call_operand.vmem [shape: f32[2,16,64], index: 0, kind: input, shape index: {}]
  %s1 = inlined_call_operand.vmem [shape: f32[2,16,64], index: 1, kind: input, shape index: {}]
  %s2 = inlined_call_operand.vmem [shape: f32[2,16,64], index: 2, kind: input, shape index: {}]
  %s3 = inlined_call_operand.vmem [shape: f32[64,1024], index: 3, kind: input, shape index: {}]
  %s4 = inlined_call_operand.vmem [shape: f32[64,1024], index: 4, kind: input, shape index: {}]
  %s5 = inlined_call_operand.vmem [shape: f32[64,1024], index: 5, kind: input, shape index: {}]
  %s6 = inlined_call_operand.vmem [shape: f32[1,1024], index: 6, kind: input, shape index: {}]
  %s7 = inlined_call_operand.vmem [shape: f32[1,1024], index: 7, kind: input, shape index: {}]
  %s8 = inlined_call_operand.vmem [shape: f32[2,1,1024], index: 8, kind: output, shape index: {}]
  %s9 = sld [smem:[#allocation0]]
  $region69: #{dgcnn_seg_forward.15} parent=0
    _
  %s11 = ssub.s32 1, %s9
  %s12 = scalar_select 0, %s11, %s9
  loop: start=0, step=1, limit=4
  $region2: #{dgcnn_seg_forward.15} parent=0 // loop_pre_header
    _
  $region3: #{dgcnn_seg_forward.15} parent=0 // loop_header
    %s14 = sphi 0, %s18
    %p15 = scmp.ge.s32.totalorder %s14, 4
    %s21 = sphi 0, %s33
    %s22 = sphi 0, %s29
    %s23 = sphi 0, %s21
    %s24 = sphi 0, %s22
    %s25 = sphi 0, %s23
    %s26 = sphi 0, %s24
    %s38 = sphi 0, %s40
    %s41 = sphi 0, %s38
    %s42 = sphi 0, %s41
    %s58 = sphi 0, %s42
    %s66 = sphi 0, %s68
    %s69 = sphi 0, %s66
    %s70 = sphi 0, %s69
    %s86 = sphi 0, %s70
    %s94 = sphi 0, %s96
    %s97 = sphi 0, %s94
    %s98 = sphi 0, %s97
    %s114 = sphi 0, %s98
    %s118 = sphi 0, %s118
    %s120 = sphi 0, %s118
    %s121 = sphi 0, %s120
    %s135 = sphi 0, %s121
    %s139 = sphi 0, %s139
    %s141 = sphi 0, %s139
    %s142 = sphi 0, %s141
    %s156 = sphi 0, %s142
    %s160 = sphi 0, %s160
    %s162 = sphi 0, %s160
    %s163 = sphi 0, %s162
    %s177 = sphi 0, %s163
    %s181 = sphi 0, %s181
    %s183 = sphi 0, %s181
    %s184 = sphi 0, %s183
    %s198 = sphi 0, %s184
    %s202 = sphi 0, %s202
    %s204 = sphi 0, %s202
    %s205 = sphi 0, %s204
    %s219 = sphi 0, %s205
    %s225 = sphi 0, %s227
    %s228 = sphi 0, %s225
    %s229 = sphi 0, %s228
    %s245 = sphi 0, %s229
  $region4: #{dgcnn_seg_forward.15} parent=0 // loop_header_branch
    %17 = sbr.rel (%p15) target = $region8
  $region5: #{dgcnn_seg_forward.15} parent=0 // loop_body
    %s19 = ssub.s32 %s14, 1
    %s20 = ssub.s32 %s14, 2
    %s27 = sadd.s32 1, %s22
    %p28 = scmp.ge.s32.totalorder %s27, 1
    %s29 = scalar_select %p28, 0, %s27
    %s30 = sadd.s32 1, %s21
    %s31 = scalar_select %p28, %s30, %s21
    %p32 = scmp.ge.s32.totalorder %s31, 2
    %s33 = scalar_select %p32, 0, %s31
    %s34 = ssub.s32 %s21, %s33
    %s35 = ssub.s32 %s22, %s29
    %s36 = sor.u32 %s34, %s35
    %p37 = scmp.eq.s32.totalorder %s36, 0
    %s39 = sadd.s32 %s38, 1
    %s40 = scalar_select %p37, %s38, %s39
    %p43 = pneg %p37
    %p44 = scmp.eq.s32.totalorder %s14, 1
    %p45 = por %p43, %p44
    %p46 = scmp.ne.s32.totalorder %s38, %s41
    %p47 = scmp.eq.s32.totalorder %s14, 0
    %p48 = por %p46, %p47
    %p49 = scmp.ne.s32.totalorder %s38, %s41
    %p50 = scmp.eq.s32.totalorder %s19, 1
    %p51 = por %p49, %p50
    %p52 = scmp.ne.s32.totalorder %s41, %s42
    %p53 = scmp.eq.s32.totalorder %s19, 0
    %p54 = por %p52, %p53
    %p55 = scmp.ne.s32.totalorder %s41, %s42
    %p56 = scmp.eq.s32.totalorder %s20, 1
    %p57 = por %p55, %p56
    %p59 = scmp.ne.s32.totalorder %s42, %s58
    %p60 = scmp.eq.s32.totalorder %s20, 0
    %p61 = por %p59, %p60
    %s62 = ssub.s32 %s21, %s33
    %s63 = ssub.s32 %s22, %s29
    %s64 = sor.u32 %s62, %s63
    %p65 = scmp.eq.s32.totalorder %s64, 0
    %s67 = sadd.s32 %s66, 1
    %s68 = scalar_select %p65, %s66, %s67
    %p71 = pneg %p65
    %p72 = scmp.eq.s32.totalorder %s14, 1
    %p73 = por %p71, %p72
    %p74 = scmp.ne.s32.totalorder %s66, %s69
    %p75 = scmp.eq.s32.totalorder %s14, 0
    %p76 = por %p74, %p75
    %p77 = scmp.ne.s32.totalorder %s66, %s69
    %p78 = scmp.eq.s32.totalorder %s19, 1
    %p79 = por %p77, %p78
    %p80 = scmp.ne.s32.totalorder %s69, %s70
    %p81 = scmp.eq.s32.totalorder %s19, 0
    %p82 = por %p80, %p81
    %p83 = scmp.ne.s32.totalorder %s69, %s70
    %p84 = scmp.eq.s32.totalorder %s20, 1
    %p85 = por %p83, %p84
    %p87 = scmp.ne.s32.totalorder %s70, %s86
    %p88 = scmp.eq.s32.totalorder %s20, 0
    %p89 = por %p87, %p88
    %s90 = ssub.s32 %s21, %s33
    %s91 = ssub.s32 %s22, %s29
    %s92 = sor.u32 %s90, %s91
    %p93 = scmp.eq.s32.totalorder %s92, 0
    %s95 = sadd.s32 %s94, 1
    %s96 = scalar_select %p93, %s94, %s95
    %p99 = pneg %p93
    %p100 = scmp.eq.s32.totalorder %s14, 1
    %p101 = por %p99, %p100
    %p102 = scmp.ne.s32.totalorder %s94, %s97
    %p103 = scmp.eq.s32.totalorder %s14, 0
    %p104 = por %p102, %p103
    %p105 = scmp.ne.s32.totalorder %s94, %s97
    %p106 = scmp.eq.s32.totalorder %s19, 1
    %p107 = por %p105, %p106
    %p108 = scmp.ne.s32.totalorder %s97, %s98
    %p109 = scmp.eq.s32.totalorder %s19, 0
    %p110 = por %p108, %p109
    %p111 = scmp.ne.s32.totalorder %s97, %s98
    %p112 = scmp.eq.s32.totalorder %s20, 1
    %p113 = por %p111, %p112
    %p115 = scmp.ne.s32.totalorder %s98, %s114
    %p116 = scmp.eq.s32.totalorder %s20, 0
    %p117 = por %p115, %p116
    %s119 = sadd.s32 %s118, 1
    %p122 = scmp.eq.s32.totalorder %s14, 1
    %p123 = scmp.ne.s32.totalorder %s118, %s120
    %p124 = scmp.eq.s32.totalorder %s14, 0
    %p125 = por %p123, %p124
    %p126 = scmp.ne.s32.totalorder %s118, %s120
    %p127 = scmp.eq.s32.totalorder %s19, 1
    %p128 = por %p126, %p127
    %p129 = scmp.ne.s32.totalorder %s120, %s121
    %p130 = scmp.eq.s32.totalorder %s19, 0
    %p131 = por %p129, %p130
    %p132 = scmp.ne.s32.totalorder %s120, %s121
    %p133 = scmp.eq.s32.totalorder %s20, 1
    %p134 = por %p132, %p133
    %p136 = scmp.ne.s32.totalorder %s121, %s135
    %p137 = scmp.eq.s32.totalorder %s20, 0
    %p138 = por %p136, %p137
    %s140 = sadd.s32 %s139, 1
    %p143 = scmp.eq.s32.totalorder %s14, 1
    %p144 = scmp.ne.s32.totalorder %s139, %s141
    %p145 = scmp.eq.s32.totalorder %s14, 0
    %p146 = por %p144, %p145
    %p147 = scmp.ne.s32.totalorder %s139, %s141
    %p148 = scmp.eq.s32.totalorder %s19, 1
    %p149 = por %p147, %p148
    %p150 = scmp.ne.s32.totalorder %s141, %s142
    %p151 = scmp.eq.s32.totalorder %s19, 0
    %p152 = por %p150, %p151
    %p153 = scmp.ne.s32.totalorder %s141, %s142
    %p154 = scmp.eq.s32.totalorder %s20, 1
    %p155 = por %p153, %p154
    %p157 = scmp.ne.s32.totalorder %s142, %s156
    %p158 = scmp.eq.s32.totalorder %s20, 0
    %p159 = por %p157, %p158
    %s161 = sadd.s32 %s160, 1
    %p164 = scmp.eq.s32.totalorder %s14, 1
    %p165 = scmp.ne.s32.totalorder %s160, %s162
    %p166 = scmp.eq.s32.totalorder %s14, 0
    %p167 = por %p165, %p166
    %p168 = scmp.ne.s32.totalorder %s160, %s162
    %p169 = scmp.eq.s32.totalorder %s19, 1
    %p170 = por %p168, %p169
    %p171 = scmp.ne.s32.totalorder %s162, %s163
    %p172 = scmp.eq.s32.totalorder %s19, 0
    %p173 = por %p171, %p172
    %p174 = scmp.ne.s32.totalorder %s162, %s163
    %p175 = scmp.eq.s32.totalorder %s20, 1
    %p176 = por %p174, %p175
    %p178 = scmp.ne.s32.totalorder %s163, %s177
    %p179 = scmp.eq.s32.totalorder %s20, 0
    %p180 = por %p178, %p179
    %s182 = sadd.s32 %s181, 1
    %p185 = scmp.eq.s32.totalorder %s14, 1
    %p186 = scmp.ne.s32.totalorder %s181, %s183
    %p187 = scmp.eq.s32.totalorder %s14, 0
    %p188 = por %p186, %p187
    %p189 = scmp.ne.s32.totalorder %s181, %s183
    %p190 = scmp.eq.s32.totalorder %s19, 1
    %p191 = por %p189, %p190
    %p192 = scmp.ne.s32.totalorder %s183, %s184
    %p193 = scmp.eq.s32.totalorder %s19, 0
    %p194 = por %p192, %p193
    %p195 = scmp.ne.s32.totalorder %s183, %s184
    %p196 = scmp.eq.s32.totalorder %s20, 1
    %p197 = por %p195, %p196
    %p199 = scmp.ne.s32.totalorder %s184, %s198
    %p200 = scmp.eq.s32.totalorder %s20, 0
    %p201 = por %p199, %p200
    %s203 = sadd.s32 %s202, 1
    %p206 = scmp.eq.s32.totalorder %s14, 1
    %p207 = scmp.ne.s32.totalorder %s202, %s204
    %p208 = scmp.eq.s32.totalorder %s14, 0
    %p209 = por %p207, %p208
    %p210 = scmp.ne.s32.totalorder %s202, %s204
    %p211 = scmp.eq.s32.totalorder %s19, 1
    %p212 = por %p210, %p211
    %p213 = scmp.ne.s32.totalorder %s204, %s205
    %p214 = scmp.eq.s32.totalorder %s19, 0
    %p215 = por %p213, %p214
    %p216 = scmp.ne.s32.totalorder %s204, %s205
    %p217 = scmp.eq.s32.totalorder %s20, 1
    %p218 = por %p216, %p217
    %p220 = scmp.ne.s32.totalorder %s205, %s219
    %p221 = scmp.eq.s32.totalorder %s20, 0
    %p222 = por %p220, %p221
    %s223 = ssub.s32 %s21, %s33
    %p224 = scmp.eq.s32.totalorder %s223, 0
    %s226 = sadd.s32 %s225, 1
    %s227 = scalar_select %p224, %s225, %s226
    %p230 = pneg %p224
    %p231 = scmp.eq.s32.totalorder %s14, 1
    %p232 = por %p230, %p231
    %p233 = scmp.ne.s32.totalorder %s225, %s228
    %p234 = scmp.eq.s32.totalorder %s14, 0
    %p235 = por %p233, %p234
    %p236 = scmp.ne.s32.totalorder %s225, %s228
    %p237 = scmp.eq.s32.totalorder %s19, 1
    %p238 = por %p236, %p237
    %p239 = scmp.ne.s32.totalorder %s228, %s229
    %p240 = scmp.eq.s32.totalorder %s19, 0
    %p241 = por %p239, %p240
    %p242 = scmp.ne.s32.totalorder %s228, %s229
    %p243 = scmp.eq.s32.totalorder %s20, 1
    %p244 = por %p242, %p243
    %p246 = scmp.ne.s32.totalorder %s229, %s245
    %p247 = scmp.eq.s32.totalorder %s20, 0
    %p248 = por %p246, %p247
    %p249 = scmp.le.s32.totalorder 1, %s14
    %p250 = scmp.lt.s32.totalorder %s14, 3
    %p251 = pnand %p249, %p250
    %p252 = pneg %p251
    // Predicated region
    $region9: #{dgcnn_seg_forward.15} parent=5 // pred_check
      _
    $region10: #{dgcnn_seg_forward.15} parent=5 // pred_check_branch
      %254 = sbr.rel (%p251) target = $region12
    $region11: #{dgcnn_seg_forward.15} parent=5 // pred_region
      %s255 = ssub.s32 %s14, 1
      // Predicated region
      $region13: #{dgcnn_seg_forward.15} parent=11 // pred_check
        %p256 = pneg %p131
      $region14: #{dgcnn_seg_forward.15} parent=11 // pred_check_branch
        %258 = sbr.rel (%p256) target = $region16
      $region15: #{dgcnn_seg_forward.15} parent=11 // pred_region
        _
      $region16: #{dgcnn_seg_forward.15} parent=11 // pred_fallthru
        _
      // Predicated region
      $region17: #{dgcnn_seg_forward.15} parent=11 // pred_check
        %p259 = pneg %p152
      $region18: #{dgcnn_seg_forward.15} parent=11 // pred_check_branch
        %261 = sbr.rel (%p259) target = $region20
      $region19: #{dgcnn_seg_forward.15} parent=11 // pred_region
        _
      $region20: #{dgcnn_seg_forward.15} parent=11 // pred_fallthru
        _
      // Predicated region
      $region21: #{dgcnn_seg_forward.15} parent=11 // pred_check
        %p262 = pneg %p173
      $region22: #{dgcnn_seg_forward.15} parent=11 // pred_check_branch
        %264 = sbr.rel (%p262) target = $region24
      $region23: #{dgcnn_seg_forward.15} parent=11 // pred_region
        _
      $region24: #{dgcnn_seg_forward.15} parent=11 // pred_fallthru
        _
      // Predicated region
      $region25: #{dgcnn_seg_forward.15} parent=11 // pred_check
        %p265 = pneg %p194
      $region26: #{dgcnn_seg_forward.15} parent=11 // pred_check_branch
        %267 = sbr.rel (%p265) target = $region28
      $region27: #{dgcnn_seg_forward.15} parent=11 // pred_region
        _
      $region28: #{dgcnn_seg_forward.15} parent=11 // pred_fallthru
        _
      // Predicated region
      $region29: #{dgcnn_seg_forward.15} parent=11 // pred_check
        %p268 = pneg %p215
      $region30: #{dgcnn_seg_forward.15} parent=11 // pred_check_branch
        %270 = sbr.rel (%p268) target = $region32
      $region31: #{dgcnn_seg_forward.15} parent=11 // pred_region
        _
      $region32: #{dgcnn_seg_forward.15} parent=11 // pred_fallthru
        _
    $region12: #{dgcnn_seg_forward.15} parent=5 // pred_fallthru
      _
    %p271 = scmp.lt.s32.totalorder %s14, 2
    // Predicated region
    $region33: #{dgcnn_seg_forward.15} parent=5 // pred_check
      %p272 = pneg %p271
    $region34: #{dgcnn_seg_forward.15} parent=5 // pred_check_branch
      %274 = sbr.rel (%p272) target = $region36
    $region35: #{dgcnn_seg_forward.15} parent=5 // pred_region
      // Predicated region
      $region37: #{dgcnn_seg_forward.15} parent=35 // pred_check
        %p275 = pneg %p48
      $region38: #{dgcnn_seg_forward.15} parent=35 // pred_check_branch
        %277 = sbr.rel (%p275) target = $region40
      $region39: #{dgcnn_seg_forward.15} parent=35 // pred_region
        %s278 = smul.u32 2, %s22
        %p279 = scmp.lt.s32.totalorder %s21, 1
        %s280 = scalar_select %p279, %s21, 1
        %p281 = scmp.lt.s32.totalorder %s278, 1
        %s282 = scalar_select %p281, %s278, 1
        %s283 = smul.addr %s280, 2
        %s284 = sadd.s32 %s282, %s283
        %s285 = smul.addr %s284, 8
        %s286 = scalar_lea.vmem %s0, %s285
        %s287 = smul.u32 2, %s22
      $region40: #{dgcnn_seg_forward.15} parent=35 // pred_fallthru
        _
      // Predicated region
      $region41: #{dgcnn_seg_forward.15} parent=35 // pred_check
        %p288 = pneg %p76
      $region42: #{dgcnn_seg_forward.15} parent=35 // pred_check_branch
        %290 = sbr.rel (%p288) target = $region44
      $region43: #{dgcnn_seg_forward.15} parent=35 // pred_region
        %s291 = smul.u32 2, %s22
        %p292 = scmp.lt.s32.totalorder %s21, 1
        %s293 = scalar_select %p292, %s21, 1
        %p294 = scmp.lt.s32.totalorder %s291, 1
        %s295 = scalar_select %p294, %s291, 1
        %s296 = smul.addr %s293, 2
        %s297 = sadd.s32 %s295, %s296
        %s298 = smul.addr %s297, 8
        %s299 = scalar_lea.vmem %s1, %s298
        %s300 = smul.u32 2, %s22
      $region44: #{dgcnn_seg_forward.15} parent=35 // pred_fallthru
        _
      // Predicated region
      $region45: #{dgcnn_seg_forward.15} parent=35 // pred_check
        %p301 = pneg %p104
      $region46: #{dgcnn_seg_forward.15} parent=35 // pred_check_branch
        %303 = sbr.rel (%p301) target = $region48
      $region47: #{dgcnn_seg_forward.15} parent=35 // pred_region
        %s304 = smul.u32 2, %s22
        %p305 = scmp.lt.s32.totalorder %s21, 1
        %s306 = scalar_select %p305, %s21, 1
        %p307 = scmp.lt.s32.totalorder %s304, 1
        %s308 = scalar_select %p307, %s304, 1
        %s309 = smul.addr %s306, 2
        %s310 = sadd.s32 %s308, %s309
        %s311 = smul.addr %s310, 8
        %s312 = scalar_lea.vmem %s2, %s311
        %s313 = smul.u32 2, %s22
      $region48: #{dgcnn_seg_forward.15} parent=35 // pred_fallthru
        _
    $region36: #{dgcnn_seg_forward.15} parent=5 // pred_fallthru
      _
    %p314 = scmp.le.s32.totalorder 1, %s14
    %p315 = scmp.lt.s32.totalorder %s14, 3
    %p316 = pnand %p314, %p315
    %p317 = pneg %p316
    // Predicated region
    $region49: #{dgcnn_seg_forward.15} parent=5 // pred_check
      _
    $region50: #{dgcnn_seg_forward.15} parent=5 // pred_check_branch
      %319 = sbr.rel (%p316) target = $region52
    $region51: #{dgcnn_seg_forward.15} parent=5 // pred_region
      %s320 = ssub.s32 %s14, 1
      %s321 = smul.u32 2, %s24
      %p322 = scmp.lt.s32.totalorder %s23, 1
      %s323 = scalar_select %p322, %s23, 1
      %p324 = scmp.lt.s32.totalorder %s321, 1
      %s325 = scalar_select %p324, %s321, 1
      %s326 = smul.addr %s323, 2
      %s327 = sadd.s32 %s325, %s326
      %s328 = smul.addr %s327, 8
      %s329 = scalar_lea.vmem %s0, %s328
      %p330 = pneg %p54
      %p331 = pneg %p51
      %s332 = smul.u32 2, %s24
      %p333 = scmp.lt.s32.totalorder %s23, 1
      %s334 = scalar_select %p333, %s23, 1
      %p335 = scmp.lt.s32.totalorder %s332, 1
      %s336 = scalar_select %p335, %s332, 1
      %s337 = smul.addr %s334, 2
      %s338 = sadd.s32 %s336, %s337
      %s339 = smul.addr %s338, 8
      %s340 = scalar_lea.vmem %s1, %s339
      %p341 = pneg %p82
      %p342 = pneg %p79
      %s343 = smul.u32 2, %s24
      %p344 = scmp.lt.s32.totalorder %s23, 1
      %s345 = scalar_select %p344, %s23, 1
      %p346 = scmp.lt.s32.totalorder %s343, 1
      %s347 = scalar_select %p346, %s343, 1
      %s348 = smul.addr %s345, 2
      %s349 = sadd.s32 %s347, %s348
      %s350 = smul.addr %s349, 8
      %s351 = scalar_lea.vmem %s2, %s350
      %p352 = pneg %p110
      %p353 = pneg %p107
      %p354 = pneg %p131
      %p355 = pneg %p128
      %p356 = pneg %p152
      %p357 = pneg %p149
      %p358 = pneg %p173
      %p359 = pneg %p170
      %p360 = pneg %p194
      %p361 = pneg %p191
      %p362 = pneg %p215
      %p363 = pneg %p212
      %p364 = pneg %p241
      %p365 = pneg %p238
      %p366 = scmp.lt.s32.totalorder %s23, 1
      %s367 = scalar_select %p366, %s23, 1
      %s368 = smul.addr %s367, 8
      %s369 = scalar_lea.vmem %s8, %s368
      %s370 = smul.u32 2, %s24
      %p371 = scmp.lt.s32.totalorder %s23, 1
      %s372 = scalar_select %p371, %s23, 1
      %p373 = scmp.lt.s32.totalorder %s370, 1
      %s374 = scalar_select %p373, %s370, 1
      %s375 = smul.addr %s372, 2
      %s376 = sadd.s32 %s374, %s375
      %s377 = smul.addr %s376, 8
      %s378 = scalar_lea.vmem %s0, %s377
      %s379 = smul.u32 2, %s24
      %s380 = smul.u32 2, %s24
      %p381 = scmp.lt.s32.totalorder %s23, 1
      %s382 = scalar_select %p381, %s23, 1
      %p383 = scmp.lt.s32.totalorder %s380, 1
      %s384 = scalar_select %p383, %s380, 1
      %s385 = smul.addr %s382, 2
      %s386 = sadd.s32 %s384, %s385
      %s387 = smul.addr %s386, 8
      %s388 = scalar_lea.vmem %s1, %s387
      %s389 = smul.u32 2, %s24
      %s390 = smul.u32 2, %s24
      %p391 = scmp.lt.s32.totalorder %s23, 1
      %s392 = scalar_select %p391, %s23, 1
      %p393 = scmp.lt.s32.totalorder %s390, 1
      %s394 = scalar_select %p393, %s390, 1
      %s395 = smul.addr %s392, 2
      %s396 = sadd.s32 %s394, %s395
      %s397 = smul.addr %s396, 8
      %s398 = scalar_lea.vmem %s2, %s397
      %s399 = smul.u32 2, %s24
      %p400 = scmp.lt.s32.totalorder %s23, 1
      %s401 = scalar_select %p400, %s23, 1
      %s402 = smul.addr %s401, 8
      %s403 = scalar_lea.vmem %s8, %s402
      %v404 = vld [vmem:[%s378] sm:$0xff]
      %v405 = vld [vmem:[%s378 + $0x8] sm:$0xff]
      %v406 = vld [vmem:[%s3] sm:$0xff]
      %v407 = vld [vmem:[%s3 + $0x8] sm:$0xff]
      %v408 = vld [vmem:[%s3 + $0x10] sm:$0xff]
      %v409 = vld [vmem:[%s3 + $0x18] sm:$0xff]
      %v410 = vld [vmem:[%s3 + $0x20] sm:$0xff]
      %v411 = vld [vmem:[%s3 + $0x28] sm:$0xff]
      %v412 = vld [vmem:[%s3 + $0x30] sm:$0xff]
      %v413 = vld [vmem:[%s3 + $0x38] sm:$0xff]
      %v414 = vld [vmem:[%s3 + $0x40] sm:$0xff]
      %v415 = vld [vmem:[%s3 + $0x48] sm:$0xff]
      %v416 = vld [vmem:[%s3 + $0x50] sm:$0xff]
      %v417 = vld [vmem:[%s3 + $0x58] sm:$0xff]
      %v418 = vld [vmem:[%s3 + $0x60] sm:$0xff]
      %v419 = vld [vmem:[%s3 + $0x68] sm:$0xff]
      %v420 = vld [vmem:[%s3 + $0x70] sm:$0xff]
      %v421 = vld [vmem:[%s3 + $0x78] sm:$0xff]
      %v422 = vld [vmem:[%s3 + $0x80] sm:$0xff]
      %v423 = vld [vmem:[%s3 + $0x88] sm:$0xff]
      %v424 = vld [vmem:[%s3 + $0x90] sm:$0xff]
      %v425 = vld [vmem:[%s3 + $0x98] sm:$0xff]
      %v426 = vld [vmem:[%s3 + $0xa0] sm:$0xff]
      %v427 = vld [vmem:[%s3 + $0xa8] sm:$0xff]
      %v428 = vld [vmem:[%s3 + $0xb0] sm:$0xff]
      %v429 = vld [vmem:[%s3 + $0xb8] sm:$0xff]
      %v430 = vld [vmem:[%s3 + $0xc0] sm:$0xff]
      %v431 = vld [vmem:[%s3 + $0xc8] sm:$0xff]
      %v432 = vld [vmem:[%s3 + $0xd0] sm:$0xff]
      %v433 = vld [vmem:[%s3 + $0xd8] sm:$0xff]
      %v434 = vld [vmem:[%s3 + $0xe0] sm:$0xff]
      %v435 = vld [vmem:[%s3 + $0xe8] sm:$0xff]
      %v436 = vld [vmem:[%s3 + $0xf0] sm:$0xff]
      %v437 = vld [vmem:[%s3 + $0xf8] sm:$0xff]
      %v438 = vld [vmem:[%s3 + $0x100] sm:$0xff]
      %v439 = vld [vmem:[%s3 + $0x108] sm:$0xff]
      %v440 = vld [vmem:[%s3 + $0x110] sm:$0xff]
      %v441 = vld [vmem:[%s3 + $0x118] sm:$0xff]
      %v442 = vld [vmem:[%s3 + $0x120] sm:$0xff]
      %v443 = vld [vmem:[%s3 + $0x128] sm:$0xff]
      %v444 = vld [vmem:[%s3 + $0x130] sm:$0xff]
      %v445 = vld [vmem:[%s3 + $0x138] sm:$0xff]
      %v446 = vld [vmem:[%s3 + $0x140] sm:$0xff]
      %v447 = vld [vmem:[%s3 + $0x148] sm:$0xff]
      %v448 = vld [vmem:[%s3 + $0x150] sm:$0xff]
      %v449 = vld [vmem:[%s3 + $0x158] sm:$0xff]
      %v450 = vld [vmem:[%s3 + $0x160] sm:$0xff]
      %v451 = vld [vmem:[%s3 + $0x168] sm:$0xff]
      %v452 = vld [vmem:[%s3 + $0x170] sm:$0xff]
      %v453 = vld [vmem:[%s3 + $0x178] sm:$0xff]
      %v454 = vld [vmem:[%s3 + $0x180] sm:$0xff]
      %v455 = vld [vmem:[%s3 + $0x188] sm:$0xff]
      %v456 = vld [vmem:[%s3 + $0x190] sm:$0xff]
      %v457 = vld [vmem:[%s3 + $0x198] sm:$0xff]
      %v458 = vld [vmem:[%s3 + $0x1a0] sm:$0xff]
      %v459 = vld [vmem:[%s3 + $0x1a8] sm:$0xff]
      %v460 = vld [vmem:[%s3 + $0x1b0] sm:$0xff]
      %v461 = vld [vmem:[%s3 + $0x1b8] sm:$0xff]
      %v462 = vld [vmem:[%s3 + $0x1c0] sm:$0xff]
      %v463 = vld [vmem:[%s3 + $0x1c8] sm:$0xff]
      %v464 = vld [vmem:[%s3 + $0x1d0] sm:$0xff]
      %v465 = vld [vmem:[%s3 + $0x1d8] sm:$0xff]
      %v466 = vld [vmem:[%s3 + $0x1e0] sm:$0xff]
      %v467 = vld [vmem:[%s3 + $0x1e8] sm:$0xff]
      %v468 = vld [vmem:[%s3 + $0x1f0] sm:$0xff]
      %v469 = vld [vmem:[%s3 + $0x1f8] sm:$0xff]
      %v470 = vld [vmem:[%s388] sm:$0xff]
      %v471 = vld [vmem:[%s388 + $0x8] sm:$0xff]
      %v472 = vld [vmem:[%s4] sm:$0xff]
      %v473 = vld [vmem:[%s4 + $0x8] sm:$0xff]
      %v474 = vld [vmem:[%s4 + $0x10] sm:$0xff]
      %v475 = vld [vmem:[%s4 + $0x18] sm:$0xff]
      %v476 = vld [vmem:[%s4 + $0x20] sm:$0xff]
      %v477 = vld [vmem:[%s4 + $0x28] sm:$0xff]
      %v478 = vld [vmem:[%s4 + $0x30] sm:$0xff]
      %v479 = vld [vmem:[%s4 + $0x38] sm:$0xff]
      %v480 = vld [vmem:[%s4 + $0x40] sm:$0xff]
      %v481 = vld [vmem:[%s4 + $0x48] sm:$0xff]
      %v482 = vld [vmem:[%s4 + $0x50] sm:$0xff]
      %v483 = vld [vmem:[%s4 + $0x58] sm:$0xff]
      %v484 = vld [vmem:[%s4 + $0x60] sm:$0xff]
      %v485 = vld [vmem:[%s4 + $0x68] sm:$0xff]
      %v486 = vld [vmem:[%s4 + $0x70] sm:$0xff]
      %v487 = vld [vmem:[%s4 + $0x78] sm:$0xff]
      %v488 = vld [vmem:[%s4 + $0x80] sm:$0xff]
      %v489 = vld [vmem:[%s4 + $0x88] sm:$0xff]
      %v490 = vld [vmem:[%s4 + $0x90] sm:$0xff]
      %v491 = vld [vmem:[%s4 + $0x98] sm:$0xff]
      %v492 = vld [vmem:[%s4 + $0xa0] sm:$0xff]
      %v493 = vld [vmem:[%s4 + $0xa8] sm:$0xff]
      %v494 = vld [vmem:[%s4 + $0xb0] sm:$0xff]
      %v495 = vld [vmem:[%s4 + $0xb8] sm:$0xff]
      %v496 = vld [vmem:[%s4 + $0xc0] sm:$0xff]
      %v497 = vld [vmem:[%s4 + $0xc8] sm:$0xff]
      %v498 = vld [vmem:[%s4 + $0xd0] sm:$0xff]
      %v499 = vld [vmem:[%s4 + $0xd8] sm:$0xff]
      %v500 = vld [vmem:[%s4 + $0xe0] sm:$0xff]
      %v501 = vld [vmem:[%s4 + $0xe8] sm:$0xff]
      %v502 = vld [vmem:[%s4 + $0xf0] sm:$0xff]
      %v503 = vld [vmem:[%s4 + $0xf8] sm:$0xff]
      %v504 = vld [vmem:[%s4 + $0x100] sm:$0xff]
      %v505 = vld [vmem:[%s4 + $0x108] sm:$0xff]
      %v506 = vld [vmem:[%s4 + $0x110] sm:$0xff]
      %v507 = vld [vmem:[%s4 + $0x118] sm:$0xff]
      %v508 = vld [vmem:[%s4 + $0x120] sm:$0xff]
      %v509 = vld [vmem:[%s4 + $0x128] sm:$0xff]
      %v510 = vld [vmem:[%s4 + $0x130] sm:$0xff]
      %v511 = vld [vmem:[%s4 + $0x138] sm:$0xff]
      %v512 = vld [vmem:[%s4 + $0x140] sm:$0xff]
      %v513 = vld [vmem:[%s4 + $0x148] sm:$0xff]
      %v514 = vld [vmem:[%s4 + $0x150] sm:$0xff]
      %v515 = vld [vmem:[%s4 + $0x158] sm:$0xff]
      %v516 = vld [vmem:[%s4 + $0x160] sm:$0xff]
      %v517 = vld [vmem:[%s4 + $0x168] sm:$0xff]
      %v518 = vld [vmem:[%s4 + $0x170] sm:$0xff]
      %v519 = vld [vmem:[%s4 + $0x178] sm:$0xff]
      %v520 = vld [vmem:[%s4 + $0x180] sm:$0xff]
      %v521 = vld [vmem:[%s4 + $0x188] sm:$0xff]
      %v522 = vld [vmem:[%s4 + $0x190] sm:$0xff]
      %v523 = vld [vmem:[%s4 + $0x198] sm:$0xff]
      %v524 = vld [vmem:[%s4 + $0x1a0] sm:$0xff]
      %v525 = vld [vmem:[%s4 + $0x1a8] sm:$0xff]
      %v526 = vld [vmem:[%s4 + $0x1b0] sm:$0xff]
      %v527 = vld [vmem:[%s4 + $0x1b8] sm:$0xff]
      %v528 = vld [vmem:[%s4 + $0x1c0] sm:$0xff]
      %v529 = vld [vmem:[%s4 + $0x1c8] sm:$0xff]
      %v530 = vld [vmem:[%s4 + $0x1d0] sm:$0xff]
      %v531 = vld [vmem:[%s4 + $0x1d8] sm:$0xff]
      %v532 = vld [vmem:[%s4 + $0x1e0] sm:$0xff]
      %v533 = vld [vmem:[%s4 + $0x1e8] sm:$0xff]
      %v534 = vld [vmem:[%s4 + $0x1f0] sm:$0xff]
      %v535 = vld [vmem:[%s4 + $0x1f8] sm:$0xff]
      %vm536 = vcmask 523264
      %v538 = vsel %vm536, %v470, 0
      %v541 = vsel %vm536, %v471, 0
      %543 = vmatpush.msra.mxu0 0.0
      %544 = vmatpush.msra.mxu0 0.0
      %545 = vmatpush.msra.mxu0 0.0
      %546 = vmatpush.msra.mxu0 0.0
      %547 = vmatpush.msra.mxu0 0.0
      %548 = vmatpush.msra.mxu0 0.0
      %549 = vmatpush.msra.mxu0 0.0
      %550 = vmatpush.msra.mxu0 0.0
      %551 = vmatpush.msra.mxu0 %v528
      %552 = vmatpush.msra.mxu0 %v520
      %553 = vmatpush.msra.mxu0 %v512
      %554 = vmatpush.msra.mxu0 %v504
      %555 = vmatpush.msra.mxu0 %v496
      %556 = vmatpush.msra.mxu0 %v488
      %557 = vmatpush.msra.mxu0 %v480
      %558 = vmatpush.msra.mxu0 %v472
      %559 = vmatmul.f32.gmra.mxu0 %v538
      %v560 = vpop.f32.mrf.mxu0
      %v561 = vadd.f32 0.0, %v560
      %562 = vmatmul.f32.gmra.mxu0 %v541
      %v563 = vpop.f32.mrf.mxu0
      %v564 = vadd.f32 0.0, %v563
      %565 = vdwg.mxu0
      %566 = vmatpush.msra.mxu0 0.0
      %567 = vmatpush.msra.mxu0 0.0
      %568 = vmatpush.msra.mxu0 0.0
      %569 = vmatpush.msra.mxu0 0.0
      %570 = vmatpush.msra.mxu0 0.0
      %571 = vmatpush.msra.mxu0 0.0
      %572 = vmatpush.msra.mxu0 0.0
      %573 = vmatpush.msra.mxu0 0.0
      %574 = vmatpush.msra.mxu0 %v529
      %575 = vmatpush.msra.mxu0 %v521
      %576 = vmatpush.msra.mxu0 %v513
      %577 = vmatpush.msra.mxu0 %v505
      %578 = vmatpush.msra.mxu0 %v497
      %579 = vmatpush.msra.mxu0 %v489
      %580 = vmatpush.msra.mxu0 %v481
      %581 = vmatpush.msra.mxu0 %v473
      %582 = vmatmul.f32.gmra.mxu0 %v538
      %v583 = vpop.f32.mrf.mxu0
      %v584 = vadd.f32 0.0, %v583
      %585 = vmatmul.f32.gmra.mxu0 %v541
      %v586 = vpop.f32.mrf.mxu0
      %v587 = vadd.f32 0.0, %v586
      %588 = vdwg.mxu0
      %589 = vmatpush.msra.mxu0 0.0
      %590 = vmatpush.msra.mxu0 0.0
      %591 = vmatpush.msra.mxu0 0.0
      %592 = vmatpush.msra.mxu0 0.0
      %593 = vmatpush.msra.mxu0 0.0
      %594 = vmatpush.msra.mxu0 0.0
      %595 = vmatpush.msra.mxu0 0.0
      %596 = vmatpush.msra.mxu0 0.0
      %597 = vmatpush.msra.mxu0 %v530
      %598 = vmatpush.msra.mxu0 %v522
      %599 = vmatpush.msra.mxu0 %v514
      %600 = vmatpush.msra.mxu0 %v506
      %601 = vmatpush.msra.mxu0 %v498
      %602 = vmatpush.msra.mxu0 %v490
      %603 = vmatpush.msra.mxu0 %v482
      %604 = vmatpush.msra.mxu0 %v474
      %605 = vmatmul.f32.gmra.mxu0 %v538
      %v606 = vpop.f32.mrf.mxu0
      %v607 = vadd.f32 0.0, %v606
      %608 = vmatmul.f32.gmra.mxu0 %v541
      %v609 = vpop.f32.mrf.mxu0
      %v610 = vadd.f32 0.0, %v609
      %611 = vdwg.mxu0
      %612 = vmatpush.msra.mxu0 0.0
      %613 = vmatpush.msra.mxu0 0.0
      %614 = vmatpush.msra.mxu0 0.0
      %615 = vmatpush.msra.mxu0 0.0
      %616 = vmatpush.msra.mxu0 0.0
      %617 = vmatpush.msra.mxu0 0.0
      %618 = vmatpush.msra.mxu0 0.0
      %619 = vmatpush.msra.mxu0 0.0
      %620 = vmatpush.msra.mxu0 %v531
      %621 = vmatpush.msra.mxu0 %v523
      %622 = vmatpush.msra.mxu0 %v515
      %623 = vmatpush.msra.mxu0 %v507
      %624 = vmatpush.msra.mxu0 %v499
      %625 = vmatpush.msra.mxu0 %v491
      %626 = vmatpush.msra.mxu0 %v483
      %627 = vmatpush.msra.mxu0 %v475
      %628 = vmatmul.f32.gmra.mxu0 %v538
      %v629 = vpop.f32.mrf.mxu0
      %v630 = vadd.f32 0.0, %v629
      %631 = vmatmul.f32.gmra.mxu0 %v541
      %v632 = vpop.f32.mrf.mxu0
      %v633 = vadd.f32 0.0, %v632
      %634 = vdwg.mxu0
      %635 = vmatpush.msra.mxu0 0.0
      %636 = vmatpush.msra.mxu0 0.0
      %637 = vmatpush.msra.mxu0 0.0
      %638 = vmatpush.msra.mxu0 0.0
      %639 = vmatpush.msra.mxu0 0.0
      %640 = vmatpush.msra.mxu0 0.0
      %641 = vmatpush.msra.mxu0 0.0
      %642 = vmatpush.msra.mxu0 0.0
      %643 = vmatpush.msra.mxu0 %v532
      %644 = vmatpush.msra.mxu0 %v524
      %645 = vmatpush.msra.mxu0 %v516
      %646 = vmatpush.msra.mxu0 %v508
      %647 = vmatpush.msra.mxu0 %v500
      %648 = vmatpush.msra.mxu0 %v492
      %649 = vmatpush.msra.mxu0 %v484
      %650 = vmatpush.msra.mxu0 %v476
      %651 = vmatmul.f32.gmra.mxu0 %v538
      %v652 = vpop.f32.mrf.mxu0
      %v653 = vadd.f32 0.0, %v652
      %654 = vmatmul.f32.gmra.mxu0 %v541
      %v655 = vpop.f32.mrf.mxu0
      %v656 = vadd.f32 0.0, %v655
      %657 = vdwg.mxu0
      %658 = vmatpush.msra.mxu0 0.0
      %659 = vmatpush.msra.mxu0 0.0
      %660 = vmatpush.msra.mxu0 0.0
      %661 = vmatpush.msra.mxu0 0.0
      %662 = vmatpush.msra.mxu0 0.0
      %663 = vmatpush.msra.mxu0 0.0
      %664 = vmatpush.msra.mxu0 0.0
      %665 = vmatpush.msra.mxu0 0.0
      %666 = vmatpush.msra.mxu0 %v533
      %667 = vmatpush.msra.mxu0 %v525
      %668 = vmatpush.msra.mxu0 %v517
      %669 = vmatpush.msra.mxu0 %v509
      %670 = vmatpush.msra.mxu0 %v501
      %671 = vmatpush.msra.mxu0 %v493
      %672 = vmatpush.msra.mxu0 %v485
      %673 = vmatpush.msra.mxu0 %v477
      %674 = vmatmul.f32.gmra.mxu0 %v538
      %v675 = vpop.f32.mrf.mxu0
      %v676 = vadd.f32 0.0, %v675
      %677 = vmatmul.f32.gmra.mxu0 %v541
      %v678 = vpop.f32.mrf.mxu0
      %v679 = vadd.f32 0.0, %v678
      %680 = vdwg.mxu0
      %681 = vmatpush.msra.mxu0 0.0
      %682 = vmatpush.msra.mxu0 0.0
      %683 = vmatpush.msra.mxu0 0.0
      %684 = vmatpush.msra.mxu0 0.0
      %685 = vmatpush.msra.mxu0 0.0
      %686 = vmatpush.msra.mxu0 0.0
      %687 = vmatpush.msra.mxu0 0.0
      %688 = vmatpush.msra.mxu0 0.0
      %689 = vmatpush.msra.mxu0 %v534
      %690 = vmatpush.msra.mxu0 %v526
      %691 = vmatpush.msra.mxu0 %v518
      %692 = vmatpush.msra.mxu0 %v510
      %693 = vmatpush.msra.mxu0 %v502
      %694 = vmatpush.msra.mxu0 %v494
      %695 = vmatpush.msra.mxu0 %v486
      %696 = vmatpush.msra.mxu0 %v478
      %697 = vmatmul.f32.gmra.mxu0 %v538
      %v698 = vpop.f32.mrf.mxu0
      %v699 = vadd.f32 0.0, %v698
      %700 = vmatmul.f32.gmra.mxu0 %v541
      %v701 = vpop.f32.mrf.mxu0
      %v702 = vadd.f32 0.0, %v701
      %703 = vdwg.mxu0
      %704 = vmatpush.msra.mxu0 0.0
      %705 = vmatpush.msra.mxu0 0.0
      %706 = vmatpush.msra.mxu0 0.0
      %707 = vmatpush.msra.mxu0 0.0
      %708 = vmatpush.msra.mxu0 0.0
      %709 = vmatpush.msra.mxu0 0.0
      %710 = vmatpush.msra.mxu0 0.0
      %711 = vmatpush.msra.mxu0 0.0
      %712 = vmatpush.msra.mxu0 %v535
      %713 = vmatpush.msra.mxu0 %v527
      %714 = vmatpush.msra.mxu0 %v519
      %715 = vmatpush.msra.mxu0 %v511
      %716 = vmatpush.msra.mxu0 %v503
      %717 = vmatpush.msra.mxu0 %v495
      %718 = vmatpush.msra.mxu0 %v487
      %719 = vmatpush.msra.mxu0 %v479
      %720 = vmatmul.f32.gmra.mxu0 %v538
      %v721 = vpop.f32.mrf.mxu0
      %v722 = vadd.f32 0.0, %v721
      %723 = vmatmul.f32.gmra.mxu0 %v541
      %v724 = vpop.f32.mrf.mxu0
      %v725 = vadd.f32 0.0, %v724
      %726 = vdwg.mxu0
      %v728 = vsel %vm536, %v404, 0
      %v731 = vsel %vm536, %v405, 0
      %733 = vmatpush.msra.mxu0 0.0
      %734 = vmatpush.msra.mxu0 0.0
      %735 = vmatpush.msra.mxu0 0.0
      %736 = vmatpush.msra.mxu0 0.0
      %737 = vmatpush.msra.mxu0 0.0
      %738 = vmatpush.msra.mxu0 0.0
      %739 = vmatpush.msra.mxu0 0.0
      %740 = vmatpush.msra.mxu0 0.0
      %741 = vmatpush.msra.mxu0 %v462
      %742 = vmatpush.msra.mxu0 %v454
      %743 = vmatpush.msra.mxu0 %v446
      %744 = vmatpush.msra.mxu0 %v438
      %745 = vmatpush.msra.mxu0 %v430
      %746 = vmatpush.msra.mxu0 %v422
      %747 = vmatpush.msra.mxu0 %v414
      %748 = vmatpush.msra.mxu0 %v406
      %749 = vmatmul.f32.gmra.mxu0 %v728
      %v750 = vpop.f32.mrf.mxu0
      %v751 = vadd.f32 %v561, %v750
      %752 = vmatmul.f32.gmra.mxu0 %v731
      %v753 = vpop.f32.mrf.mxu0
      %v754 = vadd.f32 %v564, %v753
      %755 = vdwg.mxu0
      %756 = vmatpush.msra.mxu0 0.0
      %757 = vmatpush.msra.mxu0 0.0
      %758 = vmatpush.msra.mxu0 0.0
      %759 = vmatpush.msra.mxu0 0.0
      %760 = vmatpush.msra.mxu0 0.0
      %761 = vmatpush.msra.mxu0 0.0
      %762 = vmatpush.msra.mxu0 0.0
      %763 = vmatpush.msra.mxu0 0.0
      %764 = vmatpush.msra.mxu0 %v463
      %765 = vmatpush.msra.mxu0 %v455
      %766 = vmatpush.msra.mxu0 %v447
      %767 = vmatpush.msra.mxu0 %v439
      %768 = vmatpush.msra.mxu0 %v431
      %769 = vmatpush.msra.mxu0 %v423
      %770 = vmatpush.msra.mxu0 %v415
      %771 = vmatpush.msra.mxu0 %v407
      %772 = vmatmul.f32.gmra.mxu0 %v728
      %v773 = vpop.f32.mrf.mxu0
      %v774 = vadd.f32 %v584, %v773
      %775 = vmatmul.f32.gmra.mxu0 %v731
      %v776 = vpop.f32.mrf.mxu0
      %v777 = vadd.f32 %v587, %v776
      %778 = vdwg.mxu0
      %779 = vmatpush.msra.mxu0 0.0
      %780 = vmatpush.msra.mxu0 0.0
      %781 = vmatpush.msra.mxu0 0.0
      %782 = vmatpush.msra.mxu0 0.0
      %783 = vmatpush.msra.mxu0 0.0
      %784 = vmatpush.msra.mxu0 0.0
      %785 = vmatpush.msra.mxu0 0.0
      %786 = vmatpush.msra.mxu0 0.0
      %787 = vmatpush.msra.mxu0 %v464
      %788 = vmatpush.msra.mxu0 %v456
      %789 = vmatpush.msra.mxu0 %v448
      %790 = vmatpush.msra.mxu0 %v440
      %791 = vmatpush.msra.mxu0 %v432
      %792 = vmatpush.msra.mxu0 %v424
      %793 = vmatpush.msra.mxu0 %v416
      %794 = vmatpush.msra.mxu0 %v408
      %795 = vmatmul.f32.gmra.mxu0 %v728
      %v796 = vpop.f32.mrf.mxu0
      %v797 = vadd.f32 %v607, %v796
      %798 = vmatmul.f32.gmra.mxu0 %v731
      %v799 = vpop.f32.mrf.mxu0
      %v800 = vadd.f32 %v610, %v799
      %801 = vdwg.mxu0
      %802 = vmatpush.msra.mxu0 0.0
      %803 = vmatpush.msra.mxu0 0.0
      %804 = vmatpush.msra.mxu0 0.0
      %805 = vmatpush.msra.mxu0 0.0
      %806 = vmatpush.msra.mxu0 0.0
      %807 = vmatpush.msra.mxu0 0.0
      %808 = vmatpush.msra.mxu0 0.0
      %809 = vmatpush.msra.mxu0 0.0
      %810 = vmatpush.msra.mxu0 %v465
      %811 = vmatpush.msra.mxu0 %v457
      %812 = vmatpush.msra.mxu0 %v449
      %813 = vmatpush.msra.mxu0 %v441
      %814 = vmatpush.msra.mxu0 %v433
      %815 = vmatpush.msra.mxu0 %v425
      %816 = vmatpush.msra.mxu0 %v417
      %817 = vmatpush.msra.mxu0 %v409
      %818 = vmatmul.f32.gmra.mxu0 %v728
      %v819 = vpop.f32.mrf.mxu0
      %v820 = vadd.f32 %v630, %v819
      %821 = vmatmul.f32.gmra.mxu0 %v731
      %v822 = vpop.f32.mrf.mxu0
      %v823 = vadd.f32 %v633, %v822
      %824 = vdwg.mxu0
      %825 = vmatpush.msra.mxu0 0.0
      %826 = vmatpush.msra.mxu0 0.0
      %827 = vmatpush.msra.mxu0 0.0
      %828 = vmatpush.msra.mxu0 0.0
      %829 = vmatpush.msra.mxu0 0.0
      %830 = vmatpush.msra.mxu0 0.0
      %831 = vmatpush.msra.mxu0 0.0
      %832 = vmatpush.msra.mxu0 0.0
      %833 = vmatpush.msra.mxu0 %v466
      %834 = vmatpush.msra.mxu0 %v458
      %835 = vmatpush.msra.mxu0 %v450
      %836 = vmatpush.msra.mxu0 %v442
      %837 = vmatpush.msra.mxu0 %v434
      %838 = vmatpush.msra.mxu0 %v426
      %839 = vmatpush.msra.mxu0 %v418
      %840 = vmatpush.msra.mxu0 %v410
      %841 = vmatmul.f32.gmra.mxu0 %v728
      %v842 = vpop.f32.mrf.mxu0
      %v843 = vadd.f32 %v653, %v842
      %844 = vmatmul.f32.gmra.mxu0 %v731
      %v845 = vpop.f32.mrf.mxu0
      %v846 = vadd.f32 %v656, %v845
      %847 = vdwg.mxu0
      %848 = vmatpush.msra.mxu0 0.0
      %849 = vmatpush.msra.mxu0 0.0
      %850 = vmatpush.msra.mxu0 0.0
      %851 = vmatpush.msra.mxu0 0.0
      %852 = vmatpush.msra.mxu0 0.0
      %853 = vmatpush.msra.mxu0 0.0
      %854 = vmatpush.msra.mxu0 0.0
      %855 = vmatpush.msra.mxu0 0.0
      %856 = vmatpush.msra.mxu0 %v467
      %857 = vmatpush.msra.mxu0 %v459
      %858 = vmatpush.msra.mxu0 %v451
      %859 = vmatpush.msra.mxu0 %v443
      %860 = vmatpush.msra.mxu0 %v435
      %861 = vmatpush.msra.mxu0 %v427
      %862 = vmatpush.msra.mxu0 %v419
      %863 = vmatpush.msra.mxu0 %v411
      %864 = vmatmul.f32.gmra.mxu0 %v728
      %v865 = vpop.f32.mrf.mxu0
      %v866 = vadd.f32 %v676, %v865
      %867 = vmatmul.f32.gmra.mxu0 %v731
      %v868 = vpop.f32.mrf.mxu0
      %v869 = vadd.f32 %v679, %v868
      %870 = vdwg.mxu0
      %871 = vmatpush.msra.mxu0 0.0
      %872 = vmatpush.msra.mxu0 0.0
      %873 = vmatpush.msra.mxu0 0.0
      %874 = vmatpush.msra.mxu0 0.0
      %875 = vmatpush.msra.mxu0 0.0
      %876 = vmatpush.msra.mxu0 0.0
      %877 = vmatpush.msra.mxu0 0.0
      %878 = vmatpush.msra.mxu0 0.0
      %879 = vmatpush.msra.mxu0 %v468
      %880 = vmatpush.msra.mxu0 %v460
      %881 = vmatpush.msra.mxu0 %v452
      %882 = vmatpush.msra.mxu0 %v444
      %883 = vmatpush.msra.mxu0 %v436
      %884 = vmatpush.msra.mxu0 %v428
      %885 = vmatpush.msra.mxu0 %v420
      %886 = vmatpush.msra.mxu0 %v412
      %887 = vmatmul.f32.gmra.mxu0 %v728
      %v888 = vpop.f32.mrf.mxu0
      %v889 = vadd.f32 %v699, %v888
      %890 = vmatmul.f32.gmra.mxu0 %v731
      %v891 = vpop.f32.mrf.mxu0
      %v892 = vadd.f32 %v702, %v891
      %893 = vdwg.mxu0
      %894 = vmatpush.msra.mxu0 0.0
      %895 = vmatpush.msra.mxu0 0.0
      %896 = vmatpush.msra.mxu0 0.0
      %897 = vmatpush.msra.mxu0 0.0
      %898 = vmatpush.msra.mxu0 0.0
      %899 = vmatpush.msra.mxu0 0.0
      %900 = vmatpush.msra.mxu0 0.0
      %901 = vmatpush.msra.mxu0 0.0
      %902 = vmatpush.msra.mxu0 %v469
      %903 = vmatpush.msra.mxu0 %v461
      %904 = vmatpush.msra.mxu0 %v453
      %905 = vmatpush.msra.mxu0 %v445
      %906 = vmatpush.msra.mxu0 %v437
      %907 = vmatpush.msra.mxu0 %v429
      %908 = vmatpush.msra.mxu0 %v421
      %909 = vmatpush.msra.mxu0 %v413
      %910 = vmatmul.f32.gmra.mxu0 %v728
      %v911 = vpop.f32.mrf.mxu0
      %v912 = vadd.f32 %v722, %v911
      %913 = vmatmul.f32.gmra.mxu0 %v731
      %v914 = vpop.f32.mrf.mxu0
      %v915 = vadd.f32 %v725, %v914
      %916 = vdwg.mxu0
      %v917 = vld [vmem:[%s398] sm:$0xff]
      %v918 = vld [vmem:[%s398 + $0x8] sm:$0xff]
      %v919 = vld [vmem:[%s5] sm:$0xff]
      %v920 = vld [vmem:[%s5 + $0x8] sm:$0xff]
      %v921 = vld [vmem:[%s5 + $0x10] sm:$0xff]
      %v922 = vld [vmem:[%s5 + $0x18] sm:$0xff]
      %v923 = vld [vmem:[%s5 + $0x20] sm:$0xff]
      %v924 = vld [vmem:[%s5 + $0x28] sm:$0xff]
      %v925 = vld [vmem:[%s5 + $0x30] sm:$0xff]
      %v926 = vld [vmem:[%s5 + $0x38] sm:$0xff]
      %v927 = vld [vmem:[%s5 + $0x40] sm:$0xff]
      %v928 = vld [vmem:[%s5 + $0x48] sm:$0xff]
      %v929 = vld [vmem:[%s5 + $0x50] sm:$0xff]
      %v930 = vld [vmem:[%s5 + $0x58] sm:$0xff]
      %v931 = vld [vmem:[%s5 + $0x60] sm:$0xff]
      %v932 = vld [vmem:[%s5 + $0x68] sm:$0xff]
      %v933 = vld [vmem:[%s5 + $0x70] sm:$0xff]
      %v934 = vld [vmem:[%s5 + $0x78] sm:$0xff]
      %v935 = vld [vmem:[%s5 + $0x80] sm:$0xff]
      %v936 = vld [vmem:[%s5 + $0x88] sm:$0xff]
      %v937 = vld [vmem:[%s5 + $0x90] sm:$0xff]
      %v938 = vld [vmem:[%s5 + $0x98] sm:$0xff]
      %v939 = vld [vmem:[%s5 + $0xa0] sm:$0xff]
      %v940 = vld [vmem:[%s5 + $0xa8] sm:$0xff]
      %v941 = vld [vmem:[%s5 + $0xb0] sm:$0xff]
      %v942 = vld [vmem:[%s5 + $0xb8] sm:$0xff]
      %v943 = vld [vmem:[%s5 + $0xc0] sm:$0xff]
      %v944 = vld [vmem:[%s5 + $0xc8] sm:$0xff]
      %v945 = vld [vmem:[%s5 + $0xd0] sm:$0xff]
      %v946 = vld [vmem:[%s5 + $0xd8] sm:$0xff]
      %v947 = vld [vmem:[%s5 + $0xe0] sm:$0xff]
      %v948 = vld [vmem:[%s5 + $0xe8] sm:$0xff]
      %v949 = vld [vmem:[%s5 + $0xf0] sm:$0xff]
      %v950 = vld [vmem:[%s5 + $0xf8] sm:$0xff]
      %v951 = vld [vmem:[%s5 + $0x100] sm:$0xff]
      %v952 = vld [vmem:[%s5 + $0x108] sm:$0xff]
      %v953 = vld [vmem:[%s5 + $0x110] sm:$0xff]
      %v954 = vld [vmem:[%s5 + $0x118] sm:$0xff]
      %v955 = vld [vmem:[%s5 + $0x120] sm:$0xff]
      %v956 = vld [vmem:[%s5 + $0x128] sm:$0xff]
      %v957 = vld [vmem:[%s5 + $0x130] sm:$0xff]
      %v958 = vld [vmem:[%s5 + $0x138] sm:$0xff]
      %v959 = vld [vmem:[%s5 + $0x140] sm:$0xff]
      %v960 = vld [vmem:[%s5 + $0x148] sm:$0xff]
      %v961 = vld [vmem:[%s5 + $0x150] sm:$0xff]
      %v962 = vld [vmem:[%s5 + $0x158] sm:$0xff]
      %v963 = vld [vmem:[%s5 + $0x160] sm:$0xff]
      %v964 = vld [vmem:[%s5 + $0x168] sm:$0xff]
      %v965 = vld [vmem:[%s5 + $0x170] sm:$0xff]
      %v966 = vld [vmem:[%s5 + $0x178] sm:$0xff]
      %v967 = vld [vmem:[%s5 + $0x180] sm:$0xff]
      %v968 = vld [vmem:[%s5 + $0x188] sm:$0xff]
      %v969 = vld [vmem:[%s5 + $0x190] sm:$0xff]
      %v970 = vld [vmem:[%s5 + $0x198] sm:$0xff]
      %v971 = vld [vmem:[%s5 + $0x1a0] sm:$0xff]
      %v972 = vld [vmem:[%s5 + $0x1a8] sm:$0xff]
      %v973 = vld [vmem:[%s5 + $0x1b0] sm:$0xff]
      %v974 = vld [vmem:[%s5 + $0x1b8] sm:$0xff]
      %v975 = vld [vmem:[%s5 + $0x1c0] sm:$0xff]
      %v976 = vld [vmem:[%s5 + $0x1c8] sm:$0xff]
      %v977 = vld [vmem:[%s5 + $0x1d0] sm:$0xff]
      %v978 = vld [vmem:[%s5 + $0x1d8] sm:$0xff]
      %v979 = vld [vmem:[%s5 + $0x1e0] sm:$0xff]
      %v980 = vld [vmem:[%s5 + $0x1e8] sm:$0xff]
      %v981 = vld [vmem:[%s5 + $0x1f0] sm:$0xff]
      %v982 = vld [vmem:[%s5 + $0x1f8] sm:$0xff]
      %v984 = vsel %vm536, %v917, 0
      %v987 = vsel %vm536, %v918, 0
      %989 = vmatpush.msra.mxu0 0.0
      %990 = vmatpush.msra.mxu0 0.0
      %991 = vmatpush.msra.mxu0 0.0
      %992 = vmatpush.msra.mxu0 0.0
      %993 = vmatpush.msra.mxu0 0.0
      %994 = vmatpush.msra.mxu0 0.0
      %995 = vmatpush.msra.mxu0 0.0
      %996 = vmatpush.msra.mxu0 0.0
      %997 = vmatpush.msra.mxu0 %v975
      %998 = vmatpush.msra.mxu0 %v967
      %999 = vmatpush.msra.mxu0 %v959
      %1000 = vmatpush.msra.mxu0 %v951
      %1001 = vmatpush.msra.mxu0 %v943
      %1002 = vmatpush.msra.mxu0 %v935
      %1003 = vmatpush.msra.mxu0 %v927
      %1004 = vmatpush.msra.mxu0 %v919
      %1005 = vmatmul.f32.gmra.mxu0 %v984
      %v1006 = vpop.f32.mrf.mxu0
      %v1007 = vadd.f32 0.0, %v1006
      %1008 = vmatmul.f32.gmra.mxu0 %v987
      %v1009 = vpop.f32.mrf.mxu0
      %v1010 = vadd.f32 0.0, %v1009
      %1011 = vdwg.mxu0
      %1012 = vmatpush.msra.mxu0 0.0
      %1013 = vmatpush.msra.mxu0 0.0
      %1014 = vmatpush.msra.mxu0 0.0
      %1015 = vmatpush.msra.mxu0 0.0
      %1016 = vmatpush.msra.mxu0 0.0
      %1017 = vmatpush.msra.mxu0 0.0
      %1018 = vmatpush.msra.mxu0 0.0
      %1019 = vmatpush.msra.mxu0 0.0
      %1020 = vmatpush.msra.mxu0 %v976
      %1021 = vmatpush.msra.mxu0 %v968
      %1022 = vmatpush.msra.mxu0 %v960
      %1023 = vmatpush.msra.mxu0 %v952
      %1024 = vmatpush.msra.mxu0 %v944
      %1025 = vmatpush.msra.mxu0 %v936
      %1026 = vmatpush.msra.mxu0 %v928
      %1027 = vmatpush.msra.mxu0 %v920
      %1028 = vmatmul.f32.gmra.mxu0 %v984
      %v1029 = vpop.f32.mrf.mxu0
      %v1030 = vadd.f32 0.0, %v1029
      %1031 = vmatmul.f32.gmra.mxu0 %v987
      %v1032 = vpop.f32.mrf.mxu0
      %v1033 = vadd.f32 0.0, %v1032
      %1034 = vdwg.mxu0
      %1035 = vmatpush.msra.mxu0 0.0
      %1036 = vmatpush.msra.mxu0 0.0
      %1037 = vmatpush.msra.mxu0 0.0
      %1038 = vmatpush.msra.mxu0 0.0
      %1039 = vmatpush.msra.mxu0 0.0
      %1040 = vmatpush.msra.mxu0 0.0
      %1041 = vmatpush.msra.mxu0 0.0
      %1042 = vmatpush.msra.mxu0 0.0
      %1043 = vmatpush.msra.mxu0 %v977
      %1044 = vmatpush.msra.mxu0 %v969
      %1045 = vmatpush.msra.mxu0 %v961
      %1046 = vmatpush.msra.mxu0 %v953
      %1047 = vmatpush.msra.mxu0 %v945
      %1048 = vmatpush.msra.mxu0 %v937
      %1049 = vmatpush.msra.mxu0 %v929
      %1050 = vmatpush.msra.mxu0 %v921
      %1051 = vmatmul.f32.gmra.mxu0 %v984
      %v1052 = vpop.f32.mrf.mxu0
      %v1053 = vadd.f32 0.0, %v1052
      %1054 = vmatmul.f32.gmra.mxu0 %v987
      %v1055 = vpop.f32.mrf.mxu0
      %v1056 = vadd.f32 0.0, %v1055
      %1057 = vdwg.mxu0
      %1058 = vmatpush.msra.mxu0 0.0
      %1059 = vmatpush.msra.mxu0 0.0
      %1060 = vmatpush.msra.mxu0 0.0
      %1061 = vmatpush.msra.mxu0 0.0
      %1062 = vmatpush.msra.mxu0 0.0
      %1063 = vmatpush.msra.mxu0 0.0
      %1064 = vmatpush.msra.mxu0 0.0
      %1065 = vmatpush.msra.mxu0 0.0
      %1066 = vmatpush.msra.mxu0 %v978
      %1067 = vmatpush.msra.mxu0 %v970
      %1068 = vmatpush.msra.mxu0 %v962
      %1069 = vmatpush.msra.mxu0 %v954
      %1070 = vmatpush.msra.mxu0 %v946
      %1071 = vmatpush.msra.mxu0 %v938
      %1072 = vmatpush.msra.mxu0 %v930
      %1073 = vmatpush.msra.mxu0 %v922
      %1074 = vmatmul.f32.gmra.mxu0 %v984
      %v1075 = vpop.f32.mrf.mxu0
      %v1076 = vadd.f32 0.0, %v1075
      %1077 = vmatmul.f32.gmra.mxu0 %v987
      %v1078 = vpop.f32.mrf.mxu0
      %v1079 = vadd.f32 0.0, %v1078
      %1080 = vdwg.mxu0
      %1081 = vmatpush.msra.mxu0 0.0
      %1082 = vmatpush.msra.mxu0 0.0
      %1083 = vmatpush.msra.mxu0 0.0
      %1084 = vmatpush.msra.mxu0 0.0
      %1085 = vmatpush.msra.mxu0 0.0
      %1086 = vmatpush.msra.mxu0 0.0
      %1087 = vmatpush.msra.mxu0 0.0
      %1088 = vmatpush.msra.mxu0 0.0
      %1089 = vmatpush.msra.mxu0 %v979
      %1090 = vmatpush.msra.mxu0 %v971
      %1091 = vmatpush.msra.mxu0 %v963
      %1092 = vmatpush.msra.mxu0 %v955
      %1093 = vmatpush.msra.mxu0 %v947
      %1094 = vmatpush.msra.mxu0 %v939
      %1095 = vmatpush.msra.mxu0 %v931
      %1096 = vmatpush.msra.mxu0 %v923
      %1097 = vmatmul.f32.gmra.mxu0 %v984
      %v1098 = vpop.f32.mrf.mxu0
      %v1099 = vadd.f32 0.0, %v1098
      %1100 = vmatmul.f32.gmra.mxu0 %v987
      %v1101 = vpop.f32.mrf.mxu0
      %v1102 = vadd.f32 0.0, %v1101
      %1103 = vdwg.mxu0
      %1104 = vmatpush.msra.mxu0 0.0
      %1105 = vmatpush.msra.mxu0 0.0
      %1106 = vmatpush.msra.mxu0 0.0
      %1107 = vmatpush.msra.mxu0 0.0
      %1108 = vmatpush.msra.mxu0 0.0
      %1109 = vmatpush.msra.mxu0 0.0
      %1110 = vmatpush.msra.mxu0 0.0
      %1111 = vmatpush.msra.mxu0 0.0
      %1112 = vmatpush.msra.mxu0 %v980
      %1113 = vmatpush.msra.mxu0 %v972
      %1114 = vmatpush.msra.mxu0 %v964
      %1115 = vmatpush.msra.mxu0 %v956
      %1116 = vmatpush.msra.mxu0 %v948
      %1117 = vmatpush.msra.mxu0 %v940
      %1118 = vmatpush.msra.mxu0 %v932
      %1119 = vmatpush.msra.mxu0 %v924
      %1120 = vmatmul.f32.gmra.mxu0 %v984
      %v1121 = vpop.f32.mrf.mxu0
      %v1122 = vadd.f32 0.0, %v1121
      %1123 = vmatmul.f32.gmra.mxu0 %v987
      %v1124 = vpop.f32.mrf.mxu0
      %v1125 = vadd.f32 0.0, %v1124
      %1126 = vdwg.mxu0
      %1127 = vmatpush.msra.mxu0 0.0
      %1128 = vmatpush.msra.mxu0 0.0
      %1129 = vmatpush.msra.mxu0 0.0
      %1130 = vmatpush.msra.mxu0 0.0
      %1131 = vmatpush.msra.mxu0 0.0
      %1132 = vmatpush.msra.mxu0 0.0
      %1133 = vmatpush.msra.mxu0 0.0
      %1134 = vmatpush.msra.mxu0 0.0
      %1135 = vmatpush.msra.mxu0 %v981
      %1136 = vmatpush.msra.mxu0 %v973
      %1137 = vmatpush.msra.mxu0 %v965
      %1138 = vmatpush.msra.mxu0 %v957
      %1139 = vmatpush.msra.mxu0 %v949
      %1140 = vmatpush.msra.mxu0 %v941
      %1141 = vmatpush.msra.mxu0 %v933
      %1142 = vmatpush.msra.mxu0 %v925
      %1143 = vmatmul.f32.gmra.mxu0 %v984
      %v1144 = vpop.f32.mrf.mxu0
      %v1145 = vadd.f32 0.0, %v1144
      %1146 = vmatmul.f32.gmra.mxu0 %v987
      %v1147 = vpop.f32.mrf.mxu0
      %v1148 = vadd.f32 0.0, %v1147
      %1149 = vdwg.mxu0
      %1150 = vmatpush.msra.mxu0 0.0
      %1151 = vmatpush.msra.mxu0 0.0
      %1152 = vmatpush.msra.mxu0 0.0
      %1153 = vmatpush.msra.mxu0 0.0
      %1154 = vmatpush.msra.mxu0 0.0
      %1155 = vmatpush.msra.mxu0 0.0
      %1156 = vmatpush.msra.mxu0 0.0
      %1157 = vmatpush.msra.mxu0 0.0
      %1158 = vmatpush.msra.mxu0 %v982
      %1159 = vmatpush.msra.mxu0 %v974
      %1160 = vmatpush.msra.mxu0 %v966
      %1161 = vmatpush.msra.mxu0 %v958
      %1162 = vmatpush.msra.mxu0 %v950
      %1163 = vmatpush.msra.mxu0 %v942
      %1164 = vmatpush.msra.mxu0 %v934
      %1165 = vmatpush.msra.mxu0 %v926
      %1166 = vmatmul.f32.gmra.mxu0 %v984
      %v1167 = vpop.f32.mrf.mxu0
      %v1168 = vadd.f32 0.0, %v1167
      %1169 = vmatmul.f32.gmra.mxu0 %v987
      %v1170 = vpop.f32.mrf.mxu0
      %v1171 = vadd.f32 0.0, %v1170
      %1172 = vdwg.mxu0
      %v1173 = vadd.f32 %v751, %v1007
      %v1174 = vadd.f32 %v774, %v1030
      %v1175 = vadd.f32 %v797, %v1053
      %v1176 = vadd.f32 %v820, %v1076
      %v1177 = vadd.f32 %v843, %v1099
      %v1178 = vadd.f32 %v866, %v1122
      %v1179 = vadd.f32 %v889, %v1145
      %v1180 = vadd.f32 %v912, %v1168
      %v1181 = vadd.f32 %v754, %v1010
      %v1182 = vadd.f32 %v777, %v1033
      %v1183 = vadd.f32 %v800, %v1056
      %v1184 = vadd.f32 %v823, %v1079
      %v1185 = vadd.f32 %v846, %v1102
      %v1186 = vadd.f32 %v869, %v1125
      %v1187 = vadd.f32 %v892, %v1148
      %v1188 = vadd.f32 %v915, %v1171
      %v1189 = vld [vmem:[%s6] sm:$0xff]
      %v1191 = vperm.slane %v1189, 0
      %v1192 = vperm.slane %v1189, 1
      %v1193 = vperm.slane %v1189, 2
      %v1194 = vperm.slane %v1189, 3
      %v1195 = vperm.slane %v1189, 4
      %v1196 = vperm.slane %v1189, 5
      %v1197 = vperm.slane %v1189, 6
      %v1198 = vperm.slane %v1189, 7
      %v1207 = vmul.f32 %v1173, %v1191
      %v1208 = vmul.f32 %v1174, %v1192
      %v1209 = vmul.f32 %v1175, %v1193
      %v1210 = vmul.f32 %v1176, %v1194
      %v1211 = vmul.f32 %v1177, %v1195
      %v1212 = vmul.f32 %v1178, %v1196
      %v1213 = vmul.f32 %v1179, %v1197
      %v1214 = vmul.f32 %v1180, %v1198
      %v1215 = vmul.f32 %v1181, %v1191
      %v1216 = vmul.f32 %v1182, %v1192
      %v1217 = vmul.f32 %v1183, %v1193
      %v1218 = vmul.f32 %v1184, %v1194
      %v1219 = vmul.f32 %v1185, %v1195
      %v1220 = vmul.f32 %v1186, %v1196
      %v1221 = vmul.f32 %v1187, %v1197
      %v1222 = vmul.f32 %v1188, %v1198
      %v1223 = vld [vmem:[%s7] sm:$0xff]
      %v1225 = vperm.slane %v1223, 0
      %v1226 = vperm.slane %v1223, 1
      %v1227 = vperm.slane %v1223, 2
      %v1228 = vperm.slane %v1223, 3
      %v1229 = vperm.slane %v1223, 4
      %v1230 = vperm.slane %v1223, 5
      %v1231 = vperm.slane %v1223, 6
      %v1232 = vperm.slane %v1223, 7
      %v1241 = vadd.f32 %v1207, %v1225
      %v1242 = vadd.f32 %v1208, %v1226
      %v1243 = vadd.f32 %v1209, %v1227
      %v1244 = vadd.f32 %v1210, %v1228
      %v1245 = vadd.f32 %v1211, %v1229
      %v1246 = vadd.f32 %v1212, %v1230
      %v1247 = vadd.f32 %v1213, %v1231
      %v1248 = vadd.f32 %v1214, %v1232
      %v1249 = vadd.f32 %v1215, %v1225
      %v1250 = vadd.f32 %v1216, %v1226
      %v1251 = vadd.f32 %v1217, %v1227
      %v1252 = vadd.f32 %v1218, %v1228
      %v1253 = vadd.f32 %v1219, %v1229
      %v1254 = vadd.f32 %v1220, %v1230
      %v1255 = vadd.f32 %v1221, %v1231
      %v1256 = vadd.f32 %v1222, %v1232
      %vm1257 = vcmp.gt.f32.partialorder %v1241, 0.0
      %vm1258 = vcmp.gt.f32.partialorder %v1242, 0.0
      %vm1259 = vcmp.gt.f32.partialorder %v1243, 0.0
      %vm1260 = vcmp.gt.f32.partialorder %v1244, 0.0
      %vm1261 = vcmp.gt.f32.partialorder %v1245, 0.0
      %vm1262 = vcmp.gt.f32.partialorder %v1246, 0.0
      %vm1263 = vcmp.gt.f32.partialorder %v1247, 0.0
      %vm1264 = vcmp.gt.f32.partialorder %v1248, 0.0
      %vm1265 = vcmp.gt.f32.partialorder %v1249, 0.0
      %vm1266 = vcmp.gt.f32.partialorder %v1250, 0.0
      %vm1267 = vcmp.gt.f32.partialorder %v1251, 0.0
      %vm1268 = vcmp.gt.f32.partialorder %v1252, 0.0
      %vm1269 = vcmp.gt.f32.partialorder %v1253, 0.0
      %vm1270 = vcmp.gt.f32.partialorder %v1254, 0.0
      %vm1271 = vcmp.gt.f32.partialorder %v1255, 0.0
      %vm1272 = vcmp.gt.f32.partialorder %v1256, 0.0
      %v1273 = vmul.f32 %v1241, 0.2
      %v1274 = vmul.f32 %v1242, 0.2
      %v1275 = vmul.f32 %v1243, 0.2
      %v1276 = vmul.f32 %v1244, 0.2
      %v1277 = vmul.f32 %v1245, 0.2
      %v1278 = vmul.f32 %v1246, 0.2
      %v1279 = vmul.f32 %v1247, 0.2
      %v1280 = vmul.f32 %v1248, 0.2
      %v1281 = vmul.f32 %v1249, 0.2
      %v1282 = vmul.f32 %v1250, 0.2
      %v1283 = vmul.f32 %v1251, 0.2
      %v1284 = vmul.f32 %v1252, 0.2
      %v1285 = vmul.f32 %v1253, 0.2
      %v1286 = vmul.f32 %v1254, 0.2
      %v1287 = vmul.f32 %v1255, 0.2
      %v1288 = vmul.f32 %v1256, 0.2
      %v1289 = vsel %vm1257, %v1241, %v1273
      %v1290 = vsel %vm1258, %v1242, %v1274
      %v1291 = vsel %vm1259, %v1243, %v1275
      %v1292 = vsel %vm1260, %v1244, %v1276
      %v1293 = vsel %vm1261, %v1245, %v1277
      %v1294 = vsel %vm1262, %v1246, %v1278
      %v1295 = vsel %vm1263, %v1247, %v1279
      %v1296 = vsel %vm1264, %v1248, %v1280
      %v1297 = vsel %vm1265, %v1249, %v1281
      %v1298 = vsel %vm1266, %v1250, %v1282
      %v1299 = vsel %vm1267, %v1251, %v1283
      %v1300 = vsel %vm1268, %v1252, %v1284
      %v1301 = vsel %vm1269, %v1253, %v1285
      %v1302 = vsel %vm1270, %v1254, %v1286
      %v1303 = vsel %vm1271, %v1255, %v1287
      %v1304 = vsel %vm1272, %v1256, %v1288
      %p1305 = scmp.eq.s32.totalorder %s24, 0
      // Predicated region
      $region53: #{dgcnn_seg_forward.15} parent=51 // pred_check
        %p1306 = pneg %p1305
      $region54: #{dgcnn_seg_forward.15} parent=51 // pred_check_branch
        %1308 = sbr.rel (%p1306) target = $region56
      $region55: #{dgcnn_seg_forward.15} parent=51 // pred_region
        %1309 = vst [vmem:[%s403] sm:$0xff] -inf
      $region56: #{dgcnn_seg_forward.15} parent=51 // pred_fallthru
        _
      %v1310 = vld [vmem:[%s403] sm:$0xff]
      %v1311 = vmax.f32 %v1289, %v1297
      %v1312 = vrot.slane %v1311, 4
      %v1313 = vmax.f32 %v1311, %v1312
      %v1314 = vrot.slane %v1313, 2
      %v1315 = vmax.f32 %v1313, %v1314
      %v1316 = vrot.slane %v1315, 1
      %v1317 = vmax.f32 %v1315, %v1316
      %v1318 = vmax.f32 %v1290, %v1298
      %v1319 = vrot.slane %v1318, 4
      %v1320 = vmax.f32 %v1318, %v1319
      %v1321 = vrot.slane %v1320, 2
      %v1322 = vmax.f32 %v1320, %v1321
      %v1323 = vrot.slane %v1322, 1
      %v1324 = vmax.f32 %v1322, %v1323
      %v1325 = vmax.f32 %v1291, %v1299
      %v1326 = vrot.slane %v1325, 4
      %v1327 = vmax.f32 %v1325, %v1326
      %v1328 = vrot.slane %v1327, 2
      %v1329 = vmax.f32 %v1327, %v1328
      %v1330 = vrot.slane %v1329, 1
      %v1331 = vmax.f32 %v1329, %v1330
      %v1332 = vmax.f32 %v1292, %v1300
      %v1333 = vrot.slane %v1332, 4
      %v1334 = vmax.f32 %v1332, %v1333
      %v1335 = vrot.slane %v1334, 2
      %v1336 = vmax.f32 %v1334, %v1335
      %v1337 = vrot.slane %v1336, 1
      %v1338 = vmax.f32 %v1336, %v1337
      %v1339 = vmax.f32 %v1293, %v1301
      %v1340 = vrot.slane %v1339, 4
      %v1341 = vmax.f32 %v1339, %v1340
      %v1342 = vrot.slane %v1341, 2
      %v1343 = vmax.f32 %v1341, %v1342
      %v1344 = vrot.slane %v1343, 1
      %v1345 = vmax.f32 %v1343, %v1344
      %v1346 = vmax.f32 %v1294, %v1302
      %v1347 = vrot.slane %v1346, 4
      %v1348 = vmax.f32 %v1346, %v1347
      %v1349 = vrot.slane %v1348, 2
      %v1350 = vmax.f32 %v1348, %v1349
      %v1351 = vrot.slane %v1350, 1
      %v1352 = vmax.f32 %v1350, %v1351
      %v1353 = vmax.f32 %v1295, %v1303
      %v1354 = vrot.slane %v1353, 4
      %v1355 = vmax.f32 %v1353, %v1354
      %v1356 = vrot.slane %v1355, 2
      %v1357 = vmax.f32 %v1355, %v1356
      %v1358 = vrot.slane %v1357, 1
      %v1359 = vmax.f32 %v1357, %v1358
      %v1360 = vmax.f32 %v1296, %v1304
      %v1361 = vrot.slane %v1360, 4
      %v1362 = vmax.f32 %v1360, %v1361
      %v1363 = vrot.slane %v1362, 2
      %v1364 = vmax.f32 %v1362, %v1363
      %v1365 = vrot.slane %v1364, 1
      %v1366 = vmax.f32 %v1364, %v1365
      %v1375 = vrot.slane %v1324, 7
      %v1376 = vrot.slane %v1331, 6
      %v1377 = vrot.slane %v1338, 5
      %v1378 = vrot.slane %v1345, 4
      %v1379 = vrot.slane %v1352, 3
      %v1380 = vrot.slane %v1359, 2
      %v1381 = vrot.slane %v1366, 1
      %vm1382 = vcmask 1040384
      %v1383 = vsel %vm1382, %v1317, %v1375
      %vm1384 = vcmask 1042434
      %v1385 = vsel %vm1384, %v1376, %v1377
      %vm1386 = vcmask 1041408
      %v1387 = vsel %vm1386, %v1383, %v1385
      %vm1388 = vcmask 1044484
      %v1389 = vsel %vm1388, %v1378, %v1379
      %vm1390 = vcmask 1046534
      %v1391 = vsel %vm1390, %v1380, %v1381
      %vm1392 = vcmask 1045508
      %v1393 = vsel %vm1392, %v1389, %v1391
      %vm1394 = vcmask 1043456
      %v1395 = vsel %vm1394, %v1387, %v1393
      %v1397 = vmax.f32 %v1310, %v1395
      %1398 = vst [vmem:[%s403] sm:$0xff] %v1397
      %p1399 = scmp.lt.s32.totalorder %s23, 1
      %s1400 = scalar_select %p1399, %s23, 1
      %s1401 = smul.addr %s1400, 8
      %s1402 = scalar_lea.vmem %s8, %s1401
      // Predicated region
      $region57: #{dgcnn_seg_forward.15} parent=51 // pred_check
        %p1403 = pneg %p238
      $region58: #{dgcnn_seg_forward.15} parent=51 // pred_check_branch
        %1405 = sbr.rel (%p1403) target = $region60
      $region59: #{dgcnn_seg_forward.15} parent=51 // pred_region
        _
      $region60: #{dgcnn_seg_forward.15} parent=51 // pred_fallthru
        _
    $region52: #{dgcnn_seg_forward.15} parent=5 // pred_fallthru
      _
    %p1406 = scmp.le.s32.totalorder 2, %s14
    // Predicated region
    $region61: #{dgcnn_seg_forward.15} parent=5 // pred_check
      %p1407 = pneg %p1406
    $region62: #{dgcnn_seg_forward.15} parent=5 // pred_check_branch
      %1409 = sbr.rel (%p1407) target = $region64
    $region63: #{dgcnn_seg_forward.15} parent=5 // pred_region
      %s1410 = ssub.s32 %s14, 2
      // Predicated region
      $region65: #{dgcnn_seg_forward.15} parent=63 // pred_check
        %p1411 = pneg %p244
      $region66: #{dgcnn_seg_forward.15} parent=63 // pred_check_branch
        %1413 = sbr.rel (%p1411) target = $region68
      $region67: #{dgcnn_seg_forward.15} parent=63 // pred_region
        %p1414 = scmp.lt.s32.totalorder %s25, 1
        %s1415 = scalar_select %p1414, %s25, 1
        %s1416 = smul.addr %s1415, 8
        %s1417 = scalar_lea.vmem %s8, %s1416
      $region68: #{dgcnn_seg_forward.15} parent=63 // pred_fallthru
        _
    $region64: #{dgcnn_seg_forward.15} parent=5 // pred_fallthru
      _
  $region6: #{dgcnn_seg_forward.15} parent=0 // loop_footer
    %s18 = sadd.s32 1, %s14
  $region7: #{dgcnn_seg_forward.15} parent=0 // loop_footer_branch
    %13 = sbr.rel target = $region3
  $region8: #{dgcnn_seg_forward.15} parent=0 // loop_exit
    _

// kernel: dgcnn_seg_forward.17
$region0: #{dgcnn_seg_forward.17}
  #allocation0 [shape = 'u32[]', space=smem, size = 0x4, offset = 0x4, fixed_abs, tag = 'smem constant byte address 0x4 - core index']
  #allocation1 [shape = 'u32[72,128]{1,0:T(1,128)}', space=vmem, size = 0x9000, scoped, tag = 'internal scratch']
  %s0 = inlined_call_operand.vmem [shape: f32[2,80], index: 0, kind: input, shape index: {}]
  %s1 = inlined_call_operand.vmem [shape: f32[80,40], index: 1, kind: input, shape index: {}]
  %s2 = inlined_call_operand.hbm [shape: f32[2,40], index: 2, kind: output, shape index: {}]
  %s3 = sld [smem:[#allocation0]]
  $region18: #{dgcnn_seg_forward.17} parent=0
    _
  %s5 = ssub.s32 1, %s3
  %s6 = scalar_select 0, %s5, %s3
  $region1: #{dgcnn_seg_forward.17} parent=0
    #allocation2 [shape = 'u8[1024]{0}', space=vmem, size = 0x400, scoped, tag = 'output window, operand 0, single buffered']
    #allocation3 [shape = 's32[1]{0}', space=sflag, size = 0x4, scoped, tag = 'scoped memory for dgcnn_seg_forward.17']
    %7 = vsyncpa [#allocation3], 0
    // Predicated region
    $region2: #{dgcnn_seg_forward.17} parent=1 // pred_check
      _
    $region3: #{dgcnn_seg_forward.17} parent=1 // pred_check_branch
      %9 = sbr.rel (0) target = $region5
    $region4: #{dgcnn_seg_forward.17} parent=1 // pred_region
      _
    $region5: #{dgcnn_seg_forward.17} parent=1 // pred_fallthru
      _
    // Predicated region
    $region6: #{dgcnn_seg_forward.17} parent=1 // pred_check
      _
    $region7: #{dgcnn_seg_forward.17} parent=1 // pred_check_branch
      %11 = sbr.rel (0) target = $region9
    $region8: #{dgcnn_seg_forward.17} parent=1 // pred_region
      _
    $region9: #{dgcnn_seg_forward.17} parent=1 // pred_fallthru
      _
    %v12 = vld [vmem:[%s0] sm:$0x3]
    %v13 = vld [vmem:[%s1] sm:$0xff]
    %v14 = vld [vmem:[%s1 + $0x8] sm:$0xff]
    %v15 = vld [vmem:[%s1 + $0x10] sm:$0xff]
    %v16 = vld [vmem:[%s1 + $0x18] sm:$0xff]
    %v17 = vld [vmem:[%s1 + $0x20] sm:$0xff]
    %v18 = vld [vmem:[%s1 + $0x28] sm:$0xff]
    %v19 = vld [vmem:[%s1 + $0x30] sm:$0xff]
    %v20 = vld [vmem:[%s1 + $0x38] sm:$0xff]
    %v21 = vld [vmem:[%s1 + $0x40] sm:$0xff]
    %v22 = vld [vmem:[%s1 + $0x48] sm:$0xff]
    %vm23 = vcmask 654336
    %v25 = vsel %vm23, %v12, 0
    %27 = vmatpush.msra.mxu0 0.0
    %28 = vmatpush.msra.mxu0 0.0
    %29 = vmatpush.msra.mxu0 0.0
    %30 = vmatpush.msra.mxu0 0.0
    %31 = vmatpush.msra.mxu0 0.0
    %32 = vmatpush.msra.mxu0 0.0
    %33 = vmatpush.msra.mxu0 %v22
    %34 = vmatpush.msra.mxu0 %v21
    %35 = vmatpush.msra.mxu0 %v20
    %36 = vmatpush.msra.mxu0 %v19
    %37 = vmatpush.msra.mxu0 %v18
    %38 = vmatpush.msra.mxu0 %v17
    %39 = vmatpush.msra.mxu0 %v16
    %40 = vmatpush.msra.mxu0 %v15
    %41 = vmatpush.msra.mxu0 %v14
    %42 = vmatpush.msra.mxu0 %v13
    %43 = vmatmul.f32.gmra.mxu0 %v25
    %v44 = vpop.f32.mrf.mxu0
    %v45 = vadd.f32 0.0, %v44
    %46 = vdwg.mxu0
    %vm47 = vcmask 320512
    %48 = vst.msk [vmem:[#allocation2] sm:$0x3] %vm47, %v45
    // Predicated region
    $region10: #{dgcnn_seg_forward.17} parent=1 // pred_check
      _
    $region11: #{dgcnn_seg_forward.17} parent=1 // pred_check_branch
      %50 = sbr.rel (0) target = $region13
    $region12: #{dgcnn_seg_forward.17} parent=1 // pred_region
      %52 = vsyncadd [#allocation3], 0
      %s54 = sshll.u32 [#allocation2], 4
      %s55 = int_to_ptr.vmem [resolvable:$true] %s54
      %s56 = sshll.u32 %s2, 4
      %s57 = int_to_ptr.hbm [resolvable:$true] %s56
      %59 = dma.vmem_to_hbm [thread:$0]  %s55, 32, %s57, [#allocation3]
    $region13: #{dgcnn_seg_forward.17} parent=1 // pred_fallthru
      _
    // Predicated region
    $region14: #{dgcnn_seg_forward.17} parent=1 // pred_check
      _
    $region15: #{dgcnn_seg_forward.17} parent=1 // pred_check_branch
      %61 = sbr.rel (0) target = $region17
    $region16: #{dgcnn_seg_forward.17} parent=1 // pred_region
      %63 = dma.done [#allocation3], 32
    $region17: #{dgcnn_seg_forward.17} parent=1 // pred_fallthru
      _
    %64 = vsyncpa [#allocation3], 1

// kernel: dgcnn_seg_forward.16
$region0: #{dgcnn_seg_forward.16}
  #allocation0 [shape = 'u32[]', space=smem, size = 0x4, offset = 0x4, fixed_abs, tag = 'smem constant byte address 0x4 - core index']
  #allocation1 [shape = 'u32[72,128]{1,0:T(1,128)}', space=vmem, size = 0x9000, scoped, tag = 'internal scratch']
  %s0 = inlined_call_operand.vmem [shape: f32[2,16,64], index: 0, kind: input, shape index: {}]
  %s1 = inlined_call_operand.vmem [shape: f32[2,16,64], index: 1, kind: input, shape index: {}]
  %s2 = inlined_call_operand.vmem [shape: f32[2,16,64], index: 2, kind: input, shape index: {}]
  %s3 = inlined_call_operand.vmem [shape: f32[2,1,512], index: 3, kind: input, shape index: {}]
  %s4 = inlined_call_operand.vmem [shape: f32[64,512], index: 4, kind: input, shape index: {}]
  %s5 = inlined_call_operand.vmem [shape: f32[64,512], index: 5, kind: input, shape index: {}]
  %s6 = inlined_call_operand.vmem [shape: f32[64,512], index: 6, kind: input, shape index: {}]
  %s7 = inlined_call_operand.vmem [shape: f32[1,512], index: 7, kind: input, shape index: {}]
  %s8 = inlined_call_operand.vmem [shape: f32[512,256], index: 8, kind: input, shape index: {}]
  %s9 = inlined_call_operand.vmem [shape: f32[1,256], index: 9, kind: input, shape index: {}]
  %s10 = inlined_call_operand.vmem [shape: f32[1,256], index: 10, kind: input, shape index: {}]
  %s11 = inlined_call_operand.vmem [shape: f32[256,40], index: 11, kind: input, shape index: {}]
  %s12 = inlined_call_operand.hbm [shape: f32[2,16,256], index: 12, kind: output, shape index: {0}]
  %s13 = inlined_call_operand.vmem [shape: f32[2,1,256], index: 13, kind: output, shape index: {1}]
  %s14 = inlined_call_operand.vmem [shape: f32[2,1,256], index: 14, kind: output, shape index: {2}]
  %s15 = inlined_call_operand.vmem [shape: f32[2,1,40], index: 15, kind: output, shape index: {3}]
  %s16 = inlined_call_operand.vmem [shape: f32[2,1,40], index: 16, kind: output, shape index: {4}]
  %17 = xla_tuple %s12, %s13, %s14, %s15, %s16
  %s18 = sld [smem:[#allocation0]]
  $region117: #{dgcnn_seg_forward.16} parent=0
    _
  %s20 = ssub.s32 1, %s18
  %s21 = scalar_select 0, %s20, %s18
  $region1: #{dgcnn_seg_forward.16} parent=0
    #allocation2 [shape = 'u8[32768]{0}', space=vmem, size = 0x8000, scoped, tag = 'output window, operand 0']
    #allocation3 [shape = 's32[2]{0}', space=sflag, size = 0x8, scoped, tag = 'scoped memory for dgcnn_seg_forward.16']
    %22 = vsyncpa [#allocation3], 0
    %s23 = scalar_lea.sflag [#allocation3], 1
    %24 = vsyncpa %s23, 0
    loop: start=0, step=1, limit=4
    $region2: #{dgcnn_seg_forward.16} parent=1 // loop_pre_header
      _
    $region3: #{dgcnn_seg_forward.16} parent=1 // loop_header
      %s26 = sphi 0, %s30
      %p27 = scmp.ge.s32.totalorder %s26, 4
      %s33 = sphi 0, %s45
      %s34 = sphi 0, %s41
      %s35 = sphi 0, %s33
      %s36 = sphi 0, %s34
      %s37 = sphi 0, %s35
      %s38 = sphi 0, %s36
      %s50 = sphi 0, %s52
      %s53 = sphi 0, %s50
      %s54 = sphi 0, %s53
      %s70 = sphi 0, %s54
      %s78 = sphi 0, %s80
      %s81 = sphi 0, %s78
      %s82 = sphi 0, %s81
      %s98 = sphi 0, %s82
      %s106 = sphi 0, %s108
      %s109 = sphi 0, %s106
      %s110 = sphi 0, %s109
      %s126 = sphi 0, %s110
      %s132 = sphi 0, %s134
      %s135 = sphi 0, %s132
      %s136 = sphi 0, %s135
      %s152 = sphi 0, %s136
      %s156 = sphi 0, %s156
      %s158 = sphi 0, %s156
      %s159 = sphi 0, %s158
      %s173 = sphi 0, %s159
      %s177 = sphi 0, %s177
      %s179 = sphi 0, %s177
      %s180 = sphi 0, %s179
      %s194 = sphi 0, %s180
      %s198 = sphi 0, %s198
      %s200 = sphi 0, %s198
      %s201 = sphi 0, %s200
      %s215 = sphi 0, %s201
      %s219 = sphi 0, %s219
      %s221 = sphi 0, %s219
      %s222 = sphi 0, %s221
      %s236 = sphi 0, %s222
      %s240 = sphi 0, %s240
      %s242 = sphi 0, %s240
      %s243 = sphi 0, %s242
      %s257 = sphi 0, %s243
      %s261 = sphi 0, %s261
      %s263 = sphi 0, %s261
      %s264 = sphi 0, %s263
      %s278 = sphi 0, %s264
      %s282 = sphi 0, %s282
      %s284 = sphi 0, %s282
      %s285 = sphi 0, %s284
      %s299 = sphi 0, %s285
      %s303 = sphi 0, %s303
      %s305 = sphi 0, %s303
      %s306 = sphi 0, %s305
      %s320 = sphi 0, %s306
      %s328 = sphi 0, %s330
      %s331 = sphi 0, %s328
      %s332 = sphi 0, %s331
      %s348 = sphi 0, %s332
      %s354 = sphi 0, %s356
      %s357 = sphi 0, %s354
      %s358 = sphi 0, %s357
      %s374 = sphi 0, %s358
      %s380 = sphi 0, %s382
      %s383 = sphi 0, %s380
      %s384 = sphi 0, %s383
      %s400 = sphi 0, %s384
      %s406 = sphi 0, %s408
      %s409 = sphi 0, %s406
      %s410 = sphi 0, %s409
      %s426 = sphi 0, %s410
      %s432 = sphi 0, %s434
      %s435 = sphi 0, %s432
      %s436 = sphi 0, %s435
      %s452 = sphi 0, %s436
    $region4: #{dgcnn_seg_forward.16} parent=1 // loop_header_branch
      %29 = sbr.rel (%p27) target = $region8
    $region5: #{dgcnn_seg_forward.16} parent=1 // loop_body
      %s31 = ssub.s32 %s26, 1
      %s32 = ssub.s32 %s26, 2
      %s39 = sadd.s32 1, %s34
      %p40 = scmp.ge.s32.totalorder %s39, 1
      %s41 = scalar_select %p40, 0, %s39
      %s42 = sadd.s32 1, %s33
      %s43 = scalar_select %p40, %s42, %s33
      %p44 = scmp.ge.s32.totalorder %s43, 2
      %s45 = scalar_select %p44, 0, %s43
      %s46 = ssub.s32 %s33, %s45
      %s47 = ssub.s32 %s34, %s41
      %s48 = sor.u32 %s46, %s47
      %p49 = scmp.eq.s32.totalorder %s48, 0
      %s51 = sadd.s32 %s50, 1
      %s52 = scalar_select %p49, %s50, %s51
      %p55 = pneg %p49
      %p56 = scmp.eq.s32.totalorder %s26, 1
      %p57 = por %p55, %p56
      %p58 = scmp.ne.s32.totalorder %s50, %s53
      %p59 = scmp.eq.s32.totalorder %s26, 0
      %p60 = por %p58, %p59
      %p61 = scmp.ne.s32.totalorder %s50, %s53
      %p62 = scmp.eq.s32.totalorder %s31, 1
      %p63 = por %p61, %p62
      %p64 = scmp.ne.s32.totalorder %s53, %s54
      %p65 = scmp.eq.s32.totalorder %s31, 0
      %p66 = por %p64, %p65
      %p67 = scmp.ne.s32.totalorder %s53, %s54
      %p68 = scmp.eq.s32.totalorder %s32, 1
      %p69 = por %p67, %p68
      %p71 = scmp.ne.s32.totalorder %s54, %s70
      %p72 = scmp.eq.s32.totalorder %s32, 0
      %p73 = por %p71, %p72
      %s74 = ssub.s32 %s33, %s45
      %s75 = ssub.s32 %s34, %s41
      %s76 = sor.u32 %s74, %s75
      %p77 = scmp.eq.s32.totalorder %s76, 0
      %s79 = sadd.s32 %s78, 1
      %s80 = scalar_select %p77, %s78, %s79
      %p83 = pneg %p77
      %p84 = scmp.eq.s32.totalorder %s26, 1
      %p85 = por %p83, %p84
      %p86 = scmp.ne.s32.totalorder %s78, %s81
      %p87 = scmp.eq.s32.totalorder %s26, 0
      %p88 = por %p86, %p87
      %p89 = scmp.ne.s32.totalorder %s78, %s81
      %p90 = scmp.eq.s32.totalorder %s31, 1
      %p91 = por %p89, %p90
      %p92 = scmp.ne.s32.totalorder %s81, %s82
      %p93 = scmp.eq.s32.totalorder %s31, 0
      %p94 = por %p92, %p93
      %p95 = scmp.ne.s32.totalorder %s81, %s82
      %p96 = scmp.eq.s32.totalorder %s32, 1
      %p97 = por %p95, %p96
      %p99 = scmp.ne.s32.totalorder %s82, %s98
      %p100 = scmp.eq.s32.totalorder %s32, 0
      %p101 = por %p99, %p100
      %s102 = ssub.s32 %s33, %s45
      %s103 = ssub.s32 %s34, %s41
      %s104 = sor.u32 %s102, %s103
      %p105 = scmp.eq.s32.totalorder %s104, 0
      %s107 = sadd.s32 %s106, 1
      %s108 = scalar_select %p105, %s106, %s107
      %p111 = pneg %p105
      %p112 = scmp.eq.s32.totalorder %s26, 1
      %p113 = por %p111, %p112
      %p114 = scmp.ne.s32.totalorder %s106, %s109
      %p115 = scmp.eq.s32.totalorder %s26, 0
      %p116 = por %p114, %p115
      %p117 = scmp.ne.s32.totalorder %s106, %s109
      %p118 = scmp.eq.s32.totalorder %s31, 1
      %p119 = por %p117, %p118
      %p120 = scmp.ne.s32.totalorder %s109, %s110
      %p121 = scmp.eq.s32.totalorder %s31, 0
      %p122 = por %p120, %p121
      %p123 = scmp.ne.s32.totalorder %s109, %s110
      %p124 = scmp.eq.s32.totalorder %s32, 1
      %p125 = por %p123, %p124
      %p127 = scmp.ne.s32.totalorder %s110, %s126
      %p128 = scmp.eq.s32.totalorder %s32, 0
      %p129 = por %p127, %p128
      %s130 = ssub.s32 %s33, %s45
      %p131 = scmp.eq.s32.totalorder %s130, 0
      %s133 = sadd.s32 %s132, 1
      %s134 = scalar_select %p131, %s132, %s133
      %p137 = pneg %p131
      %p138 = scmp.eq.s32.totalorder %s26, 1
      %p139 = por %p137, %p138
      %p140 = scmp.ne.s32.totalorder %s132, %s135
      %p141 = scmp.eq.s32.totalorder %s26, 0
      %p142 = por %p140, %p141
      %p143 = scmp.ne.s32.totalorder %s132, %s135
      %p144 = scmp.eq.s32.totalorder %s31, 1
      %p145 = por %p143, %p144
      %p146 = scmp.ne.s32.totalorder %s135, %s136
      %p147 = scmp.eq.s32.totalorder %s31, 0
      %p148 = por %p146, %p147
      %p149 = scmp.ne.s32.totalorder %s135, %s136
      %p150 = scmp.eq.s32.totalorder %s32, 1
      %p151 = por %p149, %p150
      %p153 = scmp.ne.s32.totalorder %s136, %s152
      %p154 = scmp.eq.s32.totalorder %s32, 0
      %p155 = por %p153, %p154
      %s157 = sadd.s32 %s156, 1
      %p160 = scmp.eq.s32.totalorder %s26, 1
      %p161 = scmp.ne.s32.totalorder %s156, %s158
      %p162 = scmp.eq.s32.totalorder %s26, 0
      %p163 = por %p161, %p162
      %p164 = scmp.ne.s32.totalorder %s156, %s158
      %p165 = scmp.eq.s32.totalorder %s31, 1
      %p166 = por %p164, %p165
      %p167 = scmp.ne.s32.totalorder %s158, %s159
      %p168 = scmp.eq.s32.totalorder %s31, 0
      %p169 = por %p167, %p168
      %p170 = scmp.ne.s32.totalorder %s158, %s159
      %p171 = scmp.eq.s32.totalorder %s32, 1
      %p172 = por %p170, %p171
      %p174 = scmp.ne.s32.totalorder %s159, %s173
      %p175 = scmp.eq.s32.totalorder %s32, 0
      %p176 = por %p174, %p175
      %s178 = sadd.s32 %s177, 1
      %p181 = scmp.eq.s32.totalorder %s26, 1
      %p182 = scmp.ne.s32.totalorder %s177, %s179
      %p183 = scmp.eq.s32.totalorder %s26, 0
      %p184 = por %p182, %p183
      %p185 = scmp.ne.s32.totalorder %s177, %s179
      %p186 = scmp.eq.s32.totalorder %s31, 1
      %p187 = por %p185, %p186
      %p188 = scmp.ne.s32.totalorder %s179, %s180
      %p189 = scmp.eq.s32.totalorder %s31, 0
      %p190 = por %p188, %p189
      %p191 = scmp.ne.s32.totalorder %s179, %s180
      %p192 = scmp.eq.s32.totalorder %s32, 1
      %p193 = por %p191, %p192
      %p195 = scmp.ne.s32.totalorder %s180, %s194
      %p196 = scmp.eq.s32.totalorder %s32, 0
      %p197 = por %p195, %p196
      %s199 = sadd.s32 %s198, 1
      %p202 = scmp.eq.s32.totalorder %s26, 1
      %p203 = scmp.ne.s32.totalorder %s198, %s200
      %p204 = scmp.eq.s32.totalorder %s26, 0
      %p205 = por %p203, %p204
      %p206 = scmp.ne.s32.totalorder %s198, %s200
      %p207 = scmp.eq.s32.totalorder %s31, 1
      %p208 = por %p206, %p207
      %p209 = scmp.ne.s32.totalorder %s200, %s201
      %p210 = scmp.eq.s32.totalorder %s31, 0
      %p211 = por %p209, %p210
      %p212 = scmp.ne.s32.totalorder %s200, %s201
      %p213 = scmp.eq.s32.totalorder %s32, 1
      %p214 = por %p212, %p213
      %p216 = scmp.ne.s32.totalorder %s201, %s215
      %p217 = scmp.eq.s32.totalorder %s32, 0
      %p218 = por %p216, %p217
      %s220 = sadd.s32 %s219, 1
      %p223 = scmp.eq.s32.totalorder %s26, 1
      %p224 = scmp.ne.s32.totalorder %s219, %s221
      %p225 = scmp.eq.s32.totalorder %s26, 0
      %p226 = por %p224, %p225
      %p227 = scmp.ne.s32.totalorder %s219, %s221
      %p228 = scmp.eq.s32.totalorder %s31, 1
      %p229 = por %p227, %p228
      %p230 = scmp.ne.s32.totalorder %s221, %s222
      %p231 = scmp.eq.s32.totalorder %s31, 0
      %p232 = por %p230, %p231
      %p233 = scmp.ne.s32.totalorder %s221, %s222
      %p234 = scmp.eq.s32.totalorder %s32, 1
      %p235 = por %p233, %p234
      %p237 = scmp.ne.s32.totalorder %s222, %s236
      %p238 = scmp.eq.s32.totalorder %s32, 0
      %p239 = por %p237, %p238
      %s241 = sadd.s32 %s240, 1
      %p244 = scmp.eq.s32.totalorder %s26, 1
      %p245 = scmp.ne.s32.totalorder %s240, %s242
      %p246 = scmp.eq.s32.totalorder %s26, 0
      %p247 = por %p245, %p246
      %p248 = scmp.ne.s32.totalorder %s240, %s242
      %p249 = scmp.eq.s32.totalorder %s31, 1
      %p250 = por %p248, %p249
      %p251 = scmp.ne.s32.totalorder %s242, %s243
      %p252 = scmp.eq.s32.totalorder %s31, 0
      %p253 = por %p251, %p252
      %p254 = scmp.ne.s32.totalorder %s242, %s243
      %p255 = scmp.eq.s32.totalorder %s32, 1
      %p256 = por %p254, %p255
      %p258 = scmp.ne.s32.totalorder %s243, %s257
      %p259 = scmp.eq.s32.totalorder %s32, 0
      %p260 = por %p258, %p259
      %s262 = sadd.s32 %s261, 1
      %p265 = scmp.eq.s32.totalorder %s26, 1
      %p266 = scmp.ne.s32.totalorder %s261, %s263
      %p267 = scmp.eq.s32.totalorder %s26, 0
      %p268 = por %p266, %p267
      %p269 = scmp.ne.s32.totalorder %s261, %s263
      %p270 = scmp.eq.s32.totalorder %s31, 1
      %p271 = por %p269, %p270
      %p272 = scmp.ne.s32.totalorder %s263, %s264
      %p273 = scmp.eq.s32.totalorder %s31, 0
      %p274 = por %p272, %p273
      %p275 = scmp.ne.s32.totalorder %s263, %s264
      %p276 = scmp.eq.s32.totalorder %s32, 1
      %p277 = por %p275, %p276
      %p279 = scmp.ne.s32.totalorder %s264, %s278
      %p280 = scmp.eq.s32.totalorder %s32, 0
      %p281 = por %p279, %p280
      %s283 = sadd.s32 %s282, 1
      %p286 = scmp.eq.s32.totalorder %s26, 1
      %p287 = scmp.ne.s32.totalorder %s282, %s284
      %p288 = scmp.eq.s32.totalorder %s26, 0
      %p289 = por %p287, %p288
      %p290 = scmp.ne.s32.totalorder %s282, %s284
      %p291 = scmp.eq.s32.totalorder %s31, 1
      %p292 = por %p290, %p291
      %p293 = scmp.ne.s32.totalorder %s284, %s285
      %p294 = scmp.eq.s32.totalorder %s31, 0
      %p295 = por %p293, %p294
      %p296 = scmp.ne.s32.totalorder %s284, %s285
      %p297 = scmp.eq.s32.totalorder %s32, 1
      %p298 = por %p296, %p297
      %p300 = scmp.ne.s32.totalorder %s285, %s299
      %p301 = scmp.eq.s32.totalorder %s32, 0
      %p302 = por %p300, %p301
      %s304 = sadd.s32 %s303, 1
      %p307 = scmp.eq.s32.totalorder %s26, 1
      %p308 = scmp.ne.s32.totalorder %s303, %s305
      %p309 = scmp.eq.s32.totalorder %s26, 0
      %p310 = por %p308, %p309
      %p311 = scmp.ne.s32.totalorder %s303, %s305
      %p312 = scmp.eq.s32.totalorder %s31, 1
      %p313 = por %p311, %p312
      %p314 = scmp.ne.s32.totalorder %s305, %s306
      %p315 = scmp.eq.s32.totalorder %s31, 0
      %p316 = por %p314, %p315
      %p317 = scmp.ne.s32.totalorder %s305, %s306
      %p318 = scmp.eq.s32.totalorder %s32, 1
      %p319 = por %p317, %p318
      %p321 = scmp.ne.s32.totalorder %s306, %s320
      %p322 = scmp.eq.s32.totalorder %s32, 0
      %p323 = por %p321, %p322
      %s324 = ssub.s32 %s33, %s45
      %s325 = ssub.s32 %s34, %s41
      %s326 = sor.u32 %s324, %s325
      %p327 = scmp.eq.s32.totalorder %s326, 0
      %s329 = sadd.s32 %s328, 1
      %s330 = scalar_select %p327, %s328, %s329
      %p333 = pneg %p327
      %p334 = scmp.eq.s32.totalorder %s26, 1
      %p335 = por %p333, %p334
      %p336 = scmp.ne.s32.totalorder %s328, %s331
      %p337 = scmp.eq.s32.totalorder %s26, 0
      %p338 = por %p336, %p337
      %p339 = scmp.ne.s32.totalorder %s328, %s331
      %p340 = scmp.eq.s32.totalorder %s31, 1
      %p341 = por %p339, %p340
      %p342 = scmp.ne.s32.totalorder %s331, %s332
      %p343 = scmp.eq.s32.totalorder %s31, 0
      %p344 = por %p342, %p343
      %p345 = scmp.ne.s32.totalorder %s331, %s332
      %p346 = scmp.eq.s32.totalorder %s32, 1
      %p347 = por %p345, %p346
      %p349 = scmp.ne.s32.totalorder %s332, %s348
      %p350 = scmp.eq.s32.totalorder %s32, 0
      %p351 = por %p349, %p350
      %s352 = ssub.s32 %s33, %s45
      %p353 = scmp.eq.s32.totalorder %s352, 0
      %s355 = sadd.s32 %s354, 1
      %s356 = scalar_select %p353, %s354, %s355
      %p359 = pneg %p353
      %p360 = scmp.eq.s32.totalorder %s26, 1
      %p361 = por %p359, %p360
      %p362 = scmp.ne.s32.totalorder %s354, %s357
      %p363 = scmp.eq.s32.totalorder %s26, 0
      %p364 = por %p362, %p363
      %p365 = scmp.ne.s32.totalorder %s354, %s357
      %p366 = scmp.eq.s32.totalorder %s31, 1
      %p367 = por %p365, %p366
      %p368 = scmp.ne.s32.totalorder %s357, %s358
      %p369 = scmp.eq.s32.totalorder %s31, 0
      %p370 = por %p368, %p369
      %p371 = scmp.ne.s32.totalorder %s357, %s358
      %p372 = scmp.eq.s32.totalorder %s32, 1
      %p373 = por %p371, %p372
      %p375 = scmp.ne.s32.totalorder %s358, %s374
      %p376 = scmp.eq.s32.totalorder %s32, 0
      %p377 = por %p375, %p376
      %s378 = ssub.s32 %s33, %s45
      %p379 = scmp.eq.s32.totalorder %s378, 0
      %s381 = sadd.s32 %s380, 1
      %s382 = scalar_select %p379, %s380, %s381
      %p385 = pneg %p379
      %p386 = scmp.eq.s32.totalorder %s26, 1
      %p387 = por %p385, %p386
      %p388 = scmp.ne.s32.totalorder %s380, %s383
      %p389 = scmp.eq.s32.totalorder %s26, 0
      %p390 = por %p388, %p389
      %p391 = scmp.ne.s32.totalorder %s380, %s383
      %p392 = scmp.eq.s32.totalorder %s31, 1
      %p393 = por %p391, %p392
      %p394 = scmp.ne.s32.totalorder %s383, %s384
      %p395 = scmp.eq.s32.totalorder %s31, 0
      %p396 = por %p394, %p395
      %p397 = scmp.ne.s32.totalorder %s383, %s384
      %p398 = scmp.eq.s32.totalorder %s32, 1
      %p399 = por %p397, %p398
      %p401 = scmp.ne.s32.totalorder %s384, %s400
      %p402 = scmp.eq.s32.totalorder %s32, 0
      %p403 = por %p401, %p402
      %s404 = ssub.s32 %s33, %s45
      %p405 = scmp.eq.s32.totalorder %s404, 0
      %s407 = sadd.s32 %s406, 1
      %s408 = scalar_select %p405, %s406, %s407
      %p411 = pneg %p405
      %p412 = scmp.eq.s32.totalorder %s26, 1
      %p413 = por %p411, %p412
      %p414 = scmp.ne.s32.totalorder %s406, %s409
      %p415 = scmp.eq.s32.totalorder %s26, 0
      %p416 = por %p414, %p415
      %p417 = scmp.ne.s32.totalorder %s406, %s409
      %p418 = scmp.eq.s32.totalorder %s31, 1
      %p419 = por %p417, %p418
      %p420 = scmp.ne.s32.totalorder %s409, %s410
      %p421 = scmp.eq.s32.totalorder %s31, 0
      %p422 = por %p420, %p421
      %p423 = scmp.ne.s32.totalorder %s409, %s410
      %p424 = scmp.eq.s32.totalorder %s32, 1
      %p425 = por %p423, %p424
      %p427 = scmp.ne.s32.totalorder %s410, %s426
      %p428 = scmp.eq.s32.totalorder %s32, 0
      %p429 = por %p427, %p428
      %s430 = ssub.s32 %s33, %s45
      %p431 = scmp.eq.s32.totalorder %s430, 0
      %s433 = sadd.s32 %s432, 1
      %s434 = scalar_select %p431, %s432, %s433
      %p437 = pneg %p431
      %p438 = scmp.eq.s32.totalorder %s26, 1
      %p439 = por %p437, %p438
      %p440 = scmp.ne.s32.totalorder %s432, %s435
      %p441 = scmp.eq.s32.totalorder %s26, 0
      %p442 = por %p440, %p441
      %p443 = scmp.ne.s32.totalorder %s432, %s435
      %p444 = scmp.eq.s32.totalorder %s31, 1
      %p445 = por %p443, %p444
      %p446 = scmp.ne.s32.totalorder %s435, %s436
      %p447 = scmp.eq.s32.totalorder %s31, 0
      %p448 = por %p446, %p447
      %p449 = scmp.ne.s32.totalorder %s435, %s436
      %p450 = scmp.eq.s32.totalorder %s32, 1
      %p451 = por %p449, %p450
      %p453 = scmp.ne.s32.totalorder %s436, %s452
      %p454 = scmp.eq.s32.totalorder %s32, 0
      %p455 = por %p453, %p454
      %p456 = scmp.le.s32.totalorder 1, %s26
      %p457 = scmp.lt.s32.totalorder %s26, 3
      %p458 = pnand %p456, %p457
      %p459 = pneg %p458
      // Predicated region
      $region9: #{dgcnn_seg_forward.16} parent=5 // pred_check
        _
      $region10: #{dgcnn_seg_forward.16} parent=5 // pred_check_branch
        %461 = sbr.rel (%p458) target = $region12
      $region11: #{dgcnn_seg_forward.16} parent=5 // pred_region
        %s462 = ssub.s32 %s26, 1
        // Predicated region
        $region13: #{dgcnn_seg_forward.16} parent=11 // pred_check
          %p463 = pneg %p169
        $region14: #{dgcnn_seg_forward.16} parent=11 // pred_check_branch
          %465 = sbr.rel (%p463) target = $region16
        $region15: #{dgcnn_seg_forward.16} parent=11 // pred_region
          _
        $region16: #{dgcnn_seg_forward.16} parent=11 // pred_fallthru
          _
        // Predicated region
        $region17: #{dgcnn_seg_forward.16} parent=11 // pred_check
          %p466 = pneg %p190
        $region18: #{dgcnn_seg_forward.16} parent=11 // pred_check_branch
          %468 = sbr.rel (%p466) target = $region20
        $region19: #{dgcnn_seg_forward.16} parent=11 // pred_region
          _
        $region20: #{dgcnn_seg_forward.16} parent=11 // pred_fallthru
          _
        // Predicated region
        $region21: #{dgcnn_seg_forward.16} parent=11 // pred_check
          %p469 = pneg %p211
        $region22: #{dgcnn_seg_forward.16} parent=11 // pred_check_branch
          %471 = sbr.rel (%p469) target = $region24
        $region23: #{dgcnn_seg_forward.16} parent=11 // pred_region
          _
        $region24: #{dgcnn_seg_forward.16} parent=11 // pred_fallthru
          _
        // Predicated region
        $region25: #{dgcnn_seg_forward.16} parent=11 // pred_check
          %p472 = pneg %p232
        $region26: #{dgcnn_seg_forward.16} parent=11 // pred_check_branch
          %474 = sbr.rel (%p472) target = $region28
        $region27: #{dgcnn_seg_forward.16} parent=11 // pred_region
          _
        $region28: #{dgcnn_seg_forward.16} parent=11 // pred_fallthru
          _
        // Predicated region
        $region29: #{dgcnn_seg_forward.16} parent=11 // pred_check
          %p475 = pneg %p253
        $region30: #{dgcnn_seg_forward.16} parent=11 // pred_check_branch
          %477 = sbr.rel (%p475) target = $region32
        $region31: #{dgcnn_seg_forward.16} parent=11 // pred_region
          _
        $region32: #{dgcnn_seg_forward.16} parent=11 // pred_fallthru
          _
        // Predicated region
        $region33: #{dgcnn_seg_forward.16} parent=11 // pred_check
          %p478 = pneg %p274
        $region34: #{dgcnn_seg_forward.16} parent=11 // pred_check_branch
          %480 = sbr.rel (%p478) target = $region36
        $region35: #{dgcnn_seg_forward.16} parent=11 // pred_region
          _
        $region36: #{dgcnn_seg_forward.16} parent=11 // pred_fallthru
          _
        // Predicated region
        $region37: #{dgcnn_seg_forward.16} parent=11 // pred_check
          %p481 = pneg %p295
        $region38: #{dgcnn_seg_forward.16} parent=11 // pred_check_branch
          %483 = sbr.rel (%p481) target = $region40
        $region39: #{dgcnn_seg_forward.16} parent=11 // pred_region
          _
        $region40: #{dgcnn_seg_forward.16} parent=11 // pred_fallthru
          _
        // Predicated region
        $region41: #{dgcnn_seg_forward.16} parent=11 // pred_check
          %p484 = pneg %p316
        $region42: #{dgcnn_seg_forward.16} parent=11 // pred_check_branch
          %486 = sbr.rel (%p484) target = $region44
        $region43: #{dgcnn_seg_forward.16} parent=11 // pred_region
          _
        $region44: #{dgcnn_seg_forward.16} parent=11 // pred_fallthru
          _
      $region12: #{dgcnn_seg_forward.16} parent=5 // pred_fallthru
        _
      %p487 = scmp.lt.s32.totalorder %s26, 2
      // Predicated region
      $region45: #{dgcnn_seg_forward.16} parent=5 // pred_check
        %p488 = pneg %p487
      $region46: #{dgcnn_seg_forward.16} parent=5 // pred_check_branch
        %490 = sbr.rel (%p488) target = $region48
      $region47: #{dgcnn_seg_forward.16} parent=5 // pred_region
        // Predicated region
        $region49: #{dgcnn_seg_forward.16} parent=47 // pred_check
          %p491 = pneg %p60
        $region50: #{dgcnn_seg_forward.16} parent=47 // pred_check_branch
          %493 = sbr.rel (%p491) target = $region52
        $region51: #{dgcnn_seg_forward.16} parent=47 // pred_region
          %s494 = smul.u32 2, %s34
          %p495 = scmp.lt.s32.totalorder %s33, 1
          %s496 = scalar_select %p495, %s33, 1
          %p497 = scmp.lt.s32.totalorder %s494, 1
          %s498 = scalar_select %p497, %s494, 1
          %s499 = smul.addr %s496, 2
          %s500 = sadd.s32 %s498, %s499
          %s501 = smul.addr %s500, 8
          %s502 = scalar_lea.vmem %s0, %s501
          %s503 = smul.u32 2, %s34
        $region52: #{dgcnn_seg_forward.16} parent=47 // pred_fallthru
          _
        // Predicated region
        $region53: #{dgcnn_seg_forward.16} parent=47 // pred_check
          %p504 = pneg %p88
        $region54: #{dgcnn_seg_forward.16} parent=47 // pred_check_branch
          %506 = sbr.rel (%p504) target = $region56
        $region55: #{dgcnn_seg_forward.16} parent=47 // pred_region
          %s507 = smul.u32 2, %s34
          %p508 = scmp.lt.s32.totalorder %s33, 1
          %s509 = scalar_select %p508, %s33, 1
          %p510 = scmp.lt.s32.totalorder %s507, 1
          %s511 = scalar_select %p510, %s507, 1
          %s512 = smul.addr %s509, 2
          %s513 = sadd.s32 %s511, %s512
          %s514 = smul.addr %s513, 8
          %s515 = scalar_lea.vmem %s1, %s514
          %s516 = smul.u32 2, %s34
        $region56: #{dgcnn_seg_forward.16} parent=47 // pred_fallthru
          _
        // Predicated region
        $region57: #{dgcnn_seg_forward.16} parent=47 // pred_check
          %p517 = pneg %p116
        $region58: #{dgcnn_seg_forward.16} parent=47 // pred_check_branch
          %519 = sbr.rel (%p517) target = $region60
        $region59: #{dgcnn_seg_forward.16} parent=47 // pred_region
          %s520 = smul.u32 2, %s34
          %p521 = scmp.lt.s32.totalorder %s33, 1
          %s522 = scalar_select %p521, %s33, 1
          %p523 = scmp.lt.s32.totalorder %s520, 1
          %s524 = scalar_select %p523, %s520, 1
          %s525 = smul.addr %s522, 2
          %s526 = sadd.s32 %s524, %s525
          %s527 = smul.addr %s526, 8
          %s528 = scalar_lea.vmem %s2, %s527
          %s529 = smul.u32 2, %s34
        $region60: #{dgcnn_seg_forward.16} parent=47 // pred_fallthru
          _
        // Predicated region
        $region61: #{dgcnn_seg_forward.16} parent=47 // pred_check
          %p530 = pneg %p142
        $region62: #{dgcnn_seg_forward.16} parent=47 // pred_check_branch
          %532 = sbr.rel (%p530) target = $region64
        $region63: #{dgcnn_seg_forward.16} parent=47 // pred_region
          %p533 = scmp.lt.s32.totalorder %s33, 1
          %s534 = scalar_select %p533, %s33, 1
          %s535 = smul.addr %s534, 4
          %s536 = scalar_lea.vmem %s3, %s535
        $region64: #{dgcnn_seg_forward.16} parent=47 // pred_fallthru
          _
      $region48: #{dgcnn_seg_forward.16} parent=5 // pred_fallthru
        _
      %p537 = scmp.le.s32.totalorder 1, %s26
      %p538 = scmp.lt.s32.totalorder %s26, 3
      %p539 = pnand %p537, %p538
      %p540 = pneg %p539
      // Predicated region
      $region65: #{dgcnn_seg_forward.16} parent=5 // pred_check
        _
      $region66: #{dgcnn_seg_forward.16} parent=5 // pred_check_branch
        %542 = sbr.rel (%p539) target = $region68
      $region67: #{dgcnn_seg_forward.16} parent=5 // pred_region
        %s543 = ssub.s32 %s26, 1
        %s544 = smul.u32 2, %s36
        %p545 = scmp.lt.s32.totalorder %s35, 1
        %s546 = scalar_select %p545, %s35, 1
        %p547 = scmp.lt.s32.totalorder %s544, 1
        %s548 = scalar_select %p547, %s544, 1
        %s549 = smul.addr %s546, 2
        %s550 = sadd.s32 %s548, %s549
        %s551 = smul.addr %s550, 8
        %s552 = scalar_lea.vmem %s0, %s551
        %p553 = pneg %p66
        %p554 = pneg %p63
        %s555 = smul.u32 2, %s36
        %p556 = scmp.lt.s32.totalorder %s35, 1
        %s557 = scalar_select %p556, %s35, 1
        %p558 = scmp.lt.s32.totalorder %s555, 1
        %s559 = scalar_select %p558, %s555, 1
        %s560 = smul.addr %s557, 2
        %s561 = sadd.s32 %s559, %s560
        %s562 = smul.addr %s561, 8
        %s563 = scalar_lea.vmem %s1, %s562
        %p564 = pneg %p94
        %p565 = pneg %p91
        %s566 = smul.u32 2, %s36
        %p567 = scmp.lt.s32.totalorder %s35, 1
        %s568 = scalar_select %p567, %s35, 1
        %p569 = scmp.lt.s32.totalorder %s566, 1
        %s570 = scalar_select %p569, %s566, 1
        %s571 = smul.addr %s568, 2
        %s572 = sadd.s32 %s570, %s571
        %s573 = smul.addr %s572, 8
        %s574 = scalar_lea.vmem %s2, %s573
        %p575 = pneg %p122
        %p576 = pneg %p119
        %p577 = scmp.lt.s32.totalorder %s35, 1
        %s578 = scalar_select %p577, %s35, 1
        %s579 = smul.addr %s578, 4
        %s580 = scalar_lea.vmem %s3, %s579
        %p581 = pneg %p148
        %p582 = pneg %p145
        %p583 = pneg %p169
        %p584 = pneg %p166
        %p585 = pneg %p190
        %p586 = pneg %p187
        %p587 = pneg %p211
        %p588 = pneg %p208
        %p589 = pneg %p232
        %p590 = pneg %p229
        %p591 = pneg %p253
        %p592 = pneg %p250
        %p593 = pneg %p274
        %p594 = pneg %p271
        %p595 = pneg %p295
        %p596 = pneg %p292
        %p597 = pneg %p316
        %p598 = pneg %p313
        %p599 = pneg %p344
        %p600 = pneg %p341
        %s601 = sand.u32 %s331, 1
        %s602 = scalar_lea.sflag [#allocation3], %s601
        %s603 = sand.u32 %s331, 1
        %s604 = smul.addr %s603, 32
        %s605 = scalar_lea.vmem [#allocation2], %s604
        %p606 = pneg %p370
        %p607 = pneg %p367
        %p608 = scmp.lt.s32.totalorder %s35, 1
        %s609 = scalar_select %p608, %s35, 1
        %s610 = smul.addr %s609, 2
        %s611 = scalar_lea.vmem %s13, %s610
        %p612 = pneg %p396
        %p613 = pneg %p393
        %p614 = scmp.lt.s32.totalorder %s35, 1
        %s615 = scalar_select %p614, %s35, 1
        %s616 = smul.addr %s615, 2
        %s617 = scalar_lea.vmem %s14, %s616
        %p618 = pneg %p422
        %p619 = pneg %p419
        %p620 = scmp.lt.s32.totalorder %s35, 1
        %s621 = scalar_select %p620, %s35, 1
        %s622 = scalar_lea.vmem %s15, %s621
        %p623 = pneg %p448
        %p624 = pneg %p445
        %p625 = scmp.lt.s32.totalorder %s35, 1
        %s626 = scalar_select %p625, %s35, 1
        %s627 = scalar_lea.vmem %s16, %s626
        %s628 = smul.u32 2, %s36
        %p629 = scmp.lt.s32.totalorder %s35, 1
        %s630 = scalar_select %p629, %s35, 1
        %p631 = scmp.lt.s32.totalorder %s628, 1
        %s632 = scalar_select %p631, %s628, 1
        %s633 = smul.addr %s630, 2
        %s634 = sadd.s32 %s632, %s633
        %s635 = smul.addr %s634, 8
        %s636 = scalar_lea.vmem %s0, %s635
        %s637 = smul.u32 2, %s36
        %s638 = smul.u32 2, %s36
        %p639 = scmp.lt.s32.totalorder %s35, 1
        %s640 = scalar_select %p639, %s35, 1
        %p641 = scmp.lt.s32.totalorder %s638, 1
        %s642 = scalar_select %p641, %s638, 1
        %s643 = smul.addr %s640, 2
        %s644 = sadd.s32 %s642, %s643
        %s645 = smul.addr %s644, 8
        %s646 = scalar_lea.vmem %s1, %s645
        %s647 = smul.u32 2, %s36
        %s648 = smul.u32 2, %s36
        %p649 = scmp.lt.s32.totalorder %s35, 1
        %s650 = scalar_select %p649, %s35, 1
        %p651 = scmp.lt.s32.totalorder %s648, 1
        %s652 = scalar_select %p651, %s648, 1
        %s653 = smul.addr %s650, 2
        %s654 = sadd.s32 %s652, %s653
        %s655 = smul.addr %s654, 8
        %s656 = scalar_lea.vmem %s2, %s655
        %s657 = smul.u32 2, %s36
        %p658 = scmp.lt.s32.totalorder %s35, 1
        %s659 = scalar_select %p658, %s35, 1
        %s660 = smul.addr %s659, 4
        %s661 = scalar_lea.vmem %s3, %s660
        %s662 = smul.u32 2, %s36
        %p663 = scmp.lt.s32.totalorder %s35, 1
        %s664 = scalar_select %p663, %s35, 1
        %s665 = smul.addr %s664, 2
        %s666 = scalar_lea.vmem %s13, %s665
        %p667 = scmp.lt.s32.totalorder %s35, 1
        %s668 = scalar_select %p667, %s35, 1
        %s669 = smul.addr %s668, 2
        %s670 = scalar_lea.vmem %s14, %s669
        %p671 = scmp.lt.s32.totalorder %s35, 1
        %s672 = scalar_select %p671, %s35, 1
        %s673 = scalar_lea.vmem %s15, %s672
        %p674 = scmp.lt.s32.totalorder %s35, 1
        %s675 = scalar_select %p674, %s35, 1
        %s676 = scalar_lea.vmem %s16, %s675
        %v677 = vld [vmem:[%s636] sm:$0xff]
        %v678 = vld [vmem:[%s636 + $0x8] sm:$0xff]
        %v679 = vld [vmem:[%s4] sm:$0xff]
        %v680 = vld [vmem:[%s4 + $0x8] sm:$0xff]
        %v681 = vld [vmem:[%s4 + $0x10] sm:$0xff]
        %v682 = vld [vmem:[%s4 + $0x18] sm:$0xff]
        %v683 = vld [vmem:[%s4 + $0x20] sm:$0xff]
        %v684 = vld [vmem:[%s4 + $0x28] sm:$0xff]
        %v685 = vld [vmem:[%s4 + $0x30] sm:$0xff]
        %v686 = vld [vmem:[%s4 + $0x38] sm:$0xff]
        %v687 = vld [vmem:[%s4 + $0x40] sm:$0xff]
        %v688 = vld [vmem:[%s4 + $0x48] sm:$0xff]
        %v689 = vld [vmem:[%s4 + $0x50] sm:$0xff]
        %v690 = vld [vmem:[%s4 + $0x58] sm:$0xff]
        %v691 = vld [vmem:[%s4 + $0x60] sm:$0xff]
        %v692 = vld [vmem:[%s4 + $0x68] sm:$0xff]
        %v693 = vld [vmem:[%s4 + $0x70] sm:$0xff]
        %v694 = vld [vmem:[%s4 + $0x78] sm:$0xff]
        %v695 = vld [vmem:[%s4 + $0x80] sm:$0xff]
        %v696 = vld [vmem:[%s4 + $0x88] sm:$0xff]
        %v697 = vld [vmem:[%s4 + $0x90] sm:$0xff]
        %v698 = vld [vmem:[%s4 + $0x98] sm:$0xff]
        %v699 = vld [vmem:[%s4 + $0xa0] sm:$0xff]
        %v700 = vld [vmem:[%s4 + $0xa8] sm:$0xff]
        %v701 = vld [vmem:[%s4 + $0xb0] sm:$0xff]
        %v702 = vld [vmem:[%s4 + $0xb8] sm:$0xff]
        %v703 = vld [vmem:[%s4 + $0xc0] sm:$0xff]
        %v704 = vld [vmem:[%s4 + $0xc8] sm:$0xff]
        %v705 = vld [vmem:[%s4 + $0xd0] sm:$0xff]
        %v706 = vld [vmem:[%s4 + $0xd8] sm:$0xff]
        %v707 = vld [vmem:[%s4 + $0xe0] sm:$0xff]
        %v708 = vld [vmem:[%s4 + $0xe8] sm:$0xff]
        %v709 = vld [vmem:[%s4 + $0xf0] sm:$0xff]
        %v710 = vld [vmem:[%s4 + $0xf8] sm:$0xff]
        %v711 = vld [vmem:[%s646] sm:$0xff]
        %v712 = vld [vmem:[%s646 + $0x8] sm:$0xff]
        %v713 = vld [vmem:[%s5] sm:$0xff]
        %v714 = vld [vmem:[%s5 + $0x8] sm:$0xff]
        %v715 = vld [vmem:[%s5 + $0x10] sm:$0xff]
        %v716 = vld [vmem:[%s5 + $0x18] sm:$0xff]
        %v717 = vld [vmem:[%s5 + $0x20] sm:$0xff]
        %v718 = vld [vmem:[%s5 + $0x28] sm:$0xff]
        %v719 = vld [vmem:[%s5 + $0x30] sm:$0xff]
        %v720 = vld [vmem:[%s5 + $0x38] sm:$0xff]
        %v721 = vld [vmem:[%s5 + $0x40] sm:$0xff]
        %v722 = vld [vmem:[%s5 + $0x48] sm:$0xff]
        %v723 = vld [vmem:[%s5 + $0x50] sm:$0xff]
        %v724 = vld [vmem:[%s5 + $0x58] sm:$0xff]
        %v725 = vld [vmem:[%s5 + $0x60] sm:$0xff]
        %v726 = vld [vmem:[%s5 + $0x68] sm:$0xff]
        %v727 = vld [vmem:[%s5 + $0x70] sm:$0xff]
        %v728 = vld [vmem:[%s5 + $0x78] sm:$0xff]
        %v729 = vld [vmem:[%s5 + $0x80] sm:$0xff]
        %v730 = vld [vmem:[%s5 + $0x88] sm:$0xff]
        %v731 = vld [vmem:[%s5 + $0x90] sm:$0xff]
        %v732 = vld [vmem:[%s5 + $0x98] sm:$0xff]
        %v733 = vld [vmem:[%s5 + $0xa0] sm:$0xff]
        %v734 = vld [vmem:[%s5 + $0xa8] sm:$0xff]
        %v735 = vld [vmem:[%s5 + $0xb0] sm:$0xff]
        %v736 = vld [vmem:[%s5 + $0xb8] sm:$0xff]
        %v737 = vld [vmem:[%s5 + $0xc0] sm:$0xff]
        %v738 = vld [vmem:[%s5 + $0xc8] sm:$0xff]
        %v739 = vld [vmem:[%s5 + $0xd0] sm:$0xff]
        %v740 = vld [vmem:[%s5 + $0xd8] sm:$0xff]
        %v741 = vld [vmem:[%s5 + $0xe0] sm:$0xff]
        %v742 = vld [vmem:[%s5 + $0xe8] sm:$0xff]
        %v743 = vld [vmem:[%s5 + $0xf0] sm:$0xff]
        %v744 = vld [vmem:[%s5 + $0xf8] sm:$0xff]
        %vm745 = vcmask 523264
        %v747 = vsel %vm745, %v711, 0
        %v750 = vsel %vm745, %v712, 0
        %752 = vmatpush.msra.mxu0 0.0
        %753 = vmatpush.msra.mxu0 0.0
        %754 = vmatpush.msra.mxu0 0.0
        %755 = vmatpush.msra.mxu0 0.0
        %756 = vmatpush.msra.mxu0 0.0
        %757 = vmatpush.msra.mxu0 0.0
        %758 = vmatpush.msra.mxu0 0.0
        %759 = vmatpush.msra.mxu0 0.0
        %760 = vmatpush.msra.mxu0 %v741
        %761 = vmatpush.msra.mxu0 %v737
        %762 = vmatpush.msra.mxu0 %v733
        %763 = vmatpush.msra.mxu0 %v729
        %764 = vmatpush.msra.mxu0 %v725
        %765 = vmatpush.msra.mxu0 %v721
        %766 = vmatpush.msra.mxu0 %v717
        %767 = vmatpush.msra.mxu0 %v713
        %768 = vmatmul.f32.gmra.mxu0 %v747
        %v769 = vpop.f32.mrf.mxu0
        %v770 = vadd.f32 0.0, %v769
        %771 = vmatmul.f32.gmra.mxu0 %v750
        %v772 = vpop.f32.mrf.mxu0
        %v773 = vadd.f32 0.0, %v772
        %774 = vdwg.mxu0
        %775 = vmatpush.msra.mxu0 0.0
        %776 = vmatpush.msra.mxu0 0.0
        %777 = vmatpush.msra.mxu0 0.0
        %778 = vmatpush.msra.mxu0 0.0
        %779 = vmatpush.msra.mxu0 0.0
        %780 = vmatpush.msra.mxu0 0.0
        %781 = vmatpush.msra.mxu0 0.0
        %782 = vmatpush.msra.mxu0 0.0
        %783 = vmatpush.msra.mxu0 %v742
        %784 = vmatpush.msra.mxu0 %v738
        %785 = vmatpush.msra.mxu0 %v734
        %786 = vmatpush.msra.mxu0 %v730
        %787 = vmatpush.msra.mxu0 %v726
        %788 = vmatpush.msra.mxu0 %v722
        %789 = vmatpush.msra.mxu0 %v718
        %790 = vmatpush.msra.mxu0 %v714
        %791 = vmatmul.f32.gmra.mxu0 %v747
        %v792 = vpop.f32.mrf.mxu0
        %v793 = vadd.f32 0.0, %v792
        %794 = vmatmul.f32.gmra.mxu0 %v750
        %v795 = vpop.f32.mrf.mxu0
        %v796 = vadd.f32 0.0, %v795
        %797 = vdwg.mxu0
        %798 = vmatpush.msra.mxu0 0.0
        %799 = vmatpush.msra.mxu0 0.0
        %800 = vmatpush.msra.mxu0 0.0
        %801 = vmatpush.msra.mxu0 0.0
        %802 = vmatpush.msra.mxu0 0.0
        %803 = vmatpush.msra.mxu0 0.0
        %804 = vmatpush.msra.mxu0 0.0
        %805 = vmatpush.msra.mxu0 0.0
        %806 = vmatpush.msra.mxu0 %v743
        %807 = vmatpush.msra.mxu0 %v739
        %808 = vmatpush.msra.mxu0 %v735
        %809 = vmatpush.msra.mxu0 %v731
        %810 = vmatpush.msra.mxu0 %v727
        %811 = vmatpush.msra.mxu0 %v723
        %812 = vmatpush.msra.mxu0 %v719
        %813 = vmatpush.msra.mxu0 %v715
        %814 = vmatmul.f32.gmra.mxu0 %v747
        %v815 = vpop.f32.mrf.mxu0
        %v816 = vadd.f32 0.0, %v815
        %817 = vmatmul.f32.gmra.mxu0 %v750
        %v818 = vpop.f32.mrf.mxu0
        %v819 = vadd.f32 0.0, %v818
        %820 = vdwg.mxu0
        %821 = vmatpush.msra.mxu0 0.0
        %822 = vmatpush.msra.mxu0 0.0
        %823 = vmatpush.msra.mxu0 0.0
        %824 = vmatpush.msra.mxu0 0.0
        %825 = vmatpush.msra.mxu0 0.0
        %826 = vmatpush.msra.mxu0 0.0
        %827 = vmatpush.msra.mxu0 0.0
        %828 = vmatpush.msra.mxu0 0.0
        %829 = vmatpush.msra.mxu0 %v744
        %830 = vmatpush.msra.mxu0 %v740
        %831 = vmatpush.msra.mxu0 %v736
        %832 = vmatpush.msra.mxu0 %v732
        %833 = vmatpush.msra.mxu0 %v728
        %834 = vmatpush.msra.mxu0 %v724
        %835 = vmatpush.msra.mxu0 %v720
        %836 = vmatpush.msra.mxu0 %v716
        %837 = vmatmul.f32.gmra.mxu0 %v747
        %v838 = vpop.f32.mrf.mxu0
        %v839 = vadd.f32 0.0, %v838
        %840 = vmatmul.f32.gmra.mxu0 %v750
        %v841 = vpop.f32.mrf.mxu0
        %v842 = vadd.f32 0.0, %v841
        %843 = vdwg.mxu0
        %v845 = vsel %vm745, %v677, 0
        %v848 = vsel %vm745, %v678, 0
        %850 = vmatpush.msra.mxu0 0.0
        %851 = vmatpush.msra.mxu0 0.0
        %852 = vmatpush.msra.mxu0 0.0
        %853 = vmatpush.msra.mxu0 0.0
        %854 = vmatpush.msra.mxu0 0.0
        %855 = vmatpush.msra.mxu0 0.0
        %856 = vmatpush.msra.mxu0 0.0
        %857 = vmatpush.msra.mxu0 0.0
        %858 = vmatpush.msra.mxu0 %v707
        %859 = vmatpush.msra.mxu0 %v703
        %860 = vmatpush.msra.mxu0 %v699
        %861 = vmatpush.msra.mxu0 %v695
        %862 = vmatpush.msra.mxu0 %v691
        %863 = vmatpush.msra.mxu0 %v687
        %864 = vmatpush.msra.mxu0 %v683
        %865 = vmatpush.msra.mxu0 %v679
        %866 = vmatmul.f32.gmra.mxu0 %v845
        %v867 = vpop.f32.mrf.mxu0
        %v868 = vadd.f32 %v770, %v867
        %869 = vmatmul.f32.gmra.mxu0 %v848
        %v870 = vpop.f32.mrf.mxu0
        %v871 = vadd.f32 %v773, %v870
        %872 = vdwg.mxu0
        %873 = vmatpush.msra.mxu0 0.0
        %874 = vmatpush.msra.mxu0 0.0
        %875 = vmatpush.msra.mxu0 0.0
        %876 = vmatpush.msra.mxu0 0.0
        %877 = vmatpush.msra.mxu0 0.0
        %878 = vmatpush.msra.mxu0 0.0
        %879 = vmatpush.msra.mxu0 0.0
        %880 = vmatpush.msra.mxu0 0.0
        %881 = vmatpush.msra.mxu0 %v708
        %882 = vmatpush.msra.mxu0 %v704
        %883 = vmatpush.msra.mxu0 %v700
        %884 = vmatpush.msra.mxu0 %v696
        %885 = vmatpush.msra.mxu0 %v692
        %886 = vmatpush.msra.mxu0 %v688
        %887 = vmatpush.msra.mxu0 %v684
        %888 = vmatpush.msra.mxu0 %v680
        %889 = vmatmul.f32.gmra.mxu0 %v845
        %v890 = vpop.f32.mrf.mxu0
        %v891 = vadd.f32 %v793, %v890
        %892 = vmatmul.f32.gmra.mxu0 %v848
        %v893 = vpop.f32.mrf.mxu0
        %v894 = vadd.f32 %v796, %v893
        %895 = vdwg.mxu0
        %896 = vmatpush.msra.mxu0 0.0
        %897 = vmatpush.msra.mxu0 0.0
        %898 = vmatpush.msra.mxu0 0.0
        %899 = vmatpush.msra.mxu0 0.0
        %900 = vmatpush.msra.mxu0 0.0
        %901 = vmatpush.msra.mxu0 0.0
        %902 = vmatpush.msra.mxu0 0.0
        %903 = vmatpush.msra.mxu0 0.0
        %904 = vmatpush.msra.mxu0 %v709
        %905 = vmatpush.msra.mxu0 %v705
        %906 = vmatpush.msra.mxu0 %v701
        %907 = vmatpush.msra.mxu0 %v697
        %908 = vmatpush.msra.mxu0 %v693
        %909 = vmatpush.msra.mxu0 %v689
        %910 = vmatpush.msra.mxu0 %v685
        %911 = vmatpush.msra.mxu0 %v681
        %912 = vmatmul.f32.gmra.mxu0 %v845
        %v913 = vpop.f32.mrf.mxu0
        %v914 = vadd.f32 %v816, %v913
        %915 = vmatmul.f32.gmra.mxu0 %v848
        %v916 = vpop.f32.mrf.mxu0
        %v917 = vadd.f32 %v819, %v916
        %918 = vdwg.mxu0
        %919 = vmatpush.msra.mxu0 0.0
        %920 = vmatpush.msra.mxu0 0.0
        %921 = vmatpush.msra.mxu0 0.0
        %922 = vmatpush.msra.mxu0 0.0
        %923 = vmatpush.msra.mxu0 0.0
        %924 = vmatpush.msra.mxu0 0.0
        %925 = vmatpush.msra.mxu0 0.0
        %926 = vmatpush.msra.mxu0 0.0
        %927 = vmatpush.msra.mxu0 %v710
        %928 = vmatpush.msra.mxu0 %v706
        %929 = vmatpush.msra.mxu0 %v702
        %930 = vmatpush.msra.mxu0 %v698
        %931 = vmatpush.msra.mxu0 %v694
        %932 = vmatpush.msra.mxu0 %v690
        %933 = vmatpush.msra.mxu0 %v686
        %934 = vmatpush.msra.mxu0 %v682
        %935 = vmatmul.f32.gmra.mxu0 %v845
        %v936 = vpop.f32.mrf.mxu0
        %v937 = vadd.f32 %v839, %v936
        %938 = vmatmul.f32.gmra.mxu0 %v848
        %v939 = vpop.f32.mrf.mxu0
        %v940 = vadd.f32 %v842, %v939
        %941 = vdwg.mxu0
        %v942 = vld [vmem:[%s656] sm:$0xff]
        %v943 = vld [vmem:[%s656 + $0x8] sm:$0xff]
        %v944 = vld [vmem:[%s6] sm:$0xff]
        %v945 = vld [vmem:[%s6 + $0x8] sm:$0xff]
        %v946 = vld [vmem:[%s6 + $0x10] sm:$0xff]
        %v947 = vld [vmem:[%s6 + $0x18] sm:$0xff]
        %v948 = vld [vmem:[%s6 + $0x20] sm:$0xff]
        %v949 = vld [vmem:[%s6 + $0x28] sm:$0xff]
        %v950 = vld [vmem:[%s6 + $0x30] sm:$0xff]
        %v951 = vld [vmem:[%s6 + $0x38] sm:$0xff]
        %v952 = vld [vmem:[%s6 + $0x40] sm:$0xff]
        %v953 = vld [vmem:[%s6 + $0x48] sm:$0xff]
        %v954 = vld [vmem:[%s6 + $0x50] sm:$0xff]
        %v955 = vld [vmem:[%s6 + $0x58] sm:$0xff]
        %v956 = vld [vmem:[%s6 + $0x60] sm:$0xff]
        %v957 = vld [vmem:[%s6 + $0x68] sm:$0xff]
        %v958 = vld [vmem:[%s6 + $0x70] sm:$0xff]
        %v959 = vld [vmem:[%s6 + $0x78] sm:$0xff]
        %v960 = vld [vmem:[%s6 + $0x80] sm:$0xff]
        %v961 = vld [vmem:[%s6 + $0x88] sm:$0xff]
        %v962 = vld [vmem:[%s6 + $0x90] sm:$0xff]
        %v963 = vld [vmem:[%s6 + $0x98] sm:$0xff]
        %v964 = vld [vmem:[%s6 + $0xa0] sm:$0xff]
        %v965 = vld [vmem:[%s6 + $0xa8] sm:$0xff]
        %v966 = vld [vmem:[%s6 + $0xb0] sm:$0xff]
        %v967 = vld [vmem:[%s6 + $0xb8] sm:$0xff]
        %v968 = vld [vmem:[%s6 + $0xc0] sm:$0xff]
        %v969 = vld [vmem:[%s6 + $0xc8] sm:$0xff]
        %v970 = vld [vmem:[%s6 + $0xd0] sm:$0xff]
        %v971 = vld [vmem:[%s6 + $0xd8] sm:$0xff]
        %v972 = vld [vmem:[%s6 + $0xe0] sm:$0xff]
        %v973 = vld [vmem:[%s6 + $0xe8] sm:$0xff]
        %v974 = vld [vmem:[%s6 + $0xf0] sm:$0xff]
        %v975 = vld [vmem:[%s6 + $0xf8] sm:$0xff]
        %v977 = vsel %vm745, %v942, 0
        %v980 = vsel %vm745, %v943, 0
        %982 = vmatpush.msra.mxu0 0.0
        %983 = vmatpush.msra.mxu0 0.0
        %984 = vmatpush.msra.mxu0 0.0
        %985 = vmatpush.msra.mxu0 0.0
        %986 = vmatpush.msra.mxu0 0.0
        %987 = vmatpush.msra.mxu0 0.0
        %988 = vmatpush.msra.mxu0 0.0
        %989 = vmatpush.msra.mxu0 0.0
        %990 = vmatpush.msra.mxu0 %v972
        %991 = vmatpush.msra.mxu0 %v968
        %992 = vmatpush.msra.mxu0 %v964
        %993 = vmatpush.msra.mxu0 %v960
        %994 = vmatpush.msra.mxu0 %v956
        %995 = vmatpush.msra.mxu0 %v952
        %996 = vmatpush.msra.mxu0 %v948
        %997 = vmatpush.msra.mxu0 %v944
        %998 = vmatmul.f32.gmra.mxu0 %v977
        %v999 = vpop.f32.mrf.mxu0
        %v1000 = vadd.f32 0.0, %v999
        %1001 = vmatmul.f32.gmra.mxu0 %v980
        %v1002 = vpop.f32.mrf.mxu0
        %v1003 = vadd.f32 0.0, %v1002
        %1004 = vdwg.mxu0
        %1005 = vmatpush.msra.mxu0 0.0
        %1006 = vmatpush.msra.mxu0 0.0
        %1007 = vmatpush.msra.mxu0 0.0
        %1008 = vmatpush.msra.mxu0 0.0
        %1009 = vmatpush.msra.mxu0 0.0
        %1010 = vmatpush.msra.mxu0 0.0
        %1011 = vmatpush.msra.mxu0 0.0
        %1012 = vmatpush.msra.mxu0 0.0
        %1013 = vmatpush.msra.mxu0 %v973
        %1014 = vmatpush.msra.mxu0 %v969
        %1015 = vmatpush.msra.mxu0 %v965
        %1016 = vmatpush.msra.mxu0 %v961
        %1017 = vmatpush.msra.mxu0 %v957
        %1018 = vmatpush.msra.mxu0 %v953
        %1019 = vmatpush.msra.mxu0 %v949
        %1020 = vmatpush.msra.mxu0 %v945
        %1021 = vmatmul.f32.gmra.mxu0 %v977
        %v1022 = vpop.f32.mrf.mxu0
        %v1023 = vadd.f32 0.0, %v1022
        %1024 = vmatmul.f32.gmra.mxu0 %v980
        %v1025 = vpop.f32.mrf.mxu0
        %v1026 = vadd.f32 0.0, %v1025
        %1027 = vdwg.mxu0
        %1028 = vmatpush.msra.mxu0 0.0
        %1029 = vmatpush.msra.mxu0 0.0
        %1030 = vmatpush.msra.mxu0 0.0
        %1031 = vmatpush.msra.mxu0 0.0
        %1032 = vmatpush.msra.mxu0 0.0
        %1033 = vmatpush.msra.mxu0 0.0
        %1034 = vmatpush.msra.mxu0 0.0
        %1035 = vmatpush.msra.mxu0 0.0
        %1036 = vmatpush.msra.mxu0 %v974
        %1037 = vmatpush.msra.mxu0 %v970
        %1038 = vmatpush.msra.mxu0 %v966
        %1039 = vmatpush.msra.mxu0 %v962
        %1040 = vmatpush.msra.mxu0 %v958
        %1041 = vmatpush.msra.mxu0 %v954
        %1042 = vmatpush.msra.mxu0 %v950
        %1043 = vmatpush.msra.mxu0 %v946
        %1044 = vmatmul.f32.gmra.mxu0 %v977
        %v1045 = vpop.f32.mrf.mxu0
        %v1046 = vadd.f32 0.0, %v1045
        %1047 = vmatmul.f32.gmra.mxu0 %v980
        %v1048 = vpop.f32.mrf.mxu0
        %v1049 = vadd.f32 0.0, %v1048
        %1050 = vdwg.mxu0
        %1051 = vmatpush.msra.mxu0 0.0
        %1052 = vmatpush.msra.mxu0 0.0
        %1053 = vmatpush.msra.mxu0 0.0
        %1054 = vmatpush.msra.mxu0 0.0
        %1055 = vmatpush.msra.mxu0 0.0
        %1056 = vmatpush.msra.mxu0 0.0
        %1057 = vmatpush.msra.mxu0 0.0
        %1058 = vmatpush.msra.mxu0 0.0
        %1059 = vmatpush.msra.mxu0 %v975
        %1060 = vmatpush.msra.mxu0 %v971
        %1061 = vmatpush.msra.mxu0 %v967
        %1062 = vmatpush.msra.mxu0 %v963
        %1063 = vmatpush.msra.mxu0 %v959
        %1064 = vmatpush.msra.mxu0 %v955
        %1065 = vmatpush.msra.mxu0 %v951
        %1066 = vmatpush.msra.mxu0 %v947
        %1067 = vmatmul.f32.gmra.mxu0 %v977
        %v1068 = vpop.f32.mrf.mxu0
        %v1069 = vadd.f32 0.0, %v1068
        %1070 = vmatmul.f32.gmra.mxu0 %v980
        %v1071 = vpop.f32.mrf.mxu0
        %v1072 = vadd.f32 0.0, %v1071
        %1073 = vdwg.mxu0
        %v1074 = vadd.f32 %v868, %v1000
        %v1075 = vadd.f32 %v891, %v1023
        %v1076 = vadd.f32 %v914, %v1046
        %v1077 = vadd.f32 %v937, %v1069
        %v1078 = vadd.f32 %v871, %v1003
        %v1079 = vadd.f32 %v894, %v1026
        %v1080 = vadd.f32 %v917, %v1049
        %v1081 = vadd.f32 %v940, %v1072
        %v1082 = vld [vmem:[%s7] sm:$0xf]
        %v1084 = vperm.slane %v1082, 0
        %v1085 = vperm.slane %v1082, 1
        %v1086 = vperm.slane %v1082, 2
        %v1087 = vperm.slane %v1082, 3
        %v1092 = vmul.f32 %v1074, %v1084
        %v1093 = vmul.f32 %v1075, %v1085
        %v1094 = vmul.f32 %v1076, %v1086
        %v1095 = vmul.f32 %v1077, %v1087
        %v1096 = vmul.f32 %v1078, %v1084
        %v1097 = vmul.f32 %v1079, %v1085
        %v1098 = vmul.f32 %v1080, %v1086
        %v1099 = vmul.f32 %v1081, %v1087
        %v1100 = vld [vmem:[%s661] sm:$0xf]
        %v1102 = vperm.slane %v1100, 0
        %v1103 = vperm.slane %v1100, 1
        %v1104 = vperm.slane %v1100, 2
        %v1105 = vperm.slane %v1100, 3
        %v1110 = vadd.f32 %v1092, %v1102
        %v1111 = vadd.f32 %v1093, %v1103
        %v1112 = vadd.f32 %v1094, %v1104
        %v1113 = vadd.f32 %v1095, %v1105
        %v1114 = vadd.f32 %v1096, %v1102
        %v1115 = vadd.f32 %v1097, %v1103
        %v1116 = vadd.f32 %v1098, %v1104
        %v1117 = vadd.f32 %v1099, %v1105
        %vm1118 = vcmp.gt.f32.partialorder %v1110, 0.0
        %vm1119 = vcmp.gt.f32.partialorder %v1111, 0.0
        %vm1120 = vcmp.gt.f32.partialorder %v1112, 0.0
        %vm1121 = vcmp.gt.f32.partialorder %v1113, 0.0
        %vm1122 = vcmp.gt.f32.partialorder %v1114, 0.0
        %vm1123 = vcmp.gt.f32.partialorder %v1115, 0.0
        %vm1124 = vcmp.gt.f32.partialorder %v1116, 0.0
        %vm1125 = vcmp.gt.f32.partialorder %v1117, 0.0
        %v1126 = vmul.f32 %v1110, 0.2
        %v1127 = vmul.f32 %v1111, 0.2
        %v1128 = vmul.f32 %v1112, 0.2
        %v1129 = vmul.f32 %v1113, 0.2
        %v1130 = vmul.f32 %v1114, 0.2
        %v1131 = vmul.f32 %v1115, 0.2
        %v1132 = vmul.f32 %v1116, 0.2
        %v1133 = vmul.f32 %v1117, 0.2
        %v1134 = vsel %vm1118, %v1110, %v1126
        %v1135 = vsel %vm1119, %v1111, %v1127
        %v1136 = vsel %vm1120, %v1112, %v1128
        %v1137 = vsel %vm1121, %v1113, %v1129
        %v1138 = vsel %vm1122, %v1114, %v1130
        %v1139 = vsel %vm1123, %v1115, %v1131
        %v1140 = vsel %vm1124, %v1116, %v1132
        %v1141 = vsel %vm1125, %v1117, %v1133
        %v1142 = vld [vmem:[%s8] sm:$0xff]
        %v1143 = vld [vmem:[%s8 + $0x8] sm:$0xff]
        %v1144 = vld [vmem:[%s8 + $0x10] sm:$0xff]
        %v1145 = vld [vmem:[%s8 + $0x18] sm:$0xff]
        %v1146 = vld [vmem:[%s8 + $0x20] sm:$0xff]
        %v1147 = vld [vmem:[%s8 + $0x28] sm:$0xff]
        %v1148 = vld [vmem:[%s8 + $0x30] sm:$0xff]
        %v1149 = vld [vmem:[%s8 + $0x38] sm:$0xff]
        %v1150 = vld [vmem:[%s8 + $0x40] sm:$0xff]
        %v1151 = vld [vmem:[%s8 + $0x48] sm:$0xff]
        %v1152 = vld [vmem:[%s8 + $0x50] sm:$0xff]
        %v1153 = vld [vmem:[%s8 + $0x58] sm:$0xff]
        %v1154 = vld [vmem:[%s8 + $0x60] sm:$0xff]
        %v1155 = vld [vmem:[%s8 + $0x68] sm:$0xff]
        %v1156 = vld [vmem:[%s8 + $0x70] sm:$0xff]
        %v1157 = vld [vmem:[%s8 + $0x78] sm:$0xff]
        %v1158 = vld [vmem:[%s8 + $0x80] sm:$0xff]
        %v1159 = vld [vmem:[%s8 + $0x88] sm:$0xff]
        %v1160 = vld [vmem:[%s8 + $0x90] sm:$0xff]
        %v1161 = vld [vmem:[%s8 + $0x98] sm:$0xff]
        %v1162 = vld [vmem:[%s8 + $0xa0] sm:$0xff]
        %v1163 = vld [vmem:[%s8 + $0xa8] sm:$0xff]
        %v1164 = vld [vmem:[%s8 + $0xb0] sm:$0xff]
        %v1165 = vld [vmem:[%s8 + $0xb8] sm:$0xff]
        %v1166 = vld [vmem:[%s8 + $0xc0] sm:$0xff]
        %v1167 = vld [vmem:[%s8 + $0xc8] sm:$0xff]
        %v1168 = vld [vmem:[%s8 + $0xd0] sm:$0xff]
        %v1169 = vld [vmem:[%s8 + $0xd8] sm:$0xff]
        %v1170 = vld [vmem:[%s8 + $0xe0] sm:$0xff]
        %v1171 = vld [vmem:[%s8 + $0xe8] sm:$0xff]
        %v1172 = vld [vmem:[%s8 + $0xf0] sm:$0xff]
        %v1173 = vld [vmem:[%s8 + $0xf8] sm:$0xff]
        %v1174 = vld [vmem:[%s8 + $0x100] sm:$0xff]
        %v1175 = vld [vmem:[%s8 + $0x108] sm:$0xff]
        %v1176 = vld [vmem:[%s8 + $0x110] sm:$0xff]
        %v1177 = vld [vmem:[%s8 + $0x118] sm:$0xff]
        %v1178 = vld [vmem:[%s8 + $0x120] sm:$0xff]
        %v1179 = vld [vmem:[%s8 + $0x128] sm:$0xff]
        %v1180 = vld [vmem:[%s8 + $0x130] sm:$0xff]
        %v1181 = vld [vmem:[%s8 + $0x138] sm:$0xff]
        %v1182 = vld [vmem:[%s8 + $0x140] sm:$0xff]
        %v1183 = vld [vmem:[%s8 + $0x148] sm:$0xff]
        %v1184 = vld [vmem:[%s8 + $0x150] sm:$0xff]
        %v1185 = vld [vmem:[%s8 + $0x158] sm:$0xff]
        %v1186 = vld [vmem:[%s8 + $0x160] sm:$0xff]
        %v1187 = vld [vmem:[%s8 + $0x168] sm:$0xff]
        %v1188 = vld [vmem:[%s8 + $0x170] sm:$0xff]
        %v1189 = vld [vmem:[%s8 + $0x178] sm:$0xff]
        %v1190 = vld [vmem:[%s8 + $0x180] sm:$0xff]
        %v1191 = vld [vmem:[%s8 + $0x188] sm:$0xff]
        %v1192 = vld [vmem:[%s8 + $0x190] sm:$0xff]
        %v1193 = vld [vmem:[%s8 + $0x198] sm:$0xff]
        %v1194 = vld [vmem:[%s8 + $0x1a0] sm:$0xff]
        %v1195 = vld [vmem:[%s8 + $0x1a8] sm:$0xff]
        %v1196 = vld [vmem:[%s8 + $0x1b0] sm:$0xff]
        %v1197 = vld [vmem:[%s8 + $0x1b8] sm:$0xff]
        %v1198 = vld [vmem:[%s8 + $0x1c0] sm:$0xff]
        %v1199 = vld [vmem:[%s8 + $0x1c8] sm:$0xff]
        %v1200 = vld [vmem:[%s8 + $0x1d0] sm:$0xff]
        %v1201 = vld [vmem:[%s8 + $0x1d8] sm:$0xff]
        %v1202 = vld [vmem:[%s8 + $0x1e0] sm:$0xff]
        %v1203 = vld [vmem:[%s8 + $0x1e8] sm:$0xff]
        %v1204 = vld [vmem:[%s8 + $0x1f0] sm:$0xff]
        %v1205 = vld [vmem:[%s8 + $0x1f8] sm:$0xff]
        %v1206 = vld [vmem:[%s8 + $0x200] sm:$0xff]
        %v1207 = vld [vmem:[%s8 + $0x208] sm:$0xff]
        %v1208 = vld [vmem:[%s8 + $0x210] sm:$0xff]
        %v1209 = vld [vmem:[%s8 + $0x218] sm:$0xff]
        %v1210 = vld [vmem:[%s8 + $0x220] sm:$0xff]
        %v1211 = vld [vmem:[%s8 + $0x228] sm:$0xff]
        %v1212 = vld [vmem:[%s8 + $0x230] sm:$0xff]
        %v1213 = vld [vmem:[%s8 + $0x238] sm:$0xff]
        %v1214 = vld [vmem:[%s8 + $0x240] sm:$0xff]
        %v1215 = vld [vmem:[%s8 + $0x248] sm:$0xff]
        %v1216 = vld [vmem:[%s8 + $0x250] sm:$0xff]
        %v1217 = vld [vmem:[%s8 + $0x258] sm:$0xff]
        %v1218 = vld [vmem:[%s8 + $0x260] sm:$0xff]
        %v1219 = vld [vmem:[%s8 + $0x268] sm:$0xff]
        %v1220 = vld [vmem:[%s8 + $0x270] sm:$0xff]
        %v1221 = vld [vmem:[%s8 + $0x278] sm:$0xff]
        %v1222 = vld [vmem:[%s8 + $0x280] sm:$0xff]
        %v1223 = vld [vmem:[%s8 + $0x288] sm:$0xff]
        %v1224 = vld [vmem:[%s8 + $0x290] sm:$0xff]
        %v1225 = vld [vmem:[%s8 + $0x298] sm:$0xff]
        %v1226 = vld [vmem:[%s8 + $0x2a0] sm:$0xff]
        %v1227 = vld [vmem:[%s8 + $0x2a8] sm:$0xff]
        %v1228 = vld [vmem:[%s8 + $0x2b0] sm:$0xff]
        %v1229 = vld [vmem:[%s8 + $0x2b8] sm:$0xff]
        %v1230 = vld [vmem:[%s8 + $0x2c0] sm:$0xff]
        %v1231 = vld [vmem:[%s8 + $0x2c8] sm:$0xff]
        %v1232 = vld [vmem:[%s8 + $0x2d0] sm:$0xff]
        %v1233 = vld [vmem:[%s8 + $0x2d8] sm:$0xff]
        %v1234 = vld [vmem:[%s8 + $0x2e0] sm:$0xff]
        %v1235 = vld [vmem:[%s8 + $0x2e8] sm:$0xff]
        %v1236 = vld [vmem:[%s8 + $0x2f0] sm:$0xff]
        %v1237 = vld [vmem:[%s8 + $0x2f8] sm:$0xff]
        %v1238 = vld [vmem:[%s8 + $0x300] sm:$0xff]
        %v1239 = vld [vmem:[%s8 + $0x308] sm:$0xff]
        %v1240 = vld [vmem:[%s8 + $0x310] sm:$0xff]
        %v1241 = vld [vmem:[%s8 + $0x318] sm:$0xff]
        %v1242 = vld [vmem:[%s8 + $0x320] sm:$0xff]
        %v1243 = vld [vmem:[%s8 + $0x328] sm:$0xff]
        %v1244 = vld [vmem:[%s8 + $0x330] sm:$0xff]
        %v1245 = vld [vmem:[%s8 + $0x338] sm:$0xff]
        %v1246 = vld [vmem:[%s8 + $0x340] sm:$0xff]
        %v1247 = vld [vmem:[%s8 + $0x348] sm:$0xff]
        %v1248 = vld [vmem:[%s8 + $0x350] sm:$0xff]
        %v1249 = vld [vmem:[%s8 + $0x358] sm:$0xff]
        %v1250 = vld [vmem:[%s8 + $0x360] sm:$0xff]
        %v1251 = vld [vmem:[%s8 + $0x368] sm:$0xff]
        %v1252 = vld [vmem:[%s8 + $0x370] sm:$0xff]
        %v1253 = vld [vmem:[%s8 + $0x378] sm:$0xff]
        %v1254 = vld [vmem:[%s8 + $0x380] sm:$0xff]
        %v1255 = vld [vmem:[%s8 + $0x388] sm:$0xff]
        %v1256 = vld [vmem:[%s8 + $0x390] sm:$0xff]
        %v1257 = vld [vmem:[%s8 + $0x398] sm:$0xff]
        %v1258 = vld [vmem:[%s8 + $0x3a0] sm:$0xff]
        %v1259 = vld [vmem:[%s8 + $0x3a8] sm:$0xff]
        %v1260 = vld [vmem:[%s8 + $0x3b0] sm:$0xff]
        %v1261 = vld [vmem:[%s8 + $0x3b8] sm:$0xff]
        %v1262 = vld [vmem:[%s8 + $0x3c0] sm:$0xff]
        %v1263 = vld [vmem:[%s8 + $0x3c8] sm:$0xff]
        %v1264 = vld [vmem:[%s8 + $0x3d0] sm:$0xff]
        %v1265 = vld [vmem:[%s8 + $0x3d8] sm:$0xff]
        %v1266 = vld [vmem:[%s8 + $0x3e0] sm:$0xff]
        %v1267 = vld [vmem:[%s8 + $0x3e8] sm:$0xff]
        %v1268 = vld [vmem:[%s8 + $0x3f0] sm:$0xff]
        %v1269 = vld [vmem:[%s8 + $0x3f8] sm:$0xff]
        %1270 = vmatpush.msra.mxu0 %v1172
        %1271 = vmatpush.msra.mxu0 %v1170
        %1272 = vmatpush.msra.mxu0 %v1168
        %1273 = vmatpush.msra.mxu0 %v1166
        %1274 = vmatpush.msra.mxu0 %v1164
        %1275 = vmatpush.msra.mxu0 %v1162
        %1276 = vmatpush.msra.mxu0 %v1160
        %1277 = vmatpush.msra.mxu0 %v1158
        %1278 = vmatpush.msra.mxu0 %v1156
        %1279 = vmatpush.msra.mxu0 %v1154
        %1280 = vmatpush.msra.mxu0 %v1152
        %1281 = vmatpush.msra.mxu0 %v1150
        %1282 = vmatpush.msra.mxu0 %v1148
        %1283 = vmatpush.msra.mxu0 %v1146
        %1284 = vmatpush.msra.mxu0 %v1144
        %1285 = vmatpush.msra.mxu0 %v1142
        %1286 = vmatmul.f32.gmra.mxu0 %v1134
        %v1287 = vpop.f32.mrf.mxu0
        %v1288 = vadd.f32 0.0, %v1287
        %1289 = vmatmul.f32.gmra.mxu0 %v1138
        %v1290 = vpop.f32.mrf.mxu0
        %v1291 = vadd.f32 0.0, %v1290
        %1292 = vdwg.mxu0
        %1293 = vmatpush.msra.mxu0 %v1204
        %1294 = vmatpush.msra.mxu0 %v1202
        %1295 = vmatpush.msra.mxu0 %v1200
        %1296 = vmatpush.msra.mxu0 %v1198
        %1297 = vmatpush.msra.mxu0 %v1196
        %1298 = vmatpush.msra.mxu0 %v1194
        %1299 = vmatpush.msra.mxu0 %v1192
        %1300 = vmatpush.msra.mxu0 %v1190
        %1301 = vmatpush.msra.mxu0 %v1188
        %1302 = vmatpush.msra.mxu0 %v1186
        %1303 = vmatpush.msra.mxu0 %v1184
        %1304 = vmatpush.msra.mxu0 %v1182
        %1305 = vmatpush.msra.mxu0 %v1180
        %1306 = vmatpush.msra.mxu0 %v1178
        %1307 = vmatpush.msra.mxu0 %v1176
        %1308 = vmatpush.msra.mxu0 %v1174
        %1309 = vmatmul.f32.gmra.mxu0 %v1135
        %v1310 = vpop.f32.mrf.mxu0
        %v1311 = vadd.f32 %v1288, %v1310
        %1312 = vmatmul.f32.gmra.mxu0 %v1139
        %v1313 = vpop.f32.mrf.mxu0
        %v1314 = vadd.f32 %v1291, %v1313
        %1315 = vdwg.mxu0
        %1316 = vmatpush.msra.mxu0 %v1236
        %1317 = vmatpush.msra.mxu0 %v1234
        %1318 = vmatpush.msra.mxu0 %v1232
        %1319 = vmatpush.msra.mxu0 %v1230
        %1320 = vmatpush.msra.mxu0 %v1228
        %1321 = vmatpush.msra.mxu0 %v1226
        %1322 = vmatpush.msra.mxu0 %v1224
        %1323 = vmatpush.msra.mxu0 %v1222
        %1324 = vmatpush.msra.mxu0 %v1220
        %1325 = vmatpush.msra.mxu0 %v1218
        %1326 = vmatpush.msra.mxu0 %v1216
        %1327 = vmatpush.msra.mxu0 %v1214
        %1328 = vmatpush.msra.mxu0 %v1212
        %1329 = vmatpush.msra.mxu0 %v1210
        %1330 = vmatpush.msra.mxu0 %v1208
        %1331 = vmatpush.msra.mxu0 %v1206
        %1332 = vmatmul.f32.gmra.mxu0 %v1136
        %v1333 = vpop.f32.mrf.mxu0
        %v1334 = vadd.f32 %v1311, %v1333
        %1335 = vmatmul.f32.gmra.mxu0 %v1140
        %v1336 = vpop.f32.mrf.mxu0
        %v1337 = vadd.f32 %v1314, %v1336
        %1338 = vdwg.mxu0
        %1339 = vmatpush.msra.mxu0 %v1268
        %1340 = vmatpush.msra.mxu0 %v1266
        %1341 = vmatpush.msra.mxu0 %v1264
        %1342 = vmatpush.msra.mxu0 %v1262
        %1343 = vmatpush.msra.mxu0 %v1260
        %1344 = vmatpush.msra.mxu0 %v1258
        %1345 = vmatpush.msra.mxu0 %v1256
        %1346 = vmatpush.msra.mxu0 %v1254
        %1347 = vmatpush.msra.mxu0 %v1252
        %1348 = vmatpush.msra.mxu0 %v1250
        %1349 = vmatpush.msra.mxu0 %v1248
        %1350 = vmatpush.msra.mxu0 %v1246
        %1351 = vmatpush.msra.mxu0 %v1244
        %1352 = vmatpush.msra.mxu0 %v1242
        %1353 = vmatpush.msra.mxu0 %v1240
        %1354 = vmatpush.msra.mxu0 %v1238
        %1355 = vmatmul.f32.gmra.mxu0 %v1137
        %v1356 = vpop.f32.mrf.mxu0
        %v1357 = vadd.f32 %v1334, %v1356
        %1358 = vmatmul.f32.gmra.mxu0 %v1141
        %v1359 = vpop.f32.mrf.mxu0
        %v1360 = vadd.f32 %v1337, %v1359
        %1361 = vdwg.mxu0
        %1362 = vmatpush.msra.mxu0 %v1173
        %1363 = vmatpush.msra.mxu0 %v1171
        %1364 = vmatpush.msra.mxu0 %v1169
        %1365 = vmatpush.msra.mxu0 %v1167
        %1366 = vmatpush.msra.mxu0 %v1165
        %1367 = vmatpush.msra.mxu0 %v1163
        %1368 = vmatpush.msra.mxu0 %v1161
        %1369 = vmatpush.msra.mxu0 %v1159
        %1370 = vmatpush.msra.mxu0 %v1157
        %1371 = vmatpush.msra.mxu0 %v1155
        %1372 = vmatpush.msra.mxu0 %v1153
        %1373 = vmatpush.msra.mxu0 %v1151
        %1374 = vmatpush.msra.mxu0 %v1149
        %1375 = vmatpush.msra.mxu0 %v1147
        %1376 = vmatpush.msra.mxu0 %v1145
        %1377 = vmatpush.msra.mxu0 %v1143
        %1378 = vmatmul.f32.gmra.mxu0 %v1134
        %v1379 = vpop.f32.mrf.mxu0
        %v1380 = vadd.f32 0.0, %v1379
        %1381 = vmatmul.f32.gmra.mxu0 %v1138
        %v1382 = vpop.f32.mrf.mxu0
        %v1383 = vadd.f32 0.0, %v1382
        %1384 = vdwg.mxu0
        %1385 = vmatpush.msra.mxu0 %v1205
        %1386 = vmatpush.msra.mxu0 %v1203
        %1387 = vmatpush.msra.mxu0 %v1201
        %1388 = vmatpush.msra.mxu0 %v1199
        %1389 = vmatpush.msra.mxu0 %v1197
        %1390 = vmatpush.msra.mxu0 %v1195
        %1391 = vmatpush.msra.mxu0 %v1193
        %1392 = vmatpush.msra.mxu0 %v1191
        %1393 = vmatpush.msra.mxu0 %v1189
        %1394 = vmatpush.msra.mxu0 %v1187
        %1395 = vmatpush.msra.mxu0 %v1185
        %1396 = vmatpush.msra.mxu0 %v1183
        %1397 = vmatpush.msra.mxu0 %v1181
        %1398 = vmatpush.msra.mxu0 %v1179
        %1399 = vmatpush.msra.mxu0 %v1177
        %1400 = vmatpush.msra.mxu0 %v1175
        %1401 = vmatmul.f32.gmra.mxu0 %v1135
        %v1402 = vpop.f32.mrf.mxu0
        %v1403 = vadd.f32 %v1380, %v1402
        %1404 = vmatmul.f32.gmra.mxu0 %v1139
        %v1405 = vpop.f32.mrf.mxu0
        %v1406 = vadd.f32 %v1383, %v1405
        %1407 = vdwg.mxu0
        %1408 = vmatpush.msra.mxu0 %v1237
        %1409 = vmatpush.msra.mxu0 %v1235
        %1410 = vmatpush.msra.mxu0 %v1233
        %1411 = vmatpush.msra.mxu0 %v1231
        %1412 = vmatpush.msra.mxu0 %v1229
        %1413 = vmatpush.msra.mxu0 %v1227
        %1414 = vmatpush.msra.mxu0 %v1225
        %1415 = vmatpush.msra.mxu0 %v1223
        %1416 = vmatpush.msra.mxu0 %v1221
        %1417 = vmatpush.msra.mxu0 %v1219
        %1418 = vmatpush.msra.mxu0 %v1217
        %1419 = vmatpush.msra.mxu0 %v1215
        %1420 = vmatpush.msra.mxu0 %v1213
        %1421 = vmatpush.msra.mxu0 %v1211
        %1422 = vmatpush.msra.mxu0 %v1209
        %1423 = vmatpush.msra.mxu0 %v1207
        %1424 = vmatmul.f32.gmra.mxu0 %v1136
        %v1425 = vpop.f32.mrf.mxu0
        %v1426 = vadd.f32 %v1403, %v1425
        %1427 = vmatmul.f32.gmra.mxu0 %v1140
        %v1428 = vpop.f32.mrf.mxu0
        %v1429 = vadd.f32 %v1406, %v1428
        %1430 = vdwg.mxu0
        %1431 = vmatpush.msra.mxu0 %v1269
        %1432 = vmatpush.msra.mxu0 %v1267
        %1433 = vmatpush.msra.mxu0 %v1265
        %1434 = vmatpush.msra.mxu0 %v1263
        %1435 = vmatpush.msra.mxu0 %v1261
        %1436 = vmatpush.msra.mxu0 %v1259
        %1437 = vmatpush.msra.mxu0 %v1257
        %1438 = vmatpush.msra.mxu0 %v1255
        %1439 = vmatpush.msra.mxu0 %v1253
        %1440 = vmatpush.msra.mxu0 %v1251
        %1441 = vmatpush.msra.mxu0 %v1249
        %1442 = vmatpush.msra.mxu0 %v1247
        %1443 = vmatpush.msra.mxu0 %v1245
        %1444 = vmatpush.msra.mxu0 %v1243
        %1445 = vmatpush.msra.mxu0 %v1241
        %1446 = vmatpush.msra.mxu0 %v1239
        %1447 = vmatmul.f32.gmra.mxu0 %v1137
        %v1448 = vpop.f32.mrf.mxu0
        %v1449 = vadd.f32 %v1426, %v1448
        %1450 = vmatmul.f32.gmra.mxu0 %v1141
        %v1451 = vpop.f32.mrf.mxu0
        %v1452 = vadd.f32 %v1429, %v1451
        %1453 = vdwg.mxu0
        %v1454 = vld [vmem:[%s9] sm:$0x3]
        %v1456 = vperm.slane %v1454, 0
        %v1457 = vperm.slane %v1454, 1
        %v1460 = vmul.f32 %v1357, %v1456
        %v1461 = vmul.f32 %v1449, %v1457
        %v1462 = vmul.f32 %v1360, %v1456
        %v1463 = vmul.f32 %v1452, %v1457
        %v1464 = vld [vmem:[%s10] sm:$0x3]
        %v1466 = vperm.slane %v1464, 0
        %v1467 = vperm.slane %v1464, 1
        %v1470 = vadd.f32 %v1460, %v1466
        %v1471 = vadd.f32 %v1461, %v1467
        %v1472 = vadd.f32 %v1462, %v1466
        %v1473 = vadd.f32 %v1463, %v1467
        %vm1474 = vcmp.gt.f32.partialorder %v1470, 0.0
        %vm1475 = vcmp.gt.f32.partialorder %v1471, 0.0
        %vm1476 = vcmp.gt.f32.partialorder %v1472, 0.0
        %vm1477 = vcmp.gt.f32.partialorder %v1473, 0.0
        %v1478 = vmul.f32 %v1470, 0.2
        %v1479 = vmul.f32 %v1471, 0.2
        %v1480 = vmul.f32 %v1472, 0.2
        %v1481 = vmul.f32 %v1473, 0.2
        %v1482 = vsel %vm1474, %v1470, %v1478
        %v1483 = vsel %vm1475, %v1471, %v1479
        %v1484 = vsel %vm1476, %v1472, %v1480
        %v1485 = vsel %vm1477, %v1473, %v1481
        %1486 = vst [vmem:[%s605] sm:$0xff] %v1482
        %1487 = vst [vmem:[%s605 + $0x8] sm:$0xff] %v1483
        %1488 = vst [vmem:[%s605 + $0x10] sm:$0xff] %v1484
        %1489 = vst [vmem:[%s605 + $0x18] sm:$0xff] %v1485
        %v1490 = vld [vmem:[%s11] sm:$0xff]
        %v1491 = vld [vmem:[%s11 + $0x8] sm:$0xff]
        %v1492 = vld [vmem:[%s11 + $0x10] sm:$0xff]
        %v1493 = vld [vmem:[%s11 + $0x18] sm:$0xff]
        %v1494 = vld [vmem:[%s11 + $0x20] sm:$0xff]
        %v1495 = vld [vmem:[%s11 + $0x28] sm:$0xff]
        %v1496 = vld [vmem:[%s11 + $0x30] sm:$0xff]
        %v1497 = vld [vmem:[%s11 + $0x38] sm:$0xff]
        %v1498 = vld [vmem:[%s11 + $0x40] sm:$0xff]
        %v1499 = vld [vmem:[%s11 + $0x48] sm:$0xff]
        %v1500 = vld [vmem:[%s11 + $0x50] sm:$0xff]
        %v1501 = vld [vmem:[%s11 + $0x58] sm:$0xff]
        %v1502 = vld [vmem:[%s11 + $0x60] sm:$0xff]
        %v1503 = vld [vmem:[%s11 + $0x68] sm:$0xff]
        %v1504 = vld [vmem:[%s11 + $0x70] sm:$0xff]
        %v1505 = vld [vmem:[%s11 + $0x78] sm:$0xff]
        %v1506 = vld [vmem:[%s11 + $0x80] sm:$0xff]
        %v1507 = vld [vmem:[%s11 + $0x88] sm:$0xff]
        %v1508 = vld [vmem:[%s11 + $0x90] sm:$0xff]
        %v1509 = vld [vmem:[%s11 + $0x98] sm:$0xff]
        %v1510 = vld [vmem:[%s11 + $0xa0] sm:$0xff]
        %v1511 = vld [vmem:[%s11 + $0xa8] sm:$0xff]
        %v1512 = vld [vmem:[%s11 + $0xb0] sm:$0xff]
        %v1513 = vld [vmem:[%s11 + $0xb8] sm:$0xff]
        %v1514 = vld [vmem:[%s11 + $0xc0] sm:$0xff]
        %v1515 = vld [vmem:[%s11 + $0xc8] sm:$0xff]
        %v1516 = vld [vmem:[%s11 + $0xd0] sm:$0xff]
        %v1517 = vld [vmem:[%s11 + $0xd8] sm:$0xff]
        %v1518 = vld [vmem:[%s11 + $0xe0] sm:$0xff]
        %v1519 = vld [vmem:[%s11 + $0xe8] sm:$0xff]
        %v1520 = vld [vmem:[%s11 + $0xf0] sm:$0xff]
        %v1521 = vld [vmem:[%s11 + $0xf8] sm:$0xff]
        %1522 = vmatpush.msra.mxu0 %v1505
        %1523 = vmatpush.msra.mxu0 %v1504
        %1524 = vmatpush.msra.mxu0 %v1503
        %1525 = vmatpush.msra.mxu0 %v1502
        %1526 = vmatpush.msra.mxu0 %v1501
        %1527 = vmatpush.msra.mxu0 %v1500
        %1528 = vmatpush.msra.mxu0 %v1499
        %1529 = vmatpush.msra.mxu0 %v1498
        %1530 = vmatpush.msra.mxu0 %v1497
        %1531 = vmatpush.msra.mxu0 %v1496
        %1532 = vmatpush.msra.mxu0 %v1495
        %1533 = vmatpush.msra.mxu0 %v1494
        %1534 = vmatpush.msra.mxu0 %v1493
        %1535 = vmatpush.msra.mxu0 %v1492
        %1536 = vmatpush.msra.mxu0 %v1491
        %1537 = vmatpush.msra.mxu0 %v1490
        %1538 = vmatmul.f32.gmra.mxu0 %v1482
        %v1539 = vpop.f32.mrf.mxu0
        %v1540 = vadd.f32 0.0, %v1539
        %1541 = vmatmul.f32.gmra.mxu0 %v1484
        %v1542 = vpop.f32.mrf.mxu0
        %v1543 = vadd.f32 0.0, %v1542
        %1544 = vdwg.mxu0
        %1545 = vmatpush.msra.mxu0 %v1521
        %1546 = vmatpush.msra.mxu0 %v1520
        %1547 = vmatpush.msra.mxu0 %v1519
        %1548 = vmatpush.msra.mxu0 %v1518
        %1549 = vmatpush.msra.mxu0 %v1517
        %1550 = vmatpush.msra.mxu0 %v1516
        %1551 = vmatpush.msra.mxu0 %v1515
        %1552 = vmatpush.msra.mxu0 %v1514
        %1553 = vmatpush.msra.mxu0 %v1513
        %1554 = vmatpush.msra.mxu0 %v1512
        %1555 = vmatpush.msra.mxu0 %v1511
        %1556 = vmatpush.msra.mxu0 %v1510
        %1557 = vmatpush.msra.mxu0 %v1509
        %1558 = vmatpush.msra.mxu0 %v1508
        %1559 = vmatpush.msra.mxu0 %v1507
        %1560 = vmatpush.msra.mxu0 %v1506
        %1561 = vmatmul.f32.gmra.mxu0 %v1483
        %v1562 = vpop.f32.mrf.mxu0
        %v1563 = vadd.f32 %v1540, %v1562
        %1564 = vmatmul.f32.gmra.mxu0 %v1485
        %v1565 = vpop.f32.mrf.mxu0
        %v1566 = vadd.f32 %v1543, %v1565
        %1567 = vdwg.mxu0
        %p1568 = scmp.eq.s32.totalorder %s36, 0
        // Predicated region
        $region69: #{dgcnn_seg_forward.16} parent=67 // pred_check
          %p1569 = pneg %p1568
        $region70: #{dgcnn_seg_forward.16} parent=67 // pred_check_branch
          %1571 = sbr.rel (%p1569) target = $region72
        $region71: #{dgcnn_seg_forward.16} parent=67 // pred_region
          %v1572 = vlaneseq
          %vm1573 = vcmp.ge.s32.totalorder %v1572, 0
          %vm1574 = vcmp.lt.s32.totalorder %v1572, 256
          %vm1575 = vmand %vm1573, %vm1574
          %1576 = vst.msk [vmem:[%s666] sm:$0x3] %vm1575, -inf
          %1577 = vst.msk [vmem:[%s670] sm:$0x3] %vm1575, 0.0
          %vm1578 = vcmask 319488
          %1579 = vst.msk [vmem:[%s673] sm:$0x1] %vm1578, -inf
          %1580 = vst.msk [vmem:[%s676] sm:$0x1] %vm1578, 0.0
        $region72: #{dgcnn_seg_forward.16} parent=67 // pred_fallthru
          _
        %v1581 = vld [vmem:[%s666] sm:$0x3]
        %v1582 = vmax.f32 %v1482, %v1484
        %v1583 = vrot.slane %v1582, 4
        %v1584 = vmax.f32 %v1582, %v1583
        %v1585 = vrot.slane %v1584, 2
        %v1586 = vmax.f32 %v1584, %v1585
        %v1587 = vrot.slane %v1586, 1
        %v1588 = vmax.f32 %v1586, %v1587
        %v1589 = vmax.f32 %v1483, %v1485
        %v1590 = vrot.slane %v1589, 4
        %v1591 = vmax.f32 %v1589, %v1590
        %v1592 = vrot.slane %v1591, 2
        %v1593 = vmax.f32 %v1591, %v1592
        %v1594 = vrot.slane %v1593, 1
        %v1595 = vmax.f32 %v1593, %v1594
        %v1598 = vrot.slane %v1595, 7
        %vm1599 = vcmask 1040384
        %v1600 = vsel %vm1599, %v1588, %v1598
        %v1602 = vmax.f32 %v1581, %v1600
        %v1603 = vlaneseq
        %vm1604 = vcmp.ge.s32.totalorder %v1603, 0
        %vm1605 = vcmp.lt.s32.totalorder %v1603, 256
        %vm1606 = vmand %vm1604, %vm1605
        %1607 = vst.msk [vmem:[%s666] sm:$0x3] %vm1606, %v1602
        %v1608 = vld [vmem:[%s670] sm:$0x3]
        %v1609 = vadd.f32 %v1482, %v1484
        %v1610 = vrot.slane %v1609, 4
        %v1611 = vadd.f32 %v1609, %v1610
        %v1612 = vrot.slane %v1611, 2
        %v1613 = vadd.f32 %v1611, %v1612
        %v1614 = vrot.slane %v1613, 1
        %v1615 = vadd.f32 %v1613, %v1614
        %v1616 = vadd.f32 %v1483, %v1485
        %v1617 = vrot.slane %v1616, 4
        %v1618 = vadd.f32 %v1616, %v1617
        %v1619 = vrot.slane %v1618, 2
        %v1620 = vadd.f32 %v1618, %v1619
        %v1621 = vrot.slane %v1620, 1
        %v1622 = vadd.f32 %v1620, %v1621
        %v1625 = vrot.slane %v1622, 7
        %v1626 = vsel %vm1599, %v1615, %v1625
        %v1628 = vadd.f32 %v1608, %v1626
        %1629 = vst.msk [vmem:[%s670] sm:$0x3] %vm1606, %v1628
        %v1630 = vld [vmem:[%s673] sm:$0x1]
        %vm1631 = vcmask 326656
        %v1632 = vsel %vm1631, %v1563, -inf
        %v1633 = vsel %vm1631, %v1566, -inf
        %v1634 = vmax.f32 %v1632, %v1633
        %v1635 = vrot.slane %v1634, 4
        %v1636 = vmax.f32 %v1634, %v1635
        %v1637 = vrot.slane %v1636, 2
        %v1638 = vmax.f32 %v1636, %v1637
        %v1639 = vrot.slane %v1638, 1
        %v1640 = vmax.f32 %v1638, %v1639
        %v1641 = vmax.f32 %v1630, %v1640
        %vm1642 = vcmask 319488
        %1643 = vst.msk [vmem:[%s673] sm:$0x1] %vm1642, %v1641
        %v1644 = vld [vmem:[%s676] sm:$0x1]
        %v1645 = vsel %vm1631, %v1563, 0.0
        %v1646 = vsel %vm1631, %v1566, 0.0
        %v1647 = vadd.f32 %v1645, %v1646
        %v1648 = vrot.slane %v1647, 4
        %v1649 = vadd.f32 %v1647, %v1648
        %v1650 = vrot.slane %v1649, 2
        %v1651 = vadd.f32 %v1649, %v1650
        %v1652 = vrot.slane %v1651, 1
        %v1653 = vadd.f32 %v1651, %v1652
        %v1654 = vadd.f32 %v1644, %v1653
        %1655 = vst.msk [vmem:[%s676] sm:$0x1] %vm1642, %v1654
        %s1656 = sand.u32 %s331, 1
        %s1657 = scalar_lea.sflag [#allocation3], %s1656
        %s1658 = sand.u32 %s331, 1
        %s1659 = smul.addr %s1658, 32
        %s1660 = scalar_lea.vmem [#allocation2], %s1659
        %p1661 = scmp.lt.s32.totalorder %s35, 1
        %s1662 = scalar_select %p1661, %s35, 1
        %s1663 = smul.addr %s1662, 2
        %s1664 = scalar_lea.vmem %s13, %s1663
        %p1665 = scmp.lt.s32.totalorder %s35, 1
        %s1666 = scalar_select %p1665, %s35, 1
        %s1667 = smul.addr %s1666, 2
        %s1668 = scalar_lea.vmem %s14, %s1667
        %p1669 = scmp.lt.s32.totalorder %s35, 1
        %s1670 = scalar_select %p1669, %s35, 1
        %s1671 = scalar_lea.vmem %s15, %s1670
        %p1672 = scmp.lt.s32.totalorder %s35, 1
        %s1673 = scalar_select %p1672, %s35, 1
        %s1674 = scalar_lea.vmem %s16, %s1673
        // Predicated region
        $region73: #{dgcnn_seg_forward.16} parent=67 // pred_check
          %p1675 = pneg %p341
        $region74: #{dgcnn_seg_forward.16} parent=67 // pred_check_branch
          %1677 = sbr.rel (%p1675) target = $region76
        $region75: #{dgcnn_seg_forward.16} parent=67 // pred_region
          %s1678 = smul.u32 2, %s36
          %1680 = vsyncadd %s1657, 0
          %s1681 = smul.addr %s1678, 2
          %s1682 = smul.addr %s35, 4
          %s1683 = sadd.s32 %s1681, %s1682
          %s1684 = smul.addr %s1683, 8
          %s1685 = scalar_lea.hbm %s12, %s1684
          %s1686 = sshll.u32 %s1660, 4
          %s1687 = int_to_ptr.vmem [resolvable:$true] %s1686
          %s1688 = sshll.u32 %s1685, 4
          %s1689 = int_to_ptr.hbm [resolvable:$true] %s1688
          %1694 = dma.vmem_to_hbm [thread:$0]  %s1687, 512, %s1689, %s1657, 256, 256, 16
        $region76: #{dgcnn_seg_forward.16} parent=67 // pred_fallthru
          _
        // Predicated region
        $region77: #{dgcnn_seg_forward.16} parent=67 // pred_check
          %p1695 = pneg %p367
        $region78: #{dgcnn_seg_forward.16} parent=67 // pred_check_branch
          %1697 = sbr.rel (%p1695) target = $region80
        $region79: #{dgcnn_seg_forward.16} parent=67 // pred_region
          _
        $region80: #{dgcnn_seg_forward.16} parent=67 // pred_fallthru
          _
        // Predicated region
        $region81: #{dgcnn_seg_forward.16} parent=67 // pred_check
          %p1698 = pneg %p393
        $region82: #{dgcnn_seg_forward.16} parent=67 // pred_check_branch
          %1700 = sbr.rel (%p1698) target = $region84
        $region83: #{dgcnn_seg_forward.16} parent=67 // pred_region
          _
        $region84: #{dgcnn_seg_forward.16} parent=67 // pred_fallthru
          _
        // Predicated region
        $region85: #{dgcnn_seg_forward.16} parent=67 // pred_check
          %p1701 = pneg %p419
        $region86: #{dgcnn_seg_forward.16} parent=67 // pred_check_branch
          %1703 = sbr.rel (%p1701) target = $region88
        $region87: #{dgcnn_seg_forward.16} parent=67 // pred_region
          _
        $region88: #{dgcnn_seg_forward.16} parent=67 // pred_fallthru
          _
        // Predicated region
        $region89: #{dgcnn_seg_forward.16} parent=67 // pred_check
          %p1704 = pneg %p445
        $region90: #{dgcnn_seg_forward.16} parent=67 // pred_check_branch
          %1706 = sbr.rel (%p1704) target = $region92
        $region91: #{dgcnn_seg_forward.16} parent=67 // pred_region
          _
        $region92: #{dgcnn_seg_forward.16} parent=67 // pred_fallthru
          _
      $region68: #{dgcnn_seg_forward.16} parent=5 // pred_fallthru
        _
      %p1707 = scmp.le.s32.totalorder 2, %s26
      // Predicated region
      $region93: #{dgcnn_seg_forward.16} parent=5 // pred_check
        %p1708 = pneg %p1707
      $region94: #{dgcnn_seg_forward.16} parent=5 // pred_check_branch
        %1710 = sbr.rel (%p1708) target = $region96
      $region95: #{dgcnn_seg_forward.16} parent=5 // pred_region
        %s1711 = ssub.s32 %s26, 2
        // Predicated region
        $region97: #{dgcnn_seg_forward.16} parent=95 // pred_check
          %p1712 = pneg %p347
        $region98: #{dgcnn_seg_forward.16} parent=95 // pred_check_branch
          %1714 = sbr.rel (%p1712) target = $region100
        $region99: #{dgcnn_seg_forward.16} parent=95 // pred_region
          %s1715 = sand.u32 %s332, 1
          %s1716 = scalar_lea.sflag [#allocation3], %s1715
          %s1717 = sand.u32 %s332, 1
          %s1718 = smul.addr %s1717, 32
          %s1719 = scalar_lea.vmem [#allocation2], %s1718
          %1721 = dma.done %s1716, 512
        $region100: #{dgcnn_seg_forward.16} parent=95 // pred_fallthru
          _
        // Predicated region
        $region101: #{dgcnn_seg_forward.16} parent=95 // pred_check
          %p1722 = pneg %p373
        $region102: #{dgcnn_seg_forward.16} parent=95 // pred_check_branch
          %1724 = sbr.rel (%p1722) target = $region104
        $region103: #{dgcnn_seg_forward.16} parent=95 // pred_region
          %p1725 = scmp.lt.s32.totalorder %s37, 1
          %s1726 = scalar_select %p1725, %s37, 1
          %s1727 = smul.addr %s1726, 2
          %s1728 = scalar_lea.vmem %s13, %s1727
        $region104: #{dgcnn_seg_forward.16} parent=95 // pred_fallthru
          _
        // Predicated region
        $region105: #{dgcnn_seg_forward.16} parent=95 // pred_check
          %p1729 = pneg %p399
        $region106: #{dgcnn_seg_forward.16} parent=95 // pred_check_branch
          %1731 = sbr.rel (%p1729) target = $region108
        $region107: #{dgcnn_seg_forward.16} parent=95 // pred_region
          %p1732 = scmp.lt.s32.totalorder %s37, 1
          %s1733 = scalar_select %p1732, %s37, 1
          %s1734 = smul.addr %s1733, 2
          %s1735 = scalar_lea.vmem %s14, %s1734
        $region108: #{dgcnn_seg_forward.16} parent=95 // pred_fallthru
          _
        // Predicated region
        $region109: #{dgcnn_seg_forward.16} parent=95 // pred_check
          %p1736 = pneg %p425
        $region110: #{dgcnn_seg_forward.16} parent=95 // pred_check_branch
          %1738 = sbr.rel (%p1736) target = $region112
        $region111: #{dgcnn_seg_forward.16} parent=95 // pred_region
          %p1739 = scmp.lt.s32.totalorder %s37, 1
          %s1740 = scalar_select %p1739, %s37, 1
          %s1741 = scalar_lea.vmem %s15, %s1740
        $region112: #{dgcnn_seg_forward.16} parent=95 // pred_fallthru
          _
        // Predicated region
        $region113: #{dgcnn_seg_forward.16} parent=95 // pred_check
          %p1742 = pneg %p451
        $region114: #{dgcnn_seg_forward.16} parent=95 // pred_check_branch
          %1744 = sbr.rel (%p1742) target = $region116
        $region115: #{dgcnn_seg_forward.16} parent=95 // pred_region
          %p1745 = scmp.lt.s32.totalorder %s37, 1
          %s1746 = scalar_select %p1745, %s37, 1
          %s1747 = scalar_lea.vmem %s16, %s1746
        $region116: #{dgcnn_seg_forward.16} parent=95 // pred_fallthru
          _
      $region96: #{dgcnn_seg_forward.16} parent=5 // pred_fallthru
        _
    $region6: #{dgcnn_seg_forward.16} parent=1 // loop_footer
      %s30 = sadd.s32 1, %s26
    $region7: #{dgcnn_seg_forward.16} parent=1 // loop_footer_branch
      %25 = sbr.rel target = $region3
    $region8: #{dgcnn_seg_forward.16} parent=1 // loop_exit
      _
    %1748 = vsyncpa [#allocation3], 1
    %s1749 = scalar_lea.sflag [#allocation3], 1
    %1750 = vsyncpa %s1749, 1

</llo_original>
